<compile_context>
chip_gen: v7x
topology: tpu7x:2x2x1
jax: 0.10.0
libtpu: 0.0.40
codegen_flags: <defaults>
</compile_context>

<pallas_src>
import math

import jax
import jax.numpy as jnp
from jax.experimental import pallas as pl
from jax.experimental.pallas import tpu as pltpu

LANE = 128
VMEM_LIMIT = 32 * 1024 * 1024  # safe scoped-VMEM budget on v5e/v6e/v7x (64 MiB phys on v7x)

# Small VGG-style `features` cfg (the module takes it as a constructor arg);
# ends at 512 channels x 1x1 spatial so the flatten matches Linear(512, .).
CFG = [64, "M", 128, "M", 512, "M"]


def _round_up(x, m):
    return (x + m - 1) // m * m


def _cdiv(a, b):
    return (a + b - 1) // b


# --------------------------- in-kernel building blocks --------------------------- #

def _pool2x2_value(x):
    """2x2/stride-2 max-pool of an in-VMEM (NB, H, W, C) value (floor semantics)."""
    NB, H, W, C = x.shape
    Ho, Wo = H // 2, W // 2
    y = x[:, :2 * Ho, :2 * Wo, :]
    y = jnp.max(y.reshape(NB * 2 * Ho * Wo, 2, C), axis=1)       # pool along W
    y = jnp.max(y.reshape(NB * Ho, 2, Wo, C), axis=1)            # pool along H
    return y.reshape(NB, Ho, Wo, C)


def _conv3x3_block(x, w_ref, b_ref, pad_ref, *, pool):
    """3x3 conv (pad=1) + bias + ReLU (+ fused 2x2 max-pool) on an NB-image block.

    x:       (NB, H, W, Cin)   bf16 value (in VMEM)
    w_ref:   (9, Cin, Cout)    bf16 ref   (tap-major weights)
    b_ref:   (1, Cout)         f32 ref
    pad_ref: (NB, H+2, W+2, Cin) bf16 VMEM scratch for the spatially padded block
    """
    NB, H, W, Cin = x.shape
    Cout = w_ref.shape[-1]
    # Pad inside the kernel: zero the scratch and write the interior.
    pad_ref[...] = jnp.zeros(pad_ref.shape, pad_ref.dtype)
    pad_ref[:, 1:H + 1, 1:W + 1, :] = x
    # Nine shifted MXU matmuls with M = NB*H*W, accumulated in f32.
    # TODO(synk): the first conv keeps K = Cin = 4 (im2col tap-folding skipped
    # for lowering robustness); it is a negligible fraction of total FLOPs.
    acc = jnp.zeros((NB * H * W, Cout), jnp.float32)
    for di in range(3):
        for dj in range(3):
            patch = pad_ref[:, di:di + H, dj:dj + W, :].reshape(NB * H * W, Cin)
            acc = acc + jnp.dot(patch, w_ref[3 * di + dj],
                                preferred_element_type=jnp.float32)
    acc = jnp.maximum(acc + b_ref[...], 0.0)                      # f32 epilogue
    if pool:
        Ho, Wo = H // 2, W // 2
        y = jnp.max(acc.reshape(NB * H * Wo, 2, Cout), axis=1)    # pool along W
        y = jnp.max(y.reshape(NB * Ho, 2, Wo, Cout), axis=1)      # pool along H
        return y.reshape(NB, Ho, Wo, Cout).astype(jnp.bfloat16)
    return acc.reshape(NB, H, W, Cout).astype(jnp.bfloat16)


# ------------------------- parameters (offline re-layout) ------------------------- #

def init_params(key, in_ch, cfg=CFG):
    """Raw parameters in PyTorch-style layout / f32 (used by the reference)."""
    params = {"convs": [], "fcs": []}
    c = in_ch
    for v in cfg:
        if v == "M":
            continue
        key, k1 = jax.random.split(key)
        n = 3 * 3 * v                           # matches PyTorch init in __init__
        w = jax.random.normal(k1, (v, c, 3, 3), jnp.float32) * math.sqrt(2.0 / n)
        b = jnp.zeros((v,), jnp.float32)
        params["convs"].append((w, b))
        c = v
    for fin, fout in [(512, 512), (512, 512), (512, 10)]:
        key, k1, k2 = jax.random.split(key, 3)
        bound = 1.0 / math.sqrt(fin)            # nn.Linear default-style init
        w = jax.random.uniform(k1, (fin, fout), jnp.float32, -bound, bound)
        b = jax.random.uniform(k2, (fout,), jnp.float32, -bound, bound)
        params["fcs"].append((w, b))
    return params


def prepare_params(params):
    """One-time re-layout: tap-major bf16 conv weights; bf16 FC weights with the
    final layer zero-padded to 128 output columns (lane-dense store)."""
    convs = []
    for (w, b) in params["convs"]:
        cout, cin, kh, kw = w.shape
        wt = jnp.transpose(w, (2, 3, 1, 0)).reshape(kh * kw, cin, cout)
        convs.append((wt.astype(jnp.bfloat16),
                      b.reshape(1, cout).astype(jnp.float32)))
    fcs = []
    n_fc = len(params["fcs"])
    for idx, (w, b) in enumerate(params["fcs"]):
        fin, fout = w.shape
        fout_pad = _round_up(fout, LANE) if idx == n_fc - 1 else fout
        wp = jnp.pad(w, ((0, 0), (0, fout_pad - fout)))
        bp = jnp.pad(b, (0, fout_pad - fout)).reshape(1, fout_pad)
        fcs.append((wp.astype(jnp.bfloat16), bp.astype(jnp.float32)))
    return {"convs": convs, "fcs": fcs}


# --------------------------------- forward pass --------------------------------- #

def vgg_server_forward(prepped, x_nchw, cfg=CFG, n_classes=10):
    x = jnp.transpose(x_nchw, (0, 2, 3, 1)).astype(jnp.bfloat16)  # NCHW -> NHWC
    N, H0, W0, Cin = x.shape

    # Batch tile: fill >=256 MXU rows on the first conv; 8-row aligned when tiled.
    nb_target = max(1, _cdiv(256, H0 * W0))
    if N <= nb_target:
        NB = N
    else:
        NB = _round_up(nb_target, 8)
    N_pad = _round_up(N, NB)
    if N_pad != N:
        x = jnp.pad(x, ((0, N_pad - N), (0, 0), (0, 0), (0, 0)))

    convs = prepped["convs"]
    fcs = prepped["fcs"]
    OUTC = fcs[-1][0].shape[1]

    # Static plan over the cfg: conv layers (with fused pool flag) + standalone
    # pools, plus the per-layer padded-activation scratch shapes and a FLOP count.
    layer_plan = []
    scratch_shapes = []
    flops = 0
    h, w, c = H0, W0, Cin
    ci, i = 0, 0
    while i < len(cfg):
        v = cfg[i]
        if v == "M":
            layer_plan.append(("pool", None))
            h, w = h // 2, w // 2
            i += 1
        else:
            fuse_pool = (i + 1 < len(cfg) and cfg[i + 1] == "M"
                         and h % 2 == 0 and w % 2 == 0)
            layer_plan.append(("conv", (ci, len(scratch_shapes), fuse_pool)))
            scratch_shapes.append(pltpu.VMEM((NB, h + 2, w + 2, c), jnp.bfloat16))
            flops += 2 * N_pad * h * w * 9 * c * v
            c = v
            ci += 1
            if fuse_pool:
                h, w = h // 2, w // 2
                i += 2
            else:
                i += 1
    n_convs = ci
    feat_dim = c * h * w
    assert feat_dim == fcs[0][0].shape[0], (feat_dim, fcs[0][0].shape)
    for (wt, _) in fcs:
        flops += 2 * N_pad * wt.shape[0] * wt.shape[1]
    n_params = 2 * n_convs + 2 * len(fcs)

    def kernel(*refs):
        x_ref = refs[0]
        p_refs = refs[1:1 + n_params]
        o_ref = refs[1 + n_params]
        pad_refs = refs[2 + n_params:]

        xv = x_ref[...]                                  # (NB, H0, W0, Cin) bf16
        for kind, info in layer_plan:
            if kind == "pool":
                xv = _pool2x2_value(xv)
            else:
                li, si, fuse_pool = info
                xv = _conv3x3_block(xv, p_refs[2 * li], p_refs[2 * li + 1],
                                    pad_refs[si], pool=fuse_pool)

        NBx, Hx, Wx, Cx = xv.shape
        if Hx == 1 and Wx == 1:
            feat = xv.reshape(NBx, Cx)                   # matches PyTorch view(N, -1)
        else:
            feat = jnp.transpose(xv, (0, 3, 1, 2)).reshape(NBx, Cx * Hx * Wx)

        fb = 2 * n_convs
        fw1, fb1 = p_refs[fb][...], p_refs[fb + 1][...]
        fw2, fb2 = p_refs[fb + 2][...], p_refs[fb + 3][...]
        fw3, fb3 = p_refs[fb + 4][...], p_refs[fb + 5][...]
        # TODO(synk): nn.Dropout layers are identity here (eval-mode semantics).
        h1 = jnp.maximum(jnp.dot(feat, fw1,
                                 preferred_element_type=jnp.float32) + fb1, 0.0)
        h2 = jnp.maximum(jnp.dot(h1.astype(fw2.dtype), fw2,
                                 preferred_element_type=jnp.float32) + fb2, 0.0)
        out = jnp.dot(h2.astype(fw3.dtype), fw3,
                      preferred_element_type=jnp.float32) + fb3
        o_ref[...] = out.astype(o_ref.dtype)

    # BlockSpecs: activation block tiles the batch; all weights are whole-array
    # blocks with constant index maps (loaded once, VMEM-resident across steps).
    in_specs = [pl.BlockSpec((NB, H0, W0, Cin), lambda n: (n, 0, 0, 0))]
    params_flat = []
    for (wt, bt) in convs:
        in_specs.append(pl.BlockSpec(wt.shape, lambda n: (0, 0, 0)))
        in_specs.append(pl.BlockSpec(bt.shape, lambda n: (0, 0)))
        params_flat += [wt, bt]
    for (wt, bt) in fcs:
        in_specs.append(pl.BlockSpec(wt.shape, lambda n: (0, 0)))
        in_specs.append(pl.BlockSpec(bt.shape, lambda n: (0, 0)))
        params_flat += [wt, bt]

    param_bytes = sum(int(p.size) * p.dtype.itemsize for p in params_flat)
    bytes_accessed = int(x.size) * 2 + param_bytes + int(N_pad * OUTC) * 4

    out = pl.pallas_call(
        kernel,
        out_shape=jax.ShapeDtypeStruct((N_pad, OUTC), jnp.float32),
        grid_spec=pltpu.PrefetchScalarGridSpec(
            num_scalar_prefetch=0,
            grid=(N_pad // NB,),
            in_specs=in_specs,
            out_specs=pl.BlockSpec((NB, OUTC), lambda n: (n, 0)),
            scratch_shapes=scratch_shapes,
        ),
        compiler_params=pltpu.CompilerParams(
            dimension_semantics=("parallel",),
            vmem_limit_bytes=VMEM_LIMIT),
        cost_estimate=pl.CostEstimate(flops=int(flops), transcendentals=0,
                                      bytes_accessed=int(bytes_accessed)),
    )(x, *params_flat)
    return out[:N, :n_classes]


# --------------------------------- f32 reference --------------------------------- #

def reference_forward(params, x_nchw, cfg=CFG):
    """Pure-JAX f32 reference for correctness checking."""
    x = jnp.transpose(x_nchw, (0, 2, 3, 1))
    ci = 0
    for v in cfg:
        if v == "M":
            x = jax.lax.reduce_window(x, -jnp.inf, jax.lax.max,
                                      (1, 2, 2, 1), (1, 2, 2, 1), "VALID")
        else:
            w, b = params["convs"][ci]
            wh = jnp.transpose(w, (2, 3, 1, 0))
            x = jax.lax.conv_general_dilated(
                x, wh, (1, 1), "SAME",
                dimension_numbers=("NHWC", "HWIO", "NHWC")) + b
            x = jnp.maximum(x, 0.0)
            ci += 1
    h = x.reshape(x.shape[0], -1)
    (w1, b1), (w2, b2), (w3, b3) = params["fcs"]
    h = jnp.maximum(h @ w1 + b1, 0.0)
    h = jnp.maximum(h @ w2 + b2, 0.0)
    return h @ w3 + b3


if __name__ == "__main__":
    key = jax.random.PRNGKey(0)
    kp, kx = jax.random.split(key)
    raw = init_params(kp, in_ch=4)
    prepped = prepare_params(raw)
    x = jax.random.normal(kx, (2, 4, 8, 8), jnp.float32)   # NCHW, like PyTorch
    fwd = jax.jit(vgg_server_forward)
    out = jax.block_until_ready(fwd(prepped, x))
    ref = reference_forward(raw, x)
    assert out.shape == (2, 10), out.shape
    err = float(jnp.max(jnp.abs(out - ref)))
    # bf16 MXU operands with f32 accumulation -> loosened tolerance vs f32 ref.
    assert jnp.allclose(out, ref, rtol=2e-2, atol=2e-2), err
    print("KERNEL_OK")
</pallas_src>

<mosaic_0001>
module attributes {stable_mosaic.version = 11 : i64} {
  func.func @kernel(%arg0: i32, %arg1: memref<2x8x8x4xbf16, #tpu.memory_space<vmem>>, %arg2: memref<9x4x64xbf16, #tpu.memory_space<vmem>>, %arg3: memref<1x64xf32, #tpu.memory_space<vmem>>, %arg4: memref<9x64x128xbf16, #tpu.memory_space<vmem>>, %arg5: memref<1x128xf32, #tpu.memory_space<vmem>>, %arg6: memref<9x128x512xbf16, #tpu.memory_space<vmem>>, %arg7: memref<1x512xf32, #tpu.memory_space<vmem>>, %arg8: memref<512x512xbf16, #tpu.memory_space<vmem>>, %arg9: memref<1x512xf32, #tpu.memory_space<vmem>>, %arg10: memref<512x512xbf16, #tpu.memory_space<vmem>>, %arg11: memref<1x512xf32, #tpu.memory_space<vmem>>, %arg12: memref<512x128xbf16, #tpu.memory_space<vmem>>, %arg13: memref<1x128xf32, #tpu.memory_space<vmem>>, %arg14: memref<2x128xf32, #tpu.memory_space<vmem>>, %arg15: memref<2x10x10x4xbf16, #tpu.memory_space<vmem>>, %arg16: memref<2x6x6x64xbf16, #tpu.memory_space<vmem>>, %arg17: memref<2x4x4x128xbf16, #tpu.memory_space<vmem>>) attributes {dimension_semantics = [#tpu.dimension_semantics<parallel>], iteration_bounds = array<i64: 1>, scalar_prefetch = 0 : i64, scratch_operands = 3 : i64, tpu.core_type = #tpu.core_type<tc>, window_params = [{transform_indices = @transform_0, window_bounds = array<i64: 2, 8, 8, 4>}, {pipeline_mode = #tpu.pipeline_mode<synchronous>, transform_indices = @transform_1, window_bounds = array<i64: 9, 4, 64>}, {pipeline_mode = #tpu.pipeline_mode<synchronous>, transform_indices = @transform_2, window_bounds = array<i64: 1, 64>}, {pipeline_mode = #tpu.pipeline_mode<synchronous>, transform_indices = @transform_3, window_bounds = array<i64: 9, 64, 128>}, {pipeline_mode = #tpu.pipeline_mode<synchronous>, transform_indices = @transform_4, window_bounds = array<i64: 1, 128>}, {pipeline_mode = #tpu.pipeline_mode<synchronous>, transform_indices = @transform_5, window_bounds = array<i64: 9, 128, 512>}, {pipeline_mode = #tpu.pipeline_mode<synchronous>, transform_indices = @transform_6, window_bounds = array<i64: 1, 512>}, {pipeline_mode = #tpu.pipeline_mode<synchronous>, transform_indices = @transform_7, window_bounds = array<i64: 512, 512>}, {pipeline_mode = #tpu.pipeline_mode<synchronous>, transform_indices = @transform_8, window_bounds = array<i64: 1, 512>}, {pipeline_mode = #tpu.pipeline_mode<synchronous>, transform_indices = @transform_9, window_bounds = array<i64: 512, 512>}, {pipeline_mode = #tpu.pipeline_mode<synchronous>, transform_indices = @transform_10, window_bounds = array<i64: 1, 512>}, {pipeline_mode = #tpu.pipeline_mode<synchronous>, transform_indices = @transform_11, window_bounds = array<i64: 512, 128>}, {pipeline_mode = #tpu.pipeline_mode<synchronous>, transform_indices = @transform_12, window_bounds = array<i64: 1, 128>}, {transform_indices = @transform_13, window_bounds = array<i64: 2, 128>}]} {
    %c0 = arith.constant 0 : index
    %c0_0 = arith.constant 0 : index
    %c0_1 = arith.constant 0 : index
    %c0_2 = arith.constant 0 : index
    %0 = vector.load %arg1[%c0, %c0_0, %c0_1, %c0_2] : memref<2x8x8x4xbf16, #tpu.memory_space<vmem>>, vector<2x8x8x4xbf16>
    %cst = arith.constant 0.000000e+00 : bf16
    %1 = vector.broadcast %cst : bf16 to vector<2x10x10x4xbf16>
    %c0_3 = arith.constant 0 : index
    %c0_4 = arith.constant 0 : index
    %c0_5 = arith.constant 0 : index
    %c0_6 = arith.constant 0 : index
    %2 = vector.load %arg15[%c0_3, %c0_4, %c0_5, %c0_6] : memref<2x10x10x4xbf16, #tpu.memory_space<vmem>>, vector<2x10x10x4xbf16>
    tpu.vector_store %arg15[%c0_3, %c0_4, %c0_5, %c0_6], %1 {strides = array<i32>} : memref<2x10x10x4xbf16, #tpu.memory_space<vmem>>, vector<2x10x10x4xbf16>,
    %c0_7 = arith.constant 0 : index
    %c1 = arith.constant 1 : index
    %c1_8 = arith.constant 1 : index
    %c0_9 = arith.constant 0 : index
    %3 = vector.load %arg15[%c0_7, %c1, %c1_8, %c0_9] : memref<2x10x10x4xbf16, #tpu.memory_space<vmem>>, vector<2x8x8x4xbf16>
    tpu.vector_store %arg15[%c0_7, %c1, %c1_8, %c0_9], %0 {strides = array<i32>} : memref<2x10x10x4xbf16, #tpu.memory_space<vmem>>, vector<2x8x8x4xbf16>,
    %cst_10 = arith.constant 0.000000e+00 : f32
    %4 = vector.broadcast %cst_10 : f32 to vector<128x64xf32>
    %c0_11 = arith.constant 0 : index
    %c0_12 = arith.constant 0 : index
    %c0_13 = arith.constant 0 : index
    %c0_14 = arith.constant 0 : index
    %5 = vector.load %arg15[%c0_11, %c0_12, %c0_13, %c0_14] : memref<2x10x10x4xbf16, #tpu.memory_space<vmem>>, vector<2x8x8x4xbf16>
    %6 = vector.shape_cast %5 : vector<2x8x8x4xbf16> to vector<128x4xbf16>
    %c0_15 = arith.constant 0 : index
    %c0_16 = arith.constant 0 : index
    %c0_17 = arith.constant 0 : index
    %7 = vector.load %arg2[%c0_15, %c0_16, %c0_17] : memref<9x4x64xbf16, #tpu.memory_space<vmem>>, vector<1x4x64xbf16>
    %8 = vector.shape_cast %7 : vector<1x4x64xbf16> to vector<4x64xbf16>
    %cst_18 = arith.constant dense<0.000000e+00> : vector<128x64xf32>
    %9 = tpu.matmul %6, %8, %cst_18 {dimension_numbers = #tpu.dot_dimension_numbers<[1], [0], [0], [1], [0, 0, 1, 1], [], []>} : vector<128x4xbf16>, vector<4x64xbf16>, vector<128x64xf32> -> vector<128x64xf32>
    %10 = arith.addf %4, %9 : vector<128x64xf32>
    %c0_19 = arith.constant 0 : index
    %c0_20 = arith.constant 0 : index
    %c1_21 = arith.constant 1 : index
    %c0_22 = arith.constant 0 : index
    %11 = vector.load %arg15[%c0_19, %c0_20, %c1_21, %c0_22] : memref<2x10x10x4xbf16, #tpu.memory_space<vmem>>, vector<2x8x8x4xbf16>
    %12 = vector.shape_cast %11 : vector<2x8x8x4xbf16> to vector<128x4xbf16>
    %c1_23 = arith.constant 1 : index
    %c0_24 = arith.constant 0 : index
    %c0_25 = arith.constant 0 : index
    %13 = vector.load %arg2[%c1_23, %c0_24, %c0_25] : memref<9x4x64xbf16, #tpu.memory_space<vmem>>, vector<1x4x64xbf16>
    %14 = vector.shape_cast %13 : vector<1x4x64xbf16> to vector<4x64xbf16>
    %cst_26 = arith.constant dense<0.000000e+00> : vector<128x64xf32>
    %15 = tpu.matmul %12, %14, %cst_26 {dimension_numbers = #tpu.dot_dimension_numbers<[1], [0], [0], [1], [0, 0, 1, 1], [], []>} : vector<128x4xbf16>, vector<4x64xbf16>, vector<128x64xf32> -> vector<128x64xf32>
    %16 = arith.addf %10, %15 : vector<128x64xf32>
    %c0_27 = arith.constant 0 : index
    %c0_28 = arith.constant 0 : index
    %c2 = arith.constant 2 : index
    %c0_29 = arith.constant 0 : index
    %17 = vector.load %arg15[%c0_27, %c0_28, %c2, %c0_29] : memref<2x10x10x4xbf16, #tpu.memory_space<vmem>>, vector<2x8x8x4xbf16>
    %18 = vector.shape_cast %17 : vector<2x8x8x4xbf16> to vector<128x4xbf16>
    %c2_30 = arith.constant 2 : index
    %c0_31 = arith.constant 0 : index
    %c0_32 = arith.constant 0 : index
    %19 = vector.load %arg2[%c2_30, %c0_31, %c0_32] : memref<9x4x64xbf16, #tpu.memory_space<vmem>>, vector<1x4x64xbf16>
    %20 = vector.shape_cast %19 : vector<1x4x64xbf16> to vector<4x64xbf16>
    %cst_33 = arith.constant dense<0.000000e+00> : vector<128x64xf32>
    %21 = tpu.matmul %18, %20, %cst_33 {dimension_numbers = #tpu.dot_dimension_numbers<[1], [0], [0], [1], [0, 0, 1, 1], [], []>} : vector<128x4xbf16>, vector<4x64xbf16>, vector<128x64xf32> -> vector<128x64xf32>
    %22 = arith.addf %16, %21 : vector<128x64xf32>
    %c0_34 = arith.constant 0 : index
    %c1_35 = arith.constant 1 : index
    %c0_36 = arith.constant 0 : index
    %c0_37 = arith.constant 0 : index
    %23 = vector.load %arg15[%c0_34, %c1_35, %c0_36, %c0_37] : memref<2x10x10x4xbf16, #tpu.memory_space<vmem>>, vector<2x8x8x4xbf16>
    %24 = vector.shape_cast %23 : vector<2x8x8x4xbf16> to vector<128x4xbf16>
    %c3 = arith.constant 3 : index
    %c0_38 = arith.constant 0 : index
    %c0_39 = arith.constant 0 : index
    %25 = vector.load %arg2[%c3, %c0_38, %c0_39] : memref<9x4x64xbf16, #tpu.memory_space<vmem>>, vector<1x4x64xbf16>
    %26 = vector.shape_cast %25 : vector<1x4x64xbf16> to vector<4x64xbf16>
    %cst_40 = arith.constant dense<0.000000e+00> : vector<128x64xf32>
    %27 = tpu.matmul %24, %26, %cst_40 {dimension_numbers = #tpu.dot_dimension_numbers<[1], [0], [0], [1], [0, 0, 1, 1], [], []>} : vector<128x4xbf16>, vector<4x64xbf16>, vector<128x64xf32> -> vector<128x64xf32>
    %28 = arith.addf %22, %27 : vector<128x64xf32>
    %c0_41 = arith.constant 0 : index
    %c1_42 = arith.constant 1 : index
    %c1_43 = arith.constant 1 : index
    %c0_44 = arith.constant 0 : index
    %29 = vector.load %arg15[%c0_41, %c1_42, %c1_43, %c0_44] : memref<2x10x10x4xbf16, #tpu.memory_space<vmem>>, vector<2x8x8x4xbf16>
    %30 = vector.shape_cast %29 : vector<2x8x8x4xbf16> to vector<128x4xbf16>
    %c4 = arith.constant 4 : index
    %c0_45 = arith.constant 0 : index
    %c0_46 = arith.constant 0 : index
    %31 = vector.load %arg2[%c4, %c0_45, %c0_46] : memref<9x4x64xbf16, #tpu.memory_space<vmem>>, vector<1x4x64xbf16>
    %32 = vector.shape_cast %31 : vector<1x4x64xbf16> to vector<4x64xbf16>
    %cst_47 = arith.constant dense<0.000000e+00> : vector<128x64xf32>
    %33 = tpu.matmul %30, %32, %cst_47 {dimension_numbers = #tpu.dot_dimension_numbers<[1], [0], [0], [1], [0, 0, 1, 1], [], []>} : vector<128x4xbf16>, vector<4x64xbf16>, vector<128x64xf32> -> vector<128x64xf32>
    %34 = arith.addf %28, %33 : vector<128x64xf32>
    %c0_48 = arith.constant 0 : index
    %c1_49 = arith.constant 1 : index
    %c2_50 = arith.constant 2 : index
    %c0_51 = arith.constant 0 : index
    %35 = vector.load %arg15[%c0_48, %c1_49, %c2_50, %c0_51] : memref<2x10x10x4xbf16, #tpu.memory_space<vmem>>, vector<2x8x8x4xbf16>
    %36 = vector.shape_cast %35 : vector<2x8x8x4xbf16> to vector<128x4xbf16>
    %c5 = arith.constant 5 : index
    %c0_52 = arith.constant 0 : index
    %c0_53 = arith.constant 0 : index
    %37 = vector.load %arg2[%c5, %c0_52, %c0_53] : memref<9x4x64xbf16, #tpu.memory_space<vmem>>, vector<1x4x64xbf16>
    %38 = vector.shape_cast %37 : vector<1x4x64xbf16> to vector<4x64xbf16>
    %cst_54 = arith.constant dense<0.000000e+00> : vector<128x64xf32>
    %39 = tpu.matmul %36, %38, %cst_54 {dimension_numbers = #tpu.dot_dimension_numbers<[1], [0], [0], [1], [0, 0, 1, 1], [], []>} : vector<128x4xbf16>, vector<4x64xbf16>, vector<128x64xf32> -> vector<128x64xf32>
    %40 = arith.addf %34, %39 : vector<128x64xf32>
    %c0_55 = arith.constant 0 : index
    %c2_56 = arith.constant 2 : index
    %c0_57 = arith.constant 0 : index
    %c0_58 = arith.constant 0 : index
    %41 = vector.load %arg15[%c0_55, %c2_56, %c0_57, %c0_58] : memref<2x10x10x4xbf16, #tpu.memory_space<vmem>>, vector<2x8x8x4xbf16>
    %42 = vector.shape_cast %41 : vector<2x8x8x4xbf16> to vector<128x4xbf16>
    %c6 = arith.constant 6 : index
    %c0_59 = arith.constant 0 : index
    %c0_60 = arith.constant 0 : index
    %43 = vector.load %arg2[%c6, %c0_59, %c0_60] : memref<9x4x64xbf16, #tpu.memory_space<vmem>>, vector<1x4x64xbf16>
    %44 = vector.shape_cast %43 : vector<1x4x64xbf16> to vector<4x64xbf16>
    %cst_61 = arith.constant dense<0.000000e+00> : vector<128x64xf32>
    %45 = tpu.matmul %42, %44, %cst_61 {dimension_numbers = #tpu.dot_dimension_numbers<[1], [0], [0], [1], [0, 0, 1, 1], [], []>} : vector<128x4xbf16>, vector<4x64xbf16>, vector<128x64xf32> -> vector<128x64xf32>
    %46 = arith.addf %40, %45 : vector<128x64xf32>
    %c0_62 = arith.constant 0 : index
    %c2_63 = arith.constant 2 : index
    %c1_64 = arith.constant 1 : index
    %c0_65 = arith.constant 0 : index
    %47 = vector.load %arg15[%c0_62, %c2_63, %c1_64, %c0_65] : memref<2x10x10x4xbf16, #tpu.memory_space<vmem>>, vector<2x8x8x4xbf16>
    %48 = vector.shape_cast %47 : vector<2x8x8x4xbf16> to vector<128x4xbf16>
    %c7 = arith.constant 7 : index
    %c0_66 = arith.constant 0 : index
    %c0_67 = arith.constant 0 : index
    %49 = vector.load %arg2[%c7, %c0_66, %c0_67] : memref<9x4x64xbf16, #tpu.memory_space<vmem>>, vector<1x4x64xbf16>
    %50 = vector.shape_cast %49 : vector<1x4x64xbf16> to vector<4x64xbf16>
    %cst_68 = arith.constant dense<0.000000e+00> : vector<128x64xf32>
    %51 = tpu.matmul %48, %50, %cst_68 {dimension_numbers = #tpu.dot_dimension_numbers<[1], [0], [0], [1], [0, 0, 1, 1], [], []>} : vector<128x4xbf16>, vector<4x64xbf16>, vector<128x64xf32> -> vector<128x64xf32>
    %52 = arith.addf %46, %51 : vector<128x64xf32>
    %c0_69 = arith.constant 0 : index
    %c2_70 = arith.constant 2 : index
    %c2_71 = arith.constant 2 : index
    %c0_72 = arith.constant 0 : index
    %53 = vector.load %arg15[%c0_69, %c2_70, %c2_71, %c0_72] : memref<2x10x10x4xbf16, #tpu.memory_space<vmem>>, vector<2x8x8x4xbf16>
    %54 = vector.shape_cast %53 : vector<2x8x8x4xbf16> to vector<128x4xbf16>
    %c8 = arith.constant 8 : index
    %c0_73 = arith.constant 0 : index
    %c0_74 = arith.constant 0 : index
    %55 = vector.load %arg2[%c8, %c0_73, %c0_74] : memref<9x4x64xbf16, #tpu.memory_space<vmem>>, vector<1x4x64xbf16>
    %56 = vector.shape_cast %55 : vector<1x4x64xbf16> to vector<4x64xbf16>
    %cst_75 = arith.constant dense<0.000000e+00> : vector<128x64xf32>
    %57 = tpu.matmul %54, %56, %cst_75 {dimension_numbers = #tpu.dot_dimension_numbers<[1], [0], [0], [1], [0, 0, 1, 1], [], []>} : vector<128x4xbf16>, vector<4x64xbf16>, vector<128x64xf32> -> vector<128x64xf32>
    %58 = arith.addf %52, %57 : vector<128x64xf32>
    %c0_76 = arith.constant 0 : index
    %c0_77 = arith.constant 0 : index
    %59 = vector.load %arg3[%c0_76, %c0_77] : memref<1x64xf32, #tpu.memory_space<vmem>>, vector<1x64xf32>
    %60 = vector.broadcast %59 : vector<1x64xf32> to vector<128x64xf32>
    %61 = arith.addf %58, %60 : vector<128x64xf32>
    %cst_78 = arith.constant 0.000000e+00 : f32
    %62 = vector.broadcast %cst_78 : f32 to vector<128x64xf32>
    %63 = arith.maximumf %61, %62 : vector<128x64xf32>
    %64 = vector.shape_cast %63 : vector<128x64xf32> to vector<64x2x64xf32>
    %cst_79 = arith.constant dense<0xFF800000> : vector<64x64xf32>
    %65 = vector.multi_reduction <maximumf>, %64, %cst_79 [1] : vector<64x2x64xf32> to vector<64x64xf32>
    %66 = vector.shape_cast %65 : vector<64x64xf32> to vector<8x2x4x64xf32>
    %cst_80 = arith.constant dense<0xFF800000> : vector<8x4x64xf32>
    %67 = vector.multi_reduction <maximumf>, %66, %cst_80 [1] : vector<8x2x4x64xf32> to vector<8x4x64xf32>
    %68 = vector.shape_cast %67 : vector<8x4x64xf32> to vector<2x4x4x64xf32>
    %69 = arith.truncf %68 : vector<2x4x4x64xf32> to vector<2x4x4x64xbf16>
    %cst_81 = arith.constant 0.000000e+00 : bf16
    %70 = vector.broadcast %cst_81 : bf16 to vector<2x6x6x64xbf16>
    %c0_82 = arith.constant 0 : index
    %c0_83 = arith.constant 0 : index
    %c0_84 = arith.constant 0 : index
    %c0_85 = arith.constant 0 : index
    %71 = vector.load %arg16[%c0_82, %c0_83, %c0_84, %c0_85] : memref<2x6x6x64xbf16, #tpu.memory_space<vmem>>, vector<2x6x6x64xbf16>
    tpu.vector_store %arg16[%c0_82, %c0_83, %c0_84, %c0_85], %70 {strides = array<i32>} : memref<2x6x6x64xbf16, #tpu.memory_space<vmem>>, vector<2x6x6x64xbf16>,
    %c0_86 = arith.constant 0 : index
    %c1_87 = arith.constant 1 : index
    %c1_88 = arith.constant 1 : index
    %c0_89 = arith.constant 0 : index
    %72 = vector.load %arg16[%c0_86, %c1_87, %c1_88, %c0_89] : memref<2x6x6x64xbf16, #tpu.memory_space<vmem>>, vector<2x4x4x64xbf16>
    tpu.vector_store %arg16[%c0_86, %c1_87, %c1_88, %c0_89], %69 {strides = array<i32>} : memref<2x6x6x64xbf16, #tpu.memory_space<vmem>>, vector<2x4x4x64xbf16>,
    %cst_90 = arith.constant 0.000000e+00 : f32
    %73 = vector.broadcast %cst_90 : f32 to vector<32x128xf32>
    %c0_91 = arith.constant 0 : index
    %c0_92 = arith.constant 0 : index
    %c0_93 = arith.constant 0 : index
    %c0_94 = arith.constant 0 : index
    %74 = vector.load %arg16[%c0_91, %c0_92, %c0_93, %c0_94] : memref<2x6x6x64xbf16, #tpu.memory_space<vmem>>, vector<2x4x4x64xbf16>
    %75 = vector.shape_cast %74 : vector<2x4x4x64xbf16> to vector<32x64xbf16>
    %c0_95 = arith.constant 0 : index
    %c0_96 = arith.constant 0 : index
    %c0_97 = arith.constant 0 : index
    %76 = vector.load %arg4[%c0_95, %c0_96, %c0_97] : memref<9x64x128xbf16, #tpu.memory_space<vmem>>, vector<1x64x128xbf16>
    %77 = vector.shape_cast %76 : vector<1x64x128xbf16> to vector<64x128xbf16>
    %cst_98 = arith.constant dense<0.000000e+00> : vector<32x128xf32>
    %78 = tpu.matmul %75, %77, %cst_98 {dimension_numbers = #tpu.dot_dimension_numbers<[1], [0], [0], [1], [0, 0, 1, 1], [], []>} : vector<32x64xbf16>, vector<64x128xbf16>, vector<32x128xf32> -> vector<32x128xf32>
    %79 = arith.addf %73, %78 : vector<32x128xf32>
    %c0_99 = arith.constant 0 : index
    %c0_100 = arith.constant 0 : index
    %c1_101 = arith.constant 1 : index
    %c0_102 = arith.constant 0 : index
    %80 = vector.load %arg16[%c0_99, %c0_100, %c1_101, %c0_102] : memref<2x6x6x64xbf16, #tpu.memory_space<vmem>>, vector<2x4x4x64xbf16>
    %81 = vector.shape_cast %80 : vector<2x4x4x64xbf16> to vector<32x64xbf16>
    %c1_103 = arith.constant 1 : index
    %c0_104 = arith.constant 0 : index
    %c0_105 = arith.constant 0 : index
    %82 = vector.load %arg4[%c1_103, %c0_104, %c0_105] : memref<9x64x128xbf16, #tpu.memory_space<vmem>>, vector<1x64x128xbf16>
    %83 = vector.shape_cast %82 : vector<1x64x128xbf16> to vector<64x128xbf16>
    %cst_106 = arith.constant dense<0.000000e+00> : vector<32x128xf32>
    %84 = tpu.matmul %81, %83, %cst_106 {dimension_numbers = #tpu.dot_dimension_numbers<[1], [0], [0], [1], [0, 0, 1, 1], [], []>} : vector<32x64xbf16>, vector<64x128xbf16>, vector<32x128xf32> -> vector<32x128xf32>
    %85 = arith.addf %79, %84 : vector<32x128xf32>
    %c0_107 = arith.constant 0 : index
    %c0_108 = arith.constant 0 : index
    %c2_109 = arith.constant 2 : index
    %c0_110 = arith.constant 0 : index
    %86 = vector.load %arg16[%c0_107, %c0_108, %c2_109, %c0_110] : memref<2x6x6x64xbf16, #tpu.memory_space<vmem>>, vector<2x4x4x64xbf16>
    %87 = vector.shape_cast %86 : vector<2x4x4x64xbf16> to vector<32x64xbf16>
    %c2_111 = arith.constant 2 : index
    %c0_112 = arith.constant 0 : index
    %c0_113 = arith.constant 0 : index
    %88 = vector.load %arg4[%c2_111, %c0_112, %c0_113] : memref<9x64x128xbf16, #tpu.memory_space<vmem>>, vector<1x64x128xbf16>
    %89 = vector.shape_cast %88 : vector<1x64x128xbf16> to vector<64x128xbf16>
    %cst_114 = arith.constant dense<0.000000e+00> : vector<32x128xf32>
    %90 = tpu.matmul %87, %89, %cst_114 {dimension_numbers = #tpu.dot_dimension_numbers<[1], [0], [0], [1], [0, 0, 1, 1], [], []>} : vector<32x64xbf16>, vector<64x128xbf16>, vector<32x128xf32> -> vector<32x128xf32>
    %91 = arith.addf %85, %90 : vector<32x128xf32>
    %c0_115 = arith.constant 0 : index
    %c1_116 = arith.constant 1 : index
    %c0_117 = arith.constant 0 : index
    %c0_118 = arith.constant 0 : index
    %92 = vector.load %arg16[%c0_115, %c1_116, %c0_117, %c0_118] : memref<2x6x6x64xbf16, #tpu.memory_space<vmem>>, vector<2x4x4x64xbf16>
    %93 = vector.shape_cast %92 : vector<2x4x4x64xbf16> to vector<32x64xbf16>
    %c3_119 = arith.constant 3 : index
    %c0_120 = arith.constant 0 : index
    %c0_121 = arith.constant 0 : index
    %94 = vector.load %arg4[%c3_119, %c0_120, %c0_121] : memref<9x64x128xbf16, #tpu.memory_space<vmem>>, vector<1x64x128xbf16>
    %95 = vector.shape_cast %94 : vector<1x64x128xbf16> to vector<64x128xbf16>
    %cst_122 = arith.constant dense<0.000000e+00> : vector<32x128xf32>
    %96 = tpu.matmul %93, %95, %cst_122 {dimension_numbers = #tpu.dot_dimension_numbers<[1], [0], [0], [1], [0, 0, 1, 1], [], []>} : vector<32x64xbf16>, vector<64x128xbf16>, vector<32x128xf32> -> vector<32x128xf32>
    %97 = arith.addf %91, %96 : vector<32x128xf32>
    %c0_123 = arith.constant 0 : index
    %c1_124 = arith.constant 1 : index
    %c1_125 = arith.constant 1 : index
    %c0_126 = arith.constant 0 : index
    %98 = vector.load %arg16[%c0_123, %c1_124, %c1_125, %c0_126] : memref<2x6x6x64xbf16, #tpu.memory_space<vmem>>, vector<2x4x4x64xbf16>
    %99 = vector.shape_cast %98 : vector<2x4x4x64xbf16> to vector<32x64xbf16>
    %c4_127 = arith.constant 4 : index
    %c0_128 = arith.constant 0 : index
    %c0_129 = arith.constant 0 : index
    %100 = vector.load %arg4[%c4_127, %c0_128, %c0_129] : memref<9x64x128xbf16, #tpu.memory_space<vmem>>, vector<1x64x128xbf16>
    %101 = vector.shape_cast %100 : vector<1x64x128xbf16> to vector<64x128xbf16>
    %cst_130 = arith.constant dense<0.000000e+00> : vector<32x128xf32>
    %102 = tpu.matmul %99, %101, %cst_130 {dimension_numbers = #tpu.dot_dimension_numbers<[1], [0], [0], [1], [0, 0, 1, 1], [], []>} : vector<32x64xbf16>, vector<64x128xbf16>, vector<32x128xf32> -> vector<32x128xf32>
    %103 = arith.addf %97, %102 : vector<32x128xf32>
    %c0_131 = arith.constant 0 : index
    %c1_132 = arith.constant 1 : index
    %c2_133 = arith.constant 2 : index
    %c0_134 = arith.constant 0 : index
    %104 = vector.load %arg16[%c0_131, %c1_132, %c2_133, %c0_134] : memref<2x6x6x64xbf16, #tpu.memory_space<vmem>>, vector<2x4x4x64xbf16>
    %105 = vector.shape_cast %104 : vector<2x4x4x64xbf16> to vector<32x64xbf16>
    %c5_135 = arith.constant 5 : index
    %c0_136 = arith.constant 0 : index
    %c0_137 = arith.constant 0 : index
    %106 = vector.load %arg4[%c5_135, %c0_136, %c0_137] : memref<9x64x128xbf16, #tpu.memory_space<vmem>>, vector<1x64x128xbf16>
    %107 = vector.shape_cast %106 : vector<1x64x128xbf16> to vector<64x128xbf16>
    %cst_138 = arith.constant dense<0.000000e+00> : vector<32x128xf32>
    %108 = tpu.matmul %105, %107, %cst_138 {dimension_numbers = #tpu.dot_dimension_numbers<[1], [0], [0], [1], [0, 0, 1, 1], [], []>} : vector<32x64xbf16>, vector<64x128xbf16>, vector<32x128xf32> -> vector<32x128xf32>
    %109 = arith.addf %103, %108 : vector<32x128xf32>
    %c0_139 = arith.constant 0 : index
    %c2_140 = arith.constant 2 : index
    %c0_141 = arith.constant 0 : index
    %c0_142 = arith.constant 0 : index
    %110 = vector.load %arg16[%c0_139, %c2_140, %c0_141, %c0_142] : memref<2x6x6x64xbf16, #tpu.memory_space<vmem>>, vector<2x4x4x64xbf16>
    %111 = vector.shape_cast %110 : vector<2x4x4x64xbf16> to vector<32x64xbf16>
    %c6_143 = arith.constant 6 : index
    %c0_144 = arith.constant 0 : index
    %c0_145 = arith.constant 0 : index
    %112 = vector.load %arg4[%c6_143, %c0_144, %c0_145] : memref<9x64x128xbf16, #tpu.memory_space<vmem>>, vector<1x64x128xbf16>
    %113 = vector.shape_cast %112 : vector<1x64x128xbf16> to vector<64x128xbf16>
    %cst_146 = arith.constant dense<0.000000e+00> : vector<32x128xf32>
    %114 = tpu.matmul %111, %113, %cst_146 {dimension_numbers = #tpu.dot_dimension_numbers<[1], [0], [0], [1], [0, 0, 1, 1], [], []>} : vector<32x64xbf16>, vector<64x128xbf16>, vector<32x128xf32> -> vector<32x128xf32>
    %115 = arith.addf %109, %114 : vector<32x128xf32>
    %c0_147 = arith.constant 0 : index
    %c2_148 = arith.constant 2 : index
    %c1_149 = arith.constant 1 : index
    %c0_150 = arith.constant 0 : index
    %116 = vector.load %arg16[%c0_147, %c2_148, %c1_149, %c0_150] : memref<2x6x6x64xbf16, #tpu.memory_space<vmem>>, vector<2x4x4x64xbf16>
    %117 = vector.shape_cast %116 : vector<2x4x4x64xbf16> to vector<32x64xbf16>
    %c7_151 = arith.constant 7 : index
    %c0_152 = arith.constant 0 : index
    %c0_153 = arith.constant 0 : index
    %118 = vector.load %arg4[%c7_151, %c0_152, %c0_153] : memref<9x64x128xbf16, #tpu.memory_space<vmem>>, vector<1x64x128xbf16>
    %119 = vector.shape_cast %118 : vector<1x64x128xbf16> to vector<64x128xbf16>
    %cst_154 = arith.constant dense<0.000000e+00> : vector<32x128xf32>
    %120 = tpu.matmul %117, %119, %cst_154 {dimension_numbers = #tpu.dot_dimension_numbers<[1], [0], [0], [1], [0, 0, 1, 1], [], []>} : vector<32x64xbf16>, vector<64x128xbf16>, vector<32x128xf32> -> vector<32x128xf32>
    %121 = arith.addf %115, %120 : vector<32x128xf32>
    %c0_155 = arith.constant 0 : index
    %c2_156 = arith.constant 2 : index
    %c2_157 = arith.constant 2 : index
    %c0_158 = arith.constant 0 : index
    %122 = vector.load %arg16[%c0_155, %c2_156, %c2_157, %c0_158] : memref<2x6x6x64xbf16, #tpu.memory_space<vmem>>, vector<2x4x4x64xbf16>
    %123 = vector.shape_cast %122 : vector<2x4x4x64xbf16> to vector<32x64xbf16>
    %c8_159 = arith.constant 8 : index
    %c0_160 = arith.constant 0 : index
    %c0_161 = arith.constant 0 : index
    %124 = vector.load %arg4[%c8_159, %c0_160, %c0_161] : memref<9x64x128xbf16, #tpu.memory_space<vmem>>, vector<1x64x128xbf16>
    %125 = vector.shape_cast %124 : vector<1x64x128xbf16> to vector<64x128xbf16>
    %cst_162 = arith.constant dense<0.000000e+00> : vector<32x128xf32>
    %126 = tpu.matmul %123, %125, %cst_162 {dimension_numbers = #tpu.dot_dimension_numbers<[1], [0], [0], [1], [0, 0, 1, 1], [], []>} : vector<32x64xbf16>, vector<64x128xbf16>, vector<32x128xf32> -> vector<32x128xf32>
    %127 = arith.addf %121, %126 : vector<32x128xf32>
    %c0_163 = arith.constant 0 : index
    %c0_164 = arith.constant 0 : index
    %128 = vector.load %arg5[%c0_163, %c0_164] : memref<1x128xf32, #tpu.memory_space<vmem>>, vector<1x128xf32>
    %129 = vector.broadcast %128 : vector<1x128xf32> to vector<32x128xf32>
    %130 = arith.addf %127, %129 : vector<32x128xf32>
    %cst_165 = arith.constant 0.000000e+00 : f32
    %131 = vector.broadcast %cst_165 : f32 to vector<32x128xf32>
    %132 = arith.maximumf %130, %131 : vector<32x128xf32>
    %133 = vector.shape_cast %132 : vector<32x128xf32> to vector<16x2x128xf32>
    %cst_166 = arith.constant dense<0xFF800000> : vector<16x128xf32>
    %134 = vector.multi_reduction <maximumf>, %133, %cst_166 [1] : vector<16x2x128xf32> to vector<16x128xf32>
    %135 = vector.shape_cast %134 : vector<16x128xf32> to vector<4x2x2x128xf32>
    %cst_167 = arith.constant dense<0xFF800000> : vector<4x2x128xf32>
    %136 = vector.multi_reduction <maximumf>, %135, %cst_167 [1] : vector<4x2x2x128xf32> to vector<4x2x128xf32>
    %137 = vector.shape_cast %136 : vector<4x2x128xf32> to vector<2x2x2x128xf32>
    %138 = arith.truncf %137 : vector<2x2x2x128xf32> to vector<2x2x2x128xbf16>
    %cst_168 = arith.constant 0.000000e+00 : bf16
    %139 = vector.broadcast %cst_168 : bf16 to vector<2x4x4x128xbf16>
    %c0_169 = arith.constant 0 : index
    %c0_170 = arith.constant 0 : index
    %c0_171 = arith.constant 0 : index
    %c0_172 = arith.constant 0 : index
    %140 = vector.load %arg17[%c0_169, %c0_170, %c0_171, %c0_172] : memref<2x4x4x128xbf16, #tpu.memory_space<vmem>>, vector<2x4x4x128xbf16>
    tpu.vector_store %arg17[%c0_169, %c0_170, %c0_171, %c0_172], %139 {strides = array<i32>} : memref<2x4x4x128xbf16, #tpu.memory_space<vmem>>, vector<2x4x4x128xbf16>,
    %c0_173 = arith.constant 0 : index
    %c1_174 = arith.constant 1 : index
    %c1_175 = arith.constant 1 : index
    %c0_176 = arith.constant 0 : index
    %141 = vector.load %arg17[%c0_173, %c1_174, %c1_175, %c0_176] : memref<2x4x4x128xbf16, #tpu.memory_space<vmem>>, vector<2x2x2x128xbf16>
    tpu.vector_store %arg17[%c0_173, %c1_174, %c1_175, %c0_176], %138 {strides = array<i32>} : memref<2x4x4x128xbf16, #tpu.memory_space<vmem>>, vector<2x2x2x128xbf16>,
    %cst_177 = arith.constant 0.000000e+00 : f32
    %142 = vector.broadcast %cst_177 : f32 to vector<8x512xf32>
    %c0_178 = arith.constant 0 : index
    %c0_179 = arith.constant 0 : index
    %c0_180 = arith.constant 0 : index
    %c0_181 = arith.constant 0 : index
    %143 = vector.load %arg17[%c0_178, %c0_179, %c0_180, %c0_181] : memref<2x4x4x128xbf16, #tpu.memory_space<vmem>>, vector<2x2x2x128xbf16>
    %144 = vector.shape_cast %143 : vector<2x2x2x128xbf16> to vector<8x128xbf16>
    %c0_182 = arith.constant 0 : index
    %c0_183 = arith.constant 0 : index
    %c0_184 = arith.constant 0 : index
    %145 = vector.load %arg6[%c0_182, %c0_183, %c0_184] : memref<9x128x512xbf16, #tpu.memory_space<vmem>>, vector<1x128x512xbf16>
    %146 = vector.shape_cast %145 : vector<1x128x512xbf16> to vector<128x512xbf16>
    %cst_185 = arith.constant dense<0.000000e+00> : vector<8x512xf32>
    %147 = tpu.matmul %144, %146, %cst_185 {dimension_numbers = #tpu.dot_dimension_numbers<[1], [0], [0], [1], [0, 0, 1, 1], [], []>} : vector<8x128xbf16>, vector<128x512xbf16>, vector<8x512xf32> -> vector<8x512xf32>
    %148 = arith.addf %142, %147 : vector<8x512xf32>
    %c0_186 = arith.constant 0 : index
    %c0_187 = arith.constant 0 : index
    %c1_188 = arith.constant 1 : index
    %c0_189 = arith.constant 0 : index
    %149 = vector.load %arg17[%c0_186, %c0_187, %c1_188, %c0_189] : memref<2x4x4x128xbf16, #tpu.memory_space<vmem>>, vector<2x2x2x128xbf16>
    %150 = vector.shape_cast %149 : vector<2x2x2x128xbf16> to vector<8x128xbf16>
    %c1_190 = arith.constant 1 : index
    %c0_191 = arith.constant 0 : index
    %c0_192 = arith.constant 0 : index
    %151 = vector.load %arg6[%c1_190, %c0_191, %c0_192] : memref<9x128x512xbf16, #tpu.memory_space<vmem>>, vector<1x128x512xbf16>
    %152 = vector.shape_cast %151 : vector<1x128x512xbf16> to vector<128x512xbf16>
    %cst_193 = arith.constant dense<0.000000e+00> : vector<8x512xf32>
    %153 = tpu.matmul %150, %152, %cst_193 {dimension_numbers = #tpu.dot_dimension_numbers<[1], [0], [0], [1], [0, 0, 1, 1], [], []>} : vector<8x128xbf16>, vector<128x512xbf16>, vector<8x512xf32> -> vector<8x512xf32>
    %154 = arith.addf %148, %153 : vector<8x512xf32>
    %c0_194 = arith.constant 0 : index
    %c0_195 = arith.constant 0 : index
    %c2_196 = arith.constant 2 : index
    %c0_197 = arith.constant 0 : index
    %155 = vector.load %arg17[%c0_194, %c0_195, %c2_196, %c0_197] : memref<2x4x4x128xbf16, #tpu.memory_space<vmem>>, vector<2x2x2x128xbf16>
    %156 = vector.shape_cast %155 : vector<2x2x2x128xbf16> to vector<8x128xbf16>
    %c2_198 = arith.constant 2 : index
    %c0_199 = arith.constant 0 : index
    %c0_200 = arith.constant 0 : index
    %157 = vector.load %arg6[%c2_198, %c0_199, %c0_200] : memref<9x128x512xbf16, #tpu.memory_space<vmem>>, vector<1x128x512xbf16>
    %158 = vector.shape_cast %157 : vector<1x128x512xbf16> to vector<128x512xbf16>
    %cst_201 = arith.constant dense<0.000000e+00> : vector<8x512xf32>
    %159 = tpu.matmul %156, %158, %cst_201 {dimension_numbers = #tpu.dot_dimension_numbers<[1], [0], [0], [1], [0, 0, 1, 1], [], []>} : vector<8x128xbf16>, vector<128x512xbf16>, vector<8x512xf32> -> vector<8x512xf32>
    %160 = arith.addf %154, %159 : vector<8x512xf32>
    %c0_202 = arith.constant 0 : index
    %c1_203 = arith.constant 1 : index
    %c0_204 = arith.constant 0 : index
    %c0_205 = arith.constant 0 : index
    %161 = vector.load %arg17[%c0_202, %c1_203, %c0_204, %c0_205] : memref<2x4x4x128xbf16, #tpu.memory_space<vmem>>, vector<2x2x2x128xbf16>
    %162 = vector.shape_cast %161 : vector<2x2x2x128xbf16> to vector<8x128xbf16>
    %c3_206 = arith.constant 3 : index
    %c0_207 = arith.constant 0 : index
    %c0_208 = arith.constant 0 : index
    %163 = vector.load %arg6[%c3_206, %c0_207, %c0_208] : memref<9x128x512xbf16, #tpu.memory_space<vmem>>, vector<1x128x512xbf16>
    %164 = vector.shape_cast %163 : vector<1x128x512xbf16> to vector<128x512xbf16>
    %cst_209 = arith.constant dense<0.000000e+00> : vector<8x512xf32>
    %165 = tpu.matmul %162, %164, %cst_209 {dimension_numbers = #tpu.dot_dimension_numbers<[1], [0], [0], [1], [0, 0, 1, 1], [], []>} : vector<8x128xbf16>, vector<128x512xbf16>, vector<8x512xf32> -> vector<8x512xf32>
    %166 = arith.addf %160, %165 : vector<8x512xf32>
    %c0_210 = arith.constant 0 : index
    %c1_211 = arith.constant 1 : index
    %c1_212 = arith.constant 1 : index
    %c0_213 = arith.constant 0 : index
    %167 = vector.load %arg17[%c0_210, %c1_211, %c1_212, %c0_213] : memref<2x4x4x128xbf16, #tpu.memory_space<vmem>>, vector<2x2x2x128xbf16>
    %168 = vector.shape_cast %167 : vector<2x2x2x128xbf16> to vector<8x128xbf16>
    %c4_214 = arith.constant 4 : index
    %c0_215 = arith.constant 0 : index
    %c0_216 = arith.constant 0 : index
    %169 = vector.load %arg6[%c4_214, %c0_215, %c0_216] : memref<9x128x512xbf16, #tpu.memory_space<vmem>>, vector<1x128x512xbf16>
    %170 = vector.shape_cast %169 : vector<1x128x512xbf16> to vector<128x512xbf16>
    %cst_217 = arith.constant dense<0.000000e+00> : vector<8x512xf32>
    %171 = tpu.matmul %168, %170, %cst_217 {dimension_numbers = #tpu.dot_dimension_numbers<[1], [0], [0], [1], [0, 0, 1, 1], [], []>} : vector<8x128xbf16>, vector<128x512xbf16>, vector<8x512xf32> -> vector<8x512xf32>
    %172 = arith.addf %166, %171 : vector<8x512xf32>
    %c0_218 = arith.constant 0 : index
    %c1_219 = arith.constant 1 : index
    %c2_220 = arith.constant 2 : index
    %c0_221 = arith.constant 0 : index
    %173 = vector.load %arg17[%c0_218, %c1_219, %c2_220, %c0_221] : memref<2x4x4x128xbf16, #tpu.memory_space<vmem>>, vector<2x2x2x128xbf16>
    %174 = vector.shape_cast %173 : vector<2x2x2x128xbf16> to vector<8x128xbf16>
    %c5_222 = arith.constant 5 : index
    %c0_223 = arith.constant 0 : index
    %c0_224 = arith.constant 0 : index
    %175 = vector.load %arg6[%c5_222, %c0_223, %c0_224] : memref<9x128x512xbf16, #tpu.memory_space<vmem>>, vector<1x128x512xbf16>
    %176 = vector.shape_cast %175 : vector<1x128x512xbf16> to vector<128x512xbf16>
    %cst_225 = arith.constant dense<0.000000e+00> : vector<8x512xf32>
    %177 = tpu.matmul %174, %176, %cst_225 {dimension_numbers = #tpu.dot_dimension_numbers<[1], [0], [0], [1], [0, 0, 1, 1], [], []>} : vector<8x128xbf16>, vector<128x512xbf16>, vector<8x512xf32> -> vector<8x512xf32>
    %178 = arith.addf %172, %177 : vector<8x512xf32>
    %c0_226 = arith.constant 0 : index
    %c2_227 = arith.constant 2 : index
    %c0_228 = arith.constant 0 : index
    %c0_229 = arith.constant 0 : index
    %179 = vector.load %arg17[%c0_226, %c2_227, %c0_228, %c0_229] : memref<2x4x4x128xbf16, #tpu.memory_space<vmem>>, vector<2x2x2x128xbf16>
    %180 = vector.shape_cast %179 : vector<2x2x2x128xbf16> to vector<8x128xbf16>
    %c6_230 = arith.constant 6 : index
    %c0_231 = arith.constant 0 : index
    %c0_232 = arith.constant 0 : index
    %181 = vector.load %arg6[%c6_230, %c0_231, %c0_232] : memref<9x128x512xbf16, #tpu.memory_space<vmem>>, vector<1x128x512xbf16>
    %182 = vector.shape_cast %181 : vector<1x128x512xbf16> to vector<128x512xbf16>
    %cst_233 = arith.constant dense<0.000000e+00> : vector<8x512xf32>
    %183 = tpu.matmul %180, %182, %cst_233 {dimension_numbers = #tpu.dot_dimension_numbers<[1], [0], [0], [1], [0, 0, 1, 1], [], []>} : vector<8x128xbf16>, vector<128x512xbf16>, vector<8x512xf32> -> vector<8x512xf32>
    %184 = arith.addf %178, %183 : vector<8x512xf32>
    %c0_234 = arith.constant 0 : index
    %c2_235 = arith.constant 2 : index
    %c1_236 = arith.constant 1 : index
    %c0_237 = arith.constant 0 : index
    %185 = vector.load %arg17[%c0_234, %c2_235, %c1_236, %c0_237] : memref<2x4x4x128xbf16, #tpu.memory_space<vmem>>, vector<2x2x2x128xbf16>
    %186 = vector.shape_cast %185 : vector<2x2x2x128xbf16> to vector<8x128xbf16>
    %c7_238 = arith.constant 7 : index
    %c0_239 = arith.constant 0 : index
    %c0_240 = arith.constant 0 : index
    %187 = vector.load %arg6[%c7_238, %c0_239, %c0_240] : memref<9x128x512xbf16, #tpu.memory_space<vmem>>, vector<1x128x512xbf16>
    %188 = vector.shape_cast %187 : vector<1x128x512xbf16> to vector<128x512xbf16>
    %cst_241 = arith.constant dense<0.000000e+00> : vector<8x512xf32>
    %189 = tpu.matmul %186, %188, %cst_241 {dimension_numbers = #tpu.dot_dimension_numbers<[1], [0], [0], [1], [0, 0, 1, 1], [], []>} : vector<8x128xbf16>, vector<128x512xbf16>, vector<8x512xf32> -> vector<8x512xf32>
    %190 = arith.addf %184, %189 : vector<8x512xf32>
    %c0_242 = arith.constant 0 : index
    %c2_243 = arith.constant 2 : index
    %c2_244 = arith.constant 2 : index
    %c0_245 = arith.constant 0 : index
    %191 = vector.load %arg17[%c0_242, %c2_243, %c2_244, %c0_245] : memref<2x4x4x128xbf16, #tpu.memory_space<vmem>>, vector<2x2x2x128xbf16>
    %192 = vector.shape_cast %191 : vector<2x2x2x128xbf16> to vector<8x128xbf16>
    %c8_246 = arith.constant 8 : index
    %c0_247 = arith.constant 0 : index
    %c0_248 = arith.constant 0 : index
    %193 = vector.load %arg6[%c8_246, %c0_247, %c0_248] : memref<9x128x512xbf16, #tpu.memory_space<vmem>>, vector<1x128x512xbf16>
    %194 = vector.shape_cast %193 : vector<1x128x512xbf16> to vector<128x512xbf16>
    %cst_249 = arith.constant dense<0.000000e+00> : vector<8x512xf32>
    %195 = tpu.matmul %192, %194, %cst_249 {dimension_numbers = #tpu.dot_dimension_numbers<[1], [0], [0], [1], [0, 0, 1, 1], [], []>} : vector<8x128xbf16>, vector<128x512xbf16>, vector<8x512xf32> -> vector<8x512xf32>
    %196 = arith.addf %190, %195 : vector<8x512xf32>
    %c0_250 = arith.constant 0 : index
    %c0_251 = arith.constant 0 : index
    %197 = vector.load %arg7[%c0_250, %c0_251] : memref<1x512xf32, #tpu.memory_space<vmem>>, vector<1x512xf32>
    %198 = vector.broadcast %197 : vector<1x512xf32> to vector<8x512xf32>
    %199 = arith.addf %196, %198 : vector<8x512xf32>
    %cst_252 = arith.constant 0.000000e+00 : f32
    %200 = vector.broadcast %cst_252 : f32 to vector<8x512xf32>
    %201 = arith.maximumf %199, %200 : vector<8x512xf32>
    %202 = vector.shape_cast %201 : vector<8x512xf32> to vector<4x2x512xf32>
    %cst_253 = arith.constant dense<0xFF800000> : vector<4x512xf32>
    %203 = vector.multi_reduction <maximumf>, %202, %cst_253 [1] : vector<4x2x512xf32> to vector<4x512xf32>
    %204 = vector.shape_cast %203 : vector<4x512xf32> to vector<2x2x1x512xf32>
    %cst_254 = arith.constant dense<0xFF800000> : vector<2x1x512xf32>
    %205 = vector.multi_reduction <maximumf>, %204, %cst_254 [1] : vector<2x2x1x512xf32> to vector<2x1x512xf32>
    %206 = vector.shape_cast %205 : vector<2x1x512xf32> to vector<2x1x1x512xf32>
    %207 = arith.truncf %206 : vector<2x1x1x512xf32> to vector<2x1x1x512xbf16>
    %208 = vector.shape_cast %207 : vector<2x1x1x512xbf16> to vector<2x512xbf16>
    %c0_255 = arith.constant 0 : index
    %c0_256 = arith.constant 0 : index
    %209 = vector.load %arg8[%c0_255, %c0_256] : memref<512x512xbf16, #tpu.memory_space<vmem>>, vector<512x512xbf16>
    %c0_257 = arith.constant 0 : index
    %c0_258 = arith.constant 0 : index
    %210 = vector.load %arg9[%c0_257, %c0_258] : memref<1x512xf32, #tpu.memory_space<vmem>>, vector<1x512xf32>
    %c0_259 = arith.constant 0 : index
    %c0_260 = arith.constant 0 : index
    %211 = vector.load %arg10[%c0_259, %c0_260] : memref<512x512xbf16, #tpu.memory_space<vmem>>, vector<512x512xbf16>
    %c0_261 = arith.constant 0 : index
    %c0_262 = arith.constant 0 : index
    %212 = vector.load %arg11[%c0_261, %c0_262] : memref<1x512xf32, #tpu.memory_space<vmem>>, vector<1x512xf32>
    %c0_263 = arith.constant 0 : index
    %c0_264 = arith.constant 0 : index
    %213 = vector.load %arg12[%c0_263, %c0_264] : memref<512x128xbf16, #tpu.memory_space<vmem>>, vector<512x128xbf16>
    %c0_265 = arith.constant 0 : index
    %c0_266 = arith.constant 0 : index
    %214 = vector.load %arg13[%c0_265, %c0_266] : memref<1x128xf32, #tpu.memory_space<vmem>>, vector<1x128xf32>
    %cst_267 = arith.constant dense<0.000000e+00> : vector<2x512xf32>
    %215 = tpu.matmul %208, %209, %cst_267 {dimension_numbers = #tpu.dot_dimension_numbers<[1], [0], [0], [1], [0, 0, 1, 1], [], []>} : vector<2x512xbf16>, vector<512x512xbf16>, vector<2x512xf32> -> vector<2x512xf32>
    %216 = vector.broadcast %210 : vector<1x512xf32> to vector<2x512xf32>
    %217 = arith.addf %215, %216 : vector<2x512xf32>
    %cst_268 = arith.constant 0.000000e+00 : f32
    %218 = vector.broadcast %cst_268 : f32 to vector<2x512xf32>
    %219 = arith.maximumf %217, %218 : vector<2x512xf32>
    %220 = arith.truncf %219 : vector<2x512xf32> to vector<2x512xbf16>
    %cst_269 = arith.constant dense<0.000000e+00> : vector<2x512xf32>
    %221 = tpu.matmul %220, %211, %cst_269 {dimension_numbers = #tpu.dot_dimension_numbers<[1], [0], [0], [1], [0, 0, 1, 1], [], []>} : vector<2x512xbf16>, vector<512x512xbf16>, vector<2x512xf32> -> vector<2x512xf32>
    %222 = vector.broadcast %212 : vector<1x512xf32> to vector<2x512xf32>
    %223 = arith.addf %221, %222 : vector<2x512xf32>
    %cst_270 = arith.constant 0.000000e+00 : f32
    %224 = vector.broadcast %cst_270 : f32 to vector<2x512xf32>
    %225 = arith.maximumf %223, %224 : vector<2x512xf32>
    %226 = arith.truncf %225 : vector<2x512xf32> to vector<2x512xbf16>
    %cst_271 = arith.constant dense<0.000000e+00> : vector<2x128xf32>
    %227 = tpu.matmul %226, %213, %cst_271 {dimension_numbers = #tpu.dot_dimension_numbers<[1], [0], [0], [1], [0, 0, 1, 1], [], []>} : vector<2x512xbf16>, vector<512x128xbf16>, vector<2x128xf32> -> vector<2x128xf32>
    %228 = vector.broadcast %214 : vector<1x128xf32> to vector<2x128xf32>
    %229 = arith.addf %227, %228 : vector<2x128xf32>
    %c0_272 = arith.constant 0 : index
    %c0_273 = arith.constant 0 : index
    %230 = vector.load %arg14[%c0_272, %c0_273] : memref<2x128xf32, #tpu.memory_space<vmem>>, vector<2x128xf32>
    tpu.vector_store %arg14[%c0_272, %c0_273], %229 {strides = array<i32>} : memref<2x128xf32, #tpu.memory_space<vmem>>, vector<2x128xf32>,
    return
  }
  func.func @transform_0(%arg0: i32) -> (i32, i32, i32, i32) {
    %c0_i32 = arith.constant 0 : i32
    %c0_i32_0 = arith.constant 0 : i32
    %c0_i32_1 = arith.constant 0 : i32
    %c0_i32_2 = arith.constant 0 : i32
    return %arg0, %c0_i32, %c0_i32_0, %c0_i32_1 : i32, i32, i32, i32
  }
  func.func @transform_1(%arg0: i32) -> (i32, i32, i32) {
    %c0_i32 = arith.constant 0 : i32
    %c0_i32_0 = arith.constant 0 : i32
    %c0_i32_1 = arith.constant 0 : i32
    %c0_i32_2 = arith.constant 0 : i32
    return %c0_i32, %c0_i32_0, %c0_i32_1 : i32, i32, i32
  }
  func.func @transform_2(%arg0: i32) -> (i32, i32) {
    %c0_i32 = arith.constant 0 : i32
    %c0_i32_0 = arith.constant 0 : i32
    %c0_i32_1 = arith.constant 0 : i32
    return %c0_i32, %c0_i32_0 : i32, i32
  }
  func.func @transform_3(%arg0: i32) -> (i32, i32, i32) {
    %c0_i32 = arith.constant 0 : i32
    %c0_i32_0 = arith.constant 0 : i32
    %c0_i32_1 = arith.constant 0 : i32
    %c0_i32_2 = arith.constant 0 : i32
    return %c0_i32, %c0_i32_0, %c0_i32_1 : i32, i32, i32
  }
  func.func @transform_4(%arg0: i32) -> (i32, i32) {
    %c0_i32 = arith.constant 0 : i32
    %c0_i32_0 = arith.constant 0 : i32
    %c0_i32_1 = arith.constant 0 : i32
    return %c0_i32, %c0_i32_0 : i32, i32
  }
  func.func @transform_5(%arg0: i32) -> (i32, i32, i32) {
    %c0_i32 = arith.constant 0 : i32
    %c0_i32_0 = arith.constant 0 : i32
    %c0_i32_1 = arith.constant 0 : i32
    %c0_i32_2 = arith.constant 0 : i32
    return %c0_i32, %c0_i32_0, %c0_i32_1 : i32, i32, i32
  }
  func.func @transform_6(%arg0: i32) -> (i32, i32) {
    %c0_i32 = arith.constant 0 : i32
    %c0_i32_0 = arith.constant 0 : i32
    %c0_i32_1 = arith.constant 0 : i32
    return %c0_i32, %c0_i32_0 : i32, i32
  }
  func.func @transform_7(%arg0: i32) -> (i32, i32) {
    %c0_i32 = arith.constant 0 : i32
    %c0_i32_0 = arith.constant 0 : i32
    %c0_i32_1 = arith.constant 0 : i32
    return %c0_i32, %c0_i32_0 : i32, i32
  }
  func.func @transform_8(%arg0: i32) -> (i32, i32) {
    %c0_i32 = arith.constant 0 : i32
    %c0_i32_0 = arith.constant 0 : i32
    %c0_i32_1 = arith.constant 0 : i32
    return %c0_i32, %c0_i32_0 : i32, i32
  }
  func.func @transform_9(%arg0: i32) -> (i32, i32) {
    %c0_i32 = arith.constant 0 : i32
    %c0_i32_0 = arith.constant 0 : i32
    %c0_i32_1 = arith.constant 0 : i32
    return %c0_i32, %c0_i32_0 : i32, i32
  }
  func.func @transform_10(%arg0: i32) -> (i32, i32) {
    %c0_i32 = arith.constant 0 : i32
    %c0_i32_0 = arith.constant 0 : i32
    %c0_i32_1 = arith.constant 0 : i32
    return %c0_i32, %c0_i32_0 : i32, i32
  }
  func.func @transform_11(%arg0: i32) -> (i32, i32) {
    %c0_i32 = arith.constant 0 : i32
    %c0_i32_0 = arith.constant 0 : i32
    %c0_i32_1 = arith.constant 0 : i32
    return %c0_i32, %c0_i32_0 : i32, i32
  }
  func.func @transform_12(%arg0: i32) -> (i32, i32) {
    %c0_i32 = arith.constant 0 : i32
    %c0_i32_0 = arith.constant 0 : i32
    %c0_i32_1 = arith.constant 0 : i32
    return %c0_i32, %c0_i32_0 : i32, i32
  }
  func.func @transform_13(%arg0: i32) -> (i32, i32) {
    %c0_i32 = arith.constant 0 : i32
    %c0_i32_0 = arith.constant 0 : i32
    return %arg0, %c0_i32 : i32, i32
  }
}

</mosaic_0001>

<llo_original>
// kernel: vgg_server_forward.1
$region0: #{vgg_server_forward.1}
  #allocation0 [shape = 'u32[]', space=smem, size = 0x4, offset = 0x4, fixed_abs, tag = 'smem constant byte address 0x4 - core index']
  #allocation1 [shape = 'u32[144,128]{1,0:T(1,128)}', space=vmem, size = 0x12000, scoped, tag = 'internal scratch']
  #allocation2 [shape = 'bf16[2,10,10,4]{3,2,1,0:T(8,128)(2,1)}', space=vmem, size = 0x14000, scoped, tag = 'scratch operand']
  #allocation3 [shape = 'bf16[2,6,6,64]{3,2,1,0:T(8,128)(2,1)}', space=vmem, size = 0x6000, scoped, tag = 'scratch operand']
  #allocation4 [shape = 'bf16[2,4,4,128]{3,2,1,0:T(4,128)(2,1)}', space=vmem, size = 0x2000, scoped, tag = 'scratch operand']
  %s0 = inlined_call_operand.vmem [shape: bf16[2,8,8,4], index: 0, kind: input, shape index: {}]
  %s1 = inlined_call_operand.hbm [shape: bf16[9,4,64], index: 1, kind: input, shape index: {}]
  %s2 = inlined_call_operand.hbm [shape: f32[1,64], index: 2, kind: input, shape index: {}]
  %s3 = inlined_call_operand.hbm [shape: bf16[9,64,128], index: 3, kind: input, shape index: {}]
  %s4 = inlined_call_operand.hbm [shape: f32[1,128], index: 4, kind: input, shape index: {}]
  %s5 = inlined_call_operand.hbm [shape: bf16[9,128,512], index: 5, kind: input, shape index: {}]
  %s6 = inlined_call_operand.hbm [shape: f32[1,512], index: 6, kind: input, shape index: {}]
  %s7 = inlined_call_operand.hbm [shape: bf16[512,512], index: 7, kind: input, shape index: {}]
  %s8 = inlined_call_operand.hbm [shape: f32[1,512], index: 8, kind: input, shape index: {}]
  %s9 = inlined_call_operand.hbm [shape: bf16[512,512], index: 9, kind: input, shape index: {}]
  %s10 = inlined_call_operand.hbm [shape: f32[1,512], index: 10, kind: input, shape index: {}]
  %s11 = inlined_call_operand.hbm [shape: bf16[512,128], index: 11, kind: input, shape index: {}]
  %s12 = inlined_call_operand.hbm [shape: f32[1,128], index: 12, kind: input, shape index: {}]
  %s13 = inlined_call_operand.hbm [shape: f32[2,128], index: 13, kind: output, shape index: {}]
  %s14 = sld [smem:[#allocation0]]
  $region110: #{vgg_server_forward.1} parent=0
    _
  %s16 = ssub.s32 1, %s14
  %s17 = scalar_select 0, %s16, %s14
  $region1: #{vgg_server_forward.1} parent=0
    #allocation5 [shape = 'u8[9216]{0}', space=vmem, size = 0x2400, scoped, tag = 'input window, operand 1, single buffered']
    #allocation6 [shape = 's32[1]{0}', space=sflag, size = 0x4, scoped, tag = 'scoped memory for vgg_server_forward.1']
    #allocation7 [shape = 's32[1]{0}', space=sflag, size = 0x4, scoped, tag = 'scoped memory for vgg_server_forward.1']
    #allocation8 [shape = 'u8[512]{0}', space=vmem, size = 0x400, scoped, tag = 'input window, operand 2, single buffered']
    #allocation9 [shape = 's32[1]{0}', space=sflag, size = 0x4, scoped, tag = 'scoped memory for vgg_server_forward.1']
    #allocation10 [shape = 'u8[147456]{0}', space=vmem, size = 0x24000, scoped, tag = 'input window, operand 3, single buffered']
    #allocation11 [shape = 'u8[512]{0}', space=vmem, size = 0x400, scoped, tag = 'input window, operand 4, single buffered']
    #allocation12 [shape = 's32[1]{0}', space=sflag, size = 0x4, scoped, tag = 'scoped memory for vgg_server_forward.1']
    #allocation13 [shape = 'u8[1179648]{0}', space=vmem, size = 0x120000, scoped, tag = 'input window, operand 5, single buffered']
    #allocation14 [shape = 'u8[2048]{0}', space=vmem, size = 0x800, scoped, tag = 'input window, operand 6, single buffered']
    #allocation15 [shape = 's32[1]{0}', space=sflag, size = 0x4, scoped, tag = 'scoped memory for vgg_server_forward.1']
    #allocation16 [shape = 'u8[524288]{0}', space=vmem, size = 0x80000, scoped, tag = 'input window, operand 7, single buffered']
    #allocation17 [shape = 'u8[2048]{0}', space=vmem, size = 0x800, scoped, tag = 'input window, operand 8, single buffered']
    #allocation18 [shape = 's32[1]{0}', space=sflag, size = 0x4, scoped, tag = 'scoped memory for vgg_server_forward.1']
    #allocation19 [shape = 'u8[524288]{0}', space=vmem, size = 0x80000, scoped, tag = 'input window, operand 9, single buffered']
    #allocation20 [shape = 'u8[2048]{0}', space=vmem, size = 0x800, scoped, tag = 'input window, operand 10, single buffered']
    #allocation21 [shape = 's32[1]{0}', space=sflag, size = 0x4, scoped, tag = 'scoped memory for vgg_server_forward.1']
    #allocation22 [shape = 'u8[131072]{0}', space=vmem, size = 0x20000, scoped, tag = 'input window, operand 11, single buffered']
    #allocation23 [shape = 'u8[512]{0}', space=vmem, size = 0x400, scoped, tag = 'input window, operand 12, single buffered']
    #allocation24 [shape = 's32[1]{0}', space=sflag, size = 0x4, scoped, tag = 'scoped memory for vgg_server_forward.1']
    #allocation25 [shape = 'u8[1024]{0}', space=vmem, size = 0x400, scoped, tag = 'output window, operand 0, single buffered']
    %18 = vsyncpa [#allocation6], 0
    %19 = vsyncpa [#allocation9], 0
    %20 = vsyncpa [#allocation12], 0
    %21 = vsyncpa [#allocation15], 0
    %22 = vsyncpa [#allocation18], 0
    %23 = vsyncpa [#allocation21], 0
    %24 = vsyncpa [#allocation24], 0
    %25 = vsyncpa [#allocation7], 0
    // Predicated region
    $region2: #{vgg_server_forward.1} parent=1 // pred_check
      _
    $region3: #{vgg_server_forward.1} parent=1 // pred_check_branch
      %27 = sbr.rel (0) target = $region5
    $region4: #{vgg_server_forward.1} parent=1 // pred_region
      _
    $region5: #{vgg_server_forward.1} parent=1 // pred_fallthru
      _
    // Predicated region
    $region6: #{vgg_server_forward.1} parent=1 // pred_check
      _
    $region7: #{vgg_server_forward.1} parent=1 // pred_check_branch
      %29 = sbr.rel (0) target = $region9
    $region8: #{vgg_server_forward.1} parent=1 // pred_region
      %s31 = ssub.s32 288, 288
      %32 = vsyncadd [#allocation6], %s31
      %s33 = sshll.u32 [#allocation5], 4
      %s34 = int_to_ptr.vmem [resolvable:$true] %s33
      %39 = dma.hbm_to_vmem [thread:$0]  %s1, 288, %s34, [#allocation6], 32, 32, 2
    $region9: #{vgg_server_forward.1} parent=1 // pred_fallthru
      _
    // Predicated region
    $region10: #{vgg_server_forward.1} parent=1 // pred_check
      _
    $region11: #{vgg_server_forward.1} parent=1 // pred_check_branch
      %41 = sbr.rel (0) target = $region13
    $region12: #{vgg_server_forward.1} parent=1 // pred_region
      %s43 = ssub.s32 16, 16
      %44 = vsyncadd [#allocation9], %s43
      %s46 = sshll.u32 [#allocation8], 4
      %s47 = int_to_ptr.vmem [resolvable:$true] %s46
      %49 = dma.hbm_to_vmem [thread:$0]  %s2, 16, %s47, [#allocation9]
    $region13: #{vgg_server_forward.1} parent=1 // pred_fallthru
      _
    // Predicated region
    $region14: #{vgg_server_forward.1} parent=1 // pred_check
      _
    $region15: #{vgg_server_forward.1} parent=1 // pred_check_branch
      %51 = sbr.rel (0) target = $region17
    $region16: #{vgg_server_forward.1} parent=1 // pred_region
      %s53 = ssub.s32 4608, 4608
      %54 = vsyncadd [#allocation9], %s53
      %s55 = sshll.u32 [#allocation10], 4
      %s56 = int_to_ptr.vmem [resolvable:$true] %s55
      %61 = dma.hbm_to_vmem [thread:$0]  %s3, 4608, %s56, [#allocation9], 64, 64, 4
    $region17: #{vgg_server_forward.1} parent=1 // pred_fallthru
      _
    // Predicated region
    $region18: #{vgg_server_forward.1} parent=1 // pred_check
      _
    $region19: #{vgg_server_forward.1} parent=1 // pred_check_branch
      %63 = sbr.rel (0) target = $region21
    $region20: #{vgg_server_forward.1} parent=1 // pred_region
      %s65 = ssub.s32 16, 16
      %66 = vsyncadd [#allocation12], %s65
      %s68 = sshll.u32 [#allocation11], 4
      %s69 = int_to_ptr.vmem [resolvable:$true] %s68
      %71 = dma.hbm_to_vmem [thread:$0]  %s4, 16, %s69, [#allocation12]
    $region21: #{vgg_server_forward.1} parent=1 // pred_fallthru
      _
    // Predicated region
    $region22: #{vgg_server_forward.1} parent=1 // pred_check
      _
    $region23: #{vgg_server_forward.1} parent=1 // pred_check_branch
      %73 = sbr.rel (0) target = $region25
    $region24: #{vgg_server_forward.1} parent=1 // pred_region
      %s75 = ssub.s32 36864, 36864
      %76 = vsyncadd [#allocation12], %s75
      %s77 = sshll.u32 [#allocation13], 4
      %s78 = int_to_ptr.vmem [resolvable:$true] %s77
      %83 = dma.hbm_to_vmem [thread:$0]  %s5, 36864, %s78, [#allocation12], 256, 256, 16
    $region25: #{vgg_server_forward.1} parent=1 // pred_fallthru
      _
    // Predicated region
    $region26: #{vgg_server_forward.1} parent=1 // pred_check
      _
    $region27: #{vgg_server_forward.1} parent=1 // pred_check_branch
      %85 = sbr.rel (0) target = $region29
    $region28: #{vgg_server_forward.1} parent=1 // pred_region
      %s87 = ssub.s32 64, 64
      %88 = vsyncadd [#allocation15], %s87
      %s90 = sshll.u32 [#allocation14], 4
      %s91 = int_to_ptr.vmem [resolvable:$true] %s90
      %93 = dma.hbm_to_vmem [thread:$0]  %s6, 64, %s91, [#allocation15]
    $region29: #{vgg_server_forward.1} parent=1 // pred_fallthru
      _
    // Predicated region
    $region30: #{vgg_server_forward.1} parent=1 // pred_check
      _
    $region31: #{vgg_server_forward.1} parent=1 // pred_check_branch
      %95 = sbr.rel (0) target = $region33
    $region32: #{vgg_server_forward.1} parent=1 // pred_region
      %s97 = ssub.s32 16384, 16384
      %98 = vsyncadd [#allocation15], %s97
      %s99 = sshll.u32 [#allocation16], 4
      %s100 = int_to_ptr.vmem [resolvable:$true] %s99
      %105 = dma.hbm_to_vmem [thread:$0]  %s7, 16384, %s100, [#allocation15], 256, 256, 16
    $region33: #{vgg_server_forward.1} parent=1 // pred_fallthru
      _
    // Predicated region
    $region34: #{vgg_server_forward.1} parent=1 // pred_check
      _
    $region35: #{vgg_server_forward.1} parent=1 // pred_check_branch
      %107 = sbr.rel (0) target = $region37
    $region36: #{vgg_server_forward.1} parent=1 // pred_region
      %s109 = ssub.s32 64, 64
      %110 = vsyncadd [#allocation18], %s109
      %s112 = sshll.u32 [#allocation17], 4
      %s113 = int_to_ptr.vmem [resolvable:$true] %s112
      %115 = dma.hbm_to_vmem [thread:$0]  %s8, 64, %s113, [#allocation18]
    $region37: #{vgg_server_forward.1} parent=1 // pred_fallthru
      _
    // Predicated region
    $region38: #{vgg_server_forward.1} parent=1 // pred_check
      _
    $region39: #{vgg_server_forward.1} parent=1 // pred_check_branch
      %117 = sbr.rel (0) target = $region41
    $region40: #{vgg_server_forward.1} parent=1 // pred_region
      %s119 = ssub.s32 16384, 16384
      %120 = vsyncadd [#allocation18], %s119
      %s121 = sshll.u32 [#allocation19], 4
      %s122 = int_to_ptr.vmem [resolvable:$true] %s121
      %127 = dma.hbm_to_vmem [thread:$0]  %s9, 16384, %s122, [#allocation18], 256, 256, 16
    $region41: #{vgg_server_forward.1} parent=1 // pred_fallthru
      _
    // Predicated region
    $region42: #{vgg_server_forward.1} parent=1 // pred_check
      _
    $region43: #{vgg_server_forward.1} parent=1 // pred_check_branch
      %129 = sbr.rel (0) target = $region45
    $region44: #{vgg_server_forward.1} parent=1 // pred_region
      %s131 = ssub.s32 64, 64
      %132 = vsyncadd [#allocation21], %s131
      %s134 = sshll.u32 [#allocation20], 4
      %s135 = int_to_ptr.vmem [resolvable:$true] %s134
      %137 = dma.hbm_to_vmem [thread:$0]  %s10, 64, %s135, [#allocation21]
    $region45: #{vgg_server_forward.1} parent=1 // pred_fallthru
      _
    // Predicated region
    $region46: #{vgg_server_forward.1} parent=1 // pred_check
      _
    $region47: #{vgg_server_forward.1} parent=1 // pred_check_branch
      %139 = sbr.rel (0) target = $region49
    $region48: #{vgg_server_forward.1} parent=1 // pred_region
      %s141 = ssub.s32 4096, 4096
      %142 = vsyncadd [#allocation21], %s141
      %s143 = sshll.u32 [#allocation22], 4
      %s144 = int_to_ptr.vmem [resolvable:$true] %s143
      %149 = dma.hbm_to_vmem [thread:$0]  %s11, 4096, %s144, [#allocation21], 64, 64, 4
    $region49: #{vgg_server_forward.1} parent=1 // pred_fallthru
      _
    // Predicated region
    $region50: #{vgg_server_forward.1} parent=1 // pred_check
      _
    $region51: #{vgg_server_forward.1} parent=1 // pred_check_branch
      %151 = sbr.rel (0) target = $region53
    $region52: #{vgg_server_forward.1} parent=1 // pred_region
      %s153 = ssub.s32 16, 16
      %154 = vsyncadd [#allocation24], %s153
      %s156 = sshll.u32 [#allocation23], 4
      %s157 = int_to_ptr.vmem [resolvable:$true] %s156
      %159 = dma.hbm_to_vmem [thread:$0]  %s12, 16, %s157, [#allocation24]
    $region53: #{vgg_server_forward.1} parent=1 // pred_fallthru
      _
    // Predicated region
    $region54: #{vgg_server_forward.1} parent=1 // pred_check
      _
    $region55: #{vgg_server_forward.1} parent=1 // pred_check_branch
      %161 = sbr.rel (0) target = $region57
    $region56: #{vgg_server_forward.1} parent=1 // pred_region
      %162 = dma.done [#allocation6], 288
    $region57: #{vgg_server_forward.1} parent=1 // pred_fallthru
      _
    // Predicated region
    $region58: #{vgg_server_forward.1} parent=1 // pred_check
      _
    $region59: #{vgg_server_forward.1} parent=1 // pred_check_branch
      %164 = sbr.rel (0) target = $region61
    $region60: #{vgg_server_forward.1} parent=1 // pred_region
      %165 = dma.done [#allocation9], 16
    $region61: #{vgg_server_forward.1} parent=1 // pred_fallthru
      _
    // Predicated region
    $region62: #{vgg_server_forward.1} parent=1 // pred_check
      _
    $region63: #{vgg_server_forward.1} parent=1 // pred_check_branch
      %167 = sbr.rel (0) target = $region65
    $region64: #{vgg_server_forward.1} parent=1 // pred_region
      %168 = dma.done [#allocation9], 4608
    $region65: #{vgg_server_forward.1} parent=1 // pred_fallthru
      _
    // Predicated region
    $region66: #{vgg_server_forward.1} parent=1 // pred_check
      _
    $region67: #{vgg_server_forward.1} parent=1 // pred_check_branch
      %170 = sbr.rel (0) target = $region69
    $region68: #{vgg_server_forward.1} parent=1 // pred_region
      %171 = dma.done [#allocation12], 16
    $region69: #{vgg_server_forward.1} parent=1 // pred_fallthru
      _
    // Predicated region
    $region70: #{vgg_server_forward.1} parent=1 // pred_check
      _
    $region71: #{vgg_server_forward.1} parent=1 // pred_check_branch
      %173 = sbr.rel (0) target = $region73
    $region72: #{vgg_server_forward.1} parent=1 // pred_region
      %174 = dma.done [#allocation12], 36864
    $region73: #{vgg_server_forward.1} parent=1 // pred_fallthru
      _
    // Predicated region
    $region74: #{vgg_server_forward.1} parent=1 // pred_check
      _
    $region75: #{vgg_server_forward.1} parent=1 // pred_check_branch
      %176 = sbr.rel (0) target = $region77
    $region76: #{vgg_server_forward.1} parent=1 // pred_region
      %177 = dma.done [#allocation15], 64
    $region77: #{vgg_server_forward.1} parent=1 // pred_fallthru
      _
    // Predicated region
    $region78: #{vgg_server_forward.1} parent=1 // pred_check
      _
    $region79: #{vgg_server_forward.1} parent=1 // pred_check_branch
      %179 = sbr.rel (0) target = $region81
    $region80: #{vgg_server_forward.1} parent=1 // pred_region
      %180 = dma.done [#allocation15], 16384
    $region81: #{vgg_server_forward.1} parent=1 // pred_fallthru
      _
    // Predicated region
    $region82: #{vgg_server_forward.1} parent=1 // pred_check
      _
    $region83: #{vgg_server_forward.1} parent=1 // pred_check_branch
      %182 = sbr.rel (0) target = $region85
    $region84: #{vgg_server_forward.1} parent=1 // pred_region
      %183 = dma.done [#allocation18], 64
    $region85: #{vgg_server_forward.1} parent=1 // pred_fallthru
      _
    // Predicated region
    $region86: #{vgg_server_forward.1} parent=1 // pred_check
      _
    $region87: #{vgg_server_forward.1} parent=1 // pred_check_branch
      %185 = sbr.rel (0) target = $region89
    $region88: #{vgg_server_forward.1} parent=1 // pred_region
      %186 = dma.done [#allocation18], 16384
    $region89: #{vgg_server_forward.1} parent=1 // pred_fallthru
      _
    // Predicated region
    $region90: #{vgg_server_forward.1} parent=1 // pred_check
      _
    $region91: #{vgg_server_forward.1} parent=1 // pred_check_branch
      %188 = sbr.rel (0) target = $region93
    $region92: #{vgg_server_forward.1} parent=1 // pred_region
      %189 = dma.done [#allocation21], 64
    $region93: #{vgg_server_forward.1} parent=1 // pred_fallthru
      _
    // Predicated region
    $region94: #{vgg_server_forward.1} parent=1 // pred_check
      _
    $region95: #{vgg_server_forward.1} parent=1 // pred_check_branch
      %191 = sbr.rel (0) target = $region97
    $region96: #{vgg_server_forward.1} parent=1 // pred_region
      %192 = dma.done [#allocation21], 4096
    $region97: #{vgg_server_forward.1} parent=1 // pred_fallthru
      _
    // Predicated region
    $region98: #{vgg_server_forward.1} parent=1 // pred_check
      _
    $region99: #{vgg_server_forward.1} parent=1 // pred_check_branch
      %194 = sbr.rel (0) target = $region101
    $region100: #{vgg_server_forward.1} parent=1 // pred_region
      %195 = dma.done [#allocation24], 16
    $region101: #{vgg_server_forward.1} parent=1 // pred_fallthru
      _
    %v197 = vld [vmem:[%s0] sm:$0xf]
    %v198 = vld [vmem:[%s0 + $0x4] sm:$0xf]
    %v199 = vld [vmem:[%s0 + $0x8] sm:$0xf]
    %v200 = vld [vmem:[%s0 + $0xc] sm:$0xf]
    %v201 = vld [vmem:[%s0 + $0x10] sm:$0xf]
    %v202 = vld [vmem:[%s0 + $0x14] sm:$0xf]
    %v203 = vld [vmem:[%s0 + $0x18] sm:$0xf]
    %v204 = vld [vmem:[%s0 + $0x1c] sm:$0xf]
    %v205 = vld [vmem:[%s0 + $0x20] sm:$0xf]
    %v206 = vld [vmem:[%s0 + $0x24] sm:$0xf]
    %v207 = vld [vmem:[%s0 + $0x28] sm:$0xf]
    %v208 = vld [vmem:[%s0 + $0x2c] sm:$0xf]
    %v209 = vld [vmem:[%s0 + $0x30] sm:$0xf]
    %v210 = vld [vmem:[%s0 + $0x34] sm:$0xf]
    %v211 = vld [vmem:[%s0 + $0x38] sm:$0xf]
    %v212 = vld [vmem:[%s0 + $0x3c] sm:$0xf]
    %vm213 = vcmask 27648
    %214 = vst.msk [vmem:[#allocation2] sm:$0xf] %vm213, 0
    %vm215 = vcmask 24576
    %216 = vst.msk [vmem:[#allocation2 + $0x4] sm:$0x1] %vm215, 0
    %217 = vst.msk [vmem:[#allocation2 + $0x8] sm:$0xf] %vm213, 0
    %218 = vst.msk [vmem:[#allocation2 + $0xc] sm:$0x1] %vm215, 0
    %219 = vst.msk [vmem:[#allocation2 + $0x10] sm:$0xf] %vm213, 0
    %220 = vst.msk [vmem:[#allocation2 + $0x14] sm:$0x1] %vm215, 0
    %221 = vst.msk [vmem:[#allocation2 + $0x18] sm:$0xf] %vm213, 0
    %222 = vst.msk [vmem:[#allocation2 + $0x1c] sm:$0x1] %vm215, 0
    %223 = vst.msk [vmem:[#allocation2 + $0x20] sm:$0xf] %vm213, 0
    %224 = vst.msk [vmem:[#allocation2 + $0x24] sm:$0x1] %vm215, 0
    %225 = vst.msk [vmem:[#allocation2 + $0x28] sm:$0xf] %vm213, 0
    %226 = vst.msk [vmem:[#allocation2 + $0x2c] sm:$0x1] %vm215, 0
    %227 = vst.msk [vmem:[#allocation2 + $0x30] sm:$0xf] %vm213, 0
    %228 = vst.msk [vmem:[#allocation2 + $0x34] sm:$0x1] %vm215, 0
    %229 = vst.msk [vmem:[#allocation2 + $0x38] sm:$0xf] %vm213, 0
    %230 = vst.msk [vmem:[#allocation2 + $0x3c] sm:$0x1] %vm215, 0
    %231 = vst.msk [vmem:[#allocation2 + $0x40] sm:$0xf] %vm213, 0
    %232 = vst.msk [vmem:[#allocation2 + $0x44] sm:$0x1] %vm215, 0
    %233 = vst.msk [vmem:[#allocation2 + $0x48] sm:$0xf] %vm213, 0
    %234 = vst.msk [vmem:[#allocation2 + $0x4c] sm:$0x1] %vm215, 0
    %235 = vst.msk [vmem:[#allocation2 + $0x50] sm:$0xf] %vm213, 0
    %236 = vst.msk [vmem:[#allocation2 + $0x54] sm:$0x1] %vm215, 0
    %237 = vst.msk [vmem:[#allocation2 + $0x58] sm:$0xf] %vm213, 0
    %238 = vst.msk [vmem:[#allocation2 + $0x5c] sm:$0x1] %vm215, 0
    %239 = vst.msk [vmem:[#allocation2 + $0x60] sm:$0xf] %vm213, 0
    %240 = vst.msk [vmem:[#allocation2 + $0x64] sm:$0x1] %vm215, 0
    %241 = vst.msk [vmem:[#allocation2 + $0x68] sm:$0xf] %vm213, 0
    %242 = vst.msk [vmem:[#allocation2 + $0x6c] sm:$0x1] %vm215, 0
    %243 = vst.msk [vmem:[#allocation2 + $0x70] sm:$0xf] %vm213, 0
    %244 = vst.msk [vmem:[#allocation2 + $0x74] sm:$0x1] %vm215, 0
    %245 = vst.msk [vmem:[#allocation2 + $0x78] sm:$0xf] %vm213, 0
    %246 = vst.msk [vmem:[#allocation2 + $0x7c] sm:$0x1] %vm215, 0
    %247 = vst.msk [vmem:[#allocation2 + $0x80] sm:$0xf] %vm213, 0
    %248 = vst.msk [vmem:[#allocation2 + $0x84] sm:$0x1] %vm215, 0
    %249 = vst.msk [vmem:[#allocation2 + $0x88] sm:$0xf] %vm213, 0
    %250 = vst.msk [vmem:[#allocation2 + $0x8c] sm:$0x1] %vm215, 0
    %251 = vst.msk [vmem:[#allocation2 + $0x90] sm:$0xf] %vm213, 0
    %252 = vst.msk [vmem:[#allocation2 + $0x94] sm:$0x1] %vm215, 0
    %253 = vst.msk [vmem:[#allocation2 + $0x98] sm:$0xf] %vm213, 0
    %254 = vst.msk [vmem:[#allocation2 + $0x9c] sm:$0x1] %vm215, 0
    %v256 = vshrl.u32 %v197, 16
    %v258 = vrot.slane %v256, 7
    %v259 = vshll.u32 %v197, 16
    %v261 = vor.u32 %v258, %v259
    %v262 = vrot.slane %v258, 4
    %v264 = vshrl.u32 %v198, 16
    %v266 = vrot.slane %v264, 7
    %v267 = vshll.u32 %v198, 16
    %v269 = vor.u32 %v266, %v267
    %v270 = vrot.slane %v266, 4
    %v272 = vshrl.u32 %v199, 16
    %v274 = vrot.slane %v272, 7
    %v275 = vshll.u32 %v199, 16
    %v277 = vor.u32 %v274, %v275
    %v278 = vrot.slane %v274, 4
    %v280 = vshrl.u32 %v200, 16
    %v282 = vrot.slane %v280, 7
    %v283 = vshll.u32 %v200, 16
    %v285 = vor.u32 %v282, %v283
    %v286 = vrot.slane %v282, 4
    %v288 = vshrl.u32 %v201, 16
    %v290 = vrot.slane %v288, 7
    %v291 = vshll.u32 %v201, 16
    %v293 = vor.u32 %v290, %v291
    %v294 = vrot.slane %v290, 4
    %v296 = vshrl.u32 %v202, 16
    %v298 = vrot.slane %v296, 7
    %v299 = vshll.u32 %v202, 16
    %v301 = vor.u32 %v298, %v299
    %v302 = vrot.slane %v298, 4
    %v304 = vshrl.u32 %v203, 16
    %v306 = vrot.slane %v304, 7
    %v307 = vshll.u32 %v203, 16
    %v309 = vor.u32 %v306, %v307
    %v310 = vrot.slane %v306, 4
    %v312 = vshrl.u32 %v204, 16
    %v314 = vrot.slane %v312, 7
    %v315 = vshll.u32 %v204, 16
    %v317 = vor.u32 %v314, %v315
    %v318 = vrot.slane %v314, 4
    %v320 = vshrl.u32 %v205, 16
    %v322 = vrot.slane %v320, 7
    %v323 = vshll.u32 %v205, 16
    %v325 = vor.u32 %v322, %v323
    %v326 = vrot.slane %v322, 4
    %v328 = vshrl.u32 %v206, 16
    %v330 = vrot.slane %v328, 7
    %v331 = vshll.u32 %v206, 16
    %v333 = vor.u32 %v330, %v331
    %v334 = vrot.slane %v330, 4
    %v336 = vshrl.u32 %v207, 16
    %v338 = vrot.slane %v336, 7
    %v339 = vshll.u32 %v207, 16
    %v341 = vor.u32 %v338, %v339
    %v342 = vrot.slane %v338, 4
    %v344 = vshrl.u32 %v208, 16
    %v346 = vrot.slane %v344, 7
    %v347 = vshll.u32 %v208, 16
    %v349 = vor.u32 %v346, %v347
    %v350 = vrot.slane %v346, 4
    %v352 = vshrl.u32 %v209, 16
    %v354 = vrot.slane %v352, 7
    %v355 = vshll.u32 %v209, 16
    %v357 = vor.u32 %v354, %v355
    %v358 = vrot.slane %v354, 4
    %v360 = vshrl.u32 %v210, 16
    %v362 = vrot.slane %v360, 7
    %v363 = vshll.u32 %v210, 16
    %v365 = vor.u32 %v362, %v363
    %v366 = vrot.slane %v362, 4
    %v368 = vshrl.u32 %v211, 16
    %v370 = vrot.slane %v368, 7
    %v371 = vshll.u32 %v211, 16
    %v373 = vor.u32 %v370, %v371
    %v374 = vrot.slane %v370, 4
    %v376 = vshrl.u32 %v212, 16
    %v378 = vrot.slane %v376, 7
    %v379 = vshll.u32 %v212, 16
    %v381 = vor.u32 %v378, %v379
    %v382 = vrot.slane %v378, 4
    %s415 = scalar_lea.vmem [#allocation2], 8
    %vm416 = vcmask 27648
    %vm417 = vsmask.f32 7938
    %vm418 = vmand %vm416, %vm417
    %v419 = vld [vmem:[%s415] sm:$0xf]
    %v420 = vsel %vm418, %v261, %v419
    %421 = vst [vmem:[%s415] sm:$0xf] %v420
    %vm422 = vcmask 24576
    %vm423 = vsmask.f32 256
    %vm424 = vmand %vm422, %vm423
    %v425 = vld [vmem:[%s415 + $0x4] sm:$0x1]
    %v426 = vsel %vm424, %v262, %v425
    %427 = vst [vmem:[%s415 + $0x4] sm:$0x1] %v426
    %v428 = vld [vmem:[%s415 + $0x8] sm:$0xf]
    %v429 = vsel %vm418, %v269, %v428
    %430 = vst [vmem:[%s415 + $0x8] sm:$0xf] %v429
    %v431 = vld [vmem:[%s415 + $0xc] sm:$0x1]
    %v432 = vsel %vm424, %v270, %v431
    %433 = vst [vmem:[%s415 + $0xc] sm:$0x1] %v432
    %v434 = vld [vmem:[%s415 + $0x10] sm:$0xf]
    %v435 = vsel %vm418, %v277, %v434
    %436 = vst [vmem:[%s415 + $0x10] sm:$0xf] %v435
    %v437 = vld [vmem:[%s415 + $0x14] sm:$0x1]
    %v438 = vsel %vm424, %v278, %v437
    %439 = vst [vmem:[%s415 + $0x14] sm:$0x1] %v438
    %v440 = vld [vmem:[%s415 + $0x18] sm:$0xf]
    %v441 = vsel %vm418, %v285, %v440
    %442 = vst [vmem:[%s415 + $0x18] sm:$0xf] %v441
    %v443 = vld [vmem:[%s415 + $0x1c] sm:$0x1]
    %v444 = vsel %vm424, %v286, %v443
    %445 = vst [vmem:[%s415 + $0x1c] sm:$0x1] %v444
    %v446 = vld [vmem:[%s415 + $0x20] sm:$0xf]
    %v447 = vsel %vm418, %v293, %v446
    %448 = vst [vmem:[%s415 + $0x20] sm:$0xf] %v447
    %v449 = vld [vmem:[%s415 + $0x24] sm:$0x1]
    %v450 = vsel %vm424, %v294, %v449
    %451 = vst [vmem:[%s415 + $0x24] sm:$0x1] %v450
    %v452 = vld [vmem:[%s415 + $0x28] sm:$0xf]
    %v453 = vsel %vm418, %v301, %v452
    %454 = vst [vmem:[%s415 + $0x28] sm:$0xf] %v453
    %v455 = vld [vmem:[%s415 + $0x2c] sm:$0x1]
    %v456 = vsel %vm424, %v302, %v455
    %457 = vst [vmem:[%s415 + $0x2c] sm:$0x1] %v456
    %v458 = vld [vmem:[%s415 + $0x30] sm:$0xf]
    %v459 = vsel %vm418, %v309, %v458
    %460 = vst [vmem:[%s415 + $0x30] sm:$0xf] %v459
    %v461 = vld [vmem:[%s415 + $0x34] sm:$0x1]
    %v462 = vsel %vm424, %v310, %v461
    %463 = vst [vmem:[%s415 + $0x34] sm:$0x1] %v462
    %v464 = vld [vmem:[%s415 + $0x38] sm:$0xf]
    %v465 = vsel %vm418, %v317, %v464
    %466 = vst [vmem:[%s415 + $0x38] sm:$0xf] %v465
    %v467 = vld [vmem:[%s415 + $0x3c] sm:$0x1]
    %v468 = vsel %vm424, %v318, %v467
    %469 = vst [vmem:[%s415 + $0x3c] sm:$0x1] %v468
    %v470 = vld [vmem:[%s415 + $0x50] sm:$0xf]
    %v471 = vsel %vm418, %v325, %v470
    %472 = vst [vmem:[%s415 + $0x50] sm:$0xf] %v471
    %v473 = vld [vmem:[%s415 + $0x54] sm:$0x1]
    %v474 = vsel %vm424, %v326, %v473
    %475 = vst [vmem:[%s415 + $0x54] sm:$0x1] %v474
    %v476 = vld [vmem:[%s415 + $0x58] sm:$0xf]
    %v477 = vsel %vm418, %v333, %v476
    %478 = vst [vmem:[%s415 + $0x58] sm:$0xf] %v477
    %v479 = vld [vmem:[%s415 + $0x5c] sm:$0x1]
    %v480 = vsel %vm424, %v334, %v479
    %481 = vst [vmem:[%s415 + $0x5c] sm:$0x1] %v480
    %v482 = vld [vmem:[%s415 + $0x60] sm:$0xf]
    %v483 = vsel %vm418, %v341, %v482
    %484 = vst [vmem:[%s415 + $0x60] sm:$0xf] %v483
    %v485 = vld [vmem:[%s415 + $0x64] sm:$0x1]
    %v486 = vsel %vm424, %v342, %v485
    %487 = vst [vmem:[%s415 + $0x64] sm:$0x1] %v486
    %v488 = vld [vmem:[%s415 + $0x68] sm:$0xf]
    %v489 = vsel %vm418, %v349, %v488
    %490 = vst [vmem:[%s415 + $0x68] sm:$0xf] %v489
    %v491 = vld [vmem:[%s415 + $0x6c] sm:$0x1]
    %v492 = vsel %vm424, %v350, %v491
    %493 = vst [vmem:[%s415 + $0x6c] sm:$0x1] %v492
    %v494 = vld [vmem:[%s415 + $0x70] sm:$0xf]
    %v495 = vsel %vm418, %v357, %v494
    %496 = vst [vmem:[%s415 + $0x70] sm:$0xf] %v495
    %v497 = vld [vmem:[%s415 + $0x74] sm:$0x1]
    %v498 = vsel %vm424, %v358, %v497
    %499 = vst [vmem:[%s415 + $0x74] sm:$0x1] %v498
    %v500 = vld [vmem:[%s415 + $0x78] sm:$0xf]
    %v501 = vsel %vm418, %v365, %v500
    %502 = vst [vmem:[%s415 + $0x78] sm:$0xf] %v501
    %v503 = vld [vmem:[%s415 + $0x7c] sm:$0x1]
    %v504 = vsel %vm424, %v366, %v503
    %505 = vst [vmem:[%s415 + $0x7c] sm:$0x1] %v504
    %v506 = vld [vmem:[%s415 + $0x80] sm:$0xf]
    %v507 = vsel %vm418, %v373, %v506
    %508 = vst [vmem:[%s415 + $0x80] sm:$0xf] %v507
    %v509 = vld [vmem:[%s415 + $0x84] sm:$0x1]
    %v510 = vsel %vm424, %v374, %v509
    %511 = vst [vmem:[%s415 + $0x84] sm:$0x1] %v510
    %v512 = vld [vmem:[%s415 + $0x88] sm:$0xf]
    %v513 = vsel %vm418, %v381, %v512
    %514 = vst [vmem:[%s415 + $0x88] sm:$0xf] %v513
    %v515 = vld [vmem:[%s415 + $0x8c] sm:$0x1]
    %v516 = vsel %vm424, %v382, %v515
    %517 = vst [vmem:[%s415 + $0x8c] sm:$0x1] %v516
    %v518 = vld [vmem:[#allocation2] sm:$0xf]
    %v519 = vld [vmem:[#allocation2 + $0x8] sm:$0xf]
    %v520 = vld [vmem:[#allocation2 + $0x10] sm:$0xf]
    %v521 = vld [vmem:[#allocation2 + $0x18] sm:$0xf]
    %v522 = vld [vmem:[#allocation2 + $0x20] sm:$0xf]
    %v523 = vld [vmem:[#allocation2 + $0x28] sm:$0xf]
    %v524 = vld [vmem:[#allocation2 + $0x30] sm:$0xf]
    %v525 = vld [vmem:[#allocation2 + $0x38] sm:$0xf]
    %v526 = vld [vmem:[#allocation2 + $0x50] sm:$0xf]
    %v527 = vld [vmem:[#allocation2 + $0x58] sm:$0xf]
    %v528 = vld [vmem:[#allocation2 + $0x60] sm:$0xf]
    %v529 = vld [vmem:[#allocation2 + $0x68] sm:$0xf]
    %v530 = vld [vmem:[#allocation2 + $0x70] sm:$0xf]
    %v531 = vld [vmem:[#allocation2 + $0x78] sm:$0xf]
    %v532 = vld [vmem:[#allocation2 + $0x80] sm:$0xf]
    %v533 = vld [vmem:[#allocation2 + $0x88] sm:$0xf]
    %v534 = vld [vmem:[#allocation5] sm:$0x3]
    %v535 = vld [vmem:[#allocation2 + $0x4] sm:$0x1]
    %v536 = vld [vmem:[#allocation2 + $0xc] sm:$0x1]
    %v537 = vld [vmem:[#allocation2 + $0x14] sm:$0x1]
    %v538 = vld [vmem:[#allocation2 + $0x1c] sm:$0x1]
    %v539 = vld [vmem:[#allocation2 + $0x24] sm:$0x1]
    %v540 = vld [vmem:[#allocation2 + $0x2c] sm:$0x1]
    %v541 = vld [vmem:[#allocation2 + $0x34] sm:$0x1]
    %v542 = vld [vmem:[#allocation2 + $0x3c] sm:$0x1]
    %v543 = vld [vmem:[#allocation2 + $0x54] sm:$0x1]
    %v544 = vld [vmem:[#allocation2 + $0x5c] sm:$0x1]
    %v545 = vld [vmem:[#allocation2 + $0x64] sm:$0x1]
    %v546 = vld [vmem:[#allocation2 + $0x6c] sm:$0x1]
    %v547 = vld [vmem:[#allocation2 + $0x74] sm:$0x1]
    %v548 = vld [vmem:[#allocation2 + $0x7c] sm:$0x1]
    %v549 = vld [vmem:[#allocation2 + $0x84] sm:$0x1]
    %v550 = vld [vmem:[#allocation2 + $0x8c] sm:$0x1]
    %vm551 = vsmask.f32 3328
    %vm552 = vsmask.f32 7440
    %vm553 = vmor %vm551, %vm552
    %v555 = vshrl.u32 %v518, 16
    %v557 = vrot.slane %v555, 4
    %v558 = vshll.u32 %v518, 16
    %v560 = vrot.slane %v558, 5
    %v561 = vor.u32 %v557, %v560
    %v562 = vrot.slane %v561, 4
    %v564 = vshll.u32 %v535, 16
    %v566 = vrot.slane %v564, 5
    %v567 = vsel %vm553, %v562, %v566
    %v569 = vshrl.u32 %v519, 16
    %v571 = vrot.slane %v569, 4
    %v572 = vshll.u32 %v519, 16
    %v574 = vrot.slane %v572, 5
    %v575 = vor.u32 %v571, %v574
    %v576 = vrot.slane %v575, 4
    %v578 = vshll.u32 %v536, 16
    %v580 = vrot.slane %v578, 5
    %v581 = vsel %vm553, %v576, %v580
    %v583 = vshrl.u32 %v520, 16
    %v585 = vrot.slane %v583, 4
    %v586 = vshll.u32 %v520, 16
    %v588 = vrot.slane %v586, 5
    %v589 = vor.u32 %v585, %v588
    %v590 = vrot.slane %v589, 4
    %v592 = vshll.u32 %v537, 16
    %v594 = vrot.slane %v592, 5
    %v595 = vsel %vm553, %v590, %v594
    %v597 = vshrl.u32 %v521, 16
    %v599 = vrot.slane %v597, 4
    %v600 = vshll.u32 %v521, 16
    %v602 = vrot.slane %v600, 5
    %v603 = vor.u32 %v599, %v602
    %v604 = vrot.slane %v603, 4
    %v606 = vshll.u32 %v538, 16
    %v608 = vrot.slane %v606, 5
    %v609 = vsel %vm553, %v604, %v608
    %v611 = vshrl.u32 %v522, 16
    %v613 = vrot.slane %v611, 4
    %v614 = vshll.u32 %v522, 16
    %v616 = vrot.slane %v614, 5
    %v617 = vor.u32 %v613, %v616
    %v618 = vrot.slane %v617, 4
    %v620 = vshll.u32 %v539, 16
    %v622 = vrot.slane %v620, 5
    %v623 = vsel %vm553, %v618, %v622
    %v625 = vshrl.u32 %v523, 16
    %v627 = vrot.slane %v625, 4
    %v628 = vshll.u32 %v523, 16
    %v630 = vrot.slane %v628, 5
    %v631 = vor.u32 %v627, %v630
    %v632 = vrot.slane %v631, 4
    %v634 = vshll.u32 %v540, 16
    %v636 = vrot.slane %v634, 5
    %v637 = vsel %vm553, %v632, %v636
    %v639 = vshrl.u32 %v524, 16
    %v641 = vrot.slane %v639, 4
    %v642 = vshll.u32 %v524, 16
    %v644 = vrot.slane %v642, 5
    %v645 = vor.u32 %v641, %v644
    %v646 = vrot.slane %v645, 4
    %v648 = vshll.u32 %v541, 16
    %v650 = vrot.slane %v648, 5
    %v651 = vsel %vm553, %v646, %v650
    %v653 = vshrl.u32 %v525, 16
    %v655 = vrot.slane %v653, 4
    %v656 = vshll.u32 %v525, 16
    %v658 = vrot.slane %v656, 5
    %v659 = vor.u32 %v655, %v658
    %v660 = vrot.slane %v659, 4
    %v662 = vshll.u32 %v542, 16
    %v664 = vrot.slane %v662, 5
    %v665 = vsel %vm553, %v660, %v664
    %v667 = vshrl.u32 %v526, 16
    %v669 = vrot.slane %v667, 4
    %v670 = vshll.u32 %v526, 16
    %v672 = vrot.slane %v670, 5
    %v673 = vor.u32 %v669, %v672
    %v674 = vrot.slane %v673, 4
    %v676 = vshll.u32 %v543, 16
    %v678 = vrot.slane %v676, 5
    %v679 = vsel %vm553, %v674, %v678
    %v681 = vshrl.u32 %v527, 16
    %v683 = vrot.slane %v681, 4
    %v684 = vshll.u32 %v527, 16
    %v686 = vrot.slane %v684, 5
    %v687 = vor.u32 %v683, %v686
    %v688 = vrot.slane %v687, 4
    %v690 = vshll.u32 %v544, 16
    %v692 = vrot.slane %v690, 5
    %v693 = vsel %vm553, %v688, %v692
    %v695 = vshrl.u32 %v528, 16
    %v697 = vrot.slane %v695, 4
    %v698 = vshll.u32 %v528, 16
    %v700 = vrot.slane %v698, 5
    %v701 = vor.u32 %v697, %v700
    %v702 = vrot.slane %v701, 4
    %v704 = vshll.u32 %v545, 16
    %v706 = vrot.slane %v704, 5
    %v707 = vsel %vm553, %v702, %v706
    %v709 = vshrl.u32 %v529, 16
    %v711 = vrot.slane %v709, 4
    %v712 = vshll.u32 %v529, 16
    %v714 = vrot.slane %v712, 5
    %v715 = vor.u32 %v711, %v714
    %v716 = vrot.slane %v715, 4
    %v718 = vshll.u32 %v546, 16
    %v720 = vrot.slane %v718, 5
    %v721 = vsel %vm553, %v716, %v720
    %v723 = vshrl.u32 %v530, 16
    %v725 = vrot.slane %v723, 4
    %v726 = vshll.u32 %v530, 16
    %v728 = vrot.slane %v726, 5
    %v729 = vor.u32 %v725, %v728
    %v730 = vrot.slane %v729, 4
    %v732 = vshll.u32 %v547, 16
    %v734 = vrot.slane %v732, 5
    %v735 = vsel %vm553, %v730, %v734
    %v737 = vshrl.u32 %v531, 16
    %v739 = vrot.slane %v737, 4
    %v740 = vshll.u32 %v531, 16
    %v742 = vrot.slane %v740, 5
    %v743 = vor.u32 %v739, %v742
    %v744 = vrot.slane %v743, 4
    %v746 = vshll.u32 %v548, 16
    %v748 = vrot.slane %v746, 5
    %v749 = vsel %vm553, %v744, %v748
    %v751 = vshrl.u32 %v532, 16
    %v753 = vrot.slane %v751, 4
    %v754 = vshll.u32 %v532, 16
    %v756 = vrot.slane %v754, 5
    %v757 = vor.u32 %v753, %v756
    %v758 = vrot.slane %v757, 4
    %v760 = vshll.u32 %v549, 16
    %v762 = vrot.slane %v760, 5
    %v763 = vsel %vm553, %v758, %v762
    %v765 = vshrl.u32 %v533, 16
    %v767 = vrot.slane %v765, 4
    %v768 = vshll.u32 %v533, 16
    %v770 = vrot.slane %v768, 5
    %v771 = vor.u32 %v767, %v770
    %v772 = vrot.slane %v771, 4
    %v774 = vshll.u32 %v550, 16
    %v776 = vrot.slane %v774, 5
    %v777 = vsel %vm553, %v772, %v776
    %s778 = scalar_lea.vmem [#allocation5], 2
    %v779 = vld [vmem:[%s778] sm:$0x3]
    %v780 = vunpack.c.l.b16 %v567
    %v781 = vunpack.c.l.b16 %v581
    %v782 = vunpack.c.l.b16 %v595
    %v783 = vunpack.c.l.b16 %v609
    %v784 = vunpack.c.l.b16 %v623
    %v785 = vunpack.c.l.b16 %v637
    %v786 = vunpack.c.l.b16 %v651
    %v787 = vunpack.c.l.b16 %v665
    %v788 = vunpack.c.l.b16 %v679
    %v789 = vunpack.c.l.b16 %v693
    %v790 = vunpack.c.l.b16 %v707
    %v791 = vunpack.c.l.b16 %v721
    %v792 = vunpack.c.l.b16 %v735
    %v793 = vunpack.c.l.b16 %v749
    %v794 = vunpack.c.l.b16 %v763
    %v795 = vunpack.c.l.b16 %v777
    %v796 = vpack.c.b16 %v781, %v780
    %v797 = vpack.c.b16 %v783, %v782
    %v798 = vpack.c.b16 %v785, %v784
    %v799 = vpack.c.b16 %v787, %v786
    %v800 = vpack.c.b16 %v789, %v788
    %v801 = vpack.c.b16 %v791, %v790
    %v802 = vpack.c.b16 %v793, %v792
    %v803 = vpack.c.b16 %v795, %v794
    %vm804 = vcmask 31744
    %v806 = vsel %vm804, %v796, 0
    %v809 = vsel %vm804, %v797, 0
    %v812 = vsel %vm804, %v798, 0
    %v815 = vsel %vm804, %v799, 0
    %v818 = vsel %vm804, %v800, 0
    %v821 = vsel %vm804, %v801, 0
    %v824 = vsel %vm804, %v802, 0
    %v827 = vsel %vm804, %v803, 0
    %vm829 = vcmask 1041408
    %v831 = vsel %vm829, %v779, 0
    %833 = vmatprep.subr.bf16.mxu0 0
    %834 = vmatpush1.bf16.msra.mxu0 %v831
    %835 = vmatprep.subr.bf16.mxu0 0
    %836 = vmatpush1.bf16.msra.mxu0 0
    %837 = vmatprep.subr.bf16.mxu0 0
    %838 = vmatpush1.bf16.msra.mxu0 0
    %839 = vmatprep.subr.bf16.mxu0 0
    %840 = vmatpush1.bf16.msra.mxu0 0
    %841 = vmatprep.subr.bf16.mxu0 0
    %842 = vmatpush1.bf16.msra.mxu0 0
    %843 = vmatprep.subr.bf16.mxu0 0
    %844 = vmatpush1.bf16.msra.mxu0 0
    %845 = vmatprep.subr.bf16.mxu0 0
    %846 = vmatpush1.bf16.msra.mxu0 0
    %847 = vmatprep.subr.bf16.mxu0 0
    %848 = vmatpush1.bf16.msra.mxu0 0
    %849 = vmatprep.subr.bf16.mxu0 0
    %850 = vmatpush1.bf16.msra.mxu0 0
    %851 = vmatprep.subr.bf16.mxu0 0
    %852 = vmatpush1.bf16.msra.mxu0 0
    %853 = vmatprep.subr.bf16.mxu0 0
    %854 = vmatpush1.bf16.msra.mxu0 0
    %855 = vmatprep.subr.bf16.mxu0 0
    %856 = vmatpush1.bf16.msra.mxu0 0
    %857 = vmatprep.subr.bf16.mxu0 0
    %858 = vmatpush1.bf16.msra.mxu0 0
    %859 = vmatprep.subr.bf16.mxu0 0
    %860 = vmatpush1.bf16.msra.mxu0 0
    %861 = vmatprep.subr.bf16.mxu0 0
    %862 = vmatpush1.bf16.msra.mxu0 0
    %863 = vmatprep.subr.bf16.mxu0 0
    %864 = vmatpush1.bf16.msra.mxu0 0
    %865 = vmatprep.mubr.bf16.mxu0 0
    %866 = vmatmul.mubr.bf16.gmra.mrb[0].mxu0 %v806
    %v867 = vpop.f32.mrb[0].mxu0
    %v868 = vadd.f32 0.0, %v867
    %v869 = vpop.f32.mrb[0].mxu0
    %v870 = vpop.f32.mrb[0].mxu0
    %v871 = vadd.f32 0.0, %v870
    %v872 = vpop.f32.mrb[0].mxu0
    %873 = vmatprep.mubr.bf16.mxu0 0
    %874 = vmatmul.mubr.bf16.gmra.mrb[0].mxu0 %v809
    %v875 = vpop.f32.mrb[0].mxu0
    %v876 = vadd.f32 0.0, %v875
    %v877 = vpop.f32.mrb[0].mxu0
    %v878 = vpop.f32.mrb[0].mxu0
    %v879 = vadd.f32 0.0, %v878
    %v880 = vpop.f32.mrb[0].mxu0
    %881 = vmatprep.mubr.bf16.mxu0 0
    %882 = vmatmul.mubr.bf16.gmra.mrb[0].mxu0 %v812
    %v883 = vpop.f32.mrb[0].mxu0
    %v884 = vadd.f32 0.0, %v883
    %v885 = vpop.f32.mrb[0].mxu0
    %v886 = vpop.f32.mrb[0].mxu0
    %v887 = vadd.f32 0.0, %v886
    %v888 = vpop.f32.mrb[0].mxu0
    %889 = vmatprep.mubr.bf16.mxu0 0
    %890 = vmatmul.mubr.bf16.gmra.mrb[0].mxu0 %v815
    %v891 = vpop.f32.mrb[0].mxu0
    %v892 = vadd.f32 0.0, %v891
    %v893 = vpop.f32.mrb[0].mxu0
    %v894 = vpop.f32.mrb[0].mxu0
    %v895 = vadd.f32 0.0, %v894
    %v896 = vpop.f32.mrb[0].mxu0
    %897 = vmatprep.mubr.bf16.mxu0 0
    %898 = vmatmul.mubr.bf16.gmra.mrb[0].mxu0 %v818
    %v899 = vpop.f32.mrb[0].mxu0
    %v900 = vadd.f32 0.0, %v899
    %v901 = vpop.f32.mrb[0].mxu0
    %v902 = vpop.f32.mrb[0].mxu0
    %v903 = vadd.f32 0.0, %v902
    %v904 = vpop.f32.mrb[0].mxu0
    %905 = vmatprep.mubr.bf16.mxu0 0
    %906 = vmatmul.mubr.bf16.gmra.mrb[0].mxu0 %v821
    %v907 = vpop.f32.mrb[0].mxu0
    %v908 = vadd.f32 0.0, %v907
    %v909 = vpop.f32.mrb[0].mxu0
    %v910 = vpop.f32.mrb[0].mxu0
    %v911 = vadd.f32 0.0, %v910
    %v912 = vpop.f32.mrb[0].mxu0
    %913 = vmatprep.mubr.bf16.mxu0 0
    %914 = vmatmul.mubr.bf16.gmra.mrb[0].mxu0 %v824
    %v915 = vpop.f32.mrb[0].mxu0
    %v916 = vadd.f32 0.0, %v915
    %v917 = vpop.f32.mrb[0].mxu0
    %v918 = vpop.f32.mrb[0].mxu0
    %v919 = vadd.f32 0.0, %v918
    %v920 = vpop.f32.mrb[0].mxu0
    %921 = vmatprep.mubr.bf16.mxu0 0
    %922 = vmatmul.mubr.bf16.gmra.mrb[0].mxu0 %v827
    %v923 = vpop.f32.mrb[0].mxu0
    %v924 = vadd.f32 0.0, %v923
    %v925 = vpop.f32.mrb[0].mxu0
    %v926 = vpop.f32.mrb[0].mxu0
    %v927 = vadd.f32 0.0, %v926
    %v928 = vpop.f32.mrb[0].mxu0
    %929 = vdwg.mxu0
    %v946 = vunpack.c.l.b16 %v518
    %v947 = vunpack.c.l.b16 %v519
    %v948 = vunpack.c.l.b16 %v520
    %v949 = vunpack.c.l.b16 %v521
    %v950 = vunpack.c.l.b16 %v522
    %v951 = vunpack.c.l.b16 %v523
    %v952 = vunpack.c.l.b16 %v524
    %v953 = vunpack.c.l.b16 %v525
    %v954 = vunpack.c.l.b16 %v526
    %v955 = vunpack.c.l.b16 %v527
    %v956 = vunpack.c.l.b16 %v528
    %v957 = vunpack.c.l.b16 %v529
    %v958 = vunpack.c.l.b16 %v530
    %v959 = vunpack.c.l.b16 %v531
    %v960 = vunpack.c.l.b16 %v532
    %v961 = vunpack.c.l.b16 %v533
    %v962 = vpack.c.b16 %v947, %v946
    %v963 = vpack.c.b16 %v949, %v948
    %v964 = vpack.c.b16 %v951, %v950
    %v965 = vpack.c.b16 %v953, %v952
    %v966 = vpack.c.b16 %v955, %v954
    %v967 = vpack.c.b16 %v957, %v956
    %v968 = vpack.c.b16 %v959, %v958
    %v969 = vpack.c.b16 %v961, %v960
    %v971 = vsel %vm804, %v962, 0
    %v974 = vsel %vm804, %v963, 0
    %v977 = vsel %vm804, %v964, 0
    %v980 = vsel %vm804, %v965, 0
    %v983 = vsel %vm804, %v966, 0
    %v986 = vsel %vm804, %v967, 0
    %v989 = vsel %vm804, %v968, 0
    %v992 = vsel %vm804, %v969, 0
    %v995 = vsel %vm829, %v534, 0
    %997 = vmatprep.subr.bf16.mxu0 0
    %998 = vmatpush1.bf16.msra.mxu0 %v995
    %999 = vmatprep.subr.bf16.mxu0 0
    %1000 = vmatpush1.bf16.msra.mxu0 0
    %1001 = vmatprep.subr.bf16.mxu0 0
    %1002 = vmatpush1.bf16.msra.mxu0 0
    %1003 = vmatprep.subr.bf16.mxu0 0
    %1004 = vmatpush1.bf16.msra.mxu0 0
    %1005 = vmatprep.subr.bf16.mxu0 0
    %1006 = vmatpush1.bf16.msra.mxu0 0
    %1007 = vmatprep.subr.bf16.mxu0 0
    %1008 = vmatpush1.bf16.msra.mxu0 0
    %1009 = vmatprep.subr.bf16.mxu0 0
    %1010 = vmatpush1.bf16.msra.mxu0 0
    %1011 = vmatprep.subr.bf16.mxu0 0
    %1012 = vmatpush1.bf16.msra.mxu0 0
    %1013 = vmatprep.subr.bf16.mxu0 0
    %1014 = vmatpush1.bf16.msra.mxu0 0
    %1015 = vmatprep.subr.bf16.mxu0 0
    %1016 = vmatpush1.bf16.msra.mxu0 0
    %1017 = vmatprep.subr.bf16.mxu0 0
    %1018 = vmatpush1.bf16.msra.mxu0 0
    %1019 = vmatprep.subr.bf16.mxu0 0
    %1020 = vmatpush1.bf16.msra.mxu0 0
    %1021 = vmatprep.subr.bf16.mxu0 0
    %1022 = vmatpush1.bf16.msra.mxu0 0
    %1023 = vmatprep.subr.bf16.mxu0 0
    %1024 = vmatpush1.bf16.msra.mxu0 0
    %1025 = vmatprep.subr.bf16.mxu0 0
    %1026 = vmatpush1.bf16.msra.mxu0 0
    %1027 = vmatprep.subr.bf16.mxu0 0
    %1028 = vmatpush1.bf16.msra.mxu0 0
    %1029 = vmatprep.mubr.bf16.mxu0 0
    %1030 = vmatmul.mubr.bf16.gmra.mrb[0].mxu0 %v971
    %v1031 = vpop.f32.mrb[0].mxu0
    %v1032 = vadd.f32 %v868, %v1031
    %v1033 = vpop.f32.mrb[0].mxu0
    %v1034 = vpop.f32.mrb[0].mxu0
    %v1035 = vadd.f32 %v871, %v1034
    %v1036 = vpop.f32.mrb[0].mxu0
    %1037 = vmatprep.mubr.bf16.mxu0 0
    %1038 = vmatmul.mubr.bf16.gmra.mrb[0].mxu0 %v974
    %v1039 = vpop.f32.mrb[0].mxu0
    %v1040 = vadd.f32 %v876, %v1039
    %v1041 = vpop.f32.mrb[0].mxu0
    %v1042 = vpop.f32.mrb[0].mxu0
    %v1043 = vadd.f32 %v879, %v1042
    %v1044 = vpop.f32.mrb[0].mxu0
    %1045 = vmatprep.mubr.bf16.mxu0 0
    %1046 = vmatmul.mubr.bf16.gmra.mrb[0].mxu0 %v977
    %v1047 = vpop.f32.mrb[0].mxu0
    %v1048 = vadd.f32 %v884, %v1047
    %v1049 = vpop.f32.mrb[0].mxu0
    %v1050 = vpop.f32.mrb[0].mxu0
    %v1051 = vadd.f32 %v887, %v1050
    %v1052 = vpop.f32.mrb[0].mxu0
    %1053 = vmatprep.mubr.bf16.mxu0 0
    %1054 = vmatmul.mubr.bf16.gmra.mrb[0].mxu0 %v980
    %v1055 = vpop.f32.mrb[0].mxu0
    %v1056 = vadd.f32 %v892, %v1055
    %v1057 = vpop.f32.mrb[0].mxu0
    %v1058 = vpop.f32.mrb[0].mxu0
    %v1059 = vadd.f32 %v895, %v1058
    %v1060 = vpop.f32.mrb[0].mxu0
    %1061 = vmatprep.mubr.bf16.mxu0 0
    %1062 = vmatmul.mubr.bf16.gmra.mrb[0].mxu0 %v983
    %v1063 = vpop.f32.mrb[0].mxu0
    %v1064 = vadd.f32 %v900, %v1063
    %v1065 = vpop.f32.mrb[0].mxu0
    %v1066 = vpop.f32.mrb[0].mxu0
    %v1067 = vadd.f32 %v903, %v1066
    %v1068 = vpop.f32.mrb[0].mxu0
    %1069 = vmatprep.mubr.bf16.mxu0 0
    %1070 = vmatmul.mubr.bf16.gmra.mrb[0].mxu0 %v986
    %v1071 = vpop.f32.mrb[0].mxu0
    %v1072 = vadd.f32 %v908, %v1071
    %v1073 = vpop.f32.mrb[0].mxu0
    %v1074 = vpop.f32.mrb[0].mxu0
    %v1075 = vadd.f32 %v911, %v1074
    %v1076 = vpop.f32.mrb[0].mxu0
    %1077 = vmatprep.mubr.bf16.mxu0 0
    %1078 = vmatmul.mubr.bf16.gmra.mrb[0].mxu0 %v989
    %v1079 = vpop.f32.mrb[0].mxu0
    %v1080 = vadd.f32 %v916, %v1079
    %v1081 = vpop.f32.mrb[0].mxu0
    %v1082 = vpop.f32.mrb[0].mxu0
    %v1083 = vadd.f32 %v919, %v1082
    %v1084 = vpop.f32.mrb[0].mxu0
    %1085 = vmatprep.mubr.bf16.mxu0 0
    %1086 = vmatmul.mubr.bf16.gmra.mrb[0].mxu0 %v992
    %v1087 = vpop.f32.mrb[0].mxu0
    %v1088 = vadd.f32 %v924, %v1087
    %v1089 = vpop.f32.mrb[0].mxu0
    %v1090 = vpop.f32.mrb[0].mxu0
    %v1091 = vadd.f32 %v927, %v1090
    %v1092 = vpop.f32.mrb[0].mxu0
    %1093 = vdwg.mxu0
    %v1094 = vld [vmem:[#allocation2] sm:$0xe]
    %v1095 = vld [vmem:[#allocation2 + $0x8] sm:$0xe]
    %v1096 = vld [vmem:[#allocation2 + $0x10] sm:$0xe]
    %v1097 = vld [vmem:[#allocation2 + $0x18] sm:$0xe]
    %v1098 = vld [vmem:[#allocation2 + $0x20] sm:$0xe]
    %v1099 = vld [vmem:[#allocation2 + $0x28] sm:$0xe]
    %v1100 = vld [vmem:[#allocation2 + $0x30] sm:$0xe]
    %v1101 = vld [vmem:[#allocation2 + $0x38] sm:$0xe]
    %v1102 = vld [vmem:[#allocation2 + $0x50] sm:$0xe]
    %v1103 = vld [vmem:[#allocation2 + $0x58] sm:$0xe]
    %v1104 = vld [vmem:[#allocation2 + $0x60] sm:$0xe]
    %v1105 = vld [vmem:[#allocation2 + $0x68] sm:$0xe]
    %v1106 = vld [vmem:[#allocation2 + $0x70] sm:$0xe]
    %v1107 = vld [vmem:[#allocation2 + $0x78] sm:$0xe]
    %v1108 = vld [vmem:[#allocation2 + $0x80] sm:$0xe]
    %v1109 = vld [vmem:[#allocation2 + $0x88] sm:$0xe]
    %vm1142 = vcmask 1042432
    %vm1143 = vcmask 1046532
    %vm1144 = vmor %vm1142, %vm1143
    %v1145 = vrot.slane %v1094, 5
    %v1146 = vrot.slane %v1145, 4
    %v1147 = vrot.slane %v535, 5
    %v1148 = vsel %vm1144, %v1146, %v1147
    %v1149 = vrot.slane %v1095, 5
    %v1150 = vrot.slane %v1149, 4
    %v1151 = vrot.slane %v536, 5
    %v1152 = vsel %vm1144, %v1150, %v1151
    %v1153 = vrot.slane %v1096, 5
    %v1154 = vrot.slane %v1153, 4
    %v1155 = vrot.slane %v537, 5
    %v1156 = vsel %vm1144, %v1154, %v1155
    %v1157 = vrot.slane %v1097, 5
    %v1158 = vrot.slane %v1157, 4
    %v1159 = vrot.slane %v538, 5
    %v1160 = vsel %vm1144, %v1158, %v1159
    %v1161 = vrot.slane %v1098, 5
    %v1162 = vrot.slane %v1161, 4
    %v1163 = vrot.slane %v539, 5
    %v1164 = vsel %vm1144, %v1162, %v1163
    %v1165 = vrot.slane %v1099, 5
    %v1166 = vrot.slane %v1165, 4
    %v1167 = vrot.slane %v540, 5
    %v1168 = vsel %vm1144, %v1166, %v1167
    %v1169 = vrot.slane %v1100, 5
    %v1170 = vrot.slane %v1169, 4
    %v1171 = vrot.slane %v541, 5
    %v1172 = vsel %vm1144, %v1170, %v1171
    %v1173 = vrot.slane %v1101, 5
    %v1174 = vrot.slane %v1173, 4
    %v1175 = vrot.slane %v542, 5
    %v1176 = vsel %vm1144, %v1174, %v1175
    %v1177 = vrot.slane %v1102, 5
    %v1178 = vrot.slane %v1177, 4
    %v1179 = vrot.slane %v543, 5
    %v1180 = vsel %vm1144, %v1178, %v1179
    %v1181 = vrot.slane %v1103, 5
    %v1182 = vrot.slane %v1181, 4
    %v1183 = vrot.slane %v544, 5
    %v1184 = vsel %vm1144, %v1182, %v1183
    %v1185 = vrot.slane %v1104, 5
    %v1186 = vrot.slane %v1185, 4
    %v1187 = vrot.slane %v545, 5
    %v1188 = vsel %vm1144, %v1186, %v1187
    %v1189 = vrot.slane %v1105, 5
    %v1190 = vrot.slane %v1189, 4
    %v1191 = vrot.slane %v546, 5
    %v1192 = vsel %vm1144, %v1190, %v1191
    %v1193 = vrot.slane %v1106, 5
    %v1194 = vrot.slane %v1193, 4
    %v1195 = vrot.slane %v547, 5
    %v1196 = vsel %vm1144, %v1194, %v1195
    %v1197 = vrot.slane %v1107, 5
    %v1198 = vrot.slane %v1197, 4
    %v1199 = vrot.slane %v548, 5
    %v1200 = vsel %vm1144, %v1198, %v1199
    %v1201 = vrot.slane %v1108, 5
    %v1202 = vrot.slane %v1201, 4
    %v1203 = vrot.slane %v549, 5
    %v1204 = vsel %vm1144, %v1202, %v1203
    %v1205 = vrot.slane %v1109, 5
    %v1206 = vrot.slane %v1205, 4
    %v1207 = vrot.slane %v550, 5
    %v1208 = vsel %vm1144, %v1206, %v1207
    %s1209 = scalar_lea.vmem [#allocation5], 4
    %v1210 = vld [vmem:[%s1209] sm:$0x3]
    %v1211 = vunpack.c.l.b16 %v1148
    %v1212 = vunpack.c.l.b16 %v1152
    %v1213 = vunpack.c.l.b16 %v1156
    %v1214 = vunpack.c.l.b16 %v1160
    %v1215 = vunpack.c.l.b16 %v1164
    %v1216 = vunpack.c.l.b16 %v1168
    %v1217 = vunpack.c.l.b16 %v1172
    %v1218 = vunpack.c.l.b16 %v1176
    %v1219 = vunpack.c.l.b16 %v1180
    %v1220 = vunpack.c.l.b16 %v1184
    %v1221 = vunpack.c.l.b16 %v1188
    %v1222 = vunpack.c.l.b16 %v1192
    %v1223 = vunpack.c.l.b16 %v1196
    %v1224 = vunpack.c.l.b16 %v1200
    %v1225 = vunpack.c.l.b16 %v1204
    %v1226 = vunpack.c.l.b16 %v1208
    %v1227 = vpack.c.b16 %v1212, %v1211
    %v1228 = vpack.c.b16 %v1214, %v1213
    %v1229 = vpack.c.b16 %v1216, %v1215
    %v1230 = vpack.c.b16 %v1218, %v1217
    %v1231 = vpack.c.b16 %v1220, %v1219
    %v1232 = vpack.c.b16 %v1222, %v1221
    %v1233 = vpack.c.b16 %v1224, %v1223
    %v1234 = vpack.c.b16 %v1226, %v1225
    %v1236 = vsel %vm804, %v1227, 0
    %v1239 = vsel %vm804, %v1228, 0
    %v1242 = vsel %vm804, %v1229, 0
    %v1245 = vsel %vm804, %v1230, 0
    %v1248 = vsel %vm804, %v1231, 0
    %v1251 = vsel %vm804, %v1232, 0
    %v1254 = vsel %vm804, %v1233, 0
    %v1257 = vsel %vm804, %v1234, 0
    %v1260 = vsel %vm829, %v1210, 0
    %1262 = vmatprep.subr.bf16.mxu0 0
    %1263 = vmatpush1.bf16.msra.mxu0 %v1260
    %1264 = vmatprep.subr.bf16.mxu0 0
    %1265 = vmatpush1.bf16.msra.mxu0 0
    %1266 = vmatprep.subr.bf16.mxu0 0
    %1267 = vmatpush1.bf16.msra.mxu0 0
    %1268 = vmatprep.subr.bf16.mxu0 0
    %1269 = vmatpush1.bf16.msra.mxu0 0
    %1270 = vmatprep.subr.bf16.mxu0 0
    %1271 = vmatpush1.bf16.msra.mxu0 0
    %1272 = vmatprep.subr.bf16.mxu0 0
    %1273 = vmatpush1.bf16.msra.mxu0 0
    %1274 = vmatprep.subr.bf16.mxu0 0
    %1275 = vmatpush1.bf16.msra.mxu0 0
    %1276 = vmatprep.subr.bf16.mxu0 0
    %1277 = vmatpush1.bf16.msra.mxu0 0
    %1278 = vmatprep.subr.bf16.mxu0 0
    %1279 = vmatpush1.bf16.msra.mxu0 0
    %1280 = vmatprep.subr.bf16.mxu0 0
    %1281 = vmatpush1.bf16.msra.mxu0 0
    %1282 = vmatprep.subr.bf16.mxu0 0
    %1283 = vmatpush1.bf16.msra.mxu0 0
    %1284 = vmatprep.subr.bf16.mxu0 0
    %1285 = vmatpush1.bf16.msra.mxu0 0
    %1286 = vmatprep.subr.bf16.mxu0 0
    %1287 = vmatpush1.bf16.msra.mxu0 0
    %1288 = vmatprep.subr.bf16.mxu0 0
    %1289 = vmatpush1.bf16.msra.mxu0 0
    %1290 = vmatprep.subr.bf16.mxu0 0
    %1291 = vmatpush1.bf16.msra.mxu0 0
    %1292 = vmatprep.subr.bf16.mxu0 0
    %1293 = vmatpush1.bf16.msra.mxu0 0
    %1294 = vmatprep.mubr.bf16.mxu0 0
    %1295 = vmatmul.mubr.bf16.gmra.mrb[0].mxu0 %v1236
    %v1296 = vpop.f32.mrb[0].mxu0
    %v1297 = vadd.f32 0.0, %v1296
    %v1298 = vpop.f32.mrb[0].mxu0
    %v1299 = vpop.f32.mrb[0].mxu0
    %v1300 = vadd.f32 0.0, %v1299
    %v1301 = vpop.f32.mrb[0].mxu0
    %1302 = vmatprep.mubr.bf16.mxu0 0
    %1303 = vmatmul.mubr.bf16.gmra.mrb[0].mxu0 %v1239
    %v1304 = vpop.f32.mrb[0].mxu0
    %v1305 = vadd.f32 0.0, %v1304
    %v1306 = vpop.f32.mrb[0].mxu0
    %v1307 = vpop.f32.mrb[0].mxu0
    %v1308 = vadd.f32 0.0, %v1307
    %v1309 = vpop.f32.mrb[0].mxu0
    %1310 = vmatprep.mubr.bf16.mxu0 0
    %1311 = vmatmul.mubr.bf16.gmra.mrb[0].mxu0 %v1242
    %v1312 = vpop.f32.mrb[0].mxu0
    %v1313 = vadd.f32 0.0, %v1312
    %v1314 = vpop.f32.mrb[0].mxu0
    %v1315 = vpop.f32.mrb[0].mxu0
    %v1316 = vadd.f32 0.0, %v1315
    %v1317 = vpop.f32.mrb[0].mxu0
    %1318 = vmatprep.mubr.bf16.mxu0 0
    %1319 = vmatmul.mubr.bf16.gmra.mrb[0].mxu0 %v1245
    %v1320 = vpop.f32.mrb[0].mxu0
    %v1321 = vadd.f32 0.0, %v1320
    %v1322 = vpop.f32.mrb[0].mxu0
    %v1323 = vpop.f32.mrb[0].mxu0
    %v1324 = vadd.f32 0.0, %v1323
    %v1325 = vpop.f32.mrb[0].mxu0
    %1326 = vmatprep.mubr.bf16.mxu0 0
    %1327 = vmatmul.mubr.bf16.gmra.mrb[0].mxu0 %v1248
    %v1328 = vpop.f32.mrb[0].mxu0
    %v1329 = vadd.f32 0.0, %v1328
    %v1330 = vpop.f32.mrb[0].mxu0
    %v1331 = vpop.f32.mrb[0].mxu0
    %v1332 = vadd.f32 0.0, %v1331
    %v1333 = vpop.f32.mrb[0].mxu0
    %1334 = vmatprep.mubr.bf16.mxu0 0
    %1335 = vmatmul.mubr.bf16.gmra.mrb[0].mxu0 %v1251
    %v1336 = vpop.f32.mrb[0].mxu0
    %v1337 = vadd.f32 0.0, %v1336
    %v1338 = vpop.f32.mrb[0].mxu0
    %v1339 = vpop.f32.mrb[0].mxu0
    %v1340 = vadd.f32 0.0, %v1339
    %v1341 = vpop.f32.mrb[0].mxu0
    %1342 = vmatprep.mubr.bf16.mxu0 0
    %1343 = vmatmul.mubr.bf16.gmra.mrb[0].mxu0 %v1254
    %v1344 = vpop.f32.mrb[0].mxu0
    %v1345 = vadd.f32 0.0, %v1344
    %v1346 = vpop.f32.mrb[0].mxu0
    %v1347 = vpop.f32.mrb[0].mxu0
    %v1348 = vadd.f32 0.0, %v1347
    %v1349 = vpop.f32.mrb[0].mxu0
    %1350 = vmatprep.mubr.bf16.mxu0 0
    %1351 = vmatmul.mubr.bf16.gmra.mrb[0].mxu0 %v1257
    %v1352 = vpop.f32.mrb[0].mxu0
    %v1353 = vadd.f32 0.0, %v1352
    %v1354 = vpop.f32.mrb[0].mxu0
    %v1355 = vpop.f32.mrb[0].mxu0
    %v1356 = vadd.f32 0.0, %v1355
    %v1357 = vpop.f32.mrb[0].mxu0
    %1358 = vdwg.mxu0
    %v1359 = vadd.f32 %v1032, %v1297
    %v1360 = vadd.f32 %v1035, %v1300
    %v1361 = vadd.f32 %v1040, %v1305
    %v1362 = vadd.f32 %v1043, %v1308
    %v1363 = vadd.f32 %v1048, %v1313
    %v1364 = vadd.f32 %v1051, %v1316
    %v1365 = vadd.f32 %v1056, %v1321
    %v1366 = vadd.f32 %v1059, %v1324
    %v1367 = vadd.f32 %v1064, %v1329
    %v1368 = vadd.f32 %v1067, %v1332
    %v1369 = vadd.f32 %v1072, %v1337
    %v1370 = vadd.f32 %v1075, %v1340
    %v1371 = vadd.f32 %v1080, %v1345
    %v1372 = vadd.f32 %v1083, %v1348
    %v1373 = vadd.f32 %v1088, %v1353
    %v1374 = vadd.f32 %v1091, %v1356
    %v1375 = vld [vmem:[%s415] sm:$0xf]
    %v1376 = vld [vmem:[%s415 + $0x8] sm:$0xf]
    %v1377 = vld [vmem:[%s415 + $0x10] sm:$0xf]
    %v1378 = vld [vmem:[%s415 + $0x18] sm:$0xf]
    %v1379 = vld [vmem:[%s415 + $0x20] sm:$0xf]
    %v1380 = vld [vmem:[%s415 + $0x28] sm:$0xf]
    %v1381 = vld [vmem:[%s415 + $0x30] sm:$0xf]
    %v1382 = vld [vmem:[%s415 + $0x38] sm:$0xf]
    %v1383 = vld [vmem:[%s415 + $0x50] sm:$0xf]
    %v1384 = vld [vmem:[%s415 + $0x58] sm:$0xf]
    %v1385 = vld [vmem:[%s415 + $0x60] sm:$0xf]
    %v1386 = vld [vmem:[%s415 + $0x68] sm:$0xf]
    %v1387 = vld [vmem:[%s415 + $0x70] sm:$0xf]
    %v1388 = vld [vmem:[%s415 + $0x78] sm:$0xf]
    %v1389 = vld [vmem:[%s415 + $0x80] sm:$0xf]
    %v1390 = vld [vmem:[%s415 + $0x88] sm:$0xf]
    %s1391 = scalar_lea.vmem [#allocation5], 6
    %v1392 = vld [vmem:[%s1391] sm:$0x3]
    %v1409 = vunpack.c.l.b16 %v1375
    %v1410 = vunpack.c.l.b16 %v1376
    %v1411 = vunpack.c.l.b16 %v1377
    %v1412 = vunpack.c.l.b16 %v1378
    %v1413 = vunpack.c.l.b16 %v1379
    %v1414 = vunpack.c.l.b16 %v1380
    %v1415 = vunpack.c.l.b16 %v1381
    %v1416 = vunpack.c.l.b16 %v1382
    %v1417 = vunpack.c.l.b16 %v1383
    %v1418 = vunpack.c.l.b16 %v1384
    %v1419 = vunpack.c.l.b16 %v1385
    %v1420 = vunpack.c.l.b16 %v1386
    %v1421 = vunpack.c.l.b16 %v1387
    %v1422 = vunpack.c.l.b16 %v1388
    %v1423 = vunpack.c.l.b16 %v1389
    %v1424 = vunpack.c.l.b16 %v1390
    %v1425 = vpack.c.b16 %v1410, %v1409
    %v1426 = vpack.c.b16 %v1412, %v1411
    %v1427 = vpack.c.b16 %v1414, %v1413
    %v1428 = vpack.c.b16 %v1416, %v1415
    %v1429 = vpack.c.b16 %v1418, %v1417
    %v1430 = vpack.c.b16 %v1420, %v1419
    %v1431 = vpack.c.b16 %v1422, %v1421
    %v1432 = vpack.c.b16 %v1424, %v1423
    %v1434 = vsel %vm804, %v1425, 0
    %v1437 = vsel %vm804, %v1426, 0
    %v1440 = vsel %vm804, %v1427, 0
    %v1443 = vsel %vm804, %v1428, 0
    %v1446 = vsel %vm804, %v1429, 0
    %v1449 = vsel %vm804, %v1430, 0
    %v1452 = vsel %vm804, %v1431, 0
    %v1455 = vsel %vm804, %v1432, 0
    %v1458 = vsel %vm829, %v1392, 0
    %1460 = vmatprep.subr.bf16.mxu0 0
    %1461 = vmatpush1.bf16.msra.mxu0 %v1458
    %1462 = vmatprep.subr.bf16.mxu0 0
    %1463 = vmatpush1.bf16.msra.mxu0 0
    %1464 = vmatprep.subr.bf16.mxu0 0
    %1465 = vmatpush1.bf16.msra.mxu0 0
    %1466 = vmatprep.subr.bf16.mxu0 0
    %1467 = vmatpush1.bf16.msra.mxu0 0
    %1468 = vmatprep.subr.bf16.mxu0 0
    %1469 = vmatpush1.bf16.msra.mxu0 0
    %1470 = vmatprep.subr.bf16.mxu0 0
    %1471 = vmatpush1.bf16.msra.mxu0 0
    %1472 = vmatprep.subr.bf16.mxu0 0
    %1473 = vmatpush1.bf16.msra.mxu0 0
    %1474 = vmatprep.subr.bf16.mxu0 0
    %1475 = vmatpush1.bf16.msra.mxu0 0
    %1476 = vmatprep.subr.bf16.mxu0 0
    %1477 = vmatpush1.bf16.msra.mxu0 0
    %1478 = vmatprep.subr.bf16.mxu0 0
    %1479 = vmatpush1.bf16.msra.mxu0 0
    %1480 = vmatprep.subr.bf16.mxu0 0
    %1481 = vmatpush1.bf16.msra.mxu0 0
    %1482 = vmatprep.subr.bf16.mxu0 0
    %1483 = vmatpush1.bf16.msra.mxu0 0
    %1484 = vmatprep.subr.bf16.mxu0 0
    %1485 = vmatpush1.bf16.msra.mxu0 0
    %1486 = vmatprep.subr.bf16.mxu0 0
    %1487 = vmatpush1.bf16.msra.mxu0 0
    %1488 = vmatprep.subr.bf16.mxu0 0
    %1489 = vmatpush1.bf16.msra.mxu0 0
    %1490 = vmatprep.subr.bf16.mxu0 0
    %1491 = vmatpush1.bf16.msra.mxu0 0
    %1492 = vmatprep.mubr.bf16.mxu0 0
    %1493 = vmatmul.mubr.bf16.gmra.mrb[0].mxu0 %v1434
    %v1494 = vpop.f32.mrb[0].mxu0
    %v1495 = vadd.f32 0.0, %v1494
    %v1496 = vpop.f32.mrb[0].mxu0
    %v1497 = vpop.f32.mrb[0].mxu0
    %v1498 = vadd.f32 0.0, %v1497
    %v1499 = vpop.f32.mrb[0].mxu0
    %1500 = vmatprep.mubr.bf16.mxu0 0
    %1501 = vmatmul.mubr.bf16.gmra.mrb[0].mxu0 %v1437
    %v1502 = vpop.f32.mrb[0].mxu0
    %v1503 = vadd.f32 0.0, %v1502
    %v1504 = vpop.f32.mrb[0].mxu0
    %v1505 = vpop.f32.mrb[0].mxu0
    %v1506 = vadd.f32 0.0, %v1505
    %v1507 = vpop.f32.mrb[0].mxu0
    %1508 = vmatprep.mubr.bf16.mxu0 0
    %1509 = vmatmul.mubr.bf16.gmra.mrb[0].mxu0 %v1440
    %v1510 = vpop.f32.mrb[0].mxu0
    %v1511 = vadd.f32 0.0, %v1510
    %v1512 = vpop.f32.mrb[0].mxu0
    %v1513 = vpop.f32.mrb[0].mxu0
    %v1514 = vadd.f32 0.0, %v1513
    %v1515 = vpop.f32.mrb[0].mxu0
    %1516 = vmatprep.mubr.bf16.mxu0 0
    %1517 = vmatmul.mubr.bf16.gmra.mrb[0].mxu0 %v1443
    %v1518 = vpop.f32.mrb[0].mxu0
    %v1519 = vadd.f32 0.0, %v1518
    %v1520 = vpop.f32.mrb[0].mxu0
    %v1521 = vpop.f32.mrb[0].mxu0
    %v1522 = vadd.f32 0.0, %v1521
    %v1523 = vpop.f32.mrb[0].mxu0
    %1524 = vmatprep.mubr.bf16.mxu0 0
    %1525 = vmatmul.mubr.bf16.gmra.mrb[0].mxu0 %v1446
    %v1526 = vpop.f32.mrb[0].mxu0
    %v1527 = vadd.f32 0.0, %v1526
    %v1528 = vpop.f32.mrb[0].mxu0
    %v1529 = vpop.f32.mrb[0].mxu0
    %v1530 = vadd.f32 0.0, %v1529
    %v1531 = vpop.f32.mrb[0].mxu0
    %1532 = vmatprep.mubr.bf16.mxu0 0
    %1533 = vmatmul.mubr.bf16.gmra.mrb[0].mxu0 %v1449
    %v1534 = vpop.f32.mrb[0].mxu0
    %v1535 = vadd.f32 0.0, %v1534
    %v1536 = vpop.f32.mrb[0].mxu0
    %v1537 = vpop.f32.mrb[0].mxu0
    %v1538 = vadd.f32 0.0, %v1537
    %v1539 = vpop.f32.mrb[0].mxu0
    %1540 = vmatprep.mubr.bf16.mxu0 0
    %1541 = vmatmul.mubr.bf16.gmra.mrb[0].mxu0 %v1452
    %v1542 = vpop.f32.mrb[0].mxu0
    %v1543 = vadd.f32 0.0, %v1542
    %v1544 = vpop.f32.mrb[0].mxu0
    %v1545 = vpop.f32.mrb[0].mxu0
    %v1546 = vadd.f32 0.0, %v1545
    %v1547 = vpop.f32.mrb[0].mxu0
    %1548 = vmatprep.mubr.bf16.mxu0 0
    %1549 = vmatmul.mubr.bf16.gmra.mrb[0].mxu0 %v1455
    %v1550 = vpop.f32.mrb[0].mxu0
    %v1551 = vadd.f32 0.0, %v1550
    %v1552 = vpop.f32.mrb[0].mxu0
    %v1553 = vpop.f32.mrb[0].mxu0
    %v1554 = vadd.f32 0.0, %v1553
    %v1555 = vpop.f32.mrb[0].mxu0
    %1556 = vdwg.mxu0
    %v1557 = vadd.f32 %v1359, %v1495
    %v1558 = vadd.f32 %v1360, %v1498
    %v1559 = vadd.f32 %v1361, %v1503
    %v1560 = vadd.f32 %v1362, %v1506
    %v1561 = vadd.f32 %v1363, %v1511
    %v1562 = vadd.f32 %v1364, %v1514
    %v1563 = vadd.f32 %v1365, %v1519
    %v1564 = vadd.f32 %v1366, %v1522
    %v1565 = vadd.f32 %v1367, %v1527
    %v1566 = vadd.f32 %v1368, %v1530
    %v1567 = vadd.f32 %v1369, %v1535
    %v1568 = vadd.f32 %v1370, %v1538
    %v1569 = vadd.f32 %v1371, %v1543
    %v1570 = vadd.f32 %v1372, %v1546
    %v1571 = vadd.f32 %v1373, %v1551
    %v1572 = vadd.f32 %v1374, %v1554
    %v1573 = vld [vmem:[%s415] sm:$0xf]
    %v1574 = vld [vmem:[%s415 + $0x4] sm:$0x1]
    %v1575 = vld [vmem:[%s415 + $0x8] sm:$0xf]
    %v1576 = vld [vmem:[%s415 + $0xc] sm:$0x1]
    %v1577 = vld [vmem:[%s415 + $0x10] sm:$0xf]
    %v1578 = vld [vmem:[%s415 + $0x14] sm:$0x1]
    %v1579 = vld [vmem:[%s415 + $0x18] sm:$0xf]
    %v1580 = vld [vmem:[%s415 + $0x1c] sm:$0x1]
    %v1581 = vld [vmem:[%s415 + $0x20] sm:$0xf]
    %v1582 = vld [vmem:[%s415 + $0x24] sm:$0x1]
    %v1583 = vld [vmem:[%s415 + $0x28] sm:$0xf]
    %v1584 = vld [vmem:[%s415 + $0x2c] sm:$0x1]
    %v1585 = vld [vmem:[%s415 + $0x30] sm:$0xf]
    %v1586 = vld [vmem:[%s415 + $0x34] sm:$0x1]
    %v1587 = vld [vmem:[%s415 + $0x38] sm:$0xf]
    %v1588 = vld [vmem:[%s415 + $0x3c] sm:$0x1]
    %v1589 = vld [vmem:[%s415 + $0x50] sm:$0xf]
    %v1590 = vld [vmem:[%s415 + $0x54] sm:$0x1]
    %v1591 = vld [vmem:[%s415 + $0x58] sm:$0xf]
    %v1592 = vld [vmem:[%s415 + $0x5c] sm:$0x1]
    %v1593 = vld [vmem:[%s415 + $0x60] sm:$0xf]
    %v1594 = vld [vmem:[%s415 + $0x64] sm:$0x1]
    %v1595 = vld [vmem:[%s415 + $0x68] sm:$0xf]
    %v1596 = vld [vmem:[%s415 + $0x6c] sm:$0x1]
    %v1597 = vld [vmem:[%s415 + $0x70] sm:$0xf]
    %v1598 = vld [vmem:[%s415 + $0x74] sm:$0x1]
    %v1599 = vld [vmem:[%s415 + $0x78] sm:$0xf]
    %v1600 = vld [vmem:[%s415 + $0x7c] sm:$0x1]
    %v1601 = vld [vmem:[%s415 + $0x80] sm:$0xf]
    %v1602 = vld [vmem:[%s415 + $0x84] sm:$0x1]
    %v1603 = vld [vmem:[%s415 + $0x88] sm:$0xf]
    %v1604 = vld [vmem:[%s415 + $0x8c] sm:$0x1]
    %v1606 = vshrl.u32 %v1573, 16
    %v1608 = vrot.slane %v1606, 4
    %v1609 = vshll.u32 %v1573, 16
    %v1611 = vrot.slane %v1609, 5
    %v1612 = vor.u32 %v1608, %v1611
    %v1613 = vrot.slane %v1612, 4
    %v1615 = vshll.u32 %v1574, 16
    %v1617 = vrot.slane %v1615, 5
    %v1618 = vsel %vm553, %v1613, %v1617
    %v1620 = vshrl.u32 %v1575, 16
    %v1622 = vrot.slane %v1620, 4
    %v1623 = vshll.u32 %v1575, 16
    %v1625 = vrot.slane %v1623, 5
    %v1626 = vor.u32 %v1622, %v1625
    %v1627 = vrot.slane %v1626, 4
    %v1629 = vshll.u32 %v1576, 16
    %v1631 = vrot.slane %v1629, 5
    %v1632 = vsel %vm553, %v1627, %v1631
    %v1634 = vshrl.u32 %v1577, 16
    %v1636 = vrot.slane %v1634, 4
    %v1637 = vshll.u32 %v1577, 16
    %v1639 = vrot.slane %v1637, 5
    %v1640 = vor.u32 %v1636, %v1639
    %v1641 = vrot.slane %v1640, 4
    %v1643 = vshll.u32 %v1578, 16
    %v1645 = vrot.slane %v1643, 5
    %v1646 = vsel %vm553, %v1641, %v1645
    %v1648 = vshrl.u32 %v1579, 16
    %v1650 = vrot.slane %v1648, 4
    %v1651 = vshll.u32 %v1579, 16
    %v1653 = vrot.slane %v1651, 5
    %v1654 = vor.u32 %v1650, %v1653
    %v1655 = vrot.slane %v1654, 4
    %v1657 = vshll.u32 %v1580, 16
    %v1659 = vrot.slane %v1657, 5
    %v1660 = vsel %vm553, %v1655, %v1659
    %v1662 = vshrl.u32 %v1581, 16
    %v1664 = vrot.slane %v1662, 4
    %v1665 = vshll.u32 %v1581, 16
    %v1667 = vrot.slane %v1665, 5
    %v1668 = vor.u32 %v1664, %v1667
    %v1669 = vrot.slane %v1668, 4
    %v1671 = vshll.u32 %v1582, 16
    %v1673 = vrot.slane %v1671, 5
    %v1674 = vsel %vm553, %v1669, %v1673
    %v1676 = vshrl.u32 %v1583, 16
    %v1678 = vrot.slane %v1676, 4
    %v1679 = vshll.u32 %v1583, 16
    %v1681 = vrot.slane %v1679, 5
    %v1682 = vor.u32 %v1678, %v1681
    %v1683 = vrot.slane %v1682, 4
    %v1685 = vshll.u32 %v1584, 16
    %v1687 = vrot.slane %v1685, 5
    %v1688 = vsel %vm553, %v1683, %v1687
    %v1690 = vshrl.u32 %v1585, 16
    %v1692 = vrot.slane %v1690, 4
    %v1693 = vshll.u32 %v1585, 16
    %v1695 = vrot.slane %v1693, 5
    %v1696 = vor.u32 %v1692, %v1695
    %v1697 = vrot.slane %v1696, 4
    %v1699 = vshll.u32 %v1586, 16
    %v1701 = vrot.slane %v1699, 5
    %v1702 = vsel %vm553, %v1697, %v1701
    %v1704 = vshrl.u32 %v1587, 16
    %v1706 = vrot.slane %v1704, 4
    %v1707 = vshll.u32 %v1587, 16
    %v1709 = vrot.slane %v1707, 5
    %v1710 = vor.u32 %v1706, %v1709
    %v1711 = vrot.slane %v1710, 4
    %v1713 = vshll.u32 %v1588, 16
    %v1715 = vrot.slane %v1713, 5
    %v1716 = vsel %vm553, %v1711, %v1715
    %v1718 = vshrl.u32 %v1589, 16
    %v1720 = vrot.slane %v1718, 4
    %v1721 = vshll.u32 %v1589, 16
    %v1723 = vrot.slane %v1721, 5
    %v1724 = vor.u32 %v1720, %v1723
    %v1725 = vrot.slane %v1724, 4
    %v1727 = vshll.u32 %v1590, 16
    %v1729 = vrot.slane %v1727, 5
    %v1730 = vsel %vm553, %v1725, %v1729
    %v1732 = vshrl.u32 %v1591, 16
    %v1734 = vrot.slane %v1732, 4
    %v1735 = vshll.u32 %v1591, 16
    %v1737 = vrot.slane %v1735, 5
    %v1738 = vor.u32 %v1734, %v1737
    %v1739 = vrot.slane %v1738, 4
    %v1741 = vshll.u32 %v1592, 16
    %v1743 = vrot.slane %v1741, 5
    %v1744 = vsel %vm553, %v1739, %v1743
    %v1746 = vshrl.u32 %v1593, 16
    %v1748 = vrot.slane %v1746, 4
    %v1749 = vshll.u32 %v1593, 16
    %v1751 = vrot.slane %v1749, 5
    %v1752 = vor.u32 %v1748, %v1751
    %v1753 = vrot.slane %v1752, 4
    %v1755 = vshll.u32 %v1594, 16
    %v1757 = vrot.slane %v1755, 5
    %v1758 = vsel %vm553, %v1753, %v1757
    %v1760 = vshrl.u32 %v1595, 16
    %v1762 = vrot.slane %v1760, 4
    %v1763 = vshll.u32 %v1595, 16
    %v1765 = vrot.slane %v1763, 5
    %v1766 = vor.u32 %v1762, %v1765
    %v1767 = vrot.slane %v1766, 4
    %v1769 = vshll.u32 %v1596, 16
    %v1771 = vrot.slane %v1769, 5
    %v1772 = vsel %vm553, %v1767, %v1771
    %v1774 = vshrl.u32 %v1597, 16
    %v1776 = vrot.slane %v1774, 4
    %v1777 = vshll.u32 %v1597, 16
    %v1779 = vrot.slane %v1777, 5
    %v1780 = vor.u32 %v1776, %v1779
    %v1781 = vrot.slane %v1780, 4
    %v1783 = vshll.u32 %v1598, 16
    %v1785 = vrot.slane %v1783, 5
    %v1786 = vsel %vm553, %v1781, %v1785
    %v1788 = vshrl.u32 %v1599, 16
    %v1790 = vrot.slane %v1788, 4
    %v1791 = vshll.u32 %v1599, 16
    %v1793 = vrot.slane %v1791, 5
    %v1794 = vor.u32 %v1790, %v1793
    %v1795 = vrot.slane %v1794, 4
    %v1797 = vshll.u32 %v1600, 16
    %v1799 = vrot.slane %v1797, 5
    %v1800 = vsel %vm553, %v1795, %v1799
    %v1802 = vshrl.u32 %v1601, 16
    %v1804 = vrot.slane %v1802, 4
    %v1805 = vshll.u32 %v1601, 16
    %v1807 = vrot.slane %v1805, 5
    %v1808 = vor.u32 %v1804, %v1807
    %v1809 = vrot.slane %v1808, 4
    %v1811 = vshll.u32 %v1602, 16
    %v1813 = vrot.slane %v1811, 5
    %v1814 = vsel %vm553, %v1809, %v1813
    %v1816 = vshrl.u32 %v1603, 16
    %v1818 = vrot.slane %v1816, 4
    %v1819 = vshll.u32 %v1603, 16
    %v1821 = vrot.slane %v1819, 5
    %v1822 = vor.u32 %v1818, %v1821
    %v1823 = vrot.slane %v1822, 4
    %v1825 = vshll.u32 %v1604, 16
    %v1827 = vrot.slane %v1825, 5
    %v1828 = vsel %vm553, %v1823, %v1827
    %s1829 = scalar_lea.vmem [#allocation5], 8
    %v1830 = vld [vmem:[%s1829] sm:$0x3]
    %v1831 = vunpack.c.l.b16 %v1618
    %v1832 = vunpack.c.l.b16 %v1632
    %v1833 = vunpack.c.l.b16 %v1646
    %v1834 = vunpack.c.l.b16 %v1660
    %v1835 = vunpack.c.l.b16 %v1674
    %v1836 = vunpack.c.l.b16 %v1688
    %v1837 = vunpack.c.l.b16 %v1702
    %v1838 = vunpack.c.l.b16 %v1716
    %v1839 = vunpack.c.l.b16 %v1730
    %v1840 = vunpack.c.l.b16 %v1744
    %v1841 = vunpack.c.l.b16 %v1758
    %v1842 = vunpack.c.l.b16 %v1772
    %v1843 = vunpack.c.l.b16 %v1786
    %v1844 = vunpack.c.l.b16 %v1800
    %v1845 = vunpack.c.l.b16 %v1814
    %v1846 = vunpack.c.l.b16 %v1828
    %v1847 = vpack.c.b16 %v1832, %v1831
    %v1848 = vpack.c.b16 %v1834, %v1833
    %v1849 = vpack.c.b16 %v1836, %v1835
    %v1850 = vpack.c.b16 %v1838, %v1837
    %v1851 = vpack.c.b16 %v1840, %v1839
    %v1852 = vpack.c.b16 %v1842, %v1841
    %v1853 = vpack.c.b16 %v1844, %v1843
    %v1854 = vpack.c.b16 %v1846, %v1845
    %v1856 = vsel %vm804, %v1847, 0
    %v1859 = vsel %vm804, %v1848, 0
    %v1862 = vsel %vm804, %v1849, 0
    %v1865 = vsel %vm804, %v1850, 0
    %v1868 = vsel %vm804, %v1851, 0
    %v1871 = vsel %vm804, %v1852, 0
    %v1874 = vsel %vm804, %v1853, 0
    %v1877 = vsel %vm804, %v1854, 0
    %v1880 = vsel %vm829, %v1830, 0
    %1882 = vmatprep.subr.bf16.mxu0 0
    %1883 = vmatpush1.bf16.msra.mxu0 %v1880
    %1884 = vmatprep.subr.bf16.mxu0 0
    %1885 = vmatpush1.bf16.msra.mxu0 0
    %1886 = vmatprep.subr.bf16.mxu0 0
    %1887 = vmatpush1.bf16.msra.mxu0 0
    %1888 = vmatprep.subr.bf16.mxu0 0
    %1889 = vmatpush1.bf16.msra.mxu0 0
    %1890 = vmatprep.subr.bf16.mxu0 0
    %1891 = vmatpush1.bf16.msra.mxu0 0
    %1892 = vmatprep.subr.bf16.mxu0 0
    %1893 = vmatpush1.bf16.msra.mxu0 0
    %1894 = vmatprep.subr.bf16.mxu0 0
    %1895 = vmatpush1.bf16.msra.mxu0 0
    %1896 = vmatprep.subr.bf16.mxu0 0
    %1897 = vmatpush1.bf16.msra.mxu0 0
    %1898 = vmatprep.subr.bf16.mxu0 0
    %1899 = vmatpush1.bf16.msra.mxu0 0
    %1900 = vmatprep.subr.bf16.mxu0 0
    %1901 = vmatpush1.bf16.msra.mxu0 0
    %1902 = vmatprep.subr.bf16.mxu0 0
    %1903 = vmatpush1.bf16.msra.mxu0 0
    %1904 = vmatprep.subr.bf16.mxu0 0
    %1905 = vmatpush1.bf16.msra.mxu0 0
    %1906 = vmatprep.subr.bf16.mxu0 0
    %1907 = vmatpush1.bf16.msra.mxu0 0
    %1908 = vmatprep.subr.bf16.mxu0 0
    %1909 = vmatpush1.bf16.msra.mxu0 0
    %1910 = vmatprep.subr.bf16.mxu0 0
    %1911 = vmatpush1.bf16.msra.mxu0 0
    %1912 = vmatprep.subr.bf16.mxu0 0
    %1913 = vmatpush1.bf16.msra.mxu0 0
    %1914 = vmatprep.mubr.bf16.mxu0 0
    %1915 = vmatmul.mubr.bf16.gmra.mrb[0].mxu0 %v1856
    %v1916 = vpop.f32.mrb[0].mxu0
    %v1917 = vadd.f32 0.0, %v1916
    %v1918 = vpop.f32.mrb[0].mxu0
    %v1919 = vpop.f32.mrb[0].mxu0
    %v1920 = vadd.f32 0.0, %v1919
    %v1921 = vpop.f32.mrb[0].mxu0
    %1922 = vmatprep.mubr.bf16.mxu0 0
    %1923 = vmatmul.mubr.bf16.gmra.mrb[0].mxu0 %v1859
    %v1924 = vpop.f32.mrb[0].mxu0
    %v1925 = vadd.f32 0.0, %v1924
    %v1926 = vpop.f32.mrb[0].mxu0
    %v1927 = vpop.f32.mrb[0].mxu0
    %v1928 = vadd.f32 0.0, %v1927
    %v1929 = vpop.f32.mrb[0].mxu0
    %1930 = vmatprep.mubr.bf16.mxu0 0
    %1931 = vmatmul.mubr.bf16.gmra.mrb[0].mxu0 %v1862
    %v1932 = vpop.f32.mrb[0].mxu0
    %v1933 = vadd.f32 0.0, %v1932
    %v1934 = vpop.f32.mrb[0].mxu0
    %v1935 = vpop.f32.mrb[0].mxu0
    %v1936 = vadd.f32 0.0, %v1935
    %v1937 = vpop.f32.mrb[0].mxu0
    %1938 = vmatprep.mubr.bf16.mxu0 0
    %1939 = vmatmul.mubr.bf16.gmra.mrb[0].mxu0 %v1865
    %v1940 = vpop.f32.mrb[0].mxu0
    %v1941 = vadd.f32 0.0, %v1940
    %v1942 = vpop.f32.mrb[0].mxu0
    %v1943 = vpop.f32.mrb[0].mxu0
    %v1944 = vadd.f32 0.0, %v1943
    %v1945 = vpop.f32.mrb[0].mxu0
    %1946 = vmatprep.mubr.bf16.mxu0 0
    %1947 = vmatmul.mubr.bf16.gmra.mrb[0].mxu0 %v1868
    %v1948 = vpop.f32.mrb[0].mxu0
    %v1949 = vadd.f32 0.0, %v1948
    %v1950 = vpop.f32.mrb[0].mxu0
    %v1951 = vpop.f32.mrb[0].mxu0
    %v1952 = vadd.f32 0.0, %v1951
    %v1953 = vpop.f32.mrb[0].mxu0
    %1954 = vmatprep.mubr.bf16.mxu0 0
    %1955 = vmatmul.mubr.bf16.gmra.mrb[0].mxu0 %v1871
    %v1956 = vpop.f32.mrb[0].mxu0
    %v1957 = vadd.f32 0.0, %v1956
    %v1958 = vpop.f32.mrb[0].mxu0
    %v1959 = vpop.f32.mrb[0].mxu0
    %v1960 = vadd.f32 0.0, %v1959
    %v1961 = vpop.f32.mrb[0].mxu0
    %1962 = vmatprep.mubr.bf16.mxu0 0
    %1963 = vmatmul.mubr.bf16.gmra.mrb[0].mxu0 %v1874
    %v1964 = vpop.f32.mrb[0].mxu0
    %v1965 = vadd.f32 0.0, %v1964
    %v1966 = vpop.f32.mrb[0].mxu0
    %v1967 = vpop.f32.mrb[0].mxu0
    %v1968 = vadd.f32 0.0, %v1967
    %v1969 = vpop.f32.mrb[0].mxu0
    %1970 = vmatprep.mubr.bf16.mxu0 0
    %1971 = vmatmul.mubr.bf16.gmra.mrb[0].mxu0 %v1877
    %v1972 = vpop.f32.mrb[0].mxu0
    %v1973 = vadd.f32 0.0, %v1972
    %v1974 = vpop.f32.mrb[0].mxu0
    %v1975 = vpop.f32.mrb[0].mxu0
    %v1976 = vadd.f32 0.0, %v1975
    %v1977 = vpop.f32.mrb[0].mxu0
    %1978 = vdwg.mxu0
    %v1979 = vadd.f32 %v1557, %v1917
    %v1980 = vadd.f32 %v1558, %v1920
    %v1981 = vadd.f32 %v1559, %v1925
    %v1982 = vadd.f32 %v1560, %v1928
    %v1983 = vadd.f32 %v1561, %v1933
    %v1984 = vadd.f32 %v1562, %v1936
    %v1985 = vadd.f32 %v1563, %v1941
    %v1986 = vadd.f32 %v1564, %v1944
    %v1987 = vadd.f32 %v1565, %v1949
    %v1988 = vadd.f32 %v1566, %v1952
    %v1989 = vadd.f32 %v1567, %v1957
    %v1990 = vadd.f32 %v1568, %v1960
    %v1991 = vadd.f32 %v1569, %v1965
    %v1992 = vadd.f32 %v1570, %v1968
    %v1993 = vadd.f32 %v1571, %v1973
    %v1994 = vadd.f32 %v1572, %v1976
    %v1995 = vld [vmem:[%s415] sm:$0xe]
    %v1996 = vld [vmem:[%s415 + $0x8] sm:$0xe]
    %v1997 = vld [vmem:[%s415 + $0x10] sm:$0xe]
    %v1998 = vld [vmem:[%s415 + $0x18] sm:$0xe]
    %v1999 = vld [vmem:[%s415 + $0x20] sm:$0xe]
    %v2000 = vld [vmem:[%s415 + $0x28] sm:$0xe]
    %v2001 = vld [vmem:[%s415 + $0x30] sm:$0xe]
    %v2002 = vld [vmem:[%s415 + $0x38] sm:$0xe]
    %v2003 = vld [vmem:[%s415 + $0x50] sm:$0xe]
    %v2004 = vld [vmem:[%s415 + $0x58] sm:$0xe]
    %v2005 = vld [vmem:[%s415 + $0x60] sm:$0xe]
    %v2006 = vld [vmem:[%s415 + $0x68] sm:$0xe]
    %v2007 = vld [vmem:[%s415 + $0x70] sm:$0xe]
    %v2008 = vld [vmem:[%s415 + $0x78] sm:$0xe]
    %v2009 = vld [vmem:[%s415 + $0x80] sm:$0xe]
    %v2010 = vld [vmem:[%s415 + $0x88] sm:$0xe]
    %v2043 = vrot.slane %v1995, 5
    %v2044 = vrot.slane %v2043, 4
    %v2045 = vrot.slane %v1574, 5
    %v2046 = vsel %vm1144, %v2044, %v2045
    %v2047 = vrot.slane %v1996, 5
    %v2048 = vrot.slane %v2047, 4
    %v2049 = vrot.slane %v1576, 5
    %v2050 = vsel %vm1144, %v2048, %v2049
    %v2051 = vrot.slane %v1997, 5
    %v2052 = vrot.slane %v2051, 4
    %v2053 = vrot.slane %v1578, 5
    %v2054 = vsel %vm1144, %v2052, %v2053
    %v2055 = vrot.slane %v1998, 5
    %v2056 = vrot.slane %v2055, 4
    %v2057 = vrot.slane %v1580, 5
    %v2058 = vsel %vm1144, %v2056, %v2057
    %v2059 = vrot.slane %v1999, 5
    %v2060 = vrot.slane %v2059, 4
    %v2061 = vrot.slane %v1582, 5
    %v2062 = vsel %vm1144, %v2060, %v2061
    %v2063 = vrot.slane %v2000, 5
    %v2064 = vrot.slane %v2063, 4
    %v2065 = vrot.slane %v1584, 5
    %v2066 = vsel %vm1144, %v2064, %v2065
    %v2067 = vrot.slane %v2001, 5
    %v2068 = vrot.slane %v2067, 4
    %v2069 = vrot.slane %v1586, 5
    %v2070 = vsel %vm1144, %v2068, %v2069
    %v2071 = vrot.slane %v2002, 5
    %v2072 = vrot.slane %v2071, 4
    %v2073 = vrot.slane %v1588, 5
    %v2074 = vsel %vm1144, %v2072, %v2073
    %v2075 = vrot.slane %v2003, 5
    %v2076 = vrot.slane %v2075, 4
    %v2077 = vrot.slane %v1590, 5
    %v2078 = vsel %vm1144, %v2076, %v2077
    %v2079 = vrot.slane %v2004, 5
    %v2080 = vrot.slane %v2079, 4
    %v2081 = vrot.slane %v1592, 5
    %v2082 = vsel %vm1144, %v2080, %v2081
    %v2083 = vrot.slane %v2005, 5
    %v2084 = vrot.slane %v2083, 4
    %v2085 = vrot.slane %v1594, 5
    %v2086 = vsel %vm1144, %v2084, %v2085
    %v2087 = vrot.slane %v2006, 5
    %v2088 = vrot.slane %v2087, 4
    %v2089 = vrot.slane %v1596, 5
    %v2090 = vsel %vm1144, %v2088, %v2089
    %v2091 = vrot.slane %v2007, 5
    %v2092 = vrot.slane %v2091, 4
    %v2093 = vrot.slane %v1598, 5
    %v2094 = vsel %vm1144, %v2092, %v2093
    %v2095 = vrot.slane %v2008, 5
    %v2096 = vrot.slane %v2095, 4
    %v2097 = vrot.slane %v1600, 5
    %v2098 = vsel %vm1144, %v2096, %v2097
    %v2099 = vrot.slane %v2009, 5
    %v2100 = vrot.slane %v2099, 4
    %v2101 = vrot.slane %v1602, 5
    %v2102 = vsel %vm1144, %v2100, %v2101
    %v2103 = vrot.slane %v2010, 5
    %v2104 = vrot.slane %v2103, 4
    %v2105 = vrot.slane %v1604, 5
    %v2106 = vsel %vm1144, %v2104, %v2105
    %s2107 = scalar_lea.vmem [#allocation5], 10
    %v2108 = vld [vmem:[%s2107] sm:$0x3]
    %v2109 = vunpack.c.l.b16 %v2046
    %v2110 = vunpack.c.l.b16 %v2050
    %v2111 = vunpack.c.l.b16 %v2054
    %v2112 = vunpack.c.l.b16 %v2058
    %v2113 = vunpack.c.l.b16 %v2062
    %v2114 = vunpack.c.l.b16 %v2066
    %v2115 = vunpack.c.l.b16 %v2070
    %v2116 = vunpack.c.l.b16 %v2074
    %v2117 = vunpack.c.l.b16 %v2078
    %v2118 = vunpack.c.l.b16 %v2082
    %v2119 = vunpack.c.l.b16 %v2086
    %v2120 = vunpack.c.l.b16 %v2090
    %v2121 = vunpack.c.l.b16 %v2094
    %v2122 = vunpack.c.l.b16 %v2098
    %v2123 = vunpack.c.l.b16 %v2102
    %v2124 = vunpack.c.l.b16 %v2106
    %v2125 = vpack.c.b16 %v2110, %v2109
    %v2126 = vpack.c.b16 %v2112, %v2111
    %v2127 = vpack.c.b16 %v2114, %v2113
    %v2128 = vpack.c.b16 %v2116, %v2115
    %v2129 = vpack.c.b16 %v2118, %v2117
    %v2130 = vpack.c.b16 %v2120, %v2119
    %v2131 = vpack.c.b16 %v2122, %v2121
    %v2132 = vpack.c.b16 %v2124, %v2123
    %v2134 = vsel %vm804, %v2125, 0
    %v2137 = vsel %vm804, %v2126, 0
    %v2140 = vsel %vm804, %v2127, 0
    %v2143 = vsel %vm804, %v2128, 0
    %v2146 = vsel %vm804, %v2129, 0
    %v2149 = vsel %vm804, %v2130, 0
    %v2152 = vsel %vm804, %v2131, 0
    %v2155 = vsel %vm804, %v2132, 0
    %v2158 = vsel %vm829, %v2108, 0
    %2160 = vmatprep.subr.bf16.mxu0 0
    %2161 = vmatpush1.bf16.msra.mxu0 %v2158
    %2162 = vmatprep.subr.bf16.mxu0 0
    %2163 = vmatpush1.bf16.msra.mxu0 0
    %2164 = vmatprep.subr.bf16.mxu0 0
    %2165 = vmatpush1.bf16.msra.mxu0 0
    %2166 = vmatprep.subr.bf16.mxu0 0
    %2167 = vmatpush1.bf16.msra.mxu0 0
    %2168 = vmatprep.subr.bf16.mxu0 0
    %2169 = vmatpush1.bf16.msra.mxu0 0
    %2170 = vmatprep.subr.bf16.mxu0 0
    %2171 = vmatpush1.bf16.msra.mxu0 0
    %2172 = vmatprep.subr.bf16.mxu0 0
    %2173 = vmatpush1.bf16.msra.mxu0 0
    %2174 = vmatprep.subr.bf16.mxu0 0
    %2175 = vmatpush1.bf16.msra.mxu0 0
    %2176 = vmatprep.subr.bf16.mxu0 0
    %2177 = vmatpush1.bf16.msra.mxu0 0
    %2178 = vmatprep.subr.bf16.mxu0 0
    %2179 = vmatpush1.bf16.msra.mxu0 0
    %2180 = vmatprep.subr.bf16.mxu0 0
    %2181 = vmatpush1.bf16.msra.mxu0 0
    %2182 = vmatprep.subr.bf16.mxu0 0
    %2183 = vmatpush1.bf16.msra.mxu0 0
    %2184 = vmatprep.subr.bf16.mxu0 0
    %2185 = vmatpush1.bf16.msra.mxu0 0
    %2186 = vmatprep.subr.bf16.mxu0 0
    %2187 = vmatpush1.bf16.msra.mxu0 0
    %2188 = vmatprep.subr.bf16.mxu0 0
    %2189 = vmatpush1.bf16.msra.mxu0 0
    %2190 = vmatprep.subr.bf16.mxu0 0
    %2191 = vmatpush1.bf16.msra.mxu0 0
    %2192 = vmatprep.mubr.bf16.mxu0 0
    %2193 = vmatmul.mubr.bf16.gmra.mrb[0].mxu0 %v2134
    %v2194 = vpop.f32.mrb[0].mxu0
    %v2195 = vadd.f32 0.0, %v2194
    %v2196 = vpop.f32.mrb[0].mxu0
    %v2197 = vpop.f32.mrb[0].mxu0
    %v2198 = vadd.f32 0.0, %v2197
    %v2199 = vpop.f32.mrb[0].mxu0
    %2200 = vmatprep.mubr.bf16.mxu0 0
    %2201 = vmatmul.mubr.bf16.gmra.mrb[0].mxu0 %v2137
    %v2202 = vpop.f32.mrb[0].mxu0
    %v2203 = vadd.f32 0.0, %v2202
    %v2204 = vpop.f32.mrb[0].mxu0
    %v2205 = vpop.f32.mrb[0].mxu0
    %v2206 = vadd.f32 0.0, %v2205
    %v2207 = vpop.f32.mrb[0].mxu0
    %2208 = vmatprep.mubr.bf16.mxu0 0
    %2209 = vmatmul.mubr.bf16.gmra.mrb[0].mxu0 %v2140
    %v2210 = vpop.f32.mrb[0].mxu0
    %v2211 = vadd.f32 0.0, %v2210
    %v2212 = vpop.f32.mrb[0].mxu0
    %v2213 = vpop.f32.mrb[0].mxu0
    %v2214 = vadd.f32 0.0, %v2213
    %v2215 = vpop.f32.mrb[0].mxu0
    %2216 = vmatprep.mubr.bf16.mxu0 0
    %2217 = vmatmul.mubr.bf16.gmra.mrb[0].mxu0 %v2143
    %v2218 = vpop.f32.mrb[0].mxu0
    %v2219 = vadd.f32 0.0, %v2218
    %v2220 = vpop.f32.mrb[0].mxu0
    %v2221 = vpop.f32.mrb[0].mxu0
    %v2222 = vadd.f32 0.0, %v2221
    %v2223 = vpop.f32.mrb[0].mxu0
    %2224 = vmatprep.mubr.bf16.mxu0 0
    %2225 = vmatmul.mubr.bf16.gmra.mrb[0].mxu0 %v2146
    %v2226 = vpop.f32.mrb[0].mxu0
    %v2227 = vadd.f32 0.0, %v2226
    %v2228 = vpop.f32.mrb[0].mxu0
    %v2229 = vpop.f32.mrb[0].mxu0
    %v2230 = vadd.f32 0.0, %v2229
    %v2231 = vpop.f32.mrb[0].mxu0
    %2232 = vmatprep.mubr.bf16.mxu0 0
    %2233 = vmatmul.mubr.bf16.gmra.mrb[0].mxu0 %v2149
    %v2234 = vpop.f32.mrb[0].mxu0
    %v2235 = vadd.f32 0.0, %v2234
    %v2236 = vpop.f32.mrb[0].mxu0
    %v2237 = vpop.f32.mrb[0].mxu0
    %v2238 = vadd.f32 0.0, %v2237
    %v2239 = vpop.f32.mrb[0].mxu0
    %2240 = vmatprep.mubr.bf16.mxu0 0
    %2241 = vmatmul.mubr.bf16.gmra.mrb[0].mxu0 %v2152
    %v2242 = vpop.f32.mrb[0].mxu0
    %v2243 = vadd.f32 0.0, %v2242
    %v2244 = vpop.f32.mrb[0].mxu0
    %v2245 = vpop.f32.mrb[0].mxu0
    %v2246 = vadd.f32 0.0, %v2245
    %v2247 = vpop.f32.mrb[0].mxu0
    %2248 = vmatprep.mubr.bf16.mxu0 0
    %2249 = vmatmul.mubr.bf16.gmra.mrb[0].mxu0 %v2155
    %v2250 = vpop.f32.mrb[0].mxu0
    %v2251 = vadd.f32 0.0, %v2250
    %v2252 = vpop.f32.mrb[0].mxu0
    %v2253 = vpop.f32.mrb[0].mxu0
    %v2254 = vadd.f32 0.0, %v2253
    %v2255 = vpop.f32.mrb[0].mxu0
    %2256 = vdwg.mxu0
    %v2257 = vadd.f32 %v1979, %v2195
    %v2258 = vadd.f32 %v1980, %v2198
    %v2259 = vadd.f32 %v1981, %v2203
    %v2260 = vadd.f32 %v1982, %v2206
    %v2261 = vadd.f32 %v1983, %v2211
    %v2262 = vadd.f32 %v1984, %v2214
    %v2263 = vadd.f32 %v1985, %v2219
    %v2264 = vadd.f32 %v1986, %v2222
    %v2265 = vadd.f32 %v1987, %v2227
    %v2266 = vadd.f32 %v1988, %v2230
    %v2267 = vadd.f32 %v1989, %v2235
    %v2268 = vadd.f32 %v1990, %v2238
    %v2269 = vadd.f32 %v1991, %v2243
    %v2270 = vadd.f32 %v1992, %v2246
    %v2271 = vadd.f32 %v1993, %v2251
    %v2272 = vadd.f32 %v1994, %v2254
    %s2273 = scalar_lea.vmem [#allocation2], 16
    %v2274 = vld [vmem:[%s2273] sm:$0xf]
    %v2275 = vld [vmem:[%s2273 + $0x8] sm:$0xf]
    %v2276 = vld [vmem:[%s2273 + $0x10] sm:$0xf]
    %v2277 = vld [vmem:[%s2273 + $0x18] sm:$0xf]
    %v2278 = vld [vmem:[%s2273 + $0x20] sm:$0xf]
    %v2279 = vld [vmem:[%s2273 + $0x28] sm:$0xf]
    %v2280 = vld [vmem:[%s2273 + $0x30] sm:$0xf]
    %v2281 = vld [vmem:[%s2273 + $0x38] sm:$0xf]
    %v2282 = vld [vmem:[%s2273 + $0x50] sm:$0xf]
    %v2283 = vld [vmem:[%s2273 + $0x58] sm:$0xf]
    %v2284 = vld [vmem:[%s2273 + $0x60] sm:$0xf]
    %v2285 = vld [vmem:[%s2273 + $0x68] sm:$0xf]
    %v2286 = vld [vmem:[%s2273 + $0x70] sm:$0xf]
    %v2287 = vld [vmem:[%s2273 + $0x78] sm:$0xf]
    %v2288 = vld [vmem:[%s2273 + $0x80] sm:$0xf]
    %v2289 = vld [vmem:[%s2273 + $0x88] sm:$0xf]
    %s2290 = scalar_lea.vmem [#allocation5], 12
    %v2291 = vld [vmem:[%s2290] sm:$0x3]
    %v2308 = vunpack.c.l.b16 %v2274
    %v2309 = vunpack.c.l.b16 %v2275
    %v2310 = vunpack.c.l.b16 %v2276
    %v2311 = vunpack.c.l.b16 %v2277
    %v2312 = vunpack.c.l.b16 %v2278
    %v2313 = vunpack.c.l.b16 %v2279
    %v2314 = vunpack.c.l.b16 %v2280
    %v2315 = vunpack.c.l.b16 %v2281
    %v2316 = vunpack.c.l.b16 %v2282
    %v2317 = vunpack.c.l.b16 %v2283
    %v2318 = vunpack.c.l.b16 %v2284
    %v2319 = vunpack.c.l.b16 %v2285
    %v2320 = vunpack.c.l.b16 %v2286
    %v2321 = vunpack.c.l.b16 %v2287
    %v2322 = vunpack.c.l.b16 %v2288
    %v2323 = vunpack.c.l.b16 %v2289
    %v2324 = vpack.c.b16 %v2309, %v2308
    %v2325 = vpack.c.b16 %v2311, %v2310
    %v2326 = vpack.c.b16 %v2313, %v2312
    %v2327 = vpack.c.b16 %v2315, %v2314
    %v2328 = vpack.c.b16 %v2317, %v2316
    %v2329 = vpack.c.b16 %v2319, %v2318
    %v2330 = vpack.c.b16 %v2321, %v2320
    %v2331 = vpack.c.b16 %v2323, %v2322
    %v2333 = vsel %vm804, %v2324, 0
    %v2336 = vsel %vm804, %v2325, 0
    %v2339 = vsel %vm804, %v2326, 0
    %v2342 = vsel %vm804, %v2327, 0
    %v2345 = vsel %vm804, %v2328, 0
    %v2348 = vsel %vm804, %v2329, 0
    %v2351 = vsel %vm804, %v2330, 0
    %v2354 = vsel %vm804, %v2331, 0
    %v2357 = vsel %vm829, %v2291, 0
    %2359 = vmatprep.subr.bf16.mxu0 0
    %2360 = vmatpush1.bf16.msra.mxu0 %v2357
    %2361 = vmatprep.subr.bf16.mxu0 0
    %2362 = vmatpush1.bf16.msra.mxu0 0
    %2363 = vmatprep.subr.bf16.mxu0 0
    %2364 = vmatpush1.bf16.msra.mxu0 0
    %2365 = vmatprep.subr.bf16.mxu0 0
    %2366 = vmatpush1.bf16.msra.mxu0 0
    %2367 = vmatprep.subr.bf16.mxu0 0
    %2368 = vmatpush1.bf16.msra.mxu0 0
    %2369 = vmatprep.subr.bf16.mxu0 0
    %2370 = vmatpush1.bf16.msra.mxu0 0
    %2371 = vmatprep.subr.bf16.mxu0 0
    %2372 = vmatpush1.bf16.msra.mxu0 0
    %2373 = vmatprep.subr.bf16.mxu0 0
    %2374 = vmatpush1.bf16.msra.mxu0 0
    %2375 = vmatprep.subr.bf16.mxu0 0
    %2376 = vmatpush1.bf16.msra.mxu0 0
    %2377 = vmatprep.subr.bf16.mxu0 0
    %2378 = vmatpush1.bf16.msra.mxu0 0
    %2379 = vmatprep.subr.bf16.mxu0 0
    %2380 = vmatpush1.bf16.msra.mxu0 0
    %2381 = vmatprep.subr.bf16.mxu0 0
    %2382 = vmatpush1.bf16.msra.mxu0 0
    %2383 = vmatprep.subr.bf16.mxu0 0
    %2384 = vmatpush1.bf16.msra.mxu0 0
    %2385 = vmatprep.subr.bf16.mxu0 0
    %2386 = vmatpush1.bf16.msra.mxu0 0
    %2387 = vmatprep.subr.bf16.mxu0 0
    %2388 = vmatpush1.bf16.msra.mxu0 0
    %2389 = vmatprep.subr.bf16.mxu0 0
    %2390 = vmatpush1.bf16.msra.mxu0 0
    %2391 = vmatprep.mubr.bf16.mxu0 0
    %2392 = vmatmul.mubr.bf16.gmra.mrb[0].mxu0 %v2333
    %v2393 = vpop.f32.mrb[0].mxu0
    %v2394 = vadd.f32 0.0, %v2393
    %v2395 = vpop.f32.mrb[0].mxu0
    %v2396 = vpop.f32.mrb[0].mxu0
    %v2397 = vadd.f32 0.0, %v2396
    %v2398 = vpop.f32.mrb[0].mxu0
    %2399 = vmatprep.mubr.bf16.mxu0 0
    %2400 = vmatmul.mubr.bf16.gmra.mrb[0].mxu0 %v2336
    %v2401 = vpop.f32.mrb[0].mxu0
    %v2402 = vadd.f32 0.0, %v2401
    %v2403 = vpop.f32.mrb[0].mxu0
    %v2404 = vpop.f32.mrb[0].mxu0
    %v2405 = vadd.f32 0.0, %v2404
    %v2406 = vpop.f32.mrb[0].mxu0
    %2407 = vmatprep.mubr.bf16.mxu0 0
    %2408 = vmatmul.mubr.bf16.gmra.mrb[0].mxu0 %v2339
    %v2409 = vpop.f32.mrb[0].mxu0
    %v2410 = vadd.f32 0.0, %v2409
    %v2411 = vpop.f32.mrb[0].mxu0
    %v2412 = vpop.f32.mrb[0].mxu0
    %v2413 = vadd.f32 0.0, %v2412
    %v2414 = vpop.f32.mrb[0].mxu0
    %2415 = vmatprep.mubr.bf16.mxu0 0
    %2416 = vmatmul.mubr.bf16.gmra.mrb[0].mxu0 %v2342
    %v2417 = vpop.f32.mrb[0].mxu0
    %v2418 = vadd.f32 0.0, %v2417
    %v2419 = vpop.f32.mrb[0].mxu0
    %v2420 = vpop.f32.mrb[0].mxu0
    %v2421 = vadd.f32 0.0, %v2420
    %v2422 = vpop.f32.mrb[0].mxu0
    %2423 = vmatprep.mubr.bf16.mxu0 0
    %2424 = vmatmul.mubr.bf16.gmra.mrb[0].mxu0 %v2345
    %v2425 = vpop.f32.mrb[0].mxu0
    %v2426 = vadd.f32 0.0, %v2425
    %v2427 = vpop.f32.mrb[0].mxu0
    %v2428 = vpop.f32.mrb[0].mxu0
    %v2429 = vadd.f32 0.0, %v2428
    %v2430 = vpop.f32.mrb[0].mxu0
    %2431 = vmatprep.mubr.bf16.mxu0 0
    %2432 = vmatmul.mubr.bf16.gmra.mrb[0].mxu0 %v2348
    %v2433 = vpop.f32.mrb[0].mxu0
    %v2434 = vadd.f32 0.0, %v2433
    %v2435 = vpop.f32.mrb[0].mxu0
    %v2436 = vpop.f32.mrb[0].mxu0
    %v2437 = vadd.f32 0.0, %v2436
    %v2438 = vpop.f32.mrb[0].mxu0
    %2439 = vmatprep.mubr.bf16.mxu0 0
    %2440 = vmatmul.mubr.bf16.gmra.mrb[0].mxu0 %v2351
    %v2441 = vpop.f32.mrb[0].mxu0
    %v2442 = vadd.f32 0.0, %v2441
    %v2443 = vpop.f32.mrb[0].mxu0
    %v2444 = vpop.f32.mrb[0].mxu0
    %v2445 = vadd.f32 0.0, %v2444
    %v2446 = vpop.f32.mrb[0].mxu0
    %2447 = vmatprep.mubr.bf16.mxu0 0
    %2448 = vmatmul.mubr.bf16.gmra.mrb[0].mxu0 %v2354
    %v2449 = vpop.f32.mrb[0].mxu0
    %v2450 = vadd.f32 0.0, %v2449
    %v2451 = vpop.f32.mrb[0].mxu0
    %v2452 = vpop.f32.mrb[0].mxu0
    %v2453 = vadd.f32 0.0, %v2452
    %v2454 = vpop.f32.mrb[0].mxu0
    %2455 = vdwg.mxu0
    %v2456 = vadd.f32 %v2257, %v2394
    %v2457 = vadd.f32 %v2258, %v2397
    %v2458 = vadd.f32 %v2259, %v2402
    %v2459 = vadd.f32 %v2260, %v2405
    %v2460 = vadd.f32 %v2261, %v2410
    %v2461 = vadd.f32 %v2262, %v2413
    %v2462 = vadd.f32 %v2263, %v2418
    %v2463 = vadd.f32 %v2264, %v2421
    %v2464 = vadd.f32 %v2265, %v2426
    %v2465 = vadd.f32 %v2266, %v2429
    %v2466 = vadd.f32 %v2267, %v2434
    %v2467 = vadd.f32 %v2268, %v2437
    %v2468 = vadd.f32 %v2269, %v2442
    %v2469 = vadd.f32 %v2270, %v2445
    %v2470 = vadd.f32 %v2271, %v2450
    %v2471 = vadd.f32 %v2272, %v2453
    %v2472 = vld [vmem:[%s2273] sm:$0xf]
    %v2473 = vld [vmem:[%s2273 + $0x4] sm:$0x1]
    %v2474 = vld [vmem:[%s2273 + $0x8] sm:$0xf]
    %v2475 = vld [vmem:[%s2273 + $0xc] sm:$0x1]
    %v2476 = vld [vmem:[%s2273 + $0x10] sm:$0xf]
    %v2477 = vld [vmem:[%s2273 + $0x14] sm:$0x1]
    %v2478 = vld [vmem:[%s2273 + $0x18] sm:$0xf]
    %v2479 = vld [vmem:[%s2273 + $0x1c] sm:$0x1]
    %v2480 = vld [vmem:[%s2273 + $0x20] sm:$0xf]
    %v2481 = vld [vmem:[%s2273 + $0x24] sm:$0x1]
    %v2482 = vld [vmem:[%s2273 + $0x28] sm:$0xf]
    %v2483 = vld [vmem:[%s2273 + $0x2c] sm:$0x1]
    %v2484 = vld [vmem:[%s2273 + $0x30] sm:$0xf]
    %v2485 = vld [vmem:[%s2273 + $0x34] sm:$0x1]
    %v2486 = vld [vmem:[%s2273 + $0x38] sm:$0xf]
    %v2487 = vld [vmem:[%s2273 + $0x3c] sm:$0x1]
    %v2488 = vld [vmem:[%s2273 + $0x50] sm:$0xf]
    %v2489 = vld [vmem:[%s2273 + $0x54] sm:$0x1]
    %v2490 = vld [vmem:[%s2273 + $0x58] sm:$0xf]
    %v2491 = vld [vmem:[%s2273 + $0x5c] sm:$0x1]
    %v2492 = vld [vmem:[%s2273 + $0x60] sm:$0xf]
    %v2493 = vld [vmem:[%s2273 + $0x64] sm:$0x1]
    %v2494 = vld [vmem:[%s2273 + $0x68] sm:$0xf]
    %v2495 = vld [vmem:[%s2273 + $0x6c] sm:$0x1]
    %v2496 = vld [vmem:[%s2273 + $0x70] sm:$0xf]
    %v2497 = vld [vmem:[%s2273 + $0x74] sm:$0x1]
    %v2498 = vld [vmem:[%s2273 + $0x78] sm:$0xf]
    %v2499 = vld [vmem:[%s2273 + $0x7c] sm:$0x1]
    %v2500 = vld [vmem:[%s2273 + $0x80] sm:$0xf]
    %v2501 = vld [vmem:[%s2273 + $0x84] sm:$0x1]
    %v2502 = vld [vmem:[%s2273 + $0x88] sm:$0xf]
    %v2503 = vld [vmem:[%s2273 + $0x8c] sm:$0x1]
    %v2505 = vshrl.u32 %v2472, 16
    %v2507 = vrot.slane %v2505, 4
    %v2508 = vshll.u32 %v2472, 16
    %v2510 = vrot.slane %v2508, 5
    %v2511 = vor.u32 %v2507, %v2510
    %v2512 = vrot.slane %v2511, 4
    %v2514 = vshll.u32 %v2473, 16
    %v2516 = vrot.slane %v2514, 5
    %v2517 = vsel %vm553, %v2512, %v2516
    %v2519 = vshrl.u32 %v2474, 16
    %v2521 = vrot.slane %v2519, 4
    %v2522 = vshll.u32 %v2474, 16
    %v2524 = vrot.slane %v2522, 5
    %v2525 = vor.u32 %v2521, %v2524
    %v2526 = vrot.slane %v2525, 4
    %v2528 = vshll.u32 %v2475, 16
    %v2530 = vrot.slane %v2528, 5
    %v2531 = vsel %vm553, %v2526, %v2530
    %v2533 = vshrl.u32 %v2476, 16
    %v2535 = vrot.slane %v2533, 4
    %v2536 = vshll.u32 %v2476, 16
    %v2538 = vrot.slane %v2536, 5
    %v2539 = vor.u32 %v2535, %v2538
    %v2540 = vrot.slane %v2539, 4
    %v2542 = vshll.u32 %v2477, 16
    %v2544 = vrot.slane %v2542, 5
    %v2545 = vsel %vm553, %v2540, %v2544
    %v2547 = vshrl.u32 %v2478, 16
    %v2549 = vrot.slane %v2547, 4
    %v2550 = vshll.u32 %v2478, 16
    %v2552 = vrot.slane %v2550, 5
    %v2553 = vor.u32 %v2549, %v2552
    %v2554 = vrot.slane %v2553, 4
    %v2556 = vshll.u32 %v2479, 16
    %v2558 = vrot.slane %v2556, 5
    %v2559 = vsel %vm553, %v2554, %v2558
    %v2561 = vshrl.u32 %v2480, 16
    %v2563 = vrot.slane %v2561, 4
    %v2564 = vshll.u32 %v2480, 16
    %v2566 = vrot.slane %v2564, 5
    %v2567 = vor.u32 %v2563, %v2566
    %v2568 = vrot.slane %v2567, 4
    %v2570 = vshll.u32 %v2481, 16
    %v2572 = vrot.slane %v2570, 5
    %v2573 = vsel %vm553, %v2568, %v2572
    %v2575 = vshrl.u32 %v2482, 16
    %v2577 = vrot.slane %v2575, 4
    %v2578 = vshll.u32 %v2482, 16
    %v2580 = vrot.slane %v2578, 5
    %v2581 = vor.u32 %v2577, %v2580
    %v2582 = vrot.slane %v2581, 4
    %v2584 = vshll.u32 %v2483, 16
    %v2586 = vrot.slane %v2584, 5
    %v2587 = vsel %vm553, %v2582, %v2586
    %v2589 = vshrl.u32 %v2484, 16
    %v2591 = vrot.slane %v2589, 4
    %v2592 = vshll.u32 %v2484, 16
    %v2594 = vrot.slane %v2592, 5
    %v2595 = vor.u32 %v2591, %v2594
    %v2596 = vrot.slane %v2595, 4
    %v2598 = vshll.u32 %v2485, 16
    %v2600 = vrot.slane %v2598, 5
    %v2601 = vsel %vm553, %v2596, %v2600
    %v2603 = vshrl.u32 %v2486, 16
    %v2605 = vrot.slane %v2603, 4
    %v2606 = vshll.u32 %v2486, 16
    %v2608 = vrot.slane %v2606, 5
    %v2609 = vor.u32 %v2605, %v2608
    %v2610 = vrot.slane %v2609, 4
    %v2612 = vshll.u32 %v2487, 16
    %v2614 = vrot.slane %v2612, 5
    %v2615 = vsel %vm553, %v2610, %v2614
    %v2617 = vshrl.u32 %v2488, 16
    %v2619 = vrot.slane %v2617, 4
    %v2620 = vshll.u32 %v2488, 16
    %v2622 = vrot.slane %v2620, 5
    %v2623 = vor.u32 %v2619, %v2622
    %v2624 = vrot.slane %v2623, 4
    %v2626 = vshll.u32 %v2489, 16
    %v2628 = vrot.slane %v2626, 5
    %v2629 = vsel %vm553, %v2624, %v2628
    %v2631 = vshrl.u32 %v2490, 16
    %v2633 = vrot.slane %v2631, 4
    %v2634 = vshll.u32 %v2490, 16
    %v2636 = vrot.slane %v2634, 5
    %v2637 = vor.u32 %v2633, %v2636
    %v2638 = vrot.slane %v2637, 4
    %v2640 = vshll.u32 %v2491, 16
    %v2642 = vrot.slane %v2640, 5
    %v2643 = vsel %vm553, %v2638, %v2642
    %v2645 = vshrl.u32 %v2492, 16
    %v2647 = vrot.slane %v2645, 4
    %v2648 = vshll.u32 %v2492, 16
    %v2650 = vrot.slane %v2648, 5
    %v2651 = vor.u32 %v2647, %v2650
    %v2652 = vrot.slane %v2651, 4
    %v2654 = vshll.u32 %v2493, 16
    %v2656 = vrot.slane %v2654, 5
    %v2657 = vsel %vm553, %v2652, %v2656
    %v2659 = vshrl.u32 %v2494, 16
    %v2661 = vrot.slane %v2659, 4
    %v2662 = vshll.u32 %v2494, 16
    %v2664 = vrot.slane %v2662, 5
    %v2665 = vor.u32 %v2661, %v2664
    %v2666 = vrot.slane %v2665, 4
    %v2668 = vshll.u32 %v2495, 16
    %v2670 = vrot.slane %v2668, 5
    %v2671 = vsel %vm553, %v2666, %v2670
    %v2673 = vshrl.u32 %v2496, 16
    %v2675 = vrot.slane %v2673, 4
    %v2676 = vshll.u32 %v2496, 16
    %v2678 = vrot.slane %v2676, 5
    %v2679 = vor.u32 %v2675, %v2678
    %v2680 = vrot.slane %v2679, 4
    %v2682 = vshll.u32 %v2497, 16
    %v2684 = vrot.slane %v2682, 5
    %v2685 = vsel %vm553, %v2680, %v2684
    %v2687 = vshrl.u32 %v2498, 16
    %v2689 = vrot.slane %v2687, 4
    %v2690 = vshll.u32 %v2498, 16
    %v2692 = vrot.slane %v2690, 5
    %v2693 = vor.u32 %v2689, %v2692
    %v2694 = vrot.slane %v2693, 4
    %v2696 = vshll.u32 %v2499, 16
    %v2698 = vrot.slane %v2696, 5
    %v2699 = vsel %vm553, %v2694, %v2698
    %v2701 = vshrl.u32 %v2500, 16
    %v2703 = vrot.slane %v2701, 4
    %v2704 = vshll.u32 %v2500, 16
    %v2706 = vrot.slane %v2704, 5
    %v2707 = vor.u32 %v2703, %v2706
    %v2708 = vrot.slane %v2707, 4
    %v2710 = vshll.u32 %v2501, 16
    %v2712 = vrot.slane %v2710, 5
    %v2713 = vsel %vm553, %v2708, %v2712
    %v2715 = vshrl.u32 %v2502, 16
    %v2717 = vrot.slane %v2715, 4
    %v2718 = vshll.u32 %v2502, 16
    %v2720 = vrot.slane %v2718, 5
    %v2721 = vor.u32 %v2717, %v2720
    %v2722 = vrot.slane %v2721, 4
    %v2724 = vshll.u32 %v2503, 16
    %v2726 = vrot.slane %v2724, 5
    %v2727 = vsel %vm553, %v2722, %v2726
    %s2728 = scalar_lea.vmem [#allocation5], 14
    %v2729 = vld [vmem:[%s2728] sm:$0x3]
    %v2730 = vunpack.c.l.b16 %v2517
    %v2731 = vunpack.c.l.b16 %v2531
    %v2732 = vunpack.c.l.b16 %v2545
    %v2733 = vunpack.c.l.b16 %v2559
    %v2734 = vunpack.c.l.b16 %v2573
    %v2735 = vunpack.c.l.b16 %v2587
    %v2736 = vunpack.c.l.b16 %v2601
    %v2737 = vunpack.c.l.b16 %v2615
    %v2738 = vunpack.c.l.b16 %v2629
    %v2739 = vunpack.c.l.b16 %v2643
    %v2740 = vunpack.c.l.b16 %v2657
    %v2741 = vunpack.c.l.b16 %v2671
    %v2742 = vunpack.c.l.b16 %v2685
    %v2743 = vunpack.c.l.b16 %v2699
    %v2744 = vunpack.c.l.b16 %v2713
    %v2745 = vunpack.c.l.b16 %v2727
    %v2746 = vpack.c.b16 %v2731, %v2730
    %v2747 = vpack.c.b16 %v2733, %v2732
    %v2748 = vpack.c.b16 %v2735, %v2734
    %v2749 = vpack.c.b16 %v2737, %v2736
    %v2750 = vpack.c.b16 %v2739, %v2738
    %v2751 = vpack.c.b16 %v2741, %v2740
    %v2752 = vpack.c.b16 %v2743, %v2742
    %v2753 = vpack.c.b16 %v2745, %v2744
    %v2755 = vsel %vm804, %v2746, 0
    %v2758 = vsel %vm804, %v2747, 0
    %v2761 = vsel %vm804, %v2748, 0
    %v2764 = vsel %vm804, %v2749, 0
    %v2767 = vsel %vm804, %v2750, 0
    %v2770 = vsel %vm804, %v2751, 0
    %v2773 = vsel %vm804, %v2752, 0
    %v2776 = vsel %vm804, %v2753, 0
    %v2779 = vsel %vm829, %v2729, 0
    %2781 = vmatprep.subr.bf16.mxu0 0
    %2782 = vmatpush1.bf16.msra.mxu0 %v2779
    %2783 = vmatprep.subr.bf16.mxu0 0
    %2784 = vmatpush1.bf16.msra.mxu0 0
    %2785 = vmatprep.subr.bf16.mxu0 0
    %2786 = vmatpush1.bf16.msra.mxu0 0
    %2787 = vmatprep.subr.bf16.mxu0 0
    %2788 = vmatpush1.bf16.msra.mxu0 0
    %2789 = vmatprep.subr.bf16.mxu0 0
    %2790 = vmatpush1.bf16.msra.mxu0 0
    %2791 = vmatprep.subr.bf16.mxu0 0
    %2792 = vmatpush1.bf16.msra.mxu0 0
    %2793 = vmatprep.subr.bf16.mxu0 0
    %2794 = vmatpush1.bf16.msra.mxu0 0
    %2795 = vmatprep.subr.bf16.mxu0 0
    %2796 = vmatpush1.bf16.msra.mxu0 0
    %2797 = vmatprep.subr.bf16.mxu0 0
    %2798 = vmatpush1.bf16.msra.mxu0 0
    %2799 = vmatprep.subr.bf16.mxu0 0
    %2800 = vmatpush1.bf16.msra.mxu0 0
    %2801 = vmatprep.subr.bf16.mxu0 0
    %2802 = vmatpush1.bf16.msra.mxu0 0
    %2803 = vmatprep.subr.bf16.mxu0 0
    %2804 = vmatpush1.bf16.msra.mxu0 0
    %2805 = vmatprep.subr.bf16.mxu0 0
    %2806 = vmatpush1.bf16.msra.mxu0 0
    %2807 = vmatprep.subr.bf16.mxu0 0
    %2808 = vmatpush1.bf16.msra.mxu0 0
    %2809 = vmatprep.subr.bf16.mxu0 0
    %2810 = vmatpush1.bf16.msra.mxu0 0
    %2811 = vmatprep.subr.bf16.mxu0 0
    %2812 = vmatpush1.bf16.msra.mxu0 0
    %2813 = vmatprep.mubr.bf16.mxu0 0
    %2814 = vmatmul.mubr.bf16.gmra.mrb[0].mxu0 %v2755
    %v2815 = vpop.f32.mrb[0].mxu0
    %v2816 = vadd.f32 0.0, %v2815
    %v2817 = vpop.f32.mrb[0].mxu0
    %v2818 = vpop.f32.mrb[0].mxu0
    %v2819 = vadd.f32 0.0, %v2818
    %v2820 = vpop.f32.mrb[0].mxu0
    %2821 = vmatprep.mubr.bf16.mxu0 0
    %2822 = vmatmul.mubr.bf16.gmra.mrb[0].mxu0 %v2758
    %v2823 = vpop.f32.mrb[0].mxu0
    %v2824 = vadd.f32 0.0, %v2823
    %v2825 = vpop.f32.mrb[0].mxu0
    %v2826 = vpop.f32.mrb[0].mxu0
    %v2827 = vadd.f32 0.0, %v2826
    %v2828 = vpop.f32.mrb[0].mxu0
    %2829 = vmatprep.mubr.bf16.mxu0 0
    %2830 = vmatmul.mubr.bf16.gmra.mrb[0].mxu0 %v2761
    %v2831 = vpop.f32.mrb[0].mxu0
    %v2832 = vadd.f32 0.0, %v2831
    %v2833 = vpop.f32.mrb[0].mxu0
    %v2834 = vpop.f32.mrb[0].mxu0
    %v2835 = vadd.f32 0.0, %v2834
    %v2836 = vpop.f32.mrb[0].mxu0
    %2837 = vmatprep.mubr.bf16.mxu0 0
    %2838 = vmatmul.mubr.bf16.gmra.mrb[0].mxu0 %v2764
    %v2839 = vpop.f32.mrb[0].mxu0
    %v2840 = vadd.f32 0.0, %v2839
    %v2841 = vpop.f32.mrb[0].mxu0
    %v2842 = vpop.f32.mrb[0].mxu0
    %v2843 = vadd.f32 0.0, %v2842
    %v2844 = vpop.f32.mrb[0].mxu0
    %2845 = vmatprep.mubr.bf16.mxu0 0
    %2846 = vmatmul.mubr.bf16.gmra.mrb[0].mxu0 %v2767
    %v2847 = vpop.f32.mrb[0].mxu0
    %v2848 = vadd.f32 0.0, %v2847
    %v2849 = vpop.f32.mrb[0].mxu0
    %v2850 = vpop.f32.mrb[0].mxu0
    %v2851 = vadd.f32 0.0, %v2850
    %v2852 = vpop.f32.mrb[0].mxu0
    %2853 = vmatprep.mubr.bf16.mxu0 0
    %2854 = vmatmul.mubr.bf16.gmra.mrb[0].mxu0 %v2770
    %v2855 = vpop.f32.mrb[0].mxu0
    %v2856 = vadd.f32 0.0, %v2855
    %v2857 = vpop.f32.mrb[0].mxu0
    %v2858 = vpop.f32.mrb[0].mxu0
    %v2859 = vadd.f32 0.0, %v2858
    %v2860 = vpop.f32.mrb[0].mxu0
    %2861 = vmatprep.mubr.bf16.mxu0 0
    %2862 = vmatmul.mubr.bf16.gmra.mrb[0].mxu0 %v2773
    %v2863 = vpop.f32.mrb[0].mxu0
    %v2864 = vadd.f32 0.0, %v2863
    %v2865 = vpop.f32.mrb[0].mxu0
    %v2866 = vpop.f32.mrb[0].mxu0
    %v2867 = vadd.f32 0.0, %v2866
    %v2868 = vpop.f32.mrb[0].mxu0
    %2869 = vmatprep.mubr.bf16.mxu0 0
    %2870 = vmatmul.mubr.bf16.gmra.mrb[0].mxu0 %v2776
    %v2871 = vpop.f32.mrb[0].mxu0
    %v2872 = vadd.f32 0.0, %v2871
    %v2873 = vpop.f32.mrb[0].mxu0
    %v2874 = vpop.f32.mrb[0].mxu0
    %v2875 = vadd.f32 0.0, %v2874
    %v2876 = vpop.f32.mrb[0].mxu0
    %2877 = vdwg.mxu0
    %v2878 = vadd.f32 %v2456, %v2816
    %v2879 = vadd.f32 %v2457, %v2819
    %v2880 = vadd.f32 %v2458, %v2824
    %v2881 = vadd.f32 %v2459, %v2827
    %v2882 = vadd.f32 %v2460, %v2832
    %v2883 = vadd.f32 %v2461, %v2835
    %v2884 = vadd.f32 %v2462, %v2840
    %v2885 = vadd.f32 %v2463, %v2843
    %v2886 = vadd.f32 %v2464, %v2848
    %v2887 = vadd.f32 %v2465, %v2851
    %v2888 = vadd.f32 %v2466, %v2856
    %v2889 = vadd.f32 %v2467, %v2859
    %v2890 = vadd.f32 %v2468, %v2864
    %v2891 = vadd.f32 %v2469, %v2867
    %v2892 = vadd.f32 %v2470, %v2872
    %v2893 = vadd.f32 %v2471, %v2875
    %v2894 = vld [vmem:[%s2273] sm:$0xe]
    %v2895 = vld [vmem:[%s2273 + $0x8] sm:$0xe]
    %v2896 = vld [vmem:[%s2273 + $0x10] sm:$0xe]
    %v2897 = vld [vmem:[%s2273 + $0x18] sm:$0xe]
    %v2898 = vld [vmem:[%s2273 + $0x20] sm:$0xe]
    %v2899 = vld [vmem:[%s2273 + $0x28] sm:$0xe]
    %v2900 = vld [vmem:[%s2273 + $0x30] sm:$0xe]
    %v2901 = vld [vmem:[%s2273 + $0x38] sm:$0xe]
    %v2902 = vld [vmem:[%s2273 + $0x50] sm:$0xe]
    %v2903 = vld [vmem:[%s2273 + $0x58] sm:$0xe]
    %v2904 = vld [vmem:[%s2273 + $0x60] sm:$0xe]
    %v2905 = vld [vmem:[%s2273 + $0x68] sm:$0xe]
    %v2906 = vld [vmem:[%s2273 + $0x70] sm:$0xe]
    %v2907 = vld [vmem:[%s2273 + $0x78] sm:$0xe]
    %v2908 = vld [vmem:[%s2273 + $0x80] sm:$0xe]
    %v2909 = vld [vmem:[%s2273 + $0x88] sm:$0xe]
    %v2942 = vrot.slane %v2894, 5
    %v2943 = vrot.slane %v2942, 4
    %v2944 = vrot.slane %v2473, 5
    %v2945 = vsel %vm1144, %v2943, %v2944
    %v2946 = vrot.slane %v2895, 5
    %v2947 = vrot.slane %v2946, 4
    %v2948 = vrot.slane %v2475, 5
    %v2949 = vsel %vm1144, %v2947, %v2948
    %v2950 = vrot.slane %v2896, 5
    %v2951 = vrot.slane %v2950, 4
    %v2952 = vrot.slane %v2477, 5
    %v2953 = vsel %vm1144, %v2951, %v2952
    %v2954 = vrot.slane %v2897, 5
    %v2955 = vrot.slane %v2954, 4
    %v2956 = vrot.slane %v2479, 5
    %v2957 = vsel %vm1144, %v2955, %v2956
    %v2958 = vrot.slane %v2898, 5
    %v2959 = vrot.slane %v2958, 4
    %v2960 = vrot.slane %v2481, 5
    %v2961 = vsel %vm1144, %v2959, %v2960
    %v2962 = vrot.slane %v2899, 5
    %v2963 = vrot.slane %v2962, 4
    %v2964 = vrot.slane %v2483, 5
    %v2965 = vsel %vm1144, %v2963, %v2964
    %v2966 = vrot.slane %v2900, 5
    %v2967 = vrot.slane %v2966, 4
    %v2968 = vrot.slane %v2485, 5
    %v2969 = vsel %vm1144, %v2967, %v2968
    %v2970 = vrot.slane %v2901, 5
    %v2971 = vrot.slane %v2970, 4
    %v2972 = vrot.slane %v2487, 5
    %v2973 = vsel %vm1144, %v2971, %v2972
    %v2974 = vrot.slane %v2902, 5
    %v2975 = vrot.slane %v2974, 4
    %v2976 = vrot.slane %v2489, 5
    %v2977 = vsel %vm1144, %v2975, %v2976
    %v2978 = vrot.slane %v2903, 5
    %v2979 = vrot.slane %v2978, 4
    %v2980 = vrot.slane %v2491, 5
    %v2981 = vsel %vm1144, %v2979, %v2980
    %v2982 = vrot.slane %v2904, 5
    %v2983 = vrot.slane %v2982, 4
    %v2984 = vrot.slane %v2493, 5
    %v2985 = vsel %vm1144, %v2983, %v2984
    %v2986 = vrot.slane %v2905, 5
    %v2987 = vrot.slane %v2986, 4
    %v2988 = vrot.slane %v2495, 5
    %v2989 = vsel %vm1144, %v2987, %v2988
    %v2990 = vrot.slane %v2906, 5
    %v2991 = vrot.slane %v2990, 4
    %v2992 = vrot.slane %v2497, 5
    %v2993 = vsel %vm1144, %v2991, %v2992
    %v2994 = vrot.slane %v2907, 5
    %v2995 = vrot.slane %v2994, 4
    %v2996 = vrot.slane %v2499, 5
    %v2997 = vsel %vm1144, %v2995, %v2996
    %v2998 = vrot.slane %v2908, 5
    %v2999 = vrot.slane %v2998, 4
    %v3000 = vrot.slane %v2501, 5
    %v3001 = vsel %vm1144, %v2999, %v3000
    %v3002 = vrot.slane %v2909, 5
    %v3003 = vrot.slane %v3002, 4
    %v3004 = vrot.slane %v2503, 5
    %v3005 = vsel %vm1144, %v3003, %v3004
    %s3006 = scalar_lea.vmem [#allocation5], 16
    %v3007 = vld [vmem:[%s3006] sm:$0x3]
    %v3008 = vunpack.c.l.b16 %v2945
    %v3009 = vunpack.c.l.b16 %v2949
    %v3010 = vunpack.c.l.b16 %v2953
    %v3011 = vunpack.c.l.b16 %v2957
    %v3012 = vunpack.c.l.b16 %v2961
    %v3013 = vunpack.c.l.b16 %v2965
    %v3014 = vunpack.c.l.b16 %v2969
    %v3015 = vunpack.c.l.b16 %v2973
    %v3016 = vunpack.c.l.b16 %v2977
    %v3017 = vunpack.c.l.b16 %v2981
    %v3018 = vunpack.c.l.b16 %v2985
    %v3019 = vunpack.c.l.b16 %v2989
    %v3020 = vunpack.c.l.b16 %v2993
    %v3021 = vunpack.c.l.b16 %v2997
    %v3022 = vunpack.c.l.b16 %v3001
    %v3023 = vunpack.c.l.b16 %v3005
    %v3024 = vpack.c.b16 %v3009, %v3008
    %v3025 = vpack.c.b16 %v3011, %v3010
    %v3026 = vpack.c.b16 %v3013, %v3012
    %v3027 = vpack.c.b16 %v3015, %v3014
    %v3028 = vpack.c.b16 %v3017, %v3016
    %v3029 = vpack.c.b16 %v3019, %v3018
    %v3030 = vpack.c.b16 %v3021, %v3020
    %v3031 = vpack.c.b16 %v3023, %v3022
    %v3033 = vsel %vm804, %v3024, 0
    %v3036 = vsel %vm804, %v3025, 0
    %v3039 = vsel %vm804, %v3026, 0
    %v3042 = vsel %vm804, %v3027, 0
    %v3045 = vsel %vm804, %v3028, 0
    %v3048 = vsel %vm804, %v3029, 0
    %v3051 = vsel %vm804, %v3030, 0
    %v3054 = vsel %vm804, %v3031, 0
    %v3057 = vsel %vm829, %v3007, 0
    %3059 = vmatprep.subr.bf16.mxu0 0
    %3060 = vmatpush1.bf16.msra.mxu0 %v3057
    %3061 = vmatprep.subr.bf16.mxu0 0
    %3062 = vmatpush1.bf16.msra.mxu0 0
    %3063 = vmatprep.subr.bf16.mxu0 0
    %3064 = vmatpush1.bf16.msra.mxu0 0
    %3065 = vmatprep.subr.bf16.mxu0 0
    %3066 = vmatpush1.bf16.msra.mxu0 0
    %3067 = vmatprep.subr.bf16.mxu0 0
    %3068 = vmatpush1.bf16.msra.mxu0 0
    %3069 = vmatprep.subr.bf16.mxu0 0
    %3070 = vmatpush1.bf16.msra.mxu0 0
    %3071 = vmatprep.subr.bf16.mxu0 0
    %3072 = vmatpush1.bf16.msra.mxu0 0
    %3073 = vmatprep.subr.bf16.mxu0 0
    %3074 = vmatpush1.bf16.msra.mxu0 0
    %3075 = vmatprep.subr.bf16.mxu0 0
    %3076 = vmatpush1.bf16.msra.mxu0 0
    %3077 = vmatprep.subr.bf16.mxu0 0
    %3078 = vmatpush1.bf16.msra.mxu0 0
    %3079 = vmatprep.subr.bf16.mxu0 0
    %3080 = vmatpush1.bf16.msra.mxu0 0
    %3081 = vmatprep.subr.bf16.mxu0 0
    %3082 = vmatpush1.bf16.msra.mxu0 0
    %3083 = vmatprep.subr.bf16.mxu0 0
    %3084 = vmatpush1.bf16.msra.mxu0 0
    %3085 = vmatprep.subr.bf16.mxu0 0
    %3086 = vmatpush1.bf16.msra.mxu0 0
    %3087 = vmatprep.subr.bf16.mxu0 0
    %3088 = vmatpush1.bf16.msra.mxu0 0
    %3089 = vmatprep.subr.bf16.mxu0 0
    %3090 = vmatpush1.bf16.msra.mxu0 0
    %3091 = vmatprep.mubr.bf16.mxu0 0
    %3092 = vmatmul.mubr.bf16.gmra.mrb[0].mxu0 %v3033
    %v3093 = vpop.f32.mrb[0].mxu0
    %v3094 = vadd.f32 0.0, %v3093
    %v3095 = vpop.f32.mrb[0].mxu0
    %v3096 = vpop.f32.mrb[0].mxu0
    %v3097 = vadd.f32 0.0, %v3096
    %v3098 = vpop.f32.mrb[0].mxu0
    %3099 = vmatprep.mubr.bf16.mxu0 0
    %3100 = vmatmul.mubr.bf16.gmra.mrb[0].mxu0 %v3036
    %v3101 = vpop.f32.mrb[0].mxu0
    %v3102 = vadd.f32 0.0, %v3101
    %v3103 = vpop.f32.mrb[0].mxu0
    %v3104 = vpop.f32.mrb[0].mxu0
    %v3105 = vadd.f32 0.0, %v3104
    %v3106 = vpop.f32.mrb[0].mxu0
    %3107 = vmatprep.mubr.bf16.mxu0 0
    %3108 = vmatmul.mubr.bf16.gmra.mrb[0].mxu0 %v3039
    %v3109 = vpop.f32.mrb[0].mxu0
    %v3110 = vadd.f32 0.0, %v3109
    %v3111 = vpop.f32.mrb[0].mxu0
    %v3112 = vpop.f32.mrb[0].mxu0
    %v3113 = vadd.f32 0.0, %v3112
    %v3114 = vpop.f32.mrb[0].mxu0
    %3115 = vmatprep.mubr.bf16.mxu0 0
    %3116 = vmatmul.mubr.bf16.gmra.mrb[0].mxu0 %v3042
    %v3117 = vpop.f32.mrb[0].mxu0
    %v3118 = vadd.f32 0.0, %v3117
    %v3119 = vpop.f32.mrb[0].mxu0
    %v3120 = vpop.f32.mrb[0].mxu0
    %v3121 = vadd.f32 0.0, %v3120
    %v3122 = vpop.f32.mrb[0].mxu0
    %3123 = vmatprep.mubr.bf16.mxu0 0
    %3124 = vmatmul.mubr.bf16.gmra.mrb[0].mxu0 %v3045
    %v3125 = vpop.f32.mrb[0].mxu0
    %v3126 = vadd.f32 0.0, %v3125
    %v3127 = vpop.f32.mrb[0].mxu0
    %v3128 = vpop.f32.mrb[0].mxu0
    %v3129 = vadd.f32 0.0, %v3128
    %v3130 = vpop.f32.mrb[0].mxu0
    %3131 = vmatprep.mubr.bf16.mxu0 0
    %3132 = vmatmul.mubr.bf16.gmra.mrb[0].mxu0 %v3048
    %v3133 = vpop.f32.mrb[0].mxu0
    %v3134 = vadd.f32 0.0, %v3133
    %v3135 = vpop.f32.mrb[0].mxu0
    %v3136 = vpop.f32.mrb[0].mxu0
    %v3137 = vadd.f32 0.0, %v3136
    %v3138 = vpop.f32.mrb[0].mxu0
    %3139 = vmatprep.mubr.bf16.mxu0 0
    %3140 = vmatmul.mubr.bf16.gmra.mrb[0].mxu0 %v3051
    %v3141 = vpop.f32.mrb[0].mxu0
    %v3142 = vadd.f32 0.0, %v3141
    %v3143 = vpop.f32.mrb[0].mxu0
    %v3144 = vpop.f32.mrb[0].mxu0
    %v3145 = vadd.f32 0.0, %v3144
    %v3146 = vpop.f32.mrb[0].mxu0
    %3147 = vmatprep.mubr.bf16.mxu0 0
    %3148 = vmatmul.mubr.bf16.gmra.mrb[0].mxu0 %v3054
    %v3149 = vpop.f32.mrb[0].mxu0
    %v3150 = vadd.f32 0.0, %v3149
    %v3151 = vpop.f32.mrb[0].mxu0
    %v3152 = vpop.f32.mrb[0].mxu0
    %v3153 = vadd.f32 0.0, %v3152
    %v3154 = vpop.f32.mrb[0].mxu0
    %3155 = vdwg.mxu0
    %v3156 = vadd.f32 %v2878, %v3094
    %v3157 = vadd.f32 %v2879, %v3097
    %v3158 = vadd.f32 %v2880, %v3102
    %v3159 = vadd.f32 %v2881, %v3105
    %v3160 = vadd.f32 %v2882, %v3110
    %v3161 = vadd.f32 %v2883, %v3113
    %v3162 = vadd.f32 %v2884, %v3118
    %v3163 = vadd.f32 %v2885, %v3121
    %v3164 = vadd.f32 %v2886, %v3126
    %v3165 = vadd.f32 %v2887, %v3129
    %v3166 = vadd.f32 %v2888, %v3134
    %v3167 = vadd.f32 %v2889, %v3137
    %v3168 = vadd.f32 %v2890, %v3142
    %v3169 = vadd.f32 %v2891, %v3145
    %v3170 = vadd.f32 %v2892, %v3150
    %v3171 = vadd.f32 %v2893, %v3153
    %v3172 = vld [vmem:[#allocation8] sm:$0x1]
    %v3174 = vlaneseq
    %v3175 = vshrl.u32 %v3174, 7
    %v3176 = vsub.s32 0, %v3175
    %v3177 = vrot.slane %v3172, %v3176
    %v3179 = vadd.f32 %v3156, %v3177
    %v3180 = vadd.f32 %v3157, %v3177
    %v3181 = vadd.f32 %v3158, %v3177
    %v3182 = vadd.f32 %v3159, %v3177
    %v3183 = vadd.f32 %v3160, %v3177
    %v3184 = vadd.f32 %v3161, %v3177
    %v3185 = vadd.f32 %v3162, %v3177
    %v3186 = vadd.f32 %v3163, %v3177
    %v3187 = vadd.f32 %v3164, %v3177
    %v3188 = vadd.f32 %v3165, %v3177
    %v3189 = vadd.f32 %v3166, %v3177
    %v3190 = vadd.f32 %v3167, %v3177
    %v3191 = vadd.f32 %v3168, %v3177
    %v3192 = vadd.f32 %v3169, %v3177
    %v3193 = vadd.f32 %v3170, %v3177
    %v3194 = vadd.f32 %v3171, %v3177
    %v3195 = vmax.f32 %v3179, 0.0
    %v3196 = vmax.f32 %v3180, 0.0
    %v3197 = vmax.f32 %v3181, 0.0
    %v3198 = vmax.f32 %v3182, 0.0
    %v3199 = vmax.f32 %v3183, 0.0
    %v3200 = vmax.f32 %v3184, 0.0
    %v3201 = vmax.f32 %v3185, 0.0
    %v3202 = vmax.f32 %v3186, 0.0
    %v3203 = vmax.f32 %v3187, 0.0
    %v3204 = vmax.f32 %v3188, 0.0
    %v3205 = vmax.f32 %v3189, 0.0
    %v3206 = vmax.f32 %v3190, 0.0
    %v3207 = vmax.f32 %v3191, 0.0
    %v3208 = vmax.f32 %v3192, 0.0
    %v3209 = vmax.f32 %v3193, 0.0
    %v3210 = vmax.f32 %v3194, 0.0
    %v3227 = vcombine.high %v3195, %v3195
    %v3229 = vunpack.c.l.s4 1983009808
    %v3230 = vunpack.c.0.s8 %v3229
    %v3231 = vlaneseq
    %v3232 = vshrl.u32 %v3231, 7
    %v3233 = vsub.s32 %v3230, %v3232
    %v3234 = vrot.slane %v3195, %v3233
    %v3236 = vunpack.c.l.s4 1983009808
    %v3237 = vunpack.c.0.s8 %v3236
    %v3238 = vlaneseq
    %v3239 = vshrl.u32 %v3238, 7
    %v3240 = vsub.s32 %v3237, %v3239
    %v3241 = vrot.slane %v3227, %v3240
    %v3242 = vcombine.high %v3234, %v3234
    %v3243 = vcombine.high %v3241, %v3241
    %v3244 = vcombine.high %v3196, %v3196
    %v3246 = vunpack.c.l.s4 1983009808
    %v3247 = vunpack.c.0.s8 %v3246
    %v3248 = vlaneseq
    %v3249 = vshrl.u32 %v3248, 7
    %v3250 = vsub.s32 %v3247, %v3249
    %v3251 = vrot.slane %v3196, %v3250
    %v3253 = vunpack.c.l.s4 1983009808
    %v3254 = vunpack.c.0.s8 %v3253
    %v3255 = vlaneseq
    %v3256 = vshrl.u32 %v3255, 7
    %v3257 = vsub.s32 %v3254, %v3256
    %v3258 = vrot.slane %v3244, %v3257
    %v3259 = vcombine.high %v3251, %v3251
    %v3260 = vcombine.high %v3258, %v3258
    %v3261 = vcombine.high %v3197, %v3197
    %v3263 = vunpack.c.l.s4 1983009808
    %v3264 = vunpack.c.0.s8 %v3263
    %v3265 = vlaneseq
    %v3266 = vshrl.u32 %v3265, 7
    %v3267 = vsub.s32 %v3264, %v3266
    %v3268 = vrot.slane %v3197, %v3267
    %v3270 = vunpack.c.l.s4 1983009808
    %v3271 = vunpack.c.0.s8 %v3270
    %v3272 = vlaneseq
    %v3273 = vshrl.u32 %v3272, 7
    %v3274 = vsub.s32 %v3271, %v3273
    %v3275 = vrot.slane %v3261, %v3274
    %v3276 = vcombine.high %v3268, %v3268
    %v3277 = vcombine.high %v3275, %v3275
    %v3278 = vcombine.high %v3198, %v3198
    %v3280 = vunpack.c.l.s4 1983009808
    %v3281 = vunpack.c.0.s8 %v3280
    %v3282 = vlaneseq
    %v3283 = vshrl.u32 %v3282, 7
    %v3284 = vsub.s32 %v3281, %v3283
    %v3285 = vrot.slane %v3198, %v3284
    %v3287 = vunpack.c.l.s4 1983009808
    %v3288 = vunpack.c.0.s8 %v3287
    %v3289 = vlaneseq
    %v3290 = vshrl.u32 %v3289, 7
    %v3291 = vsub.s32 %v3288, %v3290
    %v3292 = vrot.slane %v3278, %v3291
    %v3293 = vcombine.high %v3285, %v3285
    %v3294 = vcombine.high %v3292, %v3292
    %v3295 = vcombine.high %v3199, %v3199
    %v3297 = vunpack.c.l.s4 1983009808
    %v3298 = vunpack.c.0.s8 %v3297
    %v3299 = vlaneseq
    %v3300 = vshrl.u32 %v3299, 7
    %v3301 = vsub.s32 %v3298, %v3300
    %v3302 = vrot.slane %v3199, %v3301
    %v3304 = vunpack.c.l.s4 1983009808
    %v3305 = vunpack.c.0.s8 %v3304
    %v3306 = vlaneseq
    %v3307 = vshrl.u32 %v3306, 7
    %v3308 = vsub.s32 %v3305, %v3307
    %v3309 = vrot.slane %v3295, %v3308
    %v3310 = vcombine.high %v3302, %v3302
    %v3311 = vcombine.high %v3309, %v3309
    %v3312 = vcombine.high %v3200, %v3200
    %v3314 = vunpack.c.l.s4 1983009808
    %v3315 = vunpack.c.0.s8 %v3314
    %v3316 = vlaneseq
    %v3317 = vshrl.u32 %v3316, 7
    %v3318 = vsub.s32 %v3315, %v3317
    %v3319 = vrot.slane %v3200, %v3318
    %v3321 = vunpack.c.l.s4 1983009808
    %v3322 = vunpack.c.0.s8 %v3321
    %v3323 = vlaneseq
    %v3324 = vshrl.u32 %v3323, 7
    %v3325 = vsub.s32 %v3322, %v3324
    %v3326 = vrot.slane %v3312, %v3325
    %v3327 = vcombine.high %v3319, %v3319
    %v3328 = vcombine.high %v3326, %v3326
    %v3329 = vcombine.high %v3201, %v3201
    %v3331 = vunpack.c.l.s4 1983009808
    %v3332 = vunpack.c.0.s8 %v3331
    %v3333 = vlaneseq
    %v3334 = vshrl.u32 %v3333, 7
    %v3335 = vsub.s32 %v3332, %v3334
    %v3336 = vrot.slane %v3201, %v3335
    %v3338 = vunpack.c.l.s4 1983009808
    %v3339 = vunpack.c.0.s8 %v3338
    %v3340 = vlaneseq
    %v3341 = vshrl.u32 %v3340, 7
    %v3342 = vsub.s32 %v3339, %v3341
    %v3343 = vrot.slane %v3329, %v3342
    %v3344 = vcombine.high %v3336, %v3336
    %v3345 = vcombine.high %v3343, %v3343
    %v3346 = vcombine.high %v3202, %v3202
    %v3348 = vunpack.c.l.s4 1983009808
    %v3349 = vunpack.c.0.s8 %v3348
    %v3350 = vlaneseq
    %v3351 = vshrl.u32 %v3350, 7
    %v3352 = vsub.s32 %v3349, %v3351
    %v3353 = vrot.slane %v3202, %v3352
    %v3355 = vunpack.c.l.s4 1983009808
    %v3356 = vunpack.c.0.s8 %v3355
    %v3357 = vlaneseq
    %v3358 = vshrl.u32 %v3357, 7
    %v3359 = vsub.s32 %v3356, %v3358
    %v3360 = vrot.slane %v3346, %v3359
    %v3361 = vcombine.high %v3353, %v3353
    %v3362 = vcombine.high %v3360, %v3360
    %v3363 = vcombine.high %v3203, %v3203
    %v3365 = vunpack.c.l.s4 1983009808
    %v3366 = vunpack.c.0.s8 %v3365
    %v3367 = vlaneseq
    %v3368 = vshrl.u32 %v3367, 7
    %v3369 = vsub.s32 %v3366, %v3368
    %v3370 = vrot.slane %v3203, %v3369
    %v3372 = vunpack.c.l.s4 1983009808
    %v3373 = vunpack.c.0.s8 %v3372
    %v3374 = vlaneseq
    %v3375 = vshrl.u32 %v3374, 7
    %v3376 = vsub.s32 %v3373, %v3375
    %v3377 = vrot.slane %v3363, %v3376
    %v3378 = vcombine.high %v3370, %v3370
    %v3379 = vcombine.high %v3377, %v3377
    %v3380 = vcombine.high %v3204, %v3204
    %v3382 = vunpack.c.l.s4 1983009808
    %v3383 = vunpack.c.0.s8 %v3382
    %v3384 = vlaneseq
    %v3385 = vshrl.u32 %v3384, 7
    %v3386 = vsub.s32 %v3383, %v3385
    %v3387 = vrot.slane %v3204, %v3386
    %v3389 = vunpack.c.l.s4 1983009808
    %v3390 = vunpack.c.0.s8 %v3389
    %v3391 = vlaneseq
    %v3392 = vshrl.u32 %v3391, 7
    %v3393 = vsub.s32 %v3390, %v3392
    %v3394 = vrot.slane %v3380, %v3393
    %v3395 = vcombine.high %v3387, %v3387
    %v3396 = vcombine.high %v3394, %v3394
    %v3397 = vcombine.high %v3205, %v3205
    %v3399 = vunpack.c.l.s4 1983009808
    %v3400 = vunpack.c.0.s8 %v3399
    %v3401 = vlaneseq
    %v3402 = vshrl.u32 %v3401, 7
    %v3403 = vsub.s32 %v3400, %v3402
    %v3404 = vrot.slane %v3205, %v3403
    %v3406 = vunpack.c.l.s4 1983009808
    %v3407 = vunpack.c.0.s8 %v3406
    %v3408 = vlaneseq
    %v3409 = vshrl.u32 %v3408, 7
    %v3410 = vsub.s32 %v3407, %v3409
    %v3411 = vrot.slane %v3397, %v3410
    %v3412 = vcombine.high %v3404, %v3404
    %v3413 = vcombine.high %v3411, %v3411
    %v3414 = vcombine.high %v3206, %v3206
    %v3416 = vunpack.c.l.s4 1983009808
    %v3417 = vunpack.c.0.s8 %v3416
    %v3418 = vlaneseq
    %v3419 = vshrl.u32 %v3418, 7
    %v3420 = vsub.s32 %v3417, %v3419
    %v3421 = vrot.slane %v3206, %v3420
    %v3423 = vunpack.c.l.s4 1983009808
    %v3424 = vunpack.c.0.s8 %v3423
    %v3425 = vlaneseq
    %v3426 = vshrl.u32 %v3425, 7
    %v3427 = vsub.s32 %v3424, %v3426
    %v3428 = vrot.slane %v3414, %v3427
    %v3429 = vcombine.high %v3421, %v3421
    %v3430 = vcombine.high %v3428, %v3428
    %v3431 = vcombine.high %v3207, %v3207
    %v3433 = vunpack.c.l.s4 1983009808
    %v3434 = vunpack.c.0.s8 %v3433
    %v3435 = vlaneseq
    %v3436 = vshrl.u32 %v3435, 7
    %v3437 = vsub.s32 %v3434, %v3436
    %v3438 = vrot.slane %v3207, %v3437
    %v3440 = vunpack.c.l.s4 1983009808
    %v3441 = vunpack.c.0.s8 %v3440
    %v3442 = vlaneseq
    %v3443 = vshrl.u32 %v3442, 7
    %v3444 = vsub.s32 %v3441, %v3443
    %v3445 = vrot.slane %v3431, %v3444
    %v3446 = vcombine.high %v3438, %v3438
    %v3447 = vcombine.high %v3445, %v3445
    %v3448 = vcombine.high %v3208, %v3208
    %v3450 = vunpack.c.l.s4 1983009808
    %v3451 = vunpack.c.0.s8 %v3450
    %v3452 = vlaneseq
    %v3453 = vshrl.u32 %v3452, 7
    %v3454 = vsub.s32 %v3451, %v3453
    %v3455 = vrot.slane %v3208, %v3454
    %v3457 = vunpack.c.l.s4 1983009808
    %v3458 = vunpack.c.0.s8 %v3457
    %v3459 = vlaneseq
    %v3460 = vshrl.u32 %v3459, 7
    %v3461 = vsub.s32 %v3458, %v3460
    %v3462 = vrot.slane %v3448, %v3461
    %v3463 = vcombine.high %v3455, %v3455
    %v3464 = vcombine.high %v3462, %v3462
    %v3465 = vcombine.high %v3209, %v3209
    %v3467 = vunpack.c.l.s4 1983009808
    %v3468 = vunpack.c.0.s8 %v3467
    %v3469 = vlaneseq
    %v3470 = vshrl.u32 %v3469, 7
    %v3471 = vsub.s32 %v3468, %v3470
    %v3472 = vrot.slane %v3209, %v3471
    %v3474 = vunpack.c.l.s4 1983009808
    %v3475 = vunpack.c.0.s8 %v3474
    %v3476 = vlaneseq
    %v3477 = vshrl.u32 %v3476, 7
    %v3478 = vsub.s32 %v3475, %v3477
    %v3479 = vrot.slane %v3465, %v3478
    %v3480 = vcombine.high %v3472, %v3472
    %v3481 = vcombine.high %v3479, %v3479
    %v3482 = vcombine.high %v3210, %v3210
    %v3484 = vunpack.c.l.s4 1983009808
    %v3485 = vunpack.c.0.s8 %v3484
    %v3486 = vlaneseq
    %v3487 = vshrl.u32 %v3486, 7
    %v3488 = vsub.s32 %v3485, %v3487
    %v3489 = vrot.slane %v3210, %v3488
    %v3491 = vunpack.c.l.s4 1983009808
    %v3492 = vunpack.c.0.s8 %v3491
    %v3493 = vlaneseq
    %v3494 = vshrl.u32 %v3493, 7
    %v3495 = vsub.s32 %v3492, %v3494
    %v3496 = vrot.slane %v3482, %v3495
    %v3497 = vcombine.high %v3489, %v3489
    %v3498 = vcombine.high %v3496, %v3496
    %vm3563 = vcmask 517120
    %v3564 = vsel %vm3563, %v3234, -inf
    %v3565 = vrot.slane %v3564, 4
    %v3566 = vmax.f32 %v3564, %v3565
    %v3567 = vrot.slane %v3566, 2
    %v3568 = vmax.f32 %v3566, %v3567
    %v3569 = vrot.slane %v3568, 1
    %v3570 = vmax.f32 %v3568, %v3569
    %v3571 = vsel %vm3563, %v3242, -inf
    %v3572 = vrot.slane %v3571, 4
    %v3573 = vmax.f32 %v3571, %v3572
    %v3574 = vrot.slane %v3573, 2
    %v3575 = vmax.f32 %v3573, %v3574
    %v3576 = vrot.slane %v3575, 1
    %v3577 = vmax.f32 %v3575, %v3576
    %v3578 = vsel %vm3563, %v3241, -inf
    %v3579 = vrot.slane %v3578, 4
    %v3580 = vmax.f32 %v3578, %v3579
    %v3581 = vrot.slane %v3580, 2
    %v3582 = vmax.f32 %v3580, %v3581
    %v3583 = vrot.slane %v3582, 1
    %v3584 = vmax.f32 %v3582, %v3583
    %v3585 = vsel %vm3563, %v3243, -inf
    %v3586 = vrot.slane %v3585, 4
    %v3587 = vmax.f32 %v3585, %v3586
    %v3588 = vrot.slane %v3587, 2
    %v3589 = vmax.f32 %v3587, %v3588
    %v3590 = vrot.slane %v3589, 1
    %v3591 = vmax.f32 %v3589, %v3590
    %v3592 = vsel %vm3563, %v3251, -inf
    %v3593 = vrot.slane %v3592, 4
    %v3594 = vmax.f32 %v3592, %v3593
    %v3595 = vrot.slane %v3594, 2
    %v3596 = vmax.f32 %v3594, %v3595
    %v3597 = vrot.slane %v3596, 1
    %v3598 = vmax.f32 %v3596, %v3597
    %v3599 = vsel %vm3563, %v3259, -inf
    %v3600 = vrot.slane %v3599, 4
    %v3601 = vmax.f32 %v3599, %v3600
    %v3602 = vrot.slane %v3601, 2
    %v3603 = vmax.f32 %v3601, %v3602
    %v3604 = vrot.slane %v3603, 1
    %v3605 = vmax.f32 %v3603, %v3604
    %v3606 = vsel %vm3563, %v3258, -inf
    %v3607 = vrot.slane %v3606, 4
    %v3608 = vmax.f32 %v3606, %v3607
    %v3609 = vrot.slane %v3608, 2
    %v3610 = vmax.f32 %v3608, %v3609
    %v3611 = vrot.slane %v3610, 1
    %v3612 = vmax.f32 %v3610, %v3611
    %v3613 = vsel %vm3563, %v3260, -inf
    %v3614 = vrot.slane %v3613, 4
    %v3615 = vmax.f32 %v3613, %v3614
    %v3616 = vrot.slane %v3615, 2
    %v3617 = vmax.f32 %v3615, %v3616
    %v3618 = vrot.slane %v3617, 1
    %v3619 = vmax.f32 %v3617, %v3618
    %v3620 = vsel %vm3563, %v3268, -inf
    %v3621 = vrot.slane %v3620, 4
    %v3622 = vmax.f32 %v3620, %v3621
    %v3623 = vrot.slane %v3622, 2
    %v3624 = vmax.f32 %v3622, %v3623
    %v3625 = vrot.slane %v3624, 1
    %v3626 = vmax.f32 %v3624, %v3625
    %v3627 = vsel %vm3563, %v3276, -inf
    %v3628 = vrot.slane %v3627, 4
    %v3629 = vmax.f32 %v3627, %v3628
    %v3630 = vrot.slane %v3629, 2
    %v3631 = vmax.f32 %v3629, %v3630
    %v3632 = vrot.slane %v3631, 1
    %v3633 = vmax.f32 %v3631, %v3632
    %v3634 = vsel %vm3563, %v3275, -inf
    %v3635 = vrot.slane %v3634, 4
    %v3636 = vmax.f32 %v3634, %v3635
    %v3637 = vrot.slane %v3636, 2
    %v3638 = vmax.f32 %v3636, %v3637
    %v3639 = vrot.slane %v3638, 1
    %v3640 = vmax.f32 %v3638, %v3639
    %v3641 = vsel %vm3563, %v3277, -inf
    %v3642 = vrot.slane %v3641, 4
    %v3643 = vmax.f32 %v3641, %v3642
    %v3644 = vrot.slane %v3643, 2
    %v3645 = vmax.f32 %v3643, %v3644
    %v3646 = vrot.slane %v3645, 1
    %v3647 = vmax.f32 %v3645, %v3646
    %v3648 = vsel %vm3563, %v3285, -inf
    %v3649 = vrot.slane %v3648, 4
    %v3650 = vmax.f32 %v3648, %v3649
    %v3651 = vrot.slane %v3650, 2
    %v3652 = vmax.f32 %v3650, %v3651
    %v3653 = vrot.slane %v3652, 1
    %v3654 = vmax.f32 %v3652, %v3653
    %v3655 = vsel %vm3563, %v3293, -inf
    %v3656 = vrot.slane %v3655, 4
    %v3657 = vmax.f32 %v3655, %v3656
    %v3658 = vrot.slane %v3657, 2
    %v3659 = vmax.f32 %v3657, %v3658
    %v3660 = vrot.slane %v3659, 1
    %v3661 = vmax.f32 %v3659, %v3660
    %v3662 = vsel %vm3563, %v3292, -inf
    %v3663 = vrot.slane %v3662, 4
    %v3664 = vmax.f32 %v3662, %v3663
    %v3665 = vrot.slane %v3664, 2
    %v3666 = vmax.f32 %v3664, %v3665
    %v3667 = vrot.slane %v3666, 1
    %v3668 = vmax.f32 %v3666, %v3667
    %v3669 = vsel %vm3563, %v3294, -inf
    %v3670 = vrot.slane %v3669, 4
    %v3671 = vmax.f32 %v3669, %v3670
    %v3672 = vrot.slane %v3671, 2
    %v3673 = vmax.f32 %v3671, %v3672
    %v3674 = vrot.slane %v3673, 1
    %v3675 = vmax.f32 %v3673, %v3674
    %v3676 = vsel %vm3563, %v3302, -inf
    %v3677 = vrot.slane %v3676, 4
    %v3678 = vmax.f32 %v3676, %v3677
    %v3679 = vrot.slane %v3678, 2
    %v3680 = vmax.f32 %v3678, %v3679
    %v3681 = vrot.slane %v3680, 1
    %v3682 = vmax.f32 %v3680, %v3681
    %v3683 = vsel %vm3563, %v3310, -inf
    %v3684 = vrot.slane %v3683, 4
    %v3685 = vmax.f32 %v3683, %v3684
    %v3686 = vrot.slane %v3685, 2
    %v3687 = vmax.f32 %v3685, %v3686
    %v3688 = vrot.slane %v3687, 1
    %v3689 = vmax.f32 %v3687, %v3688
    %v3690 = vsel %vm3563, %v3309, -inf
    %v3691 = vrot.slane %v3690, 4
    %v3692 = vmax.f32 %v3690, %v3691
    %v3693 = vrot.slane %v3692, 2
    %v3694 = vmax.f32 %v3692, %v3693
    %v3695 = vrot.slane %v3694, 1
    %v3696 = vmax.f32 %v3694, %v3695
    %v3697 = vsel %vm3563, %v3311, -inf
    %v3698 = vrot.slane %v3697, 4
    %v3699 = vmax.f32 %v3697, %v3698
    %v3700 = vrot.slane %v3699, 2
    %v3701 = vmax.f32 %v3699, %v3700
    %v3702 = vrot.slane %v3701, 1
    %v3703 = vmax.f32 %v3701, %v3702
    %v3704 = vsel %vm3563, %v3319, -inf
    %v3705 = vrot.slane %v3704, 4
    %v3706 = vmax.f32 %v3704, %v3705
    %v3707 = vrot.slane %v3706, 2
    %v3708 = vmax.f32 %v3706, %v3707
    %v3709 = vrot.slane %v3708, 1
    %v3710 = vmax.f32 %v3708, %v3709
    %v3711 = vsel %vm3563, %v3327, -inf
    %v3712 = vrot.slane %v3711, 4
    %v3713 = vmax.f32 %v3711, %v3712
    %v3714 = vrot.slane %v3713, 2
    %v3715 = vmax.f32 %v3713, %v3714
    %v3716 = vrot.slane %v3715, 1
    %v3717 = vmax.f32 %v3715, %v3716
    %v3718 = vsel %vm3563, %v3326, -inf
    %v3719 = vrot.slane %v3718, 4
    %v3720 = vmax.f32 %v3718, %v3719
    %v3721 = vrot.slane %v3720, 2
    %v3722 = vmax.f32 %v3720, %v3721
    %v3723 = vrot.slane %v3722, 1
    %v3724 = vmax.f32 %v3722, %v3723
    %v3725 = vsel %vm3563, %v3328, -inf
    %v3726 = vrot.slane %v3725, 4
    %v3727 = vmax.f32 %v3725, %v3726
    %v3728 = vrot.slane %v3727, 2
    %v3729 = vmax.f32 %v3727, %v3728
    %v3730 = vrot.slane %v3729, 1
    %v3731 = vmax.f32 %v3729, %v3730
    %v3732 = vsel %vm3563, %v3336, -inf
    %v3733 = vrot.slane %v3732, 4
    %v3734 = vmax.f32 %v3732, %v3733
    %v3735 = vrot.slane %v3734, 2
    %v3736 = vmax.f32 %v3734, %v3735
    %v3737 = vrot.slane %v3736, 1
    %v3738 = vmax.f32 %v3736, %v3737
    %v3739 = vsel %vm3563, %v3344, -inf
    %v3740 = vrot.slane %v3739, 4
    %v3741 = vmax.f32 %v3739, %v3740
    %v3742 = vrot.slane %v3741, 2
    %v3743 = vmax.f32 %v3741, %v3742
    %v3744 = vrot.slane %v3743, 1
    %v3745 = vmax.f32 %v3743, %v3744
    %v3746 = vsel %vm3563, %v3343, -inf
    %v3747 = vrot.slane %v3746, 4
    %v3748 = vmax.f32 %v3746, %v3747
    %v3749 = vrot.slane %v3748, 2
    %v3750 = vmax.f32 %v3748, %v3749
    %v3751 = vrot.slane %v3750, 1
    %v3752 = vmax.f32 %v3750, %v3751
    %v3753 = vsel %vm3563, %v3345, -inf
    %v3754 = vrot.slane %v3753, 4
    %v3755 = vmax.f32 %v3753, %v3754
    %v3756 = vrot.slane %v3755, 2
    %v3757 = vmax.f32 %v3755, %v3756
    %v3758 = vrot.slane %v3757, 1
    %v3759 = vmax.f32 %v3757, %v3758
    %v3760 = vsel %vm3563, %v3353, -inf
    %v3761 = vrot.slane %v3760, 4
    %v3762 = vmax.f32 %v3760, %v3761
    %v3763 = vrot.slane %v3762, 2
    %v3764 = vmax.f32 %v3762, %v3763
    %v3765 = vrot.slane %v3764, 1
    %v3766 = vmax.f32 %v3764, %v3765
    %v3767 = vsel %vm3563, %v3361, -inf
    %v3768 = vrot.slane %v3767, 4
    %v3769 = vmax.f32 %v3767, %v3768
    %v3770 = vrot.slane %v3769, 2
    %v3771 = vmax.f32 %v3769, %v3770
    %v3772 = vrot.slane %v3771, 1
    %v3773 = vmax.f32 %v3771, %v3772
    %v3774 = vsel %vm3563, %v3360, -inf
    %v3775 = vrot.slane %v3774, 4
    %v3776 = vmax.f32 %v3774, %v3775
    %v3777 = vrot.slane %v3776, 2
    %v3778 = vmax.f32 %v3776, %v3777
    %v3779 = vrot.slane %v3778, 1
    %v3780 = vmax.f32 %v3778, %v3779
    %v3781 = vsel %vm3563, %v3362, -inf
    %v3782 = vrot.slane %v3781, 4
    %v3783 = vmax.f32 %v3781, %v3782
    %v3784 = vrot.slane %v3783, 2
    %v3785 = vmax.f32 %v3783, %v3784
    %v3786 = vrot.slane %v3785, 1
    %v3787 = vmax.f32 %v3785, %v3786
    %v3788 = vsel %vm3563, %v3370, -inf
    %v3789 = vrot.slane %v3788, 4
    %v3790 = vmax.f32 %v3788, %v3789
    %v3791 = vrot.slane %v3790, 2
    %v3792 = vmax.f32 %v3790, %v3791
    %v3793 = vrot.slane %v3792, 1
    %v3794 = vmax.f32 %v3792, %v3793
    %v3795 = vsel %vm3563, %v3378, -inf
    %v3796 = vrot.slane %v3795, 4
    %v3797 = vmax.f32 %v3795, %v3796
    %v3798 = vrot.slane %v3797, 2
    %v3799 = vmax.f32 %v3797, %v3798
    %v3800 = vrot.slane %v3799, 1
    %v3801 = vmax.f32 %v3799, %v3800
    %v3802 = vsel %vm3563, %v3377, -inf
    %v3803 = vrot.slane %v3802, 4
    %v3804 = vmax.f32 %v3802, %v3803
    %v3805 = vrot.slane %v3804, 2
    %v3806 = vmax.f32 %v3804, %v3805
    %v3807 = vrot.slane %v3806, 1
    %v3808 = vmax.f32 %v3806, %v3807
    %v3809 = vsel %vm3563, %v3379, -inf
    %v3810 = vrot.slane %v3809, 4
    %v3811 = vmax.f32 %v3809, %v3810
    %v3812 = vrot.slane %v3811, 2
    %v3813 = vmax.f32 %v3811, %v3812
    %v3814 = vrot.slane %v3813, 1
    %v3815 = vmax.f32 %v3813, %v3814
    %v3816 = vsel %vm3563, %v3387, -inf
    %v3817 = vrot.slane %v3816, 4
    %v3818 = vmax.f32 %v3816, %v3817
    %v3819 = vrot.slane %v3818, 2
    %v3820 = vmax.f32 %v3818, %v3819
    %v3821 = vrot.slane %v3820, 1
    %v3822 = vmax.f32 %v3820, %v3821
    %v3823 = vsel %vm3563, %v3395, -inf
    %v3824 = vrot.slane %v3823, 4
    %v3825 = vmax.f32 %v3823, %v3824
    %v3826 = vrot.slane %v3825, 2
    %v3827 = vmax.f32 %v3825, %v3826
    %v3828 = vrot.slane %v3827, 1
    %v3829 = vmax.f32 %v3827, %v3828
    %v3830 = vsel %vm3563, %v3394, -inf
    %v3831 = vrot.slane %v3830, 4
    %v3832 = vmax.f32 %v3830, %v3831
    %v3833 = vrot.slane %v3832, 2
    %v3834 = vmax.f32 %v3832, %v3833
    %v3835 = vrot.slane %v3834, 1
    %v3836 = vmax.f32 %v3834, %v3835
    %v3837 = vsel %vm3563, %v3396, -inf
    %v3838 = vrot.slane %v3837, 4
    %v3839 = vmax.f32 %v3837, %v3838
    %v3840 = vrot.slane %v3839, 2
    %v3841 = vmax.f32 %v3839, %v3840
    %v3842 = vrot.slane %v3841, 1
    %v3843 = vmax.f32 %v3841, %v3842
    %v3844 = vsel %vm3563, %v3404, -inf
    %v3845 = vrot.slane %v3844, 4
    %v3846 = vmax.f32 %v3844, %v3845
    %v3847 = vrot.slane %v3846, 2
    %v3848 = vmax.f32 %v3846, %v3847
    %v3849 = vrot.slane %v3848, 1
    %v3850 = vmax.f32 %v3848, %v3849
    %v3851 = vsel %vm3563, %v3412, -inf
    %v3852 = vrot.slane %v3851, 4
    %v3853 = vmax.f32 %v3851, %v3852
    %v3854 = vrot.slane %v3853, 2
    %v3855 = vmax.f32 %v3853, %v3854
    %v3856 = vrot.slane %v3855, 1
    %v3857 = vmax.f32 %v3855, %v3856
    %v3858 = vsel %vm3563, %v3411, -inf
    %v3859 = vrot.slane %v3858, 4
    %v3860 = vmax.f32 %v3858, %v3859
    %v3861 = vrot.slane %v3860, 2
    %v3862 = vmax.f32 %v3860, %v3861
    %v3863 = vrot.slane %v3862, 1
    %v3864 = vmax.f32 %v3862, %v3863
    %v3865 = vsel %vm3563, %v3413, -inf
    %v3866 = vrot.slane %v3865, 4
    %v3867 = vmax.f32 %v3865, %v3866
    %v3868 = vrot.slane %v3867, 2
    %v3869 = vmax.f32 %v3867, %v3868
    %v3870 = vrot.slane %v3869, 1
    %v3871 = vmax.f32 %v3869, %v3870
    %v3872 = vsel %vm3563, %v3421, -inf
    %v3873 = vrot.slane %v3872, 4
    %v3874 = vmax.f32 %v3872, %v3873
    %v3875 = vrot.slane %v3874, 2
    %v3876 = vmax.f32 %v3874, %v3875
    %v3877 = vrot.slane %v3876, 1
    %v3878 = vmax.f32 %v3876, %v3877
    %v3879 = vsel %vm3563, %v3429, -inf
    %v3880 = vrot.slane %v3879, 4
    %v3881 = vmax.f32 %v3879, %v3880
    %v3882 = vrot.slane %v3881, 2
    %v3883 = vmax.f32 %v3881, %v3882
    %v3884 = vrot.slane %v3883, 1
    %v3885 = vmax.f32 %v3883, %v3884
    %v3886 = vsel %vm3563, %v3428, -inf
    %v3887 = vrot.slane %v3886, 4
    %v3888 = vmax.f32 %v3886, %v3887
    %v3889 = vrot.slane %v3888, 2
    %v3890 = vmax.f32 %v3888, %v3889
    %v3891 = vrot.slane %v3890, 1
    %v3892 = vmax.f32 %v3890, %v3891
    %v3893 = vsel %vm3563, %v3430, -inf
    %v3894 = vrot.slane %v3893, 4
    %v3895 = vmax.f32 %v3893, %v3894
    %v3896 = vrot.slane %v3895, 2
    %v3897 = vmax.f32 %v3895, %v3896
    %v3898 = vrot.slane %v3897, 1
    %v3899 = vmax.f32 %v3897, %v3898
    %v3900 = vsel %vm3563, %v3438, -inf
    %v3901 = vrot.slane %v3900, 4
    %v3902 = vmax.f32 %v3900, %v3901
    %v3903 = vrot.slane %v3902, 2
    %v3904 = vmax.f32 %v3902, %v3903
    %v3905 = vrot.slane %v3904, 1
    %v3906 = vmax.f32 %v3904, %v3905
    %v3907 = vsel %vm3563, %v3446, -inf
    %v3908 = vrot.slane %v3907, 4
    %v3909 = vmax.f32 %v3907, %v3908
    %v3910 = vrot.slane %v3909, 2
    %v3911 = vmax.f32 %v3909, %v3910
    %v3912 = vrot.slane %v3911, 1
    %v3913 = vmax.f32 %v3911, %v3912
    %v3914 = vsel %vm3563, %v3445, -inf
    %v3915 = vrot.slane %v3914, 4
    %v3916 = vmax.f32 %v3914, %v3915
    %v3917 = vrot.slane %v3916, 2
    %v3918 = vmax.f32 %v3916, %v3917
    %v3919 = vrot.slane %v3918, 1
    %v3920 = vmax.f32 %v3918, %v3919
    %v3921 = vsel %vm3563, %v3447, -inf
    %v3922 = vrot.slane %v3921, 4
    %v3923 = vmax.f32 %v3921, %v3922
    %v3924 = vrot.slane %v3923, 2
    %v3925 = vmax.f32 %v3923, %v3924
    %v3926 = vrot.slane %v3925, 1
    %v3927 = vmax.f32 %v3925, %v3926
    %v3928 = vsel %vm3563, %v3455, -inf
    %v3929 = vrot.slane %v3928, 4
    %v3930 = vmax.f32 %v3928, %v3929
    %v3931 = vrot.slane %v3930, 2
    %v3932 = vmax.f32 %v3930, %v3931
    %v3933 = vrot.slane %v3932, 1
    %v3934 = vmax.f32 %v3932, %v3933
    %v3935 = vsel %vm3563, %v3463, -inf
    %v3936 = vrot.slane %v3935, 4
    %v3937 = vmax.f32 %v3935, %v3936
    %v3938 = vrot.slane %v3937, 2
    %v3939 = vmax.f32 %v3937, %v3938
    %v3940 = vrot.slane %v3939, 1
    %v3941 = vmax.f32 %v3939, %v3940
    %v3942 = vsel %vm3563, %v3462, -inf
    %v3943 = vrot.slane %v3942, 4
    %v3944 = vmax.f32 %v3942, %v3943
    %v3945 = vrot.slane %v3944, 2
    %v3946 = vmax.f32 %v3944, %v3945
    %v3947 = vrot.slane %v3946, 1
    %v3948 = vmax.f32 %v3946, %v3947
    %v3949 = vsel %vm3563, %v3464, -inf
    %v3950 = vrot.slane %v3949, 4
    %v3951 = vmax.f32 %v3949, %v3950
    %v3952 = vrot.slane %v3951, 2
    %v3953 = vmax.f32 %v3951, %v3952
    %v3954 = vrot.slane %v3953, 1
    %v3955 = vmax.f32 %v3953, %v3954
    %v3956 = vsel %vm3563, %v3472, -inf
    %v3957 = vrot.slane %v3956, 4
    %v3958 = vmax.f32 %v3956, %v3957
    %v3959 = vrot.slane %v3958, 2
    %v3960 = vmax.f32 %v3958, %v3959
    %v3961 = vrot.slane %v3960, 1
    %v3962 = vmax.f32 %v3960, %v3961
    %v3963 = vsel %vm3563, %v3480, -inf
    %v3964 = vrot.slane %v3963, 4
    %v3965 = vmax.f32 %v3963, %v3964
    %v3966 = vrot.slane %v3965, 2
    %v3967 = vmax.f32 %v3965, %v3966
    %v3968 = vrot.slane %v3967, 1
    %v3969 = vmax.f32 %v3967, %v3968
    %v3970 = vsel %vm3563, %v3479, -inf
    %v3971 = vrot.slane %v3970, 4
    %v3972 = vmax.f32 %v3970, %v3971
    %v3973 = vrot.slane %v3972, 2
    %v3974 = vmax.f32 %v3972, %v3973
    %v3975 = vrot.slane %v3974, 1
    %v3976 = vmax.f32 %v3974, %v3975
    %v3977 = vsel %vm3563, %v3481, -inf
    %v3978 = vrot.slane %v3977, 4
    %v3979 = vmax.f32 %v3977, %v3978
    %v3980 = vrot.slane %v3979, 2
    %v3981 = vmax.f32 %v3979, %v3980
    %v3982 = vrot.slane %v3981, 1
    %v3983 = vmax.f32 %v3981, %v3982
    %v3984 = vsel %vm3563, %v3489, -inf
    %v3985 = vrot.slane %v3984, 4
    %v3986 = vmax.f32 %v3984, %v3985
    %v3987 = vrot.slane %v3986, 2
    %v3988 = vmax.f32 %v3986, %v3987
    %v3989 = vrot.slane %v3988, 1
    %v3990 = vmax.f32 %v3988, %v3989
    %v3991 = vsel %vm3563, %v3497, -inf
    %v3992 = vrot.slane %v3991, 4
    %v3993 = vmax.f32 %v3991, %v3992
    %v3994 = vrot.slane %v3993, 2
    %v3995 = vmax.f32 %v3993, %v3994
    %v3996 = vrot.slane %v3995, 1
    %v3997 = vmax.f32 %v3995, %v3996
    %v3998 = vsel %vm3563, %v3496, -inf
    %v3999 = vrot.slane %v3998, 4
    %v4000 = vmax.f32 %v3998, %v3999
    %v4001 = vrot.slane %v4000, 2
    %v4002 = vmax.f32 %v4000, %v4001
    %v4003 = vrot.slane %v4002, 1
    %v4004 = vmax.f32 %v4002, %v4003
    %v4005 = vsel %vm3563, %v3498, -inf
    %v4006 = vrot.slane %v4005, 4
    %v4007 = vmax.f32 %v4005, %v4006
    %v4008 = vrot.slane %v4007, 2
    %v4009 = vmax.f32 %v4007, %v4008
    %v4010 = vrot.slane %v4009, 1
    %v4011 = vmax.f32 %v4009, %v4010
    %vm4012 = vcmask 523264
    %v4013 = vsel %vm4012, %v3570, -inf
    %v4014 = vsel %vm4012, %v3598, -inf
    %v4015 = vmax.f32 %v4013, %v4014
    %v4016 = vsel %vm4012, %v3577, -inf
    %v4017 = vsel %vm4012, %v3605, -inf
    %v4018 = vmax.f32 %v4016, %v4017
    %v4019 = vsel %vm4012, %v3584, -inf
    %v4020 = vsel %vm4012, %v3612, -inf
    %v4021 = vmax.f32 %v4019, %v4020
    %v4022 = vsel %vm4012, %v3591, -inf
    %v4023 = vsel %vm4012, %v3619, -inf
    %v4024 = vmax.f32 %v4022, %v4023
    %v4025 = vsel %vm4012, %v3626, -inf
    %v4026 = vsel %vm4012, %v3654, -inf
    %v4027 = vmax.f32 %v4025, %v4026
    %v4028 = vsel %vm4012, %v3633, -inf
    %v4029 = vsel %vm4012, %v3661, -inf
    %v4030 = vmax.f32 %v4028, %v4029
    %v4031 = vsel %vm4012, %v3640, -inf
    %v4032 = vsel %vm4012, %v3668, -inf
    %v4033 = vmax.f32 %v4031, %v4032
    %v4034 = vsel %vm4012, %v3647, -inf
    %v4035 = vsel %vm4012, %v3675, -inf
    %v4036 = vmax.f32 %v4034, %v4035
    %v4037 = vsel %vm4012, %v3682, -inf
    %v4038 = vsel %vm4012, %v3710, -inf
    %v4039 = vmax.f32 %v4037, %v4038
    %v4040 = vsel %vm4012, %v3689, -inf
    %v4041 = vsel %vm4012, %v3717, -inf
    %v4042 = vmax.f32 %v4040, %v4041
    %v4043 = vsel %vm4012, %v3696, -inf
    %v4044 = vsel %vm4012, %v3724, -inf
    %v4045 = vmax.f32 %v4043, %v4044
    %v4046 = vsel %vm4012, %v3703, -inf
    %v4047 = vsel %vm4012, %v3731, -inf
    %v4048 = vmax.f32 %v4046, %v4047
    %v4049 = vsel %vm4012, %v3738, -inf
    %v4050 = vsel %vm4012, %v3766, -inf
    %v4051 = vmax.f32 %v4049, %v4050
    %v4052 = vsel %vm4012, %v3745, -inf
    %v4053 = vsel %vm4012, %v3773, -inf
    %v4054 = vmax.f32 %v4052, %v4053
    %v4055 = vsel %vm4012, %v3752, -inf
    %v4056 = vsel %vm4012, %v3780, -inf
    %v4057 = vmax.f32 %v4055, %v4056
    %v4058 = vsel %vm4012, %v3759, -inf
    %v4059 = vsel %vm4012, %v3787, -inf
    %v4060 = vmax.f32 %v4058, %v4059
    %v4061 = vsel %vm4012, %v3794, -inf
    %v4062 = vsel %vm4012, %v3822, -inf
    %v4063 = vmax.f32 %v4061, %v4062
    %v4064 = vsel %vm4012, %v3801, -inf
    %v4065 = vsel %vm4012, %v3829, -inf
    %v4066 = vmax.f32 %v4064, %v4065
    %v4067 = vsel %vm4012, %v3808, -inf
    %v4068 = vsel %vm4012, %v3836, -inf
    %v4069 = vmax.f32 %v4067, %v4068
    %v4070 = vsel %vm4012, %v3815, -inf
    %v4071 = vsel %vm4012, %v3843, -inf
    %v4072 = vmax.f32 %v4070, %v4071
    %v4073 = vsel %vm4012, %v3850, -inf
    %v4074 = vsel %vm4012, %v3878, -inf
    %v4075 = vmax.f32 %v4073, %v4074
    %v4076 = vsel %vm4012, %v3857, -inf
    %v4077 = vsel %vm4012, %v3885, -inf
    %v4078 = vmax.f32 %v4076, %v4077
    %v4079 = vsel %vm4012, %v3864, -inf
    %v4080 = vsel %vm4012, %v3892, -inf
    %v4081 = vmax.f32 %v4079, %v4080
    %v4082 = vsel %vm4012, %v3871, -inf
    %v4083 = vsel %vm4012, %v3899, -inf
    %v4084 = vmax.f32 %v4082, %v4083
    %v4085 = vsel %vm4012, %v3906, -inf
    %v4086 = vsel %vm4012, %v3934, -inf
    %v4087 = vmax.f32 %v4085, %v4086
    %v4088 = vsel %vm4012, %v3913, -inf
    %v4089 = vsel %vm4012, %v3941, -inf
    %v4090 = vmax.f32 %v4088, %v4089
    %v4091 = vsel %vm4012, %v3920, -inf
    %v4092 = vsel %vm4012, %v3948, -inf
    %v4093 = vmax.f32 %v4091, %v4092
    %v4094 = vsel %vm4012, %v3927, -inf
    %v4095 = vsel %vm4012, %v3955, -inf
    %v4096 = vmax.f32 %v4094, %v4095
    %v4097 = vsel %vm4012, %v3962, -inf
    %v4098 = vsel %vm4012, %v3990, -inf
    %v4099 = vmax.f32 %v4097, %v4098
    %v4100 = vsel %vm4012, %v3969, -inf
    %v4101 = vsel %vm4012, %v3997, -inf
    %v4102 = vmax.f32 %v4100, %v4101
    %v4103 = vsel %vm4012, %v3976, -inf
    %v4104 = vsel %vm4012, %v4004, -inf
    %v4105 = vmax.f32 %v4103, %v4104
    %v4106 = vsel %vm4012, %v3983, -inf
    %v4107 = vsel %vm4012, %v4011, -inf
    %v4108 = vmax.f32 %v4106, %v4107
    %v4109 = vpack.c.bf16 %v4015, %v4015
    %v4110 = vpack.c.bf16 %v4018, %v4018
    %v4111 = vpack.c.bf16 %v4021, %v4021
    %v4112 = vpack.c.bf16 %v4024, %v4024
    %v4113 = vpack.c.bf16 %v4027, %v4027
    %v4114 = vpack.c.bf16 %v4030, %v4030
    %v4115 = vpack.c.bf16 %v4033, %v4033
    %v4116 = vpack.c.bf16 %v4036, %v4036
    %v4117 = vpack.c.bf16 %v4039, %v4039
    %v4118 = vpack.c.bf16 %v4042, %v4042
    %v4119 = vpack.c.bf16 %v4045, %v4045
    %v4120 = vpack.c.bf16 %v4048, %v4048
    %v4121 = vpack.c.bf16 %v4051, %v4051
    %v4122 = vpack.c.bf16 %v4054, %v4054
    %v4123 = vpack.c.bf16 %v4057, %v4057
    %v4124 = vpack.c.bf16 %v4060, %v4060
    %v4125 = vpack.c.bf16 %v4063, %v4063
    %v4126 = vpack.c.bf16 %v4066, %v4066
    %v4127 = vpack.c.bf16 %v4069, %v4069
    %v4128 = vpack.c.bf16 %v4072, %v4072
    %v4129 = vpack.c.bf16 %v4075, %v4075
    %v4130 = vpack.c.bf16 %v4078, %v4078
    %v4131 = vpack.c.bf16 %v4081, %v4081
    %v4132 = vpack.c.bf16 %v4084, %v4084
    %v4133 = vpack.c.bf16 %v4087, %v4087
    %v4134 = vpack.c.bf16 %v4090, %v4090
    %v4135 = vpack.c.bf16 %v4093, %v4093
    %v4136 = vpack.c.bf16 %v4096, %v4096
    %v4137 = vpack.c.bf16 %v4099, %v4099
    %v4138 = vpack.c.bf16 %v4102, %v4102
    %v4139 = vpack.c.bf16 %v4105, %v4105
    %v4140 = vpack.c.bf16 %v4108, %v4108
    %vm4141 = vcmask 518144
    %4142 = vst.msk [vmem:[#allocation3] sm:$0x7] %vm4141, 0
    %4143 = vst.msk [vmem:[#allocation3 + $0x4] sm:$0x7] %vm4141, 0
    %4144 = vst.msk [vmem:[#allocation3 + $0x8] sm:$0x7] %vm4141, 0
    %4145 = vst.msk [vmem:[#allocation3 + $0xc] sm:$0x7] %vm4141, 0
    %4146 = vst.msk [vmem:[#allocation3 + $0x10] sm:$0x7] %vm4141, 0
    %4147 = vst.msk [vmem:[#allocation3 + $0x14] sm:$0x7] %vm4141, 0
    %4148 = vst.msk [vmem:[#allocation3 + $0x18] sm:$0x7] %vm4141, 0
    %4149 = vst.msk [vmem:[#allocation3 + $0x1c] sm:$0x7] %vm4141, 0
    %4150 = vst.msk [vmem:[#allocation3 + $0x20] sm:$0x7] %vm4141, 0
    %4151 = vst.msk [vmem:[#allocation3 + $0x24] sm:$0x7] %vm4141, 0
    %4152 = vst.msk [vmem:[#allocation3 + $0x28] sm:$0x7] %vm4141, 0
    %4153 = vst.msk [vmem:[#allocation3 + $0x2c] sm:$0x7] %vm4141, 0
    %v4186 = vunpack.c.l.b16 %v4109
    %v4187 = vunpack.c.l.b16 %v4110
    %v4188 = vunpack.c.l.b16 %v4111
    %v4189 = vunpack.c.l.b16 %v4112
    %v4190 = vunpack.c.l.b16 %v4113
    %v4191 = vunpack.c.l.b16 %v4114
    %v4192 = vunpack.c.l.b16 %v4115
    %v4193 = vunpack.c.l.b16 %v4116
    %v4194 = vunpack.c.l.b16 %v4117
    %v4195 = vunpack.c.l.b16 %v4118
    %v4196 = vunpack.c.l.b16 %v4119
    %v4197 = vunpack.c.l.b16 %v4120
    %v4198 = vunpack.c.l.b16 %v4121
    %v4199 = vunpack.c.l.b16 %v4122
    %v4200 = vunpack.c.l.b16 %v4123
    %v4201 = vunpack.c.l.b16 %v4124
    %v4202 = vunpack.c.l.b16 %v4125
    %v4203 = vunpack.c.l.b16 %v4126
    %v4204 = vunpack.c.l.b16 %v4127
    %v4205 = vunpack.c.l.b16 %v4128
    %v4206 = vunpack.c.l.b16 %v4129
    %v4207 = vunpack.c.l.b16 %v4130
    %v4208 = vunpack.c.l.b16 %v4131
    %v4209 = vunpack.c.l.b16 %v4132
    %v4210 = vunpack.c.l.b16 %v4133
    %v4211 = vunpack.c.l.b16 %v4134
    %v4212 = vunpack.c.l.b16 %v4135
    %v4213 = vunpack.c.l.b16 %v4136
    %v4214 = vunpack.c.l.b16 %v4137
    %v4215 = vunpack.c.l.b16 %v4138
    %v4216 = vunpack.c.l.b16 %v4139
    %v4217 = vunpack.c.l.b16 %v4140
    %v4218 = vpack.c.b16 %v4186, %v4186
    %v4219 = vpack.c.b16 %v4187, %v4187
    %v4220 = vpack.c.b16 %v4188, %v4188
    %v4221 = vpack.c.b16 %v4189, %v4189
    %v4222 = vpack.c.b16 %v4190, %v4190
    %v4223 = vpack.c.b16 %v4191, %v4191
    %v4224 = vpack.c.b16 %v4192, %v4192
    %v4225 = vpack.c.b16 %v4193, %v4193
    %v4226 = vpack.c.b16 %v4194, %v4194
    %v4227 = vpack.c.b16 %v4195, %v4195
    %v4228 = vpack.c.b16 %v4196, %v4196
    %v4229 = vpack.c.b16 %v4197, %v4197
    %v4230 = vpack.c.b16 %v4198, %v4198
    %v4231 = vpack.c.b16 %v4199, %v4199
    %v4232 = vpack.c.b16 %v4200, %v4200
    %v4233 = vpack.c.b16 %v4201, %v4201
    %v4234 = vpack.c.b16 %v4202, %v4202
    %v4235 = vpack.c.b16 %v4203, %v4203
    %v4236 = vpack.c.b16 %v4204, %v4204
    %v4237 = vpack.c.b16 %v4205, %v4205
    %v4238 = vpack.c.b16 %v4206, %v4206
    %v4239 = vpack.c.b16 %v4207, %v4207
    %v4240 = vpack.c.b16 %v4208, %v4208
    %v4241 = vpack.c.b16 %v4209, %v4209
    %v4242 = vpack.c.b16 %v4210, %v4210
    %v4243 = vpack.c.b16 %v4211, %v4211
    %v4244 = vpack.c.b16 %v4212, %v4212
    %v4245 = vpack.c.b16 %v4213, %v4213
    %v4246 = vpack.c.b16 %v4214, %v4214
    %v4247 = vpack.c.b16 %v4215, %v4215
    %v4248 = vpack.c.b16 %v4216, %v4216
    %v4249 = vpack.c.b16 %v4217, %v4217
    %v4250 = vunpack.c.l.b16 %v4218
    %v4251 = vunpack.c.l.b16 %v4219
    %v4252 = vunpack.c.l.b16 %v4220
    %v4253 = vunpack.c.l.b16 %v4221
    %v4254 = vunpack.c.l.b16 %v4222
    %v4255 = vunpack.c.l.b16 %v4223
    %v4256 = vunpack.c.l.b16 %v4224
    %v4257 = vunpack.c.l.b16 %v4225
    %v4258 = vunpack.c.l.b16 %v4226
    %v4259 = vunpack.c.l.b16 %v4227
    %v4260 = vunpack.c.l.b16 %v4228
    %v4261 = vunpack.c.l.b16 %v4229
    %v4262 = vunpack.c.l.b16 %v4230
    %v4263 = vunpack.c.l.b16 %v4231
    %v4264 = vunpack.c.l.b16 %v4232
    %v4265 = vunpack.c.l.b16 %v4233
    %v4266 = vunpack.c.l.b16 %v4234
    %v4267 = vunpack.c.l.b16 %v4235
    %v4268 = vunpack.c.l.b16 %v4236
    %v4269 = vunpack.c.l.b16 %v4237
    %v4270 = vunpack.c.l.b16 %v4238
    %v4271 = vunpack.c.l.b16 %v4239
    %v4272 = vunpack.c.l.b16 %v4240
    %v4273 = vunpack.c.l.b16 %v4241
    %v4274 = vunpack.c.l.b16 %v4242
    %v4275 = vunpack.c.l.b16 %v4243
    %v4276 = vunpack.c.l.b16 %v4244
    %v4277 = vunpack.c.l.b16 %v4245
    %v4278 = vunpack.c.l.b16 %v4246
    %v4279 = vunpack.c.l.b16 %v4247
    %v4280 = vunpack.c.l.b16 %v4248
    %v4281 = vunpack.c.l.b16 %v4249
    %vm4282 = vcmask 1042434
    %v4283 = vsel %vm4282, %v4251, %v4250
    %vm4284 = vcmask 1043459
    %v4285 = vsel %vm4284, %v4252, %v4283
    %vm4286 = vcmask 1044484
    %v4287 = vsel %vm4286, %v4253, %v4285
    %v4288 = vsel %vm4282, %v4255, %v4254
    %v4289 = vsel %vm4284, %v4256, %v4288
    %v4290 = vsel %vm4286, %v4257, %v4289
    %v4291 = vsel %vm4282, %v4259, %v4258
    %v4292 = vsel %vm4284, %v4260, %v4291
    %v4293 = vsel %vm4286, %v4261, %v4292
    %v4294 = vsel %vm4282, %v4263, %v4262
    %v4295 = vsel %vm4284, %v4264, %v4294
    %v4296 = vsel %vm4286, %v4265, %v4295
    %v4297 = vsel %vm4282, %v4267, %v4266
    %v4298 = vsel %vm4284, %v4268, %v4297
    %v4299 = vsel %vm4286, %v4269, %v4298
    %v4300 = vsel %vm4282, %v4271, %v4270
    %v4301 = vsel %vm4284, %v4272, %v4300
    %v4302 = vsel %vm4286, %v4273, %v4301
    %v4303 = vsel %vm4282, %v4275, %v4274
    %v4304 = vsel %vm4284, %v4276, %v4303
    %v4305 = vsel %vm4286, %v4277, %v4304
    %v4306 = vsel %vm4282, %v4279, %v4278
    %v4307 = vsel %vm4284, %v4280, %v4306
    %v4308 = vsel %vm4286, %v4281, %v4307
    %v4309 = vpack.c.b16 %v4287, %v4287
    %v4310 = vpack.c.b16 %v4290, %v4290
    %v4311 = vpack.c.b16 %v4293, %v4293
    %v4312 = vpack.c.b16 %v4296, %v4296
    %v4313 = vpack.c.b16 %v4299, %v4299
    %v4314 = vpack.c.b16 %v4302, %v4302
    %v4315 = vpack.c.b16 %v4305, %v4305
    %v4316 = vpack.c.b16 %v4308, %v4308
    %s4325 = scalar_lea.vmem [#allocation3], 4
    %vm4326 = vcmask 518144
    %vm4327 = vsmask.f32 2306
    %vm4328 = vmand %vm4326, %vm4327
    %v4329 = vld [vmem:[%s4325] sm:$0x7]
    %v4330 = vsel %vm4328, %v4309, %v4329
    %4331 = vst [vmem:[%s4325] sm:$0x7] %v4330
    %v4332 = vld [vmem:[%s4325 + $0x4] sm:$0x7]
    %v4333 = vsel %vm4328, %v4310, %v4332
    %4334 = vst [vmem:[%s4325 + $0x4] sm:$0x7] %v4333
    %v4335 = vld [vmem:[%s4325 + $0x8] sm:$0x7]
    %v4336 = vsel %vm4328, %v4311, %v4335
    %4337 = vst [vmem:[%s4325 + $0x8] sm:$0x7] %v4336
    %v4338 = vld [vmem:[%s4325 + $0xc] sm:$0x7]
    %v4339 = vsel %vm4328, %v4312, %v4338
    %4340 = vst [vmem:[%s4325 + $0xc] sm:$0x7] %v4339
    %v4341 = vld [vmem:[%s4325 + $0x18] sm:$0x7]
    %v4342 = vsel %vm4328, %v4313, %v4341
    %4343 = vst [vmem:[%s4325 + $0x18] sm:$0x7] %v4342
    %v4344 = vld [vmem:[%s4325 + $0x1c] sm:$0x7]
    %v4345 = vsel %vm4328, %v4314, %v4344
    %4346 = vst [vmem:[%s4325 + $0x1c] sm:$0x7] %v4345
    %v4347 = vld [vmem:[%s4325 + $0x20] sm:$0x7]
    %v4348 = vsel %vm4328, %v4315, %v4347
    %4349 = vst [vmem:[%s4325 + $0x20] sm:$0x7] %v4348
    %v4350 = vld [vmem:[%s4325 + $0x24] sm:$0x7]
    %v4351 = vsel %vm4328, %v4316, %v4350
    %4352 = vst [vmem:[%s4325 + $0x24] sm:$0x7] %v4351
    %v4353 = vld [vmem:[#allocation3] sm:$0x3]
    %v4354 = vld [vmem:[#allocation3 + $0x4] sm:$0x3]
    %v4355 = vld [vmem:[#allocation3 + $0x8] sm:$0x3]
    %v4356 = vld [vmem:[#allocation3 + $0xc] sm:$0x3]
    %v4357 = vld [vmem:[#allocation3 + $0x18] sm:$0x3]
    %v4358 = vld [vmem:[#allocation3 + $0x1c] sm:$0x3]
    %v4359 = vld [vmem:[#allocation3 + $0x20] sm:$0x3]
    %v4360 = vld [vmem:[#allocation3 + $0x24] sm:$0x3]
    %v4361 = vld [vmem:[#allocation10] sm:$0xf]
    %v4362 = vld [vmem:[#allocation10 + $0x4] sm:$0xf]
    %v4363 = vld [vmem:[#allocation10 + $0x8] sm:$0xf]
    %v4364 = vld [vmem:[#allocation10 + $0xc] sm:$0xf]
    %v4365 = vld [vmem:[#allocation10 + $0x10] sm:$0xf]
    %v4366 = vld [vmem:[#allocation10 + $0x14] sm:$0xf]
    %v4367 = vld [vmem:[#allocation10 + $0x18] sm:$0xf]
    %v4368 = vld [vmem:[#allocation10 + $0x1c] sm:$0xf]
    %v4369 = vld [vmem:[#allocation3] sm:$0x7]
    %v4370 = vld [vmem:[#allocation3 + $0x4] sm:$0x7]
    %v4371 = vld [vmem:[#allocation3 + $0x8] sm:$0x7]
    %v4372 = vld [vmem:[#allocation3 + $0xc] sm:$0x7]
    %v4373 = vld [vmem:[#allocation3 + $0x18] sm:$0x7]
    %v4374 = vld [vmem:[#allocation3 + $0x1c] sm:$0x7]
    %v4375 = vld [vmem:[#allocation3 + $0x20] sm:$0x7]
    %v4376 = vld [vmem:[#allocation3 + $0x24] sm:$0x7]
    %v4386 = vunpack.c.l.s4 1983009808
    %v4387 = vunpack.c.0.s8 %v4386
    %v4388 = vlaneseq
    %v4389 = vshrl.u32 %v4388, 7
    %v4390 = vsub.s32 %v4387, %v4389
    %v4391 = vrot.slane %v4369, %v4390
    %v4392 = vcombine.high %v4391, %v4391
    %v4394 = vunpack.c.l.s4 1983009808
    %v4395 = vunpack.c.0.s8 %v4394
    %v4396 = vlaneseq
    %v4397 = vshrl.u32 %v4396, 7
    %v4398 = vsub.s32 %v4395, %v4397
    %v4399 = vrot.slane %v4370, %v4398
    %v4400 = vcombine.high %v4399, %v4399
    %v4402 = vunpack.c.l.s4 1983009808
    %v4403 = vunpack.c.0.s8 %v4402
    %v4404 = vlaneseq
    %v4405 = vshrl.u32 %v4404, 7
    %v4406 = vsub.s32 %v4403, %v4405
    %v4407 = vrot.slane %v4371, %v4406
    %v4408 = vcombine.high %v4407, %v4407
    %v4410 = vunpack.c.l.s4 1983009808
    %v4411 = vunpack.c.0.s8 %v4410
    %v4412 = vlaneseq
    %v4413 = vshrl.u32 %v4412, 7
    %v4414 = vsub.s32 %v4411, %v4413
    %v4415 = vrot.slane %v4372, %v4414
    %v4416 = vcombine.high %v4415, %v4415
    %v4418 = vunpack.c.l.s4 1983009808
    %v4419 = vunpack.c.0.s8 %v4418
    %v4420 = vlaneseq
    %v4421 = vshrl.u32 %v4420, 7
    %v4422 = vsub.s32 %v4419, %v4421
    %v4423 = vrot.slane %v4373, %v4422
    %v4424 = vcombine.high %v4423, %v4423
    %v4426 = vunpack.c.l.s4 1983009808
    %v4427 = vunpack.c.0.s8 %v4426
    %v4428 = vlaneseq
    %v4429 = vshrl.u32 %v4428, 7
    %v4430 = vsub.s32 %v4427, %v4429
    %v4431 = vrot.slane %v4374, %v4430
    %v4432 = vcombine.high %v4431, %v4431
    %v4434 = vunpack.c.l.s4 1983009808
    %v4435 = vunpack.c.0.s8 %v4434
    %v4436 = vlaneseq
    %v4437 = vshrl.u32 %v4436, 7
    %v4438 = vsub.s32 %v4435, %v4437
    %v4439 = vrot.slane %v4375, %v4438
    %v4440 = vcombine.high %v4439, %v4439
    %v4442 = vunpack.c.l.s4 1983009808
    %v4443 = vunpack.c.0.s8 %v4442
    %v4444 = vlaneseq
    %v4445 = vshrl.u32 %v4444, 7
    %v4446 = vsub.s32 %v4443, %v4445
    %v4447 = vrot.slane %v4376, %v4446
    %v4448 = vcombine.high %v4447, %v4447
    %vm4449 = vsmask.f32 1280
    %vm4450 = vsmask.f32 3336
    %vm4451 = vmor %vm4449, %vm4450
    %vm4452 = vsmask.f32 5392
    %vm4453 = vmor %vm4451, %vm4452
    %vm4454 = vsmask.f32 7448
    %vm4455 = vmor %vm4453, %vm4454
    %v4457 = vshrl.u32 %v4391, 16
    %v4459 = vrot.slane %v4457, 6
    %v4460 = vshll.u32 %v4391, 16
    %v4462 = vrot.slane %v4460, 7
    %v4463 = vor.u32 %v4459, %v4462
    %v4464 = vrot.slane %v4463, 2
    %v4466 = vshll.u32 %v4392, 16
    %v4468 = vrot.slane %v4466, 7
    %v4469 = vsel %vm4455, %v4464, %v4468
    %v4471 = vshrl.u32 %v4399, 16
    %v4473 = vrot.slane %v4471, 6
    %v4474 = vshll.u32 %v4399, 16
    %v4476 = vrot.slane %v4474, 7
    %v4477 = vor.u32 %v4473, %v4476
    %v4478 = vrot.slane %v4477, 2
    %v4480 = vshll.u32 %v4400, 16
    %v4482 = vrot.slane %v4480, 7
    %v4483 = vsel %vm4455, %v4478, %v4482
    %v4485 = vshrl.u32 %v4407, 16
    %v4487 = vrot.slane %v4485, 6
    %v4488 = vshll.u32 %v4407, 16
    %v4490 = vrot.slane %v4488, 7
    %v4491 = vor.u32 %v4487, %v4490
    %v4492 = vrot.slane %v4491, 2
    %v4494 = vshll.u32 %v4408, 16
    %v4496 = vrot.slane %v4494, 7
    %v4497 = vsel %vm4455, %v4492, %v4496
    %v4499 = vshrl.u32 %v4415, 16
    %v4501 = vrot.slane %v4499, 6
    %v4502 = vshll.u32 %v4415, 16
    %v4504 = vrot.slane %v4502, 7
    %v4505 = vor.u32 %v4501, %v4504
    %v4506 = vrot.slane %v4505, 2
    %v4508 = vshll.u32 %v4416, 16
    %v4510 = vrot.slane %v4508, 7
    %v4511 = vsel %vm4455, %v4506, %v4510
    %v4513 = vshrl.u32 %v4423, 16
    %v4515 = vrot.slane %v4513, 6
    %v4516 = vshll.u32 %v4423, 16
    %v4518 = vrot.slane %v4516, 7
    %v4519 = vor.u32 %v4515, %v4518
    %v4520 = vrot.slane %v4519, 2
    %v4522 = vshll.u32 %v4424, 16
    %v4524 = vrot.slane %v4522, 7
    %v4525 = vsel %vm4455, %v4520, %v4524
    %v4527 = vshrl.u32 %v4431, 16
    %v4529 = vrot.slane %v4527, 6
    %v4530 = vshll.u32 %v4431, 16
    %v4532 = vrot.slane %v4530, 7
    %v4533 = vor.u32 %v4529, %v4532
    %v4534 = vrot.slane %v4533, 2
    %v4536 = vshll.u32 %v4432, 16
    %v4538 = vrot.slane %v4536, 7
    %v4539 = vsel %vm4455, %v4534, %v4538
    %v4541 = vshrl.u32 %v4439, 16
    %v4543 = vrot.slane %v4541, 6
    %v4544 = vshll.u32 %v4439, 16
    %v4546 = vrot.slane %v4544, 7
    %v4547 = vor.u32 %v4543, %v4546
    %v4548 = vrot.slane %v4547, 2
    %v4550 = vshll.u32 %v4440, 16
    %v4552 = vrot.slane %v4550, 7
    %v4553 = vsel %vm4455, %v4548, %v4552
    %v4555 = vshrl.u32 %v4447, 16
    %v4557 = vrot.slane %v4555, 6
    %v4558 = vshll.u32 %v4447, 16
    %v4560 = vrot.slane %v4558, 7
    %v4561 = vor.u32 %v4557, %v4560
    %v4562 = vrot.slane %v4561, 2
    %v4564 = vshll.u32 %v4448, 16
    %v4566 = vrot.slane %v4564, 7
    %v4567 = vsel %vm4455, %v4562, %v4566
    %s4568 = scalar_lea.vmem [#allocation10], 32
    %v4569 = vld [vmem:[%s4568] sm:$0xf]
    %v4570 = vld [vmem:[%s4568 + $0x4] sm:$0xf]
    %v4571 = vld [vmem:[%s4568 + $0x8] sm:$0xf]
    %v4572 = vld [vmem:[%s4568 + $0xc] sm:$0xf]
    %v4573 = vld [vmem:[%s4568 + $0x10] sm:$0xf]
    %v4574 = vld [vmem:[%s4568 + $0x14] sm:$0xf]
    %v4575 = vld [vmem:[%s4568 + $0x18] sm:$0xf]
    %v4576 = vld [vmem:[%s4568 + $0x1c] sm:$0xf]
    %v4577 = vcombine.low %v4469, %v4483
    %v4578 = vcombine.low %v4497, %v4511
    %v4580 = vunpack.c.l.s4 1983009808
    %v4581 = vunpack.c.0.s8 %v4580
    %v4582 = vlaneseq
    %v4583 = vshrl.u32 %v4582, 7
    %v4584 = vsub.s32 %v4581, %v4583
    %v4585 = vrot.slane %v4577, %v4584
    %v4587 = vunpack.c.l.s4 1983009808
    %v4588 = vunpack.c.0.s8 %v4587
    %v4589 = vlaneseq
    %v4590 = vshrl.u32 %v4589, 7
    %v4591 = vsub.s32 %v4588, %v4590
    %v4592 = vrot.slane %v4578, %v4591
    %v4593 = vcombine.low %v4585, %v4592
    %v4594 = vcombine.low %v4525, %v4539
    %v4595 = vcombine.low %v4553, %v4567
    %v4597 = vunpack.c.l.s4 1983009808
    %v4598 = vunpack.c.0.s8 %v4597
    %v4599 = vlaneseq
    %v4600 = vshrl.u32 %v4599, 7
    %v4601 = vsub.s32 %v4598, %v4600
    %v4602 = vrot.slane %v4594, %v4601
    %v4604 = vunpack.c.l.s4 1983009808
    %v4605 = vunpack.c.0.s8 %v4604
    %v4606 = vlaneseq
    %v4607 = vshrl.u32 %v4606, 7
    %v4608 = vsub.s32 %v4605, %v4607
    %v4609 = vrot.slane %v4595, %v4608
    %v4610 = vcombine.low %v4602, %v4609
    %v4619 = vunpack.c.l.b16 %v4569
    %v4620 = vunpack.c.l.b16 %v4570
    %v4621 = vunpack.c.l.b16 %v4571
    %v4622 = vunpack.c.l.b16 %v4572
    %v4623 = vunpack.c.l.b16 %v4573
    %v4624 = vunpack.c.l.b16 %v4574
    %v4625 = vunpack.c.l.b16 %v4575
    %v4626 = vunpack.c.l.b16 %v4576
    %v4627 = vpack.c.b16 %v4620, %v4619
    %v4628 = vpack.c.b16 %v4622, %v4621
    %v4629 = vpack.c.b16 %v4624, %v4623
    %v4630 = vpack.c.b16 %v4626, %v4625
    %v4636 = vsel %vm4012, %v4593, 0
    %v4639 = vsel %vm4012, %v4610, 0
    %4641 = vmatprep.subr.bf16.mxu0 0
    %4642 = vmatpush1.bf16.msra.mxu0 %v4627
    %4643 = vmatprep.subr.bf16.mxu0 0
    %4644 = vmatpush1.bf16.msra.mxu0 %v4628
    %4645 = vmatprep.subr.bf16.mxu0 0
    %4646 = vmatpush1.bf16.msra.mxu0 %v4629
    %4647 = vmatprep.subr.bf16.mxu0 0
    %4648 = vmatpush1.bf16.msra.mxu0 %v4630
    %4649 = vmatprep.subr.bf16.mxu0 0
    %4650 = vmatpush1.bf16.msra.mxu0 0
    %4651 = vmatprep.subr.bf16.mxu0 0
    %4652 = vmatpush1.bf16.msra.mxu0 0
    %4653 = vmatprep.subr.bf16.mxu0 0
    %4654 = vmatpush1.bf16.msra.mxu0 0
    %4655 = vmatprep.subr.bf16.mxu0 0
    %4656 = vmatpush1.bf16.msra.mxu0 0
    %4657 = vmatprep.subr.bf16.mxu0 0
    %4658 = vmatpush1.bf16.msra.mxu0 0
    %4659 = vmatprep.subr.bf16.mxu0 0
    %4660 = vmatpush1.bf16.msra.mxu0 0
    %4661 = vmatprep.subr.bf16.mxu0 0
    %4662 = vmatpush1.bf16.msra.mxu0 0
    %4663 = vmatprep.subr.bf16.mxu0 0
    %4664 = vmatpush1.bf16.msra.mxu0 0
    %4665 = vmatprep.subr.bf16.mxu0 0
    %4666 = vmatpush1.bf16.msra.mxu0 0
    %4667 = vmatprep.subr.bf16.mxu0 0
    %4668 = vmatpush1.bf16.msra.mxu0 0
    %4669 = vmatprep.subr.bf16.mxu0 0
    %4670 = vmatpush1.bf16.msra.mxu0 0
    %4671 = vmatprep.subr.bf16.mxu0 0
    %4672 = vmatpush1.bf16.msra.mxu0 0
    %4673 = vmatprep.mubr.bf16.mxu0 0
    %4674 = vmatmul.mubr.bf16.gmra.mrb[0].mxu0 %v4636
    %v4675 = vpop.f32.mrb[0].mxu0
    %v4676 = vadd.f32 0.0, %v4675
    %v4677 = vpop.f32.mrb[0].mxu0
    %v4678 = vpop.f32.mrb[0].mxu0
    %v4679 = vadd.f32 0.0, %v4678
    %v4680 = vpop.f32.mrb[0].mxu0
    %4681 = vmatprep.mubr.bf16.mxu0 0
    %4682 = vmatmul.mubr.bf16.gmra.mrb[0].mxu0 %v4639
    %v4683 = vpop.f32.mrb[0].mxu0
    %v4684 = vadd.f32 0.0, %v4683
    %v4685 = vpop.f32.mrb[0].mxu0
    %v4686 = vpop.f32.mrb[0].mxu0
    %v4687 = vadd.f32 0.0, %v4686
    %v4688 = vpop.f32.mrb[0].mxu0
    %4689 = vdwg.mxu0
    %v4698 = vcombine.low %v4353, %v4354
    %v4699 = vcombine.low %v4355, %v4356
    %v4701 = vunpack.c.l.s4 1983009808
    %v4702 = vunpack.c.0.s8 %v4701
    %v4703 = vlaneseq
    %v4704 = vshrl.u32 %v4703, 7
    %v4705 = vsub.s32 %v4702, %v4704
    %v4706 = vrot.slane %v4698, %v4705
    %v4708 = vunpack.c.l.s4 1983009808
    %v4709 = vunpack.c.0.s8 %v4708
    %v4710 = vlaneseq
    %v4711 = vshrl.u32 %v4710, 7
    %v4712 = vsub.s32 %v4709, %v4711
    %v4713 = vrot.slane %v4699, %v4712
    %v4714 = vcombine.low %v4706, %v4713
    %v4715 = vcombine.low %v4357, %v4358
    %v4716 = vcombine.low %v4359, %v4360
    %v4718 = vunpack.c.l.s4 1983009808
    %v4719 = vunpack.c.0.s8 %v4718
    %v4720 = vlaneseq
    %v4721 = vshrl.u32 %v4720, 7
    %v4722 = vsub.s32 %v4719, %v4721
    %v4723 = vrot.slane %v4715, %v4722
    %v4725 = vunpack.c.l.s4 1983009808
    %v4726 = vunpack.c.0.s8 %v4725
    %v4727 = vlaneseq
    %v4728 = vshrl.u32 %v4727, 7
    %v4729 = vsub.s32 %v4726, %v4728
    %v4730 = vrot.slane %v4716, %v4729
    %v4731 = vcombine.low %v4723, %v4730
    %v4740 = vunpack.c.l.b16 %v4361
    %v4741 = vunpack.c.l.b16 %v4362
    %v4742 = vunpack.c.l.b16 %v4363
    %v4743 = vunpack.c.l.b16 %v4364
    %v4744 = vunpack.c.l.b16 %v4365
    %v4745 = vunpack.c.l.b16 %v4366
    %v4746 = vunpack.c.l.b16 %v4367
    %v4747 = vunpack.c.l.b16 %v4368
    %v4748 = vpack.c.b16 %v4741, %v4740
    %v4749 = vpack.c.b16 %v4743, %v4742
    %v4750 = vpack.c.b16 %v4745, %v4744
    %v4751 = vpack.c.b16 %v4747, %v4746
    %v4757 = vsel %vm4012, %v4714, 0
    %v4760 = vsel %vm4012, %v4731, 0
    %4762 = vmatprep.subr.bf16.mxu0 0
    %4763 = vmatpush1.bf16.msra.mxu0 %v4748
    %4764 = vmatprep.subr.bf16.mxu0 0
    %4765 = vmatpush1.bf16.msra.mxu0 %v4749
    %4766 = vmatprep.subr.bf16.mxu0 0
    %4767 = vmatpush1.bf16.msra.mxu0 %v4750
    %4768 = vmatprep.subr.bf16.mxu0 0
    %4769 = vmatpush1.bf16.msra.mxu0 %v4751
    %4770 = vmatprep.subr.bf16.mxu0 0
    %4771 = vmatpush1.bf16.msra.mxu0 0
    %4772 = vmatprep.subr.bf16.mxu0 0
    %4773 = vmatpush1.bf16.msra.mxu0 0
    %4774 = vmatprep.subr.bf16.mxu0 0
    %4775 = vmatpush1.bf16.msra.mxu0 0
    %4776 = vmatprep.subr.bf16.mxu0 0
    %4777 = vmatpush1.bf16.msra.mxu0 0
    %4778 = vmatprep.subr.bf16.mxu0 0
    %4779 = vmatpush1.bf16.msra.mxu0 0
    %4780 = vmatprep.subr.bf16.mxu0 0
    %4781 = vmatpush1.bf16.msra.mxu0 0
    %4782 = vmatprep.subr.bf16.mxu0 0
    %4783 = vmatpush1.bf16.msra.mxu0 0
    %4784 = vmatprep.subr.bf16.mxu0 0
    %4785 = vmatpush1.bf16.msra.mxu0 0
    %4786 = vmatprep.subr.bf16.mxu0 0
    %4787 = vmatpush1.bf16.msra.mxu0 0
    %4788 = vmatprep.subr.bf16.mxu0 0
    %4789 = vmatpush1.bf16.msra.mxu0 0
    %4790 = vmatprep.subr.bf16.mxu0 0
    %4791 = vmatpush1.bf16.msra.mxu0 0
    %4792 = vmatprep.subr.bf16.mxu0 0
    %4793 = vmatpush1.bf16.msra.mxu0 0
    %4794 = vmatprep.mubr.bf16.mxu0 0
    %4795 = vmatmul.mubr.bf16.gmra.mrb[0].mxu0 %v4757
    %v4796 = vpop.f32.mrb[0].mxu0
    %v4797 = vadd.f32 %v4676, %v4796
    %v4798 = vpop.f32.mrb[0].mxu0
    %v4799 = vpop.f32.mrb[0].mxu0
    %v4800 = vadd.f32 %v4679, %v4799
    %v4801 = vpop.f32.mrb[0].mxu0
    %4802 = vmatprep.mubr.bf16.mxu0 0
    %4803 = vmatmul.mubr.bf16.gmra.mrb[0].mxu0 %v4760
    %v4804 = vpop.f32.mrb[0].mxu0
    %v4805 = vadd.f32 %v4684, %v4804
    %v4806 = vpop.f32.mrb[0].mxu0
    %v4807 = vpop.f32.mrb[0].mxu0
    %v4808 = vadd.f32 %v4687, %v4807
    %v4809 = vpop.f32.mrb[0].mxu0
    %4810 = vdwg.mxu0
    %v4811 = vld [vmem:[#allocation3] sm:$0x6]
    %v4812 = vld [vmem:[#allocation3 + $0x4] sm:$0x6]
    %v4813 = vld [vmem:[#allocation3 + $0x8] sm:$0x6]
    %v4814 = vld [vmem:[#allocation3 + $0xc] sm:$0x6]
    %v4815 = vld [vmem:[#allocation3 + $0x18] sm:$0x6]
    %v4816 = vld [vmem:[#allocation3 + $0x1c] sm:$0x6]
    %v4817 = vld [vmem:[#allocation3 + $0x20] sm:$0x6]
    %v4818 = vld [vmem:[#allocation3 + $0x24] sm:$0x6]
    %v4828 = vunpack.c.l.s4 1983009808
    %v4829 = vunpack.c.0.s8 %v4828
    %v4830 = vlaneseq
    %v4831 = vshrl.u32 %v4830, 7
    %v4832 = vsub.s32 %v4829, %v4831
    %v4833 = vrot.slane %v4811, %v4832
    %v4834 = vcombine.high %v4833, %v4833
    %v4836 = vunpack.c.l.s4 1983009808
    %v4837 = vunpack.c.0.s8 %v4836
    %v4838 = vlaneseq
    %v4839 = vshrl.u32 %v4838, 7
    %v4840 = vsub.s32 %v4837, %v4839
    %v4841 = vrot.slane %v4812, %v4840
    %v4842 = vcombine.high %v4841, %v4841
    %v4844 = vunpack.c.l.s4 1983009808
    %v4845 = vunpack.c.0.s8 %v4844
    %v4846 = vlaneseq
    %v4847 = vshrl.u32 %v4846, 7
    %v4848 = vsub.s32 %v4845, %v4847
    %v4849 = vrot.slane %v4813, %v4848
    %v4850 = vcombine.high %v4849, %v4849
    %v4852 = vunpack.c.l.s4 1983009808
    %v4853 = vunpack.c.0.s8 %v4852
    %v4854 = vlaneseq
    %v4855 = vshrl.u32 %v4854, 7
    %v4856 = vsub.s32 %v4853, %v4855
    %v4857 = vrot.slane %v4814, %v4856
    %v4858 = vcombine.high %v4857, %v4857
    %v4860 = vunpack.c.l.s4 1983009808
    %v4861 = vunpack.c.0.s8 %v4860
    %v4862 = vlaneseq
    %v4863 = vshrl.u32 %v4862, 7
    %v4864 = vsub.s32 %v4861, %v4863
    %v4865 = vrot.slane %v4815, %v4864
    %v4866 = vcombine.high %v4865, %v4865
    %v4868 = vunpack.c.l.s4 1983009808
    %v4869 = vunpack.c.0.s8 %v4868
    %v4870 = vlaneseq
    %v4871 = vshrl.u32 %v4870, 7
    %v4872 = vsub.s32 %v4869, %v4871
    %v4873 = vrot.slane %v4816, %v4872
    %v4874 = vcombine.high %v4873, %v4873
    %v4876 = vunpack.c.l.s4 1983009808
    %v4877 = vunpack.c.0.s8 %v4876
    %v4878 = vlaneseq
    %v4879 = vshrl.u32 %v4878, 7
    %v4880 = vsub.s32 %v4877, %v4879
    %v4881 = vrot.slane %v4817, %v4880
    %v4882 = vcombine.high %v4881, %v4881
    %v4884 = vunpack.c.l.s4 1983009808
    %v4885 = vunpack.c.0.s8 %v4884
    %v4886 = vlaneseq
    %v4887 = vshrl.u32 %v4886, 7
    %v4888 = vsub.s32 %v4885, %v4887
    %v4889 = vrot.slane %v4818, %v4888
    %v4890 = vcombine.high %v4889, %v4889
    %vm4891 = vcmask 1040384
    %vm4892 = vcmask 1042434
    %vm4893 = vmor %vm4891, %vm4892
    %vm4894 = vcmask 1044484
    %vm4895 = vmor %vm4893, %vm4894
    %vm4896 = vcmask 1046534
    %vm4897 = vmor %vm4895, %vm4896
    %v4898 = vrot.slane %v4833, 7
    %v4899 = vrot.slane %v4898, 2
    %v4900 = vrot.slane %v4834, 7
    %v4901 = vsel %vm4897, %v4899, %v4900
    %v4902 = vrot.slane %v4841, 7
    %v4903 = vrot.slane %v4902, 2
    %v4904 = vrot.slane %v4842, 7
    %v4905 = vsel %vm4897, %v4903, %v4904
    %v4906 = vrot.slane %v4849, 7
    %v4907 = vrot.slane %v4906, 2
    %v4908 = vrot.slane %v4850, 7
    %v4909 = vsel %vm4897, %v4907, %v4908
    %v4910 = vrot.slane %v4857, 7
    %v4911 = vrot.slane %v4910, 2
    %v4912 = vrot.slane %v4858, 7
    %v4913 = vsel %vm4897, %v4911, %v4912
    %v4914 = vrot.slane %v4865, 7
    %v4915 = vrot.slane %v4914, 2
    %v4916 = vrot.slane %v4866, 7
    %v4917 = vsel %vm4897, %v4915, %v4916
    %v4918 = vrot.slane %v4873, 7
    %v4919 = vrot.slane %v4918, 2
    %v4920 = vrot.slane %v4874, 7
    %v4921 = vsel %vm4897, %v4919, %v4920
    %v4922 = vrot.slane %v4881, 7
    %v4923 = vrot.slane %v4922, 2
    %v4924 = vrot.slane %v4882, 7
    %v4925 = vsel %vm4897, %v4923, %v4924
    %v4926 = vrot.slane %v4889, 7
    %v4927 = vrot.slane %v4926, 2
    %v4928 = vrot.slane %v4890, 7
    %v4929 = vsel %vm4897, %v4927, %v4928
    %s4930 = scalar_lea.vmem [#allocation10], 64
    %v4931 = vld [vmem:[%s4930] sm:$0xf]
    %v4932 = vld [vmem:[%s4930 + $0x4] sm:$0xf]
    %v4933 = vld [vmem:[%s4930 + $0x8] sm:$0xf]
    %v4934 = vld [vmem:[%s4930 + $0xc] sm:$0xf]
    %v4935 = vld [vmem:[%s4930 + $0x10] sm:$0xf]
    %v4936 = vld [vmem:[%s4930 + $0x14] sm:$0xf]
    %v4937 = vld [vmem:[%s4930 + $0x18] sm:$0xf]
    %v4938 = vld [vmem:[%s4930 + $0x1c] sm:$0xf]
    %v4939 = vcombine.low %v4901, %v4905
    %v4940 = vcombine.low %v4909, %v4913
    %v4942 = vunpack.c.l.s4 1983009808
    %v4943 = vunpack.c.0.s8 %v4942
    %v4944 = vlaneseq
    %v4945 = vshrl.u32 %v4944, 7
    %v4946 = vsub.s32 %v4943, %v4945
    %v4947 = vrot.slane %v4939, %v4946
    %v4949 = vunpack.c.l.s4 1983009808
    %v4950 = vunpack.c.0.s8 %v4949
    %v4951 = vlaneseq
    %v4952 = vshrl.u32 %v4951, 7
    %v4953 = vsub.s32 %v4950, %v4952
    %v4954 = vrot.slane %v4940, %v4953
    %v4955 = vcombine.low %v4947, %v4954
    %v4956 = vcombine.low %v4917, %v4921
    %v4957 = vcombine.low %v4925, %v4929
    %v4959 = vunpack.c.l.s4 1983009808
    %v4960 = vunpack.c.0.s8 %v4959
    %v4961 = vlaneseq
    %v4962 = vshrl.u32 %v4961, 7
    %v4963 = vsub.s32 %v4960, %v4962
    %v4964 = vrot.slane %v4956, %v4963
    %v4966 = vunpack.c.l.s4 1983009808
    %v4967 = vunpack.c.0.s8 %v4966
    %v4968 = vlaneseq
    %v4969 = vshrl.u32 %v4968, 7
    %v4970 = vsub.s32 %v4967, %v4969
    %v4971 = vrot.slane %v4957, %v4970
    %v4972 = vcombine.low %v4964, %v4971
    %v4981 = vunpack.c.l.b16 %v4931
    %v4982 = vunpack.c.l.b16 %v4932
    %v4983 = vunpack.c.l.b16 %v4933
    %v4984 = vunpack.c.l.b16 %v4934
    %v4985 = vunpack.c.l.b16 %v4935
    %v4986 = vunpack.c.l.b16 %v4936
    %v4987 = vunpack.c.l.b16 %v4937
    %v4988 = vunpack.c.l.b16 %v4938
    %v4989 = vpack.c.b16 %v4982, %v4981
    %v4990 = vpack.c.b16 %v4984, %v4983
    %v4991 = vpack.c.b16 %v4986, %v4985
    %v4992 = vpack.c.b16 %v4988, %v4987
    %v4998 = vsel %vm4012, %v4955, 0
    %v5001 = vsel %vm4012, %v4972, 0
    %5003 = vmatprep.subr.bf16.mxu0 0
    %5004 = vmatpush1.bf16.msra.mxu0 %v4989
    %5005 = vmatprep.subr.bf16.mxu0 0
    %5006 = vmatpush1.bf16.msra.mxu0 %v4990
    %5007 = vmatprep.subr.bf16.mxu0 0
    %5008 = vmatpush1.bf16.msra.mxu0 %v4991
    %5009 = vmatprep.subr.bf16.mxu0 0
    %5010 = vmatpush1.bf16.msra.mxu0 %v4992
    %5011 = vmatprep.subr.bf16.mxu0 0
    %5012 = vmatpush1.bf16.msra.mxu0 0
    %5013 = vmatprep.subr.bf16.mxu0 0
    %5014 = vmatpush1.bf16.msra.mxu0 0
    %5015 = vmatprep.subr.bf16.mxu0 0
    %5016 = vmatpush1.bf16.msra.mxu0 0
    %5017 = vmatprep.subr.bf16.mxu0 0
    %5018 = vmatpush1.bf16.msra.mxu0 0
    %5019 = vmatprep.subr.bf16.mxu0 0
    %5020 = vmatpush1.bf16.msra.mxu0 0
    %5021 = vmatprep.subr.bf16.mxu0 0
    %5022 = vmatpush1.bf16.msra.mxu0 0
    %5023 = vmatprep.subr.bf16.mxu0 0
    %5024 = vmatpush1.bf16.msra.mxu0 0
    %5025 = vmatprep.subr.bf16.mxu0 0
    %5026 = vmatpush1.bf16.msra.mxu0 0
    %5027 = vmatprep.subr.bf16.mxu0 0
    %5028 = vmatpush1.bf16.msra.mxu0 0
    %5029 = vmatprep.subr.bf16.mxu0 0
    %5030 = vmatpush1.bf16.msra.mxu0 0
    %5031 = vmatprep.subr.bf16.mxu0 0
    %5032 = vmatpush1.bf16.msra.mxu0 0
    %5033 = vmatprep.subr.bf16.mxu0 0
    %5034 = vmatpush1.bf16.msra.mxu0 0
    %5035 = vmatprep.mubr.bf16.mxu0 0
    %5036 = vmatmul.mubr.bf16.gmra.mrb[0].mxu0 %v4998
    %v5037 = vpop.f32.mrb[0].mxu0
    %v5038 = vadd.f32 0.0, %v5037
    %v5039 = vpop.f32.mrb[0].mxu0
    %v5040 = vpop.f32.mrb[0].mxu0
    %v5041 = vadd.f32 0.0, %v5040
    %v5042 = vpop.f32.mrb[0].mxu0
    %5043 = vmatprep.mubr.bf16.mxu0 0
    %5044 = vmatmul.mubr.bf16.gmra.mrb[0].mxu0 %v5001
    %v5045 = vpop.f32.mrb[0].mxu0
    %v5046 = vadd.f32 0.0, %v5045
    %v5047 = vpop.f32.mrb[0].mxu0
    %v5048 = vpop.f32.mrb[0].mxu0
    %v5049 = vadd.f32 0.0, %v5048
    %v5050 = vpop.f32.mrb[0].mxu0
    %5051 = vdwg.mxu0
    %v5052 = vadd.f32 %v4797, %v5038
    %v5053 = vadd.f32 %v4800, %v5041
    %v5054 = vadd.f32 %v4805, %v5046
    %v5055 = vadd.f32 %v4808, %v5049
    %v5056 = vld [vmem:[%s4325] sm:$0x3]
    %v5057 = vld [vmem:[%s4325 + $0x4] sm:$0x3]
    %v5058 = vld [vmem:[%s4325 + $0x8] sm:$0x3]
    %v5059 = vld [vmem:[%s4325 + $0xc] sm:$0x3]
    %v5060 = vld [vmem:[%s4325 + $0x18] sm:$0x3]
    %v5061 = vld [vmem:[%s4325 + $0x1c] sm:$0x3]
    %v5062 = vld [vmem:[%s4325 + $0x20] sm:$0x3]
    %v5063 = vld [vmem:[%s4325 + $0x24] sm:$0x3]
    %s5064 = scalar_lea.vmem [#allocation10], 96
    %v5065 = vld [vmem:[%s5064] sm:$0xf]
    %v5066 = vld [vmem:[%s5064 + $0x4] sm:$0xf]
    %v5067 = vld [vmem:[%s5064 + $0x8] sm:$0xf]
    %v5068 = vld [vmem:[%s5064 + $0xc] sm:$0xf]
    %v5069 = vld [vmem:[%s5064 + $0x10] sm:$0xf]
    %v5070 = vld [vmem:[%s5064 + $0x14] sm:$0xf]
    %v5071 = vld [vmem:[%s5064 + $0x18] sm:$0xf]
    %v5072 = vld [vmem:[%s5064 + $0x1c] sm:$0xf]
    %v5081 = vcombine.low %v5056, %v5057
    %v5082 = vcombine.low %v5058, %v5059
    %v5084 = vunpack.c.l.s4 1983009808
    %v5085 = vunpack.c.0.s8 %v5084
    %v5086 = vlaneseq
    %v5087 = vshrl.u32 %v5086, 7
    %v5088 = vsub.s32 %v5085, %v5087
    %v5089 = vrot.slane %v5081, %v5088
    %v5091 = vunpack.c.l.s4 1983009808
    %v5092 = vunpack.c.0.s8 %v5091
    %v5093 = vlaneseq
    %v5094 = vshrl.u32 %v5093, 7
    %v5095 = vsub.s32 %v5092, %v5094
    %v5096 = vrot.slane %v5082, %v5095
    %v5097 = vcombine.low %v5089, %v5096
    %v5098 = vcombine.low %v5060, %v5061
    %v5099 = vcombine.low %v5062, %v5063
    %v5101 = vunpack.c.l.s4 1983009808
    %v5102 = vunpack.c.0.s8 %v5101
    %v5103 = vlaneseq
    %v5104 = vshrl.u32 %v5103, 7
    %v5105 = vsub.s32 %v5102, %v5104
    %v5106 = vrot.slane %v5098, %v5105
    %v5108 = vunpack.c.l.s4 1983009808
    %v5109 = vunpack.c.0.s8 %v5108
    %v5110 = vlaneseq
    %v5111 = vshrl.u32 %v5110, 7
    %v5112 = vsub.s32 %v5109, %v5111
    %v5113 = vrot.slane %v5099, %v5112
    %v5114 = vcombine.low %v5106, %v5113
    %v5123 = vunpack.c.l.b16 %v5065
    %v5124 = vunpack.c.l.b16 %v5066
    %v5125 = vunpack.c.l.b16 %v5067
    %v5126 = vunpack.c.l.b16 %v5068
    %v5127 = vunpack.c.l.b16 %v5069
    %v5128 = vunpack.c.l.b16 %v5070
    %v5129 = vunpack.c.l.b16 %v5071
    %v5130 = vunpack.c.l.b16 %v5072
    %v5131 = vpack.c.b16 %v5124, %v5123
    %v5132 = vpack.c.b16 %v5126, %v5125
    %v5133 = vpack.c.b16 %v5128, %v5127
    %v5134 = vpack.c.b16 %v5130, %v5129
    %v5140 = vsel %vm4012, %v5097, 0
    %v5143 = vsel %vm4012, %v5114, 0
    %5145 = vmatprep.subr.bf16.mxu0 0
    %5146 = vmatpush1.bf16.msra.mxu0 %v5131
    %5147 = vmatprep.subr.bf16.mxu0 0
    %5148 = vmatpush1.bf16.msra.mxu0 %v5132
    %5149 = vmatprep.subr.bf16.mxu0 0
    %5150 = vmatpush1.bf16.msra.mxu0 %v5133
    %5151 = vmatprep.subr.bf16.mxu0 0
    %5152 = vmatpush1.bf16.msra.mxu0 %v5134
    %5153 = vmatprep.subr.bf16.mxu0 0
    %5154 = vmatpush1.bf16.msra.mxu0 0
    %5155 = vmatprep.subr.bf16.mxu0 0
    %5156 = vmatpush1.bf16.msra.mxu0 0
    %5157 = vmatprep.subr.bf16.mxu0 0
    %5158 = vmatpush1.bf16.msra.mxu0 0
    %5159 = vmatprep.subr.bf16.mxu0 0
    %5160 = vmatpush1.bf16.msra.mxu0 0
    %5161 = vmatprep.subr.bf16.mxu0 0
    %5162 = vmatpush1.bf16.msra.mxu0 0
    %5163 = vmatprep.subr.bf16.mxu0 0
    %5164 = vmatpush1.bf16.msra.mxu0 0
    %5165 = vmatprep.subr.bf16.mxu0 0
    %5166 = vmatpush1.bf16.msra.mxu0 0
    %5167 = vmatprep.subr.bf16.mxu0 0
    %5168 = vmatpush1.bf16.msra.mxu0 0
    %5169 = vmatprep.subr.bf16.mxu0 0
    %5170 = vmatpush1.bf16.msra.mxu0 0
    %5171 = vmatprep.subr.bf16.mxu0 0
    %5172 = vmatpush1.bf16.msra.mxu0 0
    %5173 = vmatprep.subr.bf16.mxu0 0
    %5174 = vmatpush1.bf16.msra.mxu0 0
    %5175 = vmatprep.subr.bf16.mxu0 0
    %5176 = vmatpush1.bf16.msra.mxu0 0
    %5177 = vmatprep.mubr.bf16.mxu0 0
    %5178 = vmatmul.mubr.bf16.gmra.mrb[0].mxu0 %v5140
    %v5179 = vpop.f32.mrb[0].mxu0
    %v5180 = vadd.f32 0.0, %v5179
    %v5181 = vpop.f32.mrb[0].mxu0
    %v5182 = vpop.f32.mrb[0].mxu0
    %v5183 = vadd.f32 0.0, %v5182
    %v5184 = vpop.f32.mrb[0].mxu0
    %5185 = vmatprep.mubr.bf16.mxu0 0
    %5186 = vmatmul.mubr.bf16.gmra.mrb[0].mxu0 %v5143
    %v5187 = vpop.f32.mrb[0].mxu0
    %v5188 = vadd.f32 0.0, %v5187
    %v5189 = vpop.f32.mrb[0].mxu0
    %v5190 = vpop.f32.mrb[0].mxu0
    %v5191 = vadd.f32 0.0, %v5190
    %v5192 = vpop.f32.mrb[0].mxu0
    %5193 = vdwg.mxu0
    %v5194 = vadd.f32 %v5052, %v5180
    %v5195 = vadd.f32 %v5053, %v5183
    %v5196 = vadd.f32 %v5054, %v5188
    %v5197 = vadd.f32 %v5055, %v5191
    %v5198 = vld [vmem:[%s4325] sm:$0x7]
    %v5199 = vld [vmem:[%s4325 + $0x4] sm:$0x7]
    %v5200 = vld [vmem:[%s4325 + $0x8] sm:$0x7]
    %v5201 = vld [vmem:[%s4325 + $0xc] sm:$0x7]
    %v5202 = vld [vmem:[%s4325 + $0x18] sm:$0x7]
    %v5203 = vld [vmem:[%s4325 + $0x1c] sm:$0x7]
    %v5204 = vld [vmem:[%s4325 + $0x20] sm:$0x7]
    %v5205 = vld [vmem:[%s4325 + $0x24] sm:$0x7]
    %v5215 = vunpack.c.l.s4 1983009808
    %v5216 = vunpack.c.0.s8 %v5215
    %v5217 = vlaneseq
    %v5218 = vshrl.u32 %v5217, 7
    %v5219 = vsub.s32 %v5216, %v5218
    %v5220 = vrot.slane %v5198, %v5219
    %v5221 = vcombine.high %v5220, %v5220
    %v5223 = vunpack.c.l.s4 1983009808
    %v5224 = vunpack.c.0.s8 %v5223
    %v5225 = vlaneseq
    %v5226 = vshrl.u32 %v5225, 7
    %v5227 = vsub.s32 %v5224, %v5226
    %v5228 = vrot.slane %v5199, %v5227
    %v5229 = vcombine.high %v5228, %v5228
    %v5231 = vunpack.c.l.s4 1983009808
    %v5232 = vunpack.c.0.s8 %v5231
    %v5233 = vlaneseq
    %v5234 = vshrl.u32 %v5233, 7
    %v5235 = vsub.s32 %v5232, %v5234
    %v5236 = vrot.slane %v5200, %v5235
    %v5237 = vcombine.high %v5236, %v5236
    %v5239 = vunpack.c.l.s4 1983009808
    %v5240 = vunpack.c.0.s8 %v5239
    %v5241 = vlaneseq
    %v5242 = vshrl.u32 %v5241, 7
    %v5243 = vsub.s32 %v5240, %v5242
    %v5244 = vrot.slane %v5201, %v5243
    %v5245 = vcombine.high %v5244, %v5244
    %v5247 = vunpack.c.l.s4 1983009808
    %v5248 = vunpack.c.0.s8 %v5247
    %v5249 = vlaneseq
    %v5250 = vshrl.u32 %v5249, 7
    %v5251 = vsub.s32 %v5248, %v5250
    %v5252 = vrot.slane %v5202, %v5251
    %v5253 = vcombine.high %v5252, %v5252
    %v5255 = vunpack.c.l.s4 1983009808
    %v5256 = vunpack.c.0.s8 %v5255
    %v5257 = vlaneseq
    %v5258 = vshrl.u32 %v5257, 7
    %v5259 = vsub.s32 %v5256, %v5258
    %v5260 = vrot.slane %v5203, %v5259
    %v5261 = vcombine.high %v5260, %v5260
    %v5263 = vunpack.c.l.s4 1983009808
    %v5264 = vunpack.c.0.s8 %v5263
    %v5265 = vlaneseq
    %v5266 = vshrl.u32 %v5265, 7
    %v5267 = vsub.s32 %v5264, %v5266
    %v5268 = vrot.slane %v5204, %v5267
    %v5269 = vcombine.high %v5268, %v5268
    %v5271 = vunpack.c.l.s4 1983009808
    %v5272 = vunpack.c.0.s8 %v5271
    %v5273 = vlaneseq
    %v5274 = vshrl.u32 %v5273, 7
    %v5275 = vsub.s32 %v5272, %v5274
    %v5276 = vrot.slane %v5205, %v5275
    %v5277 = vcombine.high %v5276, %v5276
    %v5279 = vshrl.u32 %v5220, 16
    %v5281 = vrot.slane %v5279, 6
    %v5282 = vshll.u32 %v5220, 16
    %v5284 = vrot.slane %v5282, 7
    %v5285 = vor.u32 %v5281, %v5284
    %v5286 = vrot.slane %v5285, 2
    %v5288 = vshll.u32 %v5221, 16
    %v5290 = vrot.slane %v5288, 7
    %v5291 = vsel %vm4455, %v5286, %v5290
    %v5293 = vshrl.u32 %v5228, 16
    %v5295 = vrot.slane %v5293, 6
    %v5296 = vshll.u32 %v5228, 16
    %v5298 = vrot.slane %v5296, 7
    %v5299 = vor.u32 %v5295, %v5298
    %v5300 = vrot.slane %v5299, 2
    %v5302 = vshll.u32 %v5229, 16
    %v5304 = vrot.slane %v5302, 7
    %v5305 = vsel %vm4455, %v5300, %v5304
    %v5307 = vshrl.u32 %v5236, 16
    %v5309 = vrot.slane %v5307, 6
    %v5310 = vshll.u32 %v5236, 16
    %v5312 = vrot.slane %v5310, 7
    %v5313 = vor.u32 %v5309, %v5312
    %v5314 = vrot.slane %v5313, 2
    %v5316 = vshll.u32 %v5237, 16
    %v5318 = vrot.slane %v5316, 7
    %v5319 = vsel %vm4455, %v5314, %v5318
    %v5321 = vshrl.u32 %v5244, 16
    %v5323 = vrot.slane %v5321, 6
    %v5324 = vshll.u32 %v5244, 16
    %v5326 = vrot.slane %v5324, 7
    %v5327 = vor.u32 %v5323, %v5326
    %v5328 = vrot.slane %v5327, 2
    %v5330 = vshll.u32 %v5245, 16
    %v5332 = vrot.slane %v5330, 7
    %v5333 = vsel %vm4455, %v5328, %v5332
    %v5335 = vshrl.u32 %v5252, 16
    %v5337 = vrot.slane %v5335, 6
    %v5338 = vshll.u32 %v5252, 16
    %v5340 = vrot.slane %v5338, 7
    %v5341 = vor.u32 %v5337, %v5340
    %v5342 = vrot.slane %v5341, 2
    %v5344 = vshll.u32 %v5253, 16
    %v5346 = vrot.slane %v5344, 7
    %v5347 = vsel %vm4455, %v5342, %v5346
    %v5349 = vshrl.u32 %v5260, 16
    %v5351 = vrot.slane %v5349, 6
    %v5352 = vshll.u32 %v5260, 16
    %v5354 = vrot.slane %v5352, 7
    %v5355 = vor.u32 %v5351, %v5354
    %v5356 = vrot.slane %v5355, 2
    %v5358 = vshll.u32 %v5261, 16
    %v5360 = vrot.slane %v5358, 7
    %v5361 = vsel %vm4455, %v5356, %v5360
    %v5363 = vshrl.u32 %v5268, 16
    %v5365 = vrot.slane %v5363, 6
    %v5366 = vshll.u32 %v5268, 16
    %v5368 = vrot.slane %v5366, 7
    %v5369 = vor.u32 %v5365, %v5368
    %v5370 = vrot.slane %v5369, 2
    %v5372 = vshll.u32 %v5269, 16
    %v5374 = vrot.slane %v5372, 7
    %v5375 = vsel %vm4455, %v5370, %v5374
    %v5377 = vshrl.u32 %v5276, 16
    %v5379 = vrot.slane %v5377, 6
    %v5380 = vshll.u32 %v5276, 16
    %v5382 = vrot.slane %v5380, 7
    %v5383 = vor.u32 %v5379, %v5382
    %v5384 = vrot.slane %v5383, 2
    %v5386 = vshll.u32 %v5277, 16
    %v5388 = vrot.slane %v5386, 7
    %v5389 = vsel %vm4455, %v5384, %v5388
    %s5390 = scalar_lea.vmem [#allocation10], 128
    %v5391 = vld [vmem:[%s5390] sm:$0xf]
    %v5392 = vld [vmem:[%s5390 + $0x4] sm:$0xf]
    %v5393 = vld [vmem:[%s5390 + $0x8] sm:$0xf]
    %v5394 = vld [vmem:[%s5390 + $0xc] sm:$0xf]
    %v5395 = vld [vmem:[%s5390 + $0x10] sm:$0xf]
    %v5396 = vld [vmem:[%s5390 + $0x14] sm:$0xf]
    %v5397 = vld [vmem:[%s5390 + $0x18] sm:$0xf]
    %v5398 = vld [vmem:[%s5390 + $0x1c] sm:$0xf]
    %v5399 = vcombine.low %v5291, %v5305
    %v5400 = vcombine.low %v5319, %v5333
    %v5402 = vunpack.c.l.s4 1983009808
    %v5403 = vunpack.c.0.s8 %v5402
    %v5404 = vlaneseq
    %v5405 = vshrl.u32 %v5404, 7
    %v5406 = vsub.s32 %v5403, %v5405
    %v5407 = vrot.slane %v5399, %v5406
    %v5409 = vunpack.c.l.s4 1983009808
    %v5410 = vunpack.c.0.s8 %v5409
    %v5411 = vlaneseq
    %v5412 = vshrl.u32 %v5411, 7
    %v5413 = vsub.s32 %v5410, %v5412
    %v5414 = vrot.slane %v5400, %v5413
    %v5415 = vcombine.low %v5407, %v5414
    %v5416 = vcombine.low %v5347, %v5361
    %v5417 = vcombine.low %v5375, %v5389
    %v5419 = vunpack.c.l.s4 1983009808
    %v5420 = vunpack.c.0.s8 %v5419
    %v5421 = vlaneseq
    %v5422 = vshrl.u32 %v5421, 7
    %v5423 = vsub.s32 %v5420, %v5422
    %v5424 = vrot.slane %v5416, %v5423
    %v5426 = vunpack.c.l.s4 1983009808
    %v5427 = vunpack.c.0.s8 %v5426
    %v5428 = vlaneseq
    %v5429 = vshrl.u32 %v5428, 7
    %v5430 = vsub.s32 %v5427, %v5429
    %v5431 = vrot.slane %v5417, %v5430
    %v5432 = vcombine.low %v5424, %v5431
    %v5441 = vunpack.c.l.b16 %v5391
    %v5442 = vunpack.c.l.b16 %v5392
    %v5443 = vunpack.c.l.b16 %v5393
    %v5444 = vunpack.c.l.b16 %v5394
    %v5445 = vunpack.c.l.b16 %v5395
    %v5446 = vunpack.c.l.b16 %v5396
    %v5447 = vunpack.c.l.b16 %v5397
    %v5448 = vunpack.c.l.b16 %v5398
    %v5449 = vpack.c.b16 %v5442, %v5441
    %v5450 = vpack.c.b16 %v5444, %v5443
    %v5451 = vpack.c.b16 %v5446, %v5445
    %v5452 = vpack.c.b16 %v5448, %v5447
    %v5458 = vsel %vm4012, %v5415, 0
    %v5461 = vsel %vm4012, %v5432, 0
    %5463 = vmatprep.subr.bf16.mxu0 0
    %5464 = vmatpush1.bf16.msra.mxu0 %v5449
    %5465 = vmatprep.subr.bf16.mxu0 0
    %5466 = vmatpush1.bf16.msra.mxu0 %v5450
    %5467 = vmatprep.subr.bf16.mxu0 0
    %5468 = vmatpush1.bf16.msra.mxu0 %v5451
    %5469 = vmatprep.subr.bf16.mxu0 0
    %5470 = vmatpush1.bf16.msra.mxu0 %v5452
    %5471 = vmatprep.subr.bf16.mxu0 0
    %5472 = vmatpush1.bf16.msra.mxu0 0
    %5473 = vmatprep.subr.bf16.mxu0 0
    %5474 = vmatpush1.bf16.msra.mxu0 0
    %5475 = vmatprep.subr.bf16.mxu0 0
    %5476 = vmatpush1.bf16.msra.mxu0 0
    %5477 = vmatprep.subr.bf16.mxu0 0
    %5478 = vmatpush1.bf16.msra.mxu0 0
    %5479 = vmatprep.subr.bf16.mxu0 0
    %5480 = vmatpush1.bf16.msra.mxu0 0
    %5481 = vmatprep.subr.bf16.mxu0 0
    %5482 = vmatpush1.bf16.msra.mxu0 0
    %5483 = vmatprep.subr.bf16.mxu0 0
    %5484 = vmatpush1.bf16.msra.mxu0 0
    %5485 = vmatprep.subr.bf16.mxu0 0
    %5486 = vmatpush1.bf16.msra.mxu0 0
    %5487 = vmatprep.subr.bf16.mxu0 0
    %5488 = vmatpush1.bf16.msra.mxu0 0
    %5489 = vmatprep.subr.bf16.mxu0 0
    %5490 = vmatpush1.bf16.msra.mxu0 0
    %5491 = vmatprep.subr.bf16.mxu0 0
    %5492 = vmatpush1.bf16.msra.mxu0 0
    %5493 = vmatprep.subr.bf16.mxu0 0
    %5494 = vmatpush1.bf16.msra.mxu0 0
    %5495 = vmatprep.mubr.bf16.mxu0 0
    %5496 = vmatmul.mubr.bf16.gmra.mrb[0].mxu0 %v5458
    %v5497 = vpop.f32.mrb[0].mxu0
    %v5498 = vadd.f32 0.0, %v5497
    %v5499 = vpop.f32.mrb[0].mxu0
    %v5500 = vpop.f32.mrb[0].mxu0
    %v5501 = vadd.f32 0.0, %v5500
    %v5502 = vpop.f32.mrb[0].mxu0
    %5503 = vmatprep.mubr.bf16.mxu0 0
    %5504 = vmatmul.mubr.bf16.gmra.mrb[0].mxu0 %v5461
    %v5505 = vpop.f32.mrb[0].mxu0
    %v5506 = vadd.f32 0.0, %v5505
    %v5507 = vpop.f32.mrb[0].mxu0
    %v5508 = vpop.f32.mrb[0].mxu0
    %v5509 = vadd.f32 0.0, %v5508
    %v5510 = vpop.f32.mrb[0].mxu0
    %5511 = vdwg.mxu0
    %v5512 = vadd.f32 %v5194, %v5498
    %v5513 = vadd.f32 %v5195, %v5501
    %v5514 = vadd.f32 %v5196, %v5506
    %v5515 = vadd.f32 %v5197, %v5509
    %v5516 = vld [vmem:[%s4325] sm:$0x6]
    %v5517 = vld [vmem:[%s4325 + $0x4] sm:$0x6]
    %v5518 = vld [vmem:[%s4325 + $0x8] sm:$0x6]
    %v5519 = vld [vmem:[%s4325 + $0xc] sm:$0x6]
    %v5520 = vld [vmem:[%s4325 + $0x18] sm:$0x6]
    %v5521 = vld [vmem:[%s4325 + $0x1c] sm:$0x6]
    %v5522 = vld [vmem:[%s4325 + $0x20] sm:$0x6]
    %v5523 = vld [vmem:[%s4325 + $0x24] sm:$0x6]
    %v5533 = vunpack.c.l.s4 1983009808
    %v5534 = vunpack.c.0.s8 %v5533
    %v5535 = vlaneseq
    %v5536 = vshrl.u32 %v5535, 7
    %v5537 = vsub.s32 %v5534, %v5536
    %v5538 = vrot.slane %v5516, %v5537
    %v5539 = vcombine.high %v5538, %v5538
    %v5541 = vunpack.c.l.s4 1983009808
    %v5542 = vunpack.c.0.s8 %v5541
    %v5543 = vlaneseq
    %v5544 = vshrl.u32 %v5543, 7
    %v5545 = vsub.s32 %v5542, %v5544
    %v5546 = vrot.slane %v5517, %v5545
    %v5547 = vcombine.high %v5546, %v5546
    %v5549 = vunpack.c.l.s4 1983009808
    %v5550 = vunpack.c.0.s8 %v5549
    %v5551 = vlaneseq
    %v5552 = vshrl.u32 %v5551, 7
    %v5553 = vsub.s32 %v5550, %v5552
    %v5554 = vrot.slane %v5518, %v5553
    %v5555 = vcombine.high %v5554, %v5554
    %v5557 = vunpack.c.l.s4 1983009808
    %v5558 = vunpack.c.0.s8 %v5557
    %v5559 = vlaneseq
    %v5560 = vshrl.u32 %v5559, 7
    %v5561 = vsub.s32 %v5558, %v5560
    %v5562 = vrot.slane %v5519, %v5561
    %v5563 = vcombine.high %v5562, %v5562
    %v5565 = vunpack.c.l.s4 1983009808
    %v5566 = vunpack.c.0.s8 %v5565
    %v5567 = vlaneseq
    %v5568 = vshrl.u32 %v5567, 7
    %v5569 = vsub.s32 %v5566, %v5568
    %v5570 = vrot.slane %v5520, %v5569
    %v5571 = vcombine.high %v5570, %v5570
    %v5573 = vunpack.c.l.s4 1983009808
    %v5574 = vunpack.c.0.s8 %v5573
    %v5575 = vlaneseq
    %v5576 = vshrl.u32 %v5575, 7
    %v5577 = vsub.s32 %v5574, %v5576
    %v5578 = vrot.slane %v5521, %v5577
    %v5579 = vcombine.high %v5578, %v5578
    %v5581 = vunpack.c.l.s4 1983009808
    %v5582 = vunpack.c.0.s8 %v5581
    %v5583 = vlaneseq
    %v5584 = vshrl.u32 %v5583, 7
    %v5585 = vsub.s32 %v5582, %v5584
    %v5586 = vrot.slane %v5522, %v5585
    %v5587 = vcombine.high %v5586, %v5586
    %v5589 = vunpack.c.l.s4 1983009808
    %v5590 = vunpack.c.0.s8 %v5589
    %v5591 = vlaneseq
    %v5592 = vshrl.u32 %v5591, 7
    %v5593 = vsub.s32 %v5590, %v5592
    %v5594 = vrot.slane %v5523, %v5593
    %v5595 = vcombine.high %v5594, %v5594
    %v5596 = vrot.slane %v5538, 7
    %v5597 = vrot.slane %v5596, 2
    %v5598 = vrot.slane %v5539, 7
    %v5599 = vsel %vm4897, %v5597, %v5598
    %v5600 = vrot.slane %v5546, 7
    %v5601 = vrot.slane %v5600, 2
    %v5602 = vrot.slane %v5547, 7
    %v5603 = vsel %vm4897, %v5601, %v5602
    %v5604 = vrot.slane %v5554, 7
    %v5605 = vrot.slane %v5604, 2
    %v5606 = vrot.slane %v5555, 7
    %v5607 = vsel %vm4897, %v5605, %v5606
    %v5608 = vrot.slane %v5562, 7
    %v5609 = vrot.slane %v5608, 2
    %v5610 = vrot.slane %v5563, 7
    %v5611 = vsel %vm4897, %v5609, %v5610
    %v5612 = vrot.slane %v5570, 7
    %v5613 = vrot.slane %v5612, 2
    %v5614 = vrot.slane %v5571, 7
    %v5615 = vsel %vm4897, %v5613, %v5614
    %v5616 = vrot.slane %v5578, 7
    %v5617 = vrot.slane %v5616, 2
    %v5618 = vrot.slane %v5579, 7
    %v5619 = vsel %vm4897, %v5617, %v5618
    %v5620 = vrot.slane %v5586, 7
    %v5621 = vrot.slane %v5620, 2
    %v5622 = vrot.slane %v5587, 7
    %v5623 = vsel %vm4897, %v5621, %v5622
    %v5624 = vrot.slane %v5594, 7
    %v5625 = vrot.slane %v5624, 2
    %v5626 = vrot.slane %v5595, 7
    %v5627 = vsel %vm4897, %v5625, %v5626
    %s5628 = scalar_lea.vmem [#allocation10], 160
    %v5629 = vld [vmem:[%s5628] sm:$0xf]
    %v5630 = vld [vmem:[%s5628 + $0x4] sm:$0xf]
    %v5631 = vld [vmem:[%s5628 + $0x8] sm:$0xf]
    %v5632 = vld [vmem:[%s5628 + $0xc] sm:$0xf]
    %v5633 = vld [vmem:[%s5628 + $0x10] sm:$0xf]
    %v5634 = vld [vmem:[%s5628 + $0x14] sm:$0xf]
    %v5635 = vld [vmem:[%s5628 + $0x18] sm:$0xf]
    %v5636 = vld [vmem:[%s5628 + $0x1c] sm:$0xf]
    %v5637 = vcombine.low %v5599, %v5603
    %v5638 = vcombine.low %v5607, %v5611
    %v5640 = vunpack.c.l.s4 1983009808
    %v5641 = vunpack.c.0.s8 %v5640
    %v5642 = vlaneseq
    %v5643 = vshrl.u32 %v5642, 7
    %v5644 = vsub.s32 %v5641, %v5643
    %v5645 = vrot.slane %v5637, %v5644
    %v5647 = vunpack.c.l.s4 1983009808
    %v5648 = vunpack.c.0.s8 %v5647
    %v5649 = vlaneseq
    %v5650 = vshrl.u32 %v5649, 7
    %v5651 = vsub.s32 %v5648, %v5650
    %v5652 = vrot.slane %v5638, %v5651
    %v5653 = vcombine.low %v5645, %v5652
    %v5654 = vcombine.low %v5615, %v5619
    %v5655 = vcombine.low %v5623, %v5627
    %v5657 = vunpack.c.l.s4 1983009808
    %v5658 = vunpack.c.0.s8 %v5657
    %v5659 = vlaneseq
    %v5660 = vshrl.u32 %v5659, 7
    %v5661 = vsub.s32 %v5658, %v5660
    %v5662 = vrot.slane %v5654, %v5661
    %v5664 = vunpack.c.l.s4 1983009808
    %v5665 = vunpack.c.0.s8 %v5664
    %v5666 = vlaneseq
    %v5667 = vshrl.u32 %v5666, 7
    %v5668 = vsub.s32 %v5665, %v5667
    %v5669 = vrot.slane %v5655, %v5668
    %v5670 = vcombine.low %v5662, %v5669
    %v5679 = vunpack.c.l.b16 %v5629
    %v5680 = vunpack.c.l.b16 %v5630
    %v5681 = vunpack.c.l.b16 %v5631
    %v5682 = vunpack.c.l.b16 %v5632
    %v5683 = vunpack.c.l.b16 %v5633
    %v5684 = vunpack.c.l.b16 %v5634
    %v5685 = vunpack.c.l.b16 %v5635
    %v5686 = vunpack.c.l.b16 %v5636
    %v5687 = vpack.c.b16 %v5680, %v5679
    %v5688 = vpack.c.b16 %v5682, %v5681
    %v5689 = vpack.c.b16 %v5684, %v5683
    %v5690 = vpack.c.b16 %v5686, %v5685
    %v5696 = vsel %vm4012, %v5653, 0
    %v5699 = vsel %vm4012, %v5670, 0
    %5701 = vmatprep.subr.bf16.mxu0 0
    %5702 = vmatpush1.bf16.msra.mxu0 %v5687
    %5703 = vmatprep.subr.bf16.mxu0 0
    %5704 = vmatpush1.bf16.msra.mxu0 %v5688
    %5705 = vmatprep.subr.bf16.mxu0 0
    %5706 = vmatpush1.bf16.msra.mxu0 %v5689
    %5707 = vmatprep.subr.bf16.mxu0 0
    %5708 = vmatpush1.bf16.msra.mxu0 %v5690
    %5709 = vmatprep.subr.bf16.mxu0 0
    %5710 = vmatpush1.bf16.msra.mxu0 0
    %5711 = vmatprep.subr.bf16.mxu0 0
    %5712 = vmatpush1.bf16.msra.mxu0 0
    %5713 = vmatprep.subr.bf16.mxu0 0
    %5714 = vmatpush1.bf16.msra.mxu0 0
    %5715 = vmatprep.subr.bf16.mxu0 0
    %5716 = vmatpush1.bf16.msra.mxu0 0
    %5717 = vmatprep.subr.bf16.mxu0 0
    %5718 = vmatpush1.bf16.msra.mxu0 0
    %5719 = vmatprep.subr.bf16.mxu0 0
    %5720 = vmatpush1.bf16.msra.mxu0 0
    %5721 = vmatprep.subr.bf16.mxu0 0
    %5722 = vmatpush1.bf16.msra.mxu0 0
    %5723 = vmatprep.subr.bf16.mxu0 0
    %5724 = vmatpush1.bf16.msra.mxu0 0
    %5725 = vmatprep.subr.bf16.mxu0 0
    %5726 = vmatpush1.bf16.msra.mxu0 0
    %5727 = vmatprep.subr.bf16.mxu0 0
    %5728 = vmatpush1.bf16.msra.mxu0 0
    %5729 = vmatprep.subr.bf16.mxu0 0
    %5730 = vmatpush1.bf16.msra.mxu0 0
    %5731 = vmatprep.subr.bf16.mxu0 0
    %5732 = vmatpush1.bf16.msra.mxu0 0
    %5733 = vmatprep.mubr.bf16.mxu0 0
    %5734 = vmatmul.mubr.bf16.gmra.mrb[0].mxu0 %v5696
    %v5735 = vpop.f32.mrb[0].mxu0
    %v5736 = vadd.f32 0.0, %v5735
    %v5737 = vpop.f32.mrb[0].mxu0
    %v5738 = vpop.f32.mrb[0].mxu0
    %v5739 = vadd.f32 0.0, %v5738
    %v5740 = vpop.f32.mrb[0].mxu0
    %5741 = vmatprep.mubr.bf16.mxu0 0
    %5742 = vmatmul.mubr.bf16.gmra.mrb[0].mxu0 %v5699
    %v5743 = vpop.f32.mrb[0].mxu0
    %v5744 = vadd.f32 0.0, %v5743
    %v5745 = vpop.f32.mrb[0].mxu0
    %v5746 = vpop.f32.mrb[0].mxu0
    %v5747 = vadd.f32 0.0, %v5746
    %v5748 = vpop.f32.mrb[0].mxu0
    %5749 = vdwg.mxu0
    %v5750 = vadd.f32 %v5512, %v5736
    %v5751 = vadd.f32 %v5513, %v5739
    %v5752 = vadd.f32 %v5514, %v5744
    %v5753 = vadd.f32 %v5515, %v5747
    %s5754 = scalar_lea.vmem [#allocation3], 8
    %v5755 = vld [vmem:[%s5754] sm:$0x3]
    %v5756 = vld [vmem:[%s5754 + $0x4] sm:$0x3]
    %v5757 = vld [vmem:[%s5754 + $0x8] sm:$0x3]
    %v5758 = vld [vmem:[%s5754 + $0xc] sm:$0x3]
    %v5759 = vld [vmem:[%s5754 + $0x18] sm:$0x3]
    %v5760 = vld [vmem:[%s5754 + $0x1c] sm:$0x3]
    %v5761 = vld [vmem:[%s5754 + $0x20] sm:$0x3]
    %v5762 = vld [vmem:[%s5754 + $0x24] sm:$0x3]
    %s5763 = scalar_lea.vmem [#allocation10], 192
    %v5764 = vld [vmem:[%s5763] sm:$0xf]
    %v5765 = vld [vmem:[%s5763 + $0x4] sm:$0xf]
    %v5766 = vld [vmem:[%s5763 + $0x8] sm:$0xf]
    %v5767 = vld [vmem:[%s5763 + $0xc] sm:$0xf]
    %v5768 = vld [vmem:[%s5763 + $0x10] sm:$0xf]
    %v5769 = vld [vmem:[%s5763 + $0x14] sm:$0xf]
    %v5770 = vld [vmem:[%s5763 + $0x18] sm:$0xf]
    %v5771 = vld [vmem:[%s5763 + $0x1c] sm:$0xf]
    %v5780 = vcombine.low %v5755, %v5756
    %v5781 = vcombine.low %v5757, %v5758
    %v5783 = vunpack.c.l.s4 1983009808
    %v5784 = vunpack.c.0.s8 %v5783
    %v5785 = vlaneseq
    %v5786 = vshrl.u32 %v5785, 7
    %v5787 = vsub.s32 %v5784, %v5786
    %v5788 = vrot.slane %v5780, %v5787
    %v5790 = vunpack.c.l.s4 1983009808
    %v5791 = vunpack.c.0.s8 %v5790
    %v5792 = vlaneseq
    %v5793 = vshrl.u32 %v5792, 7
    %v5794 = vsub.s32 %v5791, %v5793
    %v5795 = vrot.slane %v5781, %v5794
    %v5796 = vcombine.low %v5788, %v5795
    %v5797 = vcombine.low %v5759, %v5760
    %v5798 = vcombine.low %v5761, %v5762
    %v5800 = vunpack.c.l.s4 1983009808
    %v5801 = vunpack.c.0.s8 %v5800
    %v5802 = vlaneseq
    %v5803 = vshrl.u32 %v5802, 7
    %v5804 = vsub.s32 %v5801, %v5803
    %v5805 = vrot.slane %v5797, %v5804
    %v5807 = vunpack.c.l.s4 1983009808
    %v5808 = vunpack.c.0.s8 %v5807
    %v5809 = vlaneseq
    %v5810 = vshrl.u32 %v5809, 7
    %v5811 = vsub.s32 %v5808, %v5810
    %v5812 = vrot.slane %v5798, %v5811
    %v5813 = vcombine.low %v5805, %v5812
    %v5822 = vunpack.c.l.b16 %v5764
    %v5823 = vunpack.c.l.b16 %v5765
    %v5824 = vunpack.c.l.b16 %v5766
    %v5825 = vunpack.c.l.b16 %v5767
    %v5826 = vunpack.c.l.b16 %v5768
    %v5827 = vunpack.c.l.b16 %v5769
    %v5828 = vunpack.c.l.b16 %v5770
    %v5829 = vunpack.c.l.b16 %v5771
    %v5830 = vpack.c.b16 %v5823, %v5822
    %v5831 = vpack.c.b16 %v5825, %v5824
    %v5832 = vpack.c.b16 %v5827, %v5826
    %v5833 = vpack.c.b16 %v5829, %v5828
    %v5839 = vsel %vm4012, %v5796, 0
    %v5842 = vsel %vm4012, %v5813, 0
    %5844 = vmatprep.subr.bf16.mxu0 0
    %5845 = vmatpush1.bf16.msra.mxu0 %v5830
    %5846 = vmatprep.subr.bf16.mxu0 0
    %5847 = vmatpush1.bf16.msra.mxu0 %v5831
    %5848 = vmatprep.subr.bf16.mxu0 0
    %5849 = vmatpush1.bf16.msra.mxu0 %v5832
    %5850 = vmatprep.subr.bf16.mxu0 0
    %5851 = vmatpush1.bf16.msra.mxu0 %v5833
    %5852 = vmatprep.subr.bf16.mxu0 0
    %5853 = vmatpush1.bf16.msra.mxu0 0
    %5854 = vmatprep.subr.bf16.mxu0 0
    %5855 = vmatpush1.bf16.msra.mxu0 0
    %5856 = vmatprep.subr.bf16.mxu0 0
    %5857 = vmatpush1.bf16.msra.mxu0 0
    %5858 = vmatprep.subr.bf16.mxu0 0
    %5859 = vmatpush1.bf16.msra.mxu0 0
    %5860 = vmatprep.subr.bf16.mxu0 0
    %5861 = vmatpush1.bf16.msra.mxu0 0
    %5862 = vmatprep.subr.bf16.mxu0 0
    %5863 = vmatpush1.bf16.msra.mxu0 0
    %5864 = vmatprep.subr.bf16.mxu0 0
    %5865 = vmatpush1.bf16.msra.mxu0 0
    %5866 = vmatprep.subr.bf16.mxu0 0
    %5867 = vmatpush1.bf16.msra.mxu0 0
    %5868 = vmatprep.subr.bf16.mxu0 0
    %5869 = vmatpush1.bf16.msra.mxu0 0
    %5870 = vmatprep.subr.bf16.mxu0 0
    %5871 = vmatpush1.bf16.msra.mxu0 0
    %5872 = vmatprep.subr.bf16.mxu0 0
    %5873 = vmatpush1.bf16.msra.mxu0 0
    %5874 = vmatprep.subr.bf16.mxu0 0
    %5875 = vmatpush1.bf16.msra.mxu0 0
    %5876 = vmatprep.mubr.bf16.mxu0 0
    %5877 = vmatmul.mubr.bf16.gmra.mrb[0].mxu0 %v5839
    %v5878 = vpop.f32.mrb[0].mxu0
    %v5879 = vadd.f32 0.0, %v5878
    %v5880 = vpop.f32.mrb[0].mxu0
    %v5881 = vpop.f32.mrb[0].mxu0
    %v5882 = vadd.f32 0.0, %v5881
    %v5883 = vpop.f32.mrb[0].mxu0
    %5884 = vmatprep.mubr.bf16.mxu0 0
    %5885 = vmatmul.mubr.bf16.gmra.mrb[0].mxu0 %v5842
    %v5886 = vpop.f32.mrb[0].mxu0
    %v5887 = vadd.f32 0.0, %v5886
    %v5888 = vpop.f32.mrb[0].mxu0
    %v5889 = vpop.f32.mrb[0].mxu0
    %v5890 = vadd.f32 0.0, %v5889
    %v5891 = vpop.f32.mrb[0].mxu0
    %5892 = vdwg.mxu0
    %v5893 = vadd.f32 %v5750, %v5879
    %v5894 = vadd.f32 %v5751, %v5882
    %v5895 = vadd.f32 %v5752, %v5887
    %v5896 = vadd.f32 %v5753, %v5890
    %v5897 = vld [vmem:[%s5754] sm:$0x7]
    %v5898 = vld [vmem:[%s5754 + $0x4] sm:$0x7]
    %v5899 = vld [vmem:[%s5754 + $0x8] sm:$0x7]
    %v5900 = vld [vmem:[%s5754 + $0xc] sm:$0x7]
    %v5901 = vld [vmem:[%s5754 + $0x18] sm:$0x7]
    %v5902 = vld [vmem:[%s5754 + $0x1c] sm:$0x7]
    %v5903 = vld [vmem:[%s5754 + $0x20] sm:$0x7]
    %v5904 = vld [vmem:[%s5754 + $0x24] sm:$0x7]
    %v5914 = vunpack.c.l.s4 1983009808
    %v5915 = vunpack.c.0.s8 %v5914
    %v5916 = vlaneseq
    %v5917 = vshrl.u32 %v5916, 7
    %v5918 = vsub.s32 %v5915, %v5917
    %v5919 = vrot.slane %v5897, %v5918
    %v5920 = vcombine.high %v5919, %v5919
    %v5922 = vunpack.c.l.s4 1983009808
    %v5923 = vunpack.c.0.s8 %v5922
    %v5924 = vlaneseq
    %v5925 = vshrl.u32 %v5924, 7
    %v5926 = vsub.s32 %v5923, %v5925
    %v5927 = vrot.slane %v5898, %v5926
    %v5928 = vcombine.high %v5927, %v5927
    %v5930 = vunpack.c.l.s4 1983009808
    %v5931 = vunpack.c.0.s8 %v5930
    %v5932 = vlaneseq
    %v5933 = vshrl.u32 %v5932, 7
    %v5934 = vsub.s32 %v5931, %v5933
    %v5935 = vrot.slane %v5899, %v5934
    %v5936 = vcombine.high %v5935, %v5935
    %v5938 = vunpack.c.l.s4 1983009808
    %v5939 = vunpack.c.0.s8 %v5938
    %v5940 = vlaneseq
    %v5941 = vshrl.u32 %v5940, 7
    %v5942 = vsub.s32 %v5939, %v5941
    %v5943 = vrot.slane %v5900, %v5942
    %v5944 = vcombine.high %v5943, %v5943
    %v5946 = vunpack.c.l.s4 1983009808
    %v5947 = vunpack.c.0.s8 %v5946
    %v5948 = vlaneseq
    %v5949 = vshrl.u32 %v5948, 7
    %v5950 = vsub.s32 %v5947, %v5949
    %v5951 = vrot.slane %v5901, %v5950
    %v5952 = vcombine.high %v5951, %v5951
    %v5954 = vunpack.c.l.s4 1983009808
    %v5955 = vunpack.c.0.s8 %v5954
    %v5956 = vlaneseq
    %v5957 = vshrl.u32 %v5956, 7
    %v5958 = vsub.s32 %v5955, %v5957
    %v5959 = vrot.slane %v5902, %v5958
    %v5960 = vcombine.high %v5959, %v5959
    %v5962 = vunpack.c.l.s4 1983009808
    %v5963 = vunpack.c.0.s8 %v5962
    %v5964 = vlaneseq
    %v5965 = vshrl.u32 %v5964, 7
    %v5966 = vsub.s32 %v5963, %v5965
    %v5967 = vrot.slane %v5903, %v5966
    %v5968 = vcombine.high %v5967, %v5967
    %v5970 = vunpack.c.l.s4 1983009808
    %v5971 = vunpack.c.0.s8 %v5970
    %v5972 = vlaneseq
    %v5973 = vshrl.u32 %v5972, 7
    %v5974 = vsub.s32 %v5971, %v5973
    %v5975 = vrot.slane %v5904, %v5974
    %v5976 = vcombine.high %v5975, %v5975
    %v5978 = vshrl.u32 %v5919, 16
    %v5980 = vrot.slane %v5978, 6
    %v5981 = vshll.u32 %v5919, 16
    %v5983 = vrot.slane %v5981, 7
    %v5984 = vor.u32 %v5980, %v5983
    %v5985 = vrot.slane %v5984, 2
    %v5987 = vshll.u32 %v5920, 16
    %v5989 = vrot.slane %v5987, 7
    %v5990 = vsel %vm4455, %v5985, %v5989
    %v5992 = vshrl.u32 %v5927, 16
    %v5994 = vrot.slane %v5992, 6
    %v5995 = vshll.u32 %v5927, 16
    %v5997 = vrot.slane %v5995, 7
    %v5998 = vor.u32 %v5994, %v5997
    %v5999 = vrot.slane %v5998, 2
    %v6001 = vshll.u32 %v5928, 16
    %v6003 = vrot.slane %v6001, 7
    %v6004 = vsel %vm4455, %v5999, %v6003
    %v6006 = vshrl.u32 %v5935, 16
    %v6008 = vrot.slane %v6006, 6
    %v6009 = vshll.u32 %v5935, 16
    %v6011 = vrot.slane %v6009, 7
    %v6012 = vor.u32 %v6008, %v6011
    %v6013 = vrot.slane %v6012, 2
    %v6015 = vshll.u32 %v5936, 16
    %v6017 = vrot.slane %v6015, 7
    %v6018 = vsel %vm4455, %v6013, %v6017
    %v6020 = vshrl.u32 %v5943, 16
    %v6022 = vrot.slane %v6020, 6
    %v6023 = vshll.u32 %v5943, 16
    %v6025 = vrot.slane %v6023, 7
    %v6026 = vor.u32 %v6022, %v6025
    %v6027 = vrot.slane %v6026, 2
    %v6029 = vshll.u32 %v5944, 16
    %v6031 = vrot.slane %v6029, 7
    %v6032 = vsel %vm4455, %v6027, %v6031
    %v6034 = vshrl.u32 %v5951, 16
    %v6036 = vrot.slane %v6034, 6
    %v6037 = vshll.u32 %v5951, 16
    %v6039 = vrot.slane %v6037, 7
    %v6040 = vor.u32 %v6036, %v6039
    %v6041 = vrot.slane %v6040, 2
    %v6043 = vshll.u32 %v5952, 16
    %v6045 = vrot.slane %v6043, 7
    %v6046 = vsel %vm4455, %v6041, %v6045
    %v6048 = vshrl.u32 %v5959, 16
    %v6050 = vrot.slane %v6048, 6
    %v6051 = vshll.u32 %v5959, 16
    %v6053 = vrot.slane %v6051, 7
    %v6054 = vor.u32 %v6050, %v6053
    %v6055 = vrot.slane %v6054, 2
    %v6057 = vshll.u32 %v5960, 16
    %v6059 = vrot.slane %v6057, 7
    %v6060 = vsel %vm4455, %v6055, %v6059
    %v6062 = vshrl.u32 %v5967, 16
    %v6064 = vrot.slane %v6062, 6
    %v6065 = vshll.u32 %v5967, 16
    %v6067 = vrot.slane %v6065, 7
    %v6068 = vor.u32 %v6064, %v6067
    %v6069 = vrot.slane %v6068, 2
    %v6071 = vshll.u32 %v5968, 16
    %v6073 = vrot.slane %v6071, 7
    %v6074 = vsel %vm4455, %v6069, %v6073
    %v6076 = vshrl.u32 %v5975, 16
    %v6078 = vrot.slane %v6076, 6
    %v6079 = vshll.u32 %v5975, 16
    %v6081 = vrot.slane %v6079, 7
    %v6082 = vor.u32 %v6078, %v6081
    %v6083 = vrot.slane %v6082, 2
    %v6085 = vshll.u32 %v5976, 16
    %v6087 = vrot.slane %v6085, 7
    %v6088 = vsel %vm4455, %v6083, %v6087
    %s6089 = scalar_lea.vmem [#allocation10], 224
    %v6090 = vld [vmem:[%s6089] sm:$0xf]
    %v6091 = vld [vmem:[%s6089 + $0x4] sm:$0xf]
    %v6092 = vld [vmem:[%s6089 + $0x8] sm:$0xf]
    %v6093 = vld [vmem:[%s6089 + $0xc] sm:$0xf]
    %v6094 = vld [vmem:[%s6089 + $0x10] sm:$0xf]
    %v6095 = vld [vmem:[%s6089 + $0x14] sm:$0xf]
    %v6096 = vld [vmem:[%s6089 + $0x18] sm:$0xf]
    %v6097 = vld [vmem:[%s6089 + $0x1c] sm:$0xf]
    %v6098 = vcombine.low %v5990, %v6004
    %v6099 = vcombine.low %v6018, %v6032
    %v6101 = vunpack.c.l.s4 1983009808
    %v6102 = vunpack.c.0.s8 %v6101
    %v6103 = vlaneseq
    %v6104 = vshrl.u32 %v6103, 7
    %v6105 = vsub.s32 %v6102, %v6104
    %v6106 = vrot.slane %v6098, %v6105
    %v6108 = vunpack.c.l.s4 1983009808
    %v6109 = vunpack.c.0.s8 %v6108
    %v6110 = vlaneseq
    %v6111 = vshrl.u32 %v6110, 7
    %v6112 = vsub.s32 %v6109, %v6111
    %v6113 = vrot.slane %v6099, %v6112
    %v6114 = vcombine.low %v6106, %v6113
    %v6115 = vcombine.low %v6046, %v6060
    %v6116 = vcombine.low %v6074, %v6088
    %v6118 = vunpack.c.l.s4 1983009808
    %v6119 = vunpack.c.0.s8 %v6118
    %v6120 = vlaneseq
    %v6121 = vshrl.u32 %v6120, 7
    %v6122 = vsub.s32 %v6119, %v6121
    %v6123 = vrot.slane %v6115, %v6122
    %v6125 = vunpack.c.l.s4 1983009808
    %v6126 = vunpack.c.0.s8 %v6125
    %v6127 = vlaneseq
    %v6128 = vshrl.u32 %v6127, 7
    %v6129 = vsub.s32 %v6126, %v6128
    %v6130 = vrot.slane %v6116, %v6129
    %v6131 = vcombine.low %v6123, %v6130
    %v6140 = vunpack.c.l.b16 %v6090
    %v6141 = vunpack.c.l.b16 %v6091
    %v6142 = vunpack.c.l.b16 %v6092
    %v6143 = vunpack.c.l.b16 %v6093
    %v6144 = vunpack.c.l.b16 %v6094
    %v6145 = vunpack.c.l.b16 %v6095
    %v6146 = vunpack.c.l.b16 %v6096
    %v6147 = vunpack.c.l.b16 %v6097
    %v6148 = vpack.c.b16 %v6141, %v6140
    %v6149 = vpack.c.b16 %v6143, %v6142
    %v6150 = vpack.c.b16 %v6145, %v6144
    %v6151 = vpack.c.b16 %v6147, %v6146
    %v6157 = vsel %vm4012, %v6114, 0
    %v6160 = vsel %vm4012, %v6131, 0
    %6162 = vmatprep.subr.bf16.mxu0 0
    %6163 = vmatpush1.bf16.msra.mxu0 %v6148
    %6164 = vmatprep.subr.bf16.mxu0 0
    %6165 = vmatpush1.bf16.msra.mxu0 %v6149
    %6166 = vmatprep.subr.bf16.mxu0 0
    %6167 = vmatpush1.bf16.msra.mxu0 %v6150
    %6168 = vmatprep.subr.bf16.mxu0 0
    %6169 = vmatpush1.bf16.msra.mxu0 %v6151
    %6170 = vmatprep.subr.bf16.mxu0 0
    %6171 = vmatpush1.bf16.msra.mxu0 0
    %6172 = vmatprep.subr.bf16.mxu0 0
    %6173 = vmatpush1.bf16.msra.mxu0 0
    %6174 = vmatprep.subr.bf16.mxu0 0
    %6175 = vmatpush1.bf16.msra.mxu0 0
    %6176 = vmatprep.subr.bf16.mxu0 0
    %6177 = vmatpush1.bf16.msra.mxu0 0
    %6178 = vmatprep.subr.bf16.mxu0 0
    %6179 = vmatpush1.bf16.msra.mxu0 0
    %6180 = vmatprep.subr.bf16.mxu0 0
    %6181 = vmatpush1.bf16.msra.mxu0 0
    %6182 = vmatprep.subr.bf16.mxu0 0
    %6183 = vmatpush1.bf16.msra.mxu0 0
    %6184 = vmatprep.subr.bf16.mxu0 0
    %6185 = vmatpush1.bf16.msra.mxu0 0
    %6186 = vmatprep.subr.bf16.mxu0 0
    %6187 = vmatpush1.bf16.msra.mxu0 0
    %6188 = vmatprep.subr.bf16.mxu0 0
    %6189 = vmatpush1.bf16.msra.mxu0 0
    %6190 = vmatprep.subr.bf16.mxu0 0
    %6191 = vmatpush1.bf16.msra.mxu0 0
    %6192 = vmatprep.subr.bf16.mxu0 0
    %6193 = vmatpush1.bf16.msra.mxu0 0
    %6194 = vmatprep.mubr.bf16.mxu0 0
    %6195 = vmatmul.mubr.bf16.gmra.mrb[0].mxu0 %v6157
    %v6196 = vpop.f32.mrb[0].mxu0
    %v6197 = vadd.f32 0.0, %v6196
    %v6198 = vpop.f32.mrb[0].mxu0
    %v6199 = vpop.f32.mrb[0].mxu0
    %v6200 = vadd.f32 0.0, %v6199
    %v6201 = vpop.f32.mrb[0].mxu0
    %6202 = vmatprep.mubr.bf16.mxu0 0
    %6203 = vmatmul.mubr.bf16.gmra.mrb[0].mxu0 %v6160
    %v6204 = vpop.f32.mrb[0].mxu0
    %v6205 = vadd.f32 0.0, %v6204
    %v6206 = vpop.f32.mrb[0].mxu0
    %v6207 = vpop.f32.mrb[0].mxu0
    %v6208 = vadd.f32 0.0, %v6207
    %v6209 = vpop.f32.mrb[0].mxu0
    %6210 = vdwg.mxu0
    %v6211 = vadd.f32 %v5893, %v6197
    %v6212 = vadd.f32 %v5894, %v6200
    %v6213 = vadd.f32 %v5895, %v6205
    %v6214 = vadd.f32 %v5896, %v6208
    %v6215 = vld [vmem:[%s5754] sm:$0x6]
    %v6216 = vld [vmem:[%s5754 + $0x4] sm:$0x6]
    %v6217 = vld [vmem:[%s5754 + $0x8] sm:$0x6]
    %v6218 = vld [vmem:[%s5754 + $0xc] sm:$0x6]
    %v6219 = vld [vmem:[%s5754 + $0x18] sm:$0x6]
    %v6220 = vld [vmem:[%s5754 + $0x1c] sm:$0x6]
    %v6221 = vld [vmem:[%s5754 + $0x20] sm:$0x6]
    %v6222 = vld [vmem:[%s5754 + $0x24] sm:$0x6]
    %v6232 = vunpack.c.l.s4 1983009808
    %v6233 = vunpack.c.0.s8 %v6232
    %v6234 = vlaneseq
    %v6235 = vshrl.u32 %v6234, 7
    %v6236 = vsub.s32 %v6233, %v6235
    %v6237 = vrot.slane %v6215, %v6236
    %v6238 = vcombine.high %v6237, %v6237
    %v6240 = vunpack.c.l.s4 1983009808
    %v6241 = vunpack.c.0.s8 %v6240
    %v6242 = vlaneseq
    %v6243 = vshrl.u32 %v6242, 7
    %v6244 = vsub.s32 %v6241, %v6243
    %v6245 = vrot.slane %v6216, %v6244
    %v6246 = vcombine.high %v6245, %v6245
    %v6248 = vunpack.c.l.s4 1983009808
    %v6249 = vunpack.c.0.s8 %v6248
    %v6250 = vlaneseq
    %v6251 = vshrl.u32 %v6250, 7
    %v6252 = vsub.s32 %v6249, %v6251
    %v6253 = vrot.slane %v6217, %v6252
    %v6254 = vcombine.high %v6253, %v6253
    %v6256 = vunpack.c.l.s4 1983009808
    %v6257 = vunpack.c.0.s8 %v6256
    %v6258 = vlaneseq
    %v6259 = vshrl.u32 %v6258, 7
    %v6260 = vsub.s32 %v6257, %v6259
    %v6261 = vrot.slane %v6218, %v6260
    %v6262 = vcombine.high %v6261, %v6261
    %v6264 = vunpack.c.l.s4 1983009808
    %v6265 = vunpack.c.0.s8 %v6264
    %v6266 = vlaneseq
    %v6267 = vshrl.u32 %v6266, 7
    %v6268 = vsub.s32 %v6265, %v6267
    %v6269 = vrot.slane %v6219, %v6268
    %v6270 = vcombine.high %v6269, %v6269
    %v6272 = vunpack.c.l.s4 1983009808
    %v6273 = vunpack.c.0.s8 %v6272
    %v6274 = vlaneseq
    %v6275 = vshrl.u32 %v6274, 7
    %v6276 = vsub.s32 %v6273, %v6275
    %v6277 = vrot.slane %v6220, %v6276
    %v6278 = vcombine.high %v6277, %v6277
    %v6280 = vunpack.c.l.s4 1983009808
    %v6281 = vunpack.c.0.s8 %v6280
    %v6282 = vlaneseq
    %v6283 = vshrl.u32 %v6282, 7
    %v6284 = vsub.s32 %v6281, %v6283
    %v6285 = vrot.slane %v6221, %v6284
    %v6286 = vcombine.high %v6285, %v6285
    %v6288 = vunpack.c.l.s4 1983009808
    %v6289 = vunpack.c.0.s8 %v6288
    %v6290 = vlaneseq
    %v6291 = vshrl.u32 %v6290, 7
    %v6292 = vsub.s32 %v6289, %v6291
    %v6293 = vrot.slane %v6222, %v6292
    %v6294 = vcombine.high %v6293, %v6293
    %v6295 = vrot.slane %v6237, 7
    %v6296 = vrot.slane %v6295, 2
    %v6297 = vrot.slane %v6238, 7
    %v6298 = vsel %vm4897, %v6296, %v6297
    %v6299 = vrot.slane %v6245, 7
    %v6300 = vrot.slane %v6299, 2
    %v6301 = vrot.slane %v6246, 7
    %v6302 = vsel %vm4897, %v6300, %v6301
    %v6303 = vrot.slane %v6253, 7
    %v6304 = vrot.slane %v6303, 2
    %v6305 = vrot.slane %v6254, 7
    %v6306 = vsel %vm4897, %v6304, %v6305
    %v6307 = vrot.slane %v6261, 7
    %v6308 = vrot.slane %v6307, 2
    %v6309 = vrot.slane %v6262, 7
    %v6310 = vsel %vm4897, %v6308, %v6309
    %v6311 = vrot.slane %v6269, 7
    %v6312 = vrot.slane %v6311, 2
    %v6313 = vrot.slane %v6270, 7
    %v6314 = vsel %vm4897, %v6312, %v6313
    %v6315 = vrot.slane %v6277, 7
    %v6316 = vrot.slane %v6315, 2
    %v6317 = vrot.slane %v6278, 7
    %v6318 = vsel %vm4897, %v6316, %v6317
    %v6319 = vrot.slane %v6285, 7
    %v6320 = vrot.slane %v6319, 2
    %v6321 = vrot.slane %v6286, 7
    %v6322 = vsel %vm4897, %v6320, %v6321
    %v6323 = vrot.slane %v6293, 7
    %v6324 = vrot.slane %v6323, 2
    %v6325 = vrot.slane %v6294, 7
    %v6326 = vsel %vm4897, %v6324, %v6325
    %s6327 = scalar_lea.vmem [#allocation10], 256
    %v6328 = vld [vmem:[%s6327] sm:$0xf]
    %v6329 = vld [vmem:[%s6327 + $0x4] sm:$0xf]
    %v6330 = vld [vmem:[%s6327 + $0x8] sm:$0xf]
    %v6331 = vld [vmem:[%s6327 + $0xc] sm:$0xf]
    %v6332 = vld [vmem:[%s6327 + $0x10] sm:$0xf]
    %v6333 = vld [vmem:[%s6327 + $0x14] sm:$0xf]
    %v6334 = vld [vmem:[%s6327 + $0x18] sm:$0xf]
    %v6335 = vld [vmem:[%s6327 + $0x1c] sm:$0xf]
    %v6336 = vcombine.low %v6298, %v6302
    %v6337 = vcombine.low %v6306, %v6310
    %v6339 = vunpack.c.l.s4 1983009808
    %v6340 = vunpack.c.0.s8 %v6339
    %v6341 = vlaneseq
    %v6342 = vshrl.u32 %v6341, 7
    %v6343 = vsub.s32 %v6340, %v6342
    %v6344 = vrot.slane %v6336, %v6343
    %v6346 = vunpack.c.l.s4 1983009808
    %v6347 = vunpack.c.0.s8 %v6346
    %v6348 = vlaneseq
    %v6349 = vshrl.u32 %v6348, 7
    %v6350 = vsub.s32 %v6347, %v6349
    %v6351 = vrot.slane %v6337, %v6350
    %v6352 = vcombine.low %v6344, %v6351
    %v6353 = vcombine.low %v6314, %v6318
    %v6354 = vcombine.low %v6322, %v6326
    %v6356 = vunpack.c.l.s4 1983009808
    %v6357 = vunpack.c.0.s8 %v6356
    %v6358 = vlaneseq
    %v6359 = vshrl.u32 %v6358, 7
    %v6360 = vsub.s32 %v6357, %v6359
    %v6361 = vrot.slane %v6353, %v6360
    %v6363 = vunpack.c.l.s4 1983009808
    %v6364 = vunpack.c.0.s8 %v6363
    %v6365 = vlaneseq
    %v6366 = vshrl.u32 %v6365, 7
    %v6367 = vsub.s32 %v6364, %v6366
    %v6368 = vrot.slane %v6354, %v6367
    %v6369 = vcombine.low %v6361, %v6368
    %v6378 = vunpack.c.l.b16 %v6328
    %v6379 = vunpack.c.l.b16 %v6329
    %v6380 = vunpack.c.l.b16 %v6330
    %v6381 = vunpack.c.l.b16 %v6331
    %v6382 = vunpack.c.l.b16 %v6332
    %v6383 = vunpack.c.l.b16 %v6333
    %v6384 = vunpack.c.l.b16 %v6334
    %v6385 = vunpack.c.l.b16 %v6335
    %v6386 = vpack.c.b16 %v6379, %v6378
    %v6387 = vpack.c.b16 %v6381, %v6380
    %v6388 = vpack.c.b16 %v6383, %v6382
    %v6389 = vpack.c.b16 %v6385, %v6384
    %v6395 = vsel %vm4012, %v6352, 0
    %v6398 = vsel %vm4012, %v6369, 0
    %6400 = vmatprep.subr.bf16.mxu0 0
    %6401 = vmatpush1.bf16.msra.mxu0 %v6386
    %6402 = vmatprep.subr.bf16.mxu0 0
    %6403 = vmatpush1.bf16.msra.mxu0 %v6387
    %6404 = vmatprep.subr.bf16.mxu0 0
    %6405 = vmatpush1.bf16.msra.mxu0 %v6388
    %6406 = vmatprep.subr.bf16.mxu0 0
    %6407 = vmatpush1.bf16.msra.mxu0 %v6389
    %6408 = vmatprep.subr.bf16.mxu0 0
    %6409 = vmatpush1.bf16.msra.mxu0 0
    %6410 = vmatprep.subr.bf16.mxu0 0
    %6411 = vmatpush1.bf16.msra.mxu0 0
    %6412 = vmatprep.subr.bf16.mxu0 0
    %6413 = vmatpush1.bf16.msra.mxu0 0
    %6414 = vmatprep.subr.bf16.mxu0 0
    %6415 = vmatpush1.bf16.msra.mxu0 0
    %6416 = vmatprep.subr.bf16.mxu0 0
    %6417 = vmatpush1.bf16.msra.mxu0 0
    %6418 = vmatprep.subr.bf16.mxu0 0
    %6419 = vmatpush1.bf16.msra.mxu0 0
    %6420 = vmatprep.subr.bf16.mxu0 0
    %6421 = vmatpush1.bf16.msra.mxu0 0
    %6422 = vmatprep.subr.bf16.mxu0 0
    %6423 = vmatpush1.bf16.msra.mxu0 0
    %6424 = vmatprep.subr.bf16.mxu0 0
    %6425 = vmatpush1.bf16.msra.mxu0 0
    %6426 = vmatprep.subr.bf16.mxu0 0
    %6427 = vmatpush1.bf16.msra.mxu0 0
    %6428 = vmatprep.subr.bf16.mxu0 0
    %6429 = vmatpush1.bf16.msra.mxu0 0
    %6430 = vmatprep.subr.bf16.mxu0 0
    %6431 = vmatpush1.bf16.msra.mxu0 0
    %6432 = vmatprep.mubr.bf16.mxu0 0
    %6433 = vmatmul.mubr.bf16.gmra.mrb[0].mxu0 %v6395
    %v6434 = vpop.f32.mrb[0].mxu0
    %v6435 = vadd.f32 0.0, %v6434
    %v6436 = vpop.f32.mrb[0].mxu0
    %v6437 = vpop.f32.mrb[0].mxu0
    %v6438 = vadd.f32 0.0, %v6437
    %v6439 = vpop.f32.mrb[0].mxu0
    %6440 = vmatprep.mubr.bf16.mxu0 0
    %6441 = vmatmul.mubr.bf16.gmra.mrb[0].mxu0 %v6398
    %v6442 = vpop.f32.mrb[0].mxu0
    %v6443 = vadd.f32 0.0, %v6442
    %v6444 = vpop.f32.mrb[0].mxu0
    %v6445 = vpop.f32.mrb[0].mxu0
    %v6446 = vadd.f32 0.0, %v6445
    %v6447 = vpop.f32.mrb[0].mxu0
    %6448 = vdwg.mxu0
    %v6449 = vadd.f32 %v6211, %v6435
    %v6450 = vadd.f32 %v6212, %v6438
    %v6451 = vadd.f32 %v6213, %v6443
    %v6452 = vadd.f32 %v6214, %v6446
    %v6453 = vld [vmem:[#allocation11] sm:$0x1]
    %v6455 = vlaneseq
    %v6456 = vshrl.u32 %v6455, 7
    %v6457 = vsub.s32 0, %v6456
    %v6458 = vrot.slane %v6453, %v6457
    %v6460 = vadd.f32 %v6449, %v6458
    %v6461 = vadd.f32 %v6450, %v6458
    %v6462 = vadd.f32 %v6451, %v6458
    %v6463 = vadd.f32 %v6452, %v6458
    %v6464 = vmax.f32 %v6460, 0.0
    %v6465 = vmax.f32 %v6461, 0.0
    %v6466 = vmax.f32 %v6462, 0.0
    %v6467 = vmax.f32 %v6463, 0.0
    %v6472 = vcombine.high %v6464, %v6464
    %v6474 = vunpack.c.l.s4 1983009808
    %v6475 = vunpack.c.0.s8 %v6474
    %v6476 = vlaneseq
    %v6477 = vshrl.u32 %v6476, 7
    %v6478 = vsub.s32 %v6475, %v6477
    %v6479 = vrot.slane %v6464, %v6478
    %v6481 = vunpack.c.l.s4 1983009808
    %v6482 = vunpack.c.0.s8 %v6481
    %v6483 = vlaneseq
    %v6484 = vshrl.u32 %v6483, 7
    %v6485 = vsub.s32 %v6482, %v6484
    %v6486 = vrot.slane %v6472, %v6485
    %v6487 = vcombine.high %v6479, %v6479
    %v6488 = vcombine.high %v6486, %v6486
    %v6489 = vcombine.high %v6465, %v6465
    %v6491 = vunpack.c.l.s4 1983009808
    %v6492 = vunpack.c.0.s8 %v6491
    %v6493 = vlaneseq
    %v6494 = vshrl.u32 %v6493, 7
    %v6495 = vsub.s32 %v6492, %v6494
    %v6496 = vrot.slane %v6465, %v6495
    %v6498 = vunpack.c.l.s4 1983009808
    %v6499 = vunpack.c.0.s8 %v6498
    %v6500 = vlaneseq
    %v6501 = vshrl.u32 %v6500, 7
    %v6502 = vsub.s32 %v6499, %v6501
    %v6503 = vrot.slane %v6489, %v6502
    %v6504 = vcombine.high %v6496, %v6496
    %v6505 = vcombine.high %v6503, %v6503
    %v6506 = vcombine.high %v6466, %v6466
    %v6508 = vunpack.c.l.s4 1983009808
    %v6509 = vunpack.c.0.s8 %v6508
    %v6510 = vlaneseq
    %v6511 = vshrl.u32 %v6510, 7
    %v6512 = vsub.s32 %v6509, %v6511
    %v6513 = vrot.slane %v6466, %v6512
    %v6515 = vunpack.c.l.s4 1983009808
    %v6516 = vunpack.c.0.s8 %v6515
    %v6517 = vlaneseq
    %v6518 = vshrl.u32 %v6517, 7
    %v6519 = vsub.s32 %v6516, %v6518
    %v6520 = vrot.slane %v6506, %v6519
    %v6521 = vcombine.high %v6513, %v6513
    %v6522 = vcombine.high %v6520, %v6520
    %v6523 = vcombine.high %v6467, %v6467
    %v6525 = vunpack.c.l.s4 1983009808
    %v6526 = vunpack.c.0.s8 %v6525
    %v6527 = vlaneseq
    %v6528 = vshrl.u32 %v6527, 7
    %v6529 = vsub.s32 %v6526, %v6528
    %v6530 = vrot.slane %v6467, %v6529
    %v6532 = vunpack.c.l.s4 1983009808
    %v6533 = vunpack.c.0.s8 %v6532
    %v6534 = vlaneseq
    %v6535 = vshrl.u32 %v6534, 7
    %v6536 = vsub.s32 %v6533, %v6535
    %v6537 = vrot.slane %v6523, %v6536
    %v6538 = vcombine.high %v6530, %v6530
    %v6539 = vcombine.high %v6537, %v6537
    %v6556 = vsel %vm829, %v6479, -inf
    %v6557 = vrot.slane %v6556, 4
    %v6558 = vmax.f32 %v6556, %v6557
    %v6559 = vrot.slane %v6558, 2
    %v6560 = vmax.f32 %v6558, %v6559
    %v6561 = vrot.slane %v6560, 1
    %v6562 = vmax.f32 %v6560, %v6561
    %v6563 = vsel %vm829, %v6487, -inf
    %v6564 = vrot.slane %v6563, 4
    %v6565 = vmax.f32 %v6563, %v6564
    %v6566 = vrot.slane %v6565, 2
    %v6567 = vmax.f32 %v6565, %v6566
    %v6568 = vrot.slane %v6567, 1
    %v6569 = vmax.f32 %v6567, %v6568
    %v6570 = vsel %vm829, %v6486, -inf
    %v6571 = vrot.slane %v6570, 4
    %v6572 = vmax.f32 %v6570, %v6571
    %v6573 = vrot.slane %v6572, 2
    %v6574 = vmax.f32 %v6572, %v6573
    %v6575 = vrot.slane %v6574, 1
    %v6576 = vmax.f32 %v6574, %v6575
    %v6577 = vsel %vm829, %v6488, -inf
    %v6578 = vrot.slane %v6577, 4
    %v6579 = vmax.f32 %v6577, %v6578
    %v6580 = vrot.slane %v6579, 2
    %v6581 = vmax.f32 %v6579, %v6580
    %v6582 = vrot.slane %v6581, 1
    %v6583 = vmax.f32 %v6581, %v6582
    %v6584 = vsel %vm829, %v6496, -inf
    %v6585 = vrot.slane %v6584, 4
    %v6586 = vmax.f32 %v6584, %v6585
    %v6587 = vrot.slane %v6586, 2
    %v6588 = vmax.f32 %v6586, %v6587
    %v6589 = vrot.slane %v6588, 1
    %v6590 = vmax.f32 %v6588, %v6589
    %v6591 = vsel %vm829, %v6504, -inf
    %v6592 = vrot.slane %v6591, 4
    %v6593 = vmax.f32 %v6591, %v6592
    %v6594 = vrot.slane %v6593, 2
    %v6595 = vmax.f32 %v6593, %v6594
    %v6596 = vrot.slane %v6595, 1
    %v6597 = vmax.f32 %v6595, %v6596
    %v6598 = vsel %vm829, %v6503, -inf
    %v6599 = vrot.slane %v6598, 4
    %v6600 = vmax.f32 %v6598, %v6599
    %v6601 = vrot.slane %v6600, 2
    %v6602 = vmax.f32 %v6600, %v6601
    %v6603 = vrot.slane %v6602, 1
    %v6604 = vmax.f32 %v6602, %v6603
    %v6605 = vsel %vm829, %v6505, -inf
    %v6606 = vrot.slane %v6605, 4
    %v6607 = vmax.f32 %v6605, %v6606
    %v6608 = vrot.slane %v6607, 2
    %v6609 = vmax.f32 %v6607, %v6608
    %v6610 = vrot.slane %v6609, 1
    %v6611 = vmax.f32 %v6609, %v6610
    %v6612 = vsel %vm829, %v6513, -inf
    %v6613 = vrot.slane %v6612, 4
    %v6614 = vmax.f32 %v6612, %v6613
    %v6615 = vrot.slane %v6614, 2
    %v6616 = vmax.f32 %v6614, %v6615
    %v6617 = vrot.slane %v6616, 1
    %v6618 = vmax.f32 %v6616, %v6617
    %v6619 = vsel %vm829, %v6521, -inf
    %v6620 = vrot.slane %v6619, 4
    %v6621 = vmax.f32 %v6619, %v6620
    %v6622 = vrot.slane %v6621, 2
    %v6623 = vmax.f32 %v6621, %v6622
    %v6624 = vrot.slane %v6623, 1
    %v6625 = vmax.f32 %v6623, %v6624
    %v6626 = vsel %vm829, %v6520, -inf
    %v6627 = vrot.slane %v6626, 4
    %v6628 = vmax.f32 %v6626, %v6627
    %v6629 = vrot.slane %v6628, 2
    %v6630 = vmax.f32 %v6628, %v6629
    %v6631 = vrot.slane %v6630, 1
    %v6632 = vmax.f32 %v6630, %v6631
    %v6633 = vsel %vm829, %v6522, -inf
    %v6634 = vrot.slane %v6633, 4
    %v6635 = vmax.f32 %v6633, %v6634
    %v6636 = vrot.slane %v6635, 2
    %v6637 = vmax.f32 %v6635, %v6636
    %v6638 = vrot.slane %v6637, 1
    %v6639 = vmax.f32 %v6637, %v6638
    %v6640 = vsel %vm829, %v6530, -inf
    %v6641 = vrot.slane %v6640, 4
    %v6642 = vmax.f32 %v6640, %v6641
    %v6643 = vrot.slane %v6642, 2
    %v6644 = vmax.f32 %v6642, %v6643
    %v6645 = vrot.slane %v6644, 1
    %v6646 = vmax.f32 %v6644, %v6645
    %v6647 = vsel %vm829, %v6538, -inf
    %v6648 = vrot.slane %v6647, 4
    %v6649 = vmax.f32 %v6647, %v6648
    %v6650 = vrot.slane %v6649, 2
    %v6651 = vmax.f32 %v6649, %v6650
    %v6652 = vrot.slane %v6651, 1
    %v6653 = vmax.f32 %v6651, %v6652
    %v6654 = vsel %vm829, %v6537, -inf
    %v6655 = vrot.slane %v6654, 4
    %v6656 = vmax.f32 %v6654, %v6655
    %v6657 = vrot.slane %v6656, 2
    %v6658 = vmax.f32 %v6656, %v6657
    %v6659 = vrot.slane %v6658, 1
    %v6660 = vmax.f32 %v6658, %v6659
    %v6661 = vsel %vm829, %v6539, -inf
    %v6662 = vrot.slane %v6661, 4
    %v6663 = vmax.f32 %v6661, %v6662
    %v6664 = vrot.slane %v6663, 2
    %v6665 = vmax.f32 %v6663, %v6664
    %v6666 = vrot.slane %v6665, 1
    %v6667 = vmax.f32 %v6665, %v6666
    %v6668 = vmax.f32 %v6562, %v6576
    %v6669 = vmax.f32 %v6569, %v6583
    %v6670 = vmax.f32 %v6590, %v6604
    %v6671 = vmax.f32 %v6597, %v6611
    %v6672 = vmax.f32 %v6618, %v6632
    %v6673 = vmax.f32 %v6625, %v6639
    %v6674 = vmax.f32 %v6646, %v6660
    %v6675 = vmax.f32 %v6653, %v6667
    %v6676 = vpack.c.bf16 %v6668, %v6668
    %v6677 = vpack.c.bf16 %v6669, %v6669
    %v6678 = vpack.c.bf16 %v6670, %v6670
    %v6679 = vpack.c.bf16 %v6671, %v6671
    %v6680 = vpack.c.bf16 %v6672, %v6672
    %v6681 = vpack.c.bf16 %v6673, %v6673
    %v6682 = vpack.c.bf16 %v6674, %v6674
    %v6683 = vpack.c.bf16 %v6675, %v6675
    %6684 = vst [vmem:[#allocation4] sm:$0x3] 0
    %6685 = vst [vmem:[#allocation4 + $0x2] sm:$0x3] 0
    %6686 = vst [vmem:[#allocation4 + $0x4] sm:$0x3] 0
    %6687 = vst [vmem:[#allocation4 + $0x6] sm:$0x3] 0
    %6688 = vst [vmem:[#allocation4 + $0x8] sm:$0x3] 0
    %6689 = vst [vmem:[#allocation4 + $0xa] sm:$0x3] 0
    %6690 = vst [vmem:[#allocation4 + $0xc] sm:$0x3] 0
    %6691 = vst [vmem:[#allocation4 + $0xe] sm:$0x3] 0
    %v6701 = vunpack.c.l.s4 1983009808
    %v6702 = vunpack.c.0.s8 %v6701
    %v6703 = vlaneseq
    %v6704 = vshrl.u32 %v6703, 7
    %v6705 = vsub.s32 %v6702, %v6704
    %v6706 = vrot.slane %v6676, %v6705
    %v6708 = vunpack.c.l.s4 1983009808
    %v6709 = vunpack.c.0.s8 %v6708
    %v6710 = vlaneseq
    %v6711 = vshrl.u32 %v6710, 7
    %v6712 = vsub.s32 %v6709, %v6711
    %v6713 = vrot.slane %v6677, %v6712
    %v6715 = vunpack.c.l.s4 1983009808
    %v6716 = vunpack.c.0.s8 %v6715
    %v6717 = vlaneseq
    %v6718 = vshrl.u32 %v6717, 7
    %v6719 = vsub.s32 %v6716, %v6718
    %v6720 = vrot.slane %v6678, %v6719
    %v6722 = vunpack.c.l.s4 1983009808
    %v6723 = vunpack.c.0.s8 %v6722
    %v6724 = vlaneseq
    %v6725 = vshrl.u32 %v6724, 7
    %v6726 = vsub.s32 %v6723, %v6725
    %v6727 = vrot.slane %v6679, %v6726
    %v6729 = vunpack.c.l.s4 1983009808
    %v6730 = vunpack.c.0.s8 %v6729
    %v6731 = vlaneseq
    %v6732 = vshrl.u32 %v6731, 7
    %v6733 = vsub.s32 %v6730, %v6732
    %v6734 = vrot.slane %v6680, %v6733
    %v6736 = vunpack.c.l.s4 1983009808
    %v6737 = vunpack.c.0.s8 %v6736
    %v6738 = vlaneseq
    %v6739 = vshrl.u32 %v6738, 7
    %v6740 = vsub.s32 %v6737, %v6739
    %v6741 = vrot.slane %v6681, %v6740
    %v6743 = vunpack.c.l.s4 1983009808
    %v6744 = vunpack.c.0.s8 %v6743
    %v6745 = vlaneseq
    %v6746 = vshrl.u32 %v6745, 7
    %v6747 = vsub.s32 %v6744, %v6746
    %v6748 = vrot.slane %v6682, %v6747
    %v6750 = vunpack.c.l.s4 1983009808
    %v6751 = vunpack.c.0.s8 %v6750
    %v6752 = vlaneseq
    %v6753 = vshrl.u32 %v6752, 7
    %v6754 = vsub.s32 %v6751, %v6753
    %v6755 = vrot.slane %v6683, %v6754
    %v6757 = vunpack.c.l.s4 1983009808
    %v6758 = vunpack.c.0.s8 %v6757
    %v6759 = vlaneseq
    %v6760 = vshrl.u32 %v6759, 7
    %v6761 = vsub.s32 %v6758, %v6760
    %v6762 = vrot.slane %v6706, %v6761
    %v6764 = vunpack.c.l.s4 1983009808
    %v6765 = vunpack.c.0.s8 %v6764
    %v6766 = vlaneseq
    %v6767 = vshrl.u32 %v6766, 7
    %v6768 = vsub.s32 %v6765, %v6767
    %v6769 = vrot.slane %v6713, %v6768
    %v6771 = vunpack.c.l.s4 1983009808
    %v6772 = vunpack.c.0.s8 %v6771
    %v6773 = vlaneseq
    %v6774 = vshrl.u32 %v6773, 7
    %v6775 = vsub.s32 %v6772, %v6774
    %v6776 = vrot.slane %v6720, %v6775
    %v6778 = vunpack.c.l.s4 1983009808
    %v6779 = vunpack.c.0.s8 %v6778
    %v6780 = vlaneseq
    %v6781 = vshrl.u32 %v6780, 7
    %v6782 = vsub.s32 %v6779, %v6781
    %v6783 = vrot.slane %v6727, %v6782
    %v6785 = vunpack.c.l.s4 1983009808
    %v6786 = vunpack.c.0.s8 %v6785
    %v6787 = vlaneseq
    %v6788 = vshrl.u32 %v6787, 7
    %v6789 = vsub.s32 %v6786, %v6788
    %v6790 = vrot.slane %v6734, %v6789
    %v6792 = vunpack.c.l.s4 1983009808
    %v6793 = vunpack.c.0.s8 %v6792
    %v6794 = vlaneseq
    %v6795 = vshrl.u32 %v6794, 7
    %v6796 = vsub.s32 %v6793, %v6795
    %v6797 = vrot.slane %v6741, %v6796
    %v6799 = vunpack.c.l.s4 1983009808
    %v6800 = vunpack.c.0.s8 %v6799
    %v6801 = vlaneseq
    %v6802 = vshrl.u32 %v6801, 7
    %v6803 = vsub.s32 %v6800, %v6802
    %v6804 = vrot.slane %v6748, %v6803
    %v6806 = vunpack.c.l.s4 1983009808
    %v6807 = vunpack.c.0.s8 %v6806
    %v6808 = vlaneseq
    %v6809 = vshrl.u32 %v6808, 7
    %v6810 = vsub.s32 %v6807, %v6809
    %v6811 = vrot.slane %v6755, %v6810
    %v6812 = vunpack.c.l.b16 %v6762
    %v6813 = vunpack.c.l.b16 %v6769
    %v6814 = vunpack.c.l.b16 %v6776
    %v6815 = vunpack.c.l.b16 %v6783
    %v6816 = vunpack.c.l.b16 %v6790
    %v6817 = vunpack.c.l.b16 %v6797
    %v6818 = vunpack.c.l.b16 %v6804
    %v6819 = vunpack.c.l.b16 %v6811
    %v6820 = vrot.slane %v6812, 7
    %v6821 = vrot.slane %v6813, 6
    %v6822 = vsel %vm4282, %v6821, %v6820
    %v6823 = vrot.slane %v6814, 7
    %v6824 = vrot.slane %v6815, 6
    %v6825 = vsel %vm4282, %v6824, %v6823
    %v6826 = vrot.slane %v6816, 7
    %v6827 = vrot.slane %v6817, 6
    %v6828 = vsel %vm4282, %v6827, %v6826
    %v6829 = vrot.slane %v6818, 7
    %v6830 = vrot.slane %v6819, 6
    %v6831 = vsel %vm4282, %v6830, %v6829
    %v6832 = vpack.c.b16 %v6822, %v6822
    %v6833 = vpack.c.b16 %v6825, %v6825
    %v6834 = vpack.c.b16 %v6828, %v6828
    %v6835 = vpack.c.b16 %v6831, %v6831
    %v6837 = vunpack.c.l.s4 1983009808
    %v6838 = vunpack.c.0.s8 %v6837
    %v6839 = vlaneseq
    %v6840 = vshrl.u32 %v6839, 7
    %v6841 = vsub.s32 %v6838, %v6840
    %v6842 = vrot.slane %v6832, %v6841
    %v6844 = vunpack.c.l.s4 1983009808
    %v6845 = vunpack.c.0.s8 %v6844
    %v6846 = vlaneseq
    %v6847 = vshrl.u32 %v6846, 7
    %v6848 = vsub.s32 %v6845, %v6847
    %v6849 = vrot.slane %v6833, %v6848
    %v6851 = vunpack.c.l.s4 1983009808
    %v6852 = vunpack.c.0.s8 %v6851
    %v6853 = vlaneseq
    %v6854 = vshrl.u32 %v6853, 7
    %v6855 = vsub.s32 %v6852, %v6854
    %v6856 = vrot.slane %v6834, %v6855
    %v6858 = vunpack.c.l.s4 1983009808
    %v6859 = vunpack.c.0.s8 %v6858
    %v6860 = vlaneseq
    %v6861 = vshrl.u32 %v6860, 7
    %v6862 = vsub.s32 %v6859, %v6861
    %v6863 = vrot.slane %v6835, %v6862
    %s6868 = scalar_lea.vmem [#allocation4], 2
    %vm6869 = vcmask 1041408
    %vm6870 = vsmask.f32 1282
    %vm6871 = vmand %vm6869, %vm6870
    %v6872 = vld [vmem:[%s6868] sm:$0x3]
    %v6873 = vsel %vm6871, %v6842, %v6872
    %6874 = vst [vmem:[%s6868] sm:$0x3] %v6873
    %v6875 = vld [vmem:[%s6868 + $0x2] sm:$0x3]
    %v6876 = vsel %vm6871, %v6849, %v6875
    %6877 = vst [vmem:[%s6868 + $0x2] sm:$0x3] %v6876
    %v6878 = vld [vmem:[%s6868 + $0x8] sm:$0x3]
    %v6879 = vsel %vm6871, %v6856, %v6878
    %6880 = vst [vmem:[%s6868 + $0x8] sm:$0x3] %v6879
    %v6881 = vld [vmem:[%s6868 + $0xa] sm:$0x3]
    %v6882 = vsel %vm6871, %v6863, %v6881
    %6883 = vst [vmem:[%s6868 + $0xa] sm:$0x3] %v6882
    %v6884 = vld [vmem:[#allocation4] sm:$0x1]
    %v6885 = vld [vmem:[#allocation4 + $0x2] sm:$0x1]
    %v6886 = vld [vmem:[#allocation4 + $0x8] sm:$0x1]
    %v6887 = vld [vmem:[#allocation4 + $0xa] sm:$0x1]
    %v6888 = vld [vmem:[#allocation13] sm:$0xff]
    %v6889 = vld [vmem:[#allocation13 + $0x8] sm:$0xff]
    %v6890 = vld [vmem:[#allocation13 + $0x10] sm:$0xff]
    %v6891 = vld [vmem:[#allocation13 + $0x18] sm:$0xff]
    %v6892 = vld [vmem:[#allocation13 + $0x20] sm:$0xff]
    %v6893 = vld [vmem:[#allocation13 + $0x28] sm:$0xff]
    %v6894 = vld [vmem:[#allocation13 + $0x30] sm:$0xff]
    %v6895 = vld [vmem:[#allocation13 + $0x38] sm:$0xff]
    %v6896 = vld [vmem:[#allocation13 + $0x40] sm:$0xff]
    %v6897 = vld [vmem:[#allocation13 + $0x48] sm:$0xff]
    %v6898 = vld [vmem:[#allocation13 + $0x50] sm:$0xff]
    %v6899 = vld [vmem:[#allocation13 + $0x58] sm:$0xff]
    %v6900 = vld [vmem:[#allocation13 + $0x60] sm:$0xff]
    %v6901 = vld [vmem:[#allocation13 + $0x68] sm:$0xff]
    %v6902 = vld [vmem:[#allocation13 + $0x70] sm:$0xff]
    %v6903 = vld [vmem:[#allocation13 + $0x78] sm:$0xff]
    %v6904 = vld [vmem:[#allocation13 + $0x80] sm:$0xff]
    %v6905 = vld [vmem:[#allocation13 + $0x88] sm:$0xff]
    %v6906 = vld [vmem:[#allocation13 + $0x90] sm:$0xff]
    %v6907 = vld [vmem:[#allocation13 + $0x98] sm:$0xff]
    %v6908 = vld [vmem:[#allocation13 + $0xa0] sm:$0xff]
    %v6909 = vld [vmem:[#allocation13 + $0xa8] sm:$0xff]
    %v6910 = vld [vmem:[#allocation13 + $0xb0] sm:$0xff]
    %v6911 = vld [vmem:[#allocation13 + $0xb8] sm:$0xff]
    %v6912 = vld [vmem:[#allocation13 + $0xc0] sm:$0xff]
    %v6913 = vld [vmem:[#allocation13 + $0xc8] sm:$0xff]
    %v6914 = vld [vmem:[#allocation13 + $0xd0] sm:$0xff]
    %v6915 = vld [vmem:[#allocation13 + $0xd8] sm:$0xff]
    %v6916 = vld [vmem:[#allocation13 + $0xe0] sm:$0xff]
    %v6917 = vld [vmem:[#allocation13 + $0xe8] sm:$0xff]
    %v6918 = vld [vmem:[#allocation13 + $0xf0] sm:$0xff]
    %v6919 = vld [vmem:[#allocation13 + $0xf8] sm:$0xff]
    %v6920 = vld [vmem:[#allocation4] sm:$0x3]
    %v6921 = vld [vmem:[#allocation4 + $0x2] sm:$0x3]
    %v6922 = vld [vmem:[#allocation4 + $0x8] sm:$0x3]
    %v6923 = vld [vmem:[#allocation4 + $0xa] sm:$0x3]
    %v6929 = vunpack.c.l.s4 1966171168
    %v6930 = vunpack.c.0.s8 %v6929
    %v6931 = vlaneseq
    %v6932 = vshrl.u32 %v6931, 7
    %v6933 = vsub.s32 %v6930, %v6932
    %v6934 = vrot.slane %v6920, %v6933
    %v6935 = vcombine.high %v6934, %v6934
    %v6937 = vunpack.c.l.s4 1966171168
    %v6938 = vunpack.c.0.s8 %v6937
    %v6939 = vlaneseq
    %v6940 = vshrl.u32 %v6939, 7
    %v6941 = vsub.s32 %v6938, %v6940
    %v6942 = vrot.slane %v6921, %v6941
    %v6943 = vcombine.high %v6942, %v6942
    %v6945 = vunpack.c.l.s4 1966171168
    %v6946 = vunpack.c.0.s8 %v6945
    %v6947 = vlaneseq
    %v6948 = vshrl.u32 %v6947, 7
    %v6949 = vsub.s32 %v6946, %v6948
    %v6950 = vrot.slane %v6922, %v6949
    %v6951 = vcombine.high %v6950, %v6950
    %v6953 = vunpack.c.l.s4 1966171168
    %v6954 = vunpack.c.0.s8 %v6953
    %v6955 = vlaneseq
    %v6956 = vshrl.u32 %v6955, 7
    %v6957 = vsub.s32 %v6954, %v6956
    %v6958 = vrot.slane %v6923, %v6957
    %v6959 = vcombine.high %v6958, %v6958
    %vm6960 = vsmask.f32 1284
    %vm6961 = vmor %vm423, %vm6960
    %vm6962 = vsmask.f32 2312
    %vm6963 = vmor %vm6961, %vm6962
    %vm6964 = vsmask.f32 3340
    %vm6965 = vmor %vm6963, %vm6964
    %vm6966 = vsmask.f32 4368
    %vm6967 = vmor %vm6965, %vm6966
    %vm6968 = vsmask.f32 5396
    %vm6969 = vmor %vm6967, %vm6968
    %vm6970 = vsmask.f32 6424
    %vm6971 = vmor %vm6969, %vm6970
    %vm6972 = vsmask.f32 7452
    %vm6973 = vmor %vm6971, %vm6972
    %v6975 = vshrl.u32 %v6934, 16
    %v6977 = vrot.slane %v6975, 7
    %v6978 = vrot.slane %v6977, 1
    %v6980 = vshll.u32 %v6935, 16
    %v6982 = vsel %vm6973, %v6978, %v6980
    %v6984 = vshrl.u32 %v6942, 16
    %v6986 = vrot.slane %v6984, 7
    %v6987 = vrot.slane %v6986, 1
    %v6989 = vshll.u32 %v6943, 16
    %v6991 = vsel %vm6973, %v6987, %v6989
    %v6993 = vshrl.u32 %v6950, 16
    %v6995 = vrot.slane %v6993, 7
    %v6996 = vrot.slane %v6995, 1
    %v6998 = vshll.u32 %v6951, 16
    %v7000 = vsel %vm6973, %v6996, %v6998
    %v7002 = vshrl.u32 %v6958, 16
    %v7004 = vrot.slane %v7002, 7
    %v7005 = vrot.slane %v7004, 1
    %v7007 = vshll.u32 %v6959, 16
    %v7009 = vsel %vm6973, %v7005, %v7007
    %s7010 = scalar_lea.vmem [#allocation13], 256
    %v7011 = vld [vmem:[%s7010] sm:$0xff]
    %v7012 = vld [vmem:[%s7010 + $0x8] sm:$0xff]
    %v7013 = vld [vmem:[%s7010 + $0x10] sm:$0xff]
    %v7014 = vld [vmem:[%s7010 + $0x18] sm:$0xff]
    %v7015 = vld [vmem:[%s7010 + $0x20] sm:$0xff]
    %v7016 = vld [vmem:[%s7010 + $0x28] sm:$0xff]
    %v7017 = vld [vmem:[%s7010 + $0x30] sm:$0xff]
    %v7018 = vld [vmem:[%s7010 + $0x38] sm:$0xff]
    %v7019 = vld [vmem:[%s7010 + $0x40] sm:$0xff]
    %v7020 = vld [vmem:[%s7010 + $0x48] sm:$0xff]
    %v7021 = vld [vmem:[%s7010 + $0x50] sm:$0xff]
    %v7022 = vld [vmem:[%s7010 + $0x58] sm:$0xff]
    %v7023 = vld [vmem:[%s7010 + $0x60] sm:$0xff]
    %v7024 = vld [vmem:[%s7010 + $0x68] sm:$0xff]
    %v7025 = vld [vmem:[%s7010 + $0x70] sm:$0xff]
    %v7026 = vld [vmem:[%s7010 + $0x78] sm:$0xff]
    %v7027 = vld [vmem:[%s7010 + $0x80] sm:$0xff]
    %v7028 = vld [vmem:[%s7010 + $0x88] sm:$0xff]
    %v7029 = vld [vmem:[%s7010 + $0x90] sm:$0xff]
    %v7030 = vld [vmem:[%s7010 + $0x98] sm:$0xff]
    %v7031 = vld [vmem:[%s7010 + $0xa0] sm:$0xff]
    %v7032 = vld [vmem:[%s7010 + $0xa8] sm:$0xff]
    %v7033 = vld [vmem:[%s7010 + $0xb0] sm:$0xff]
    %v7034 = vld [vmem:[%s7010 + $0xb8] sm:$0xff]
    %v7035 = vld [vmem:[%s7010 + $0xc0] sm:$0xff]
    %v7036 = vld [vmem:[%s7010 + $0xc8] sm:$0xff]
    %v7037 = vld [vmem:[%s7010 + $0xd0] sm:$0xff]
    %v7038 = vld [vmem:[%s7010 + $0xd8] sm:$0xff]
    %v7039 = vld [vmem:[%s7010 + $0xe0] sm:$0xff]
    %v7040 = vld [vmem:[%s7010 + $0xe8] sm:$0xff]
    %v7041 = vld [vmem:[%s7010 + $0xf0] sm:$0xff]
    %v7042 = vld [vmem:[%s7010 + $0xf8] sm:$0xff]
    %v7043 = vcombine.low %v6982, %v6991
    %v7044 = vcombine.low %v7000, %v7009
    %v7046 = vunpack.c.l.s4 1966171168
    %v7047 = vunpack.c.0.s8 %v7046
    %v7048 = vlaneseq
    %v7049 = vshrl.u32 %v7048, 7
    %v7050 = vsub.s32 %v7047, %v7049
    %v7051 = vrot.slane %v7043, %v7050
    %v7053 = vunpack.c.l.s4 1966171168
    %v7054 = vunpack.c.0.s8 %v7053
    %v7055 = vlaneseq
    %v7056 = vshrl.u32 %v7055, 7
    %v7057 = vsub.s32 %v7054, %v7056
    %v7058 = vrot.slane %v7044, %v7057
    %v7059 = vcombine.low %v7051, %v7058
    %v7061 = vunpack.c.l.s4 1966171168
    %v7062 = vunpack.c.0.s8 %v7061
    %v7063 = vlaneseq
    %v7064 = vshrl.u32 %v7063, 7
    %v7065 = vsub.s32 %v7062, %v7064
    %v7066 = vrot.slane %v7059, %v7065
    %v7100 = vunpack.c.l.b16 %v7011
    %v7101 = vunpack.c.h.b16 %v7011
    %v7102 = vunpack.c.l.b16 %v7012
    %v7103 = vunpack.c.h.b16 %v7012
    %v7104 = vunpack.c.l.b16 %v7013
    %v7105 = vunpack.c.h.b16 %v7013
    %v7106 = vunpack.c.l.b16 %v7014
    %v7107 = vunpack.c.h.b16 %v7014
    %v7108 = vunpack.c.l.b16 %v7015
    %v7109 = vunpack.c.h.b16 %v7015
    %v7110 = vunpack.c.l.b16 %v7016
    %v7111 = vunpack.c.h.b16 %v7016
    %v7112 = vunpack.c.l.b16 %v7017
    %v7113 = vunpack.c.h.b16 %v7017
    %v7114 = vunpack.c.l.b16 %v7018
    %v7115 = vunpack.c.h.b16 %v7018
    %v7116 = vunpack.c.l.b16 %v7019
    %v7117 = vunpack.c.h.b16 %v7019
    %v7118 = vunpack.c.l.b16 %v7020
    %v7119 = vunpack.c.h.b16 %v7020
    %v7120 = vunpack.c.l.b16 %v7021
    %v7121 = vunpack.c.h.b16 %v7021
    %v7122 = vunpack.c.l.b16 %v7022
    %v7123 = vunpack.c.h.b16 %v7022
    %v7124 = vunpack.c.l.b16 %v7023
    %v7125 = vunpack.c.h.b16 %v7023
    %v7126 = vunpack.c.l.b16 %v7024
    %v7127 = vunpack.c.h.b16 %v7024
    %v7128 = vunpack.c.l.b16 %v7025
    %v7129 = vunpack.c.h.b16 %v7025
    %v7130 = vunpack.c.l.b16 %v7026
    %v7131 = vunpack.c.h.b16 %v7026
    %v7132 = vunpack.c.l.b16 %v7027
    %v7133 = vunpack.c.h.b16 %v7027
    %v7134 = vunpack.c.l.b16 %v7028
    %v7135 = vunpack.c.h.b16 %v7028
    %v7136 = vunpack.c.l.b16 %v7029
    %v7137 = vunpack.c.h.b16 %v7029
    %v7138 = vunpack.c.l.b16 %v7030
    %v7139 = vunpack.c.h.b16 %v7030
    %v7140 = vunpack.c.l.b16 %v7031
    %v7141 = vunpack.c.h.b16 %v7031
    %v7142 = vunpack.c.l.b16 %v7032
    %v7143 = vunpack.c.h.b16 %v7032
    %v7144 = vunpack.c.l.b16 %v7033
    %v7145 = vunpack.c.h.b16 %v7033
    %v7146 = vunpack.c.l.b16 %v7034
    %v7147 = vunpack.c.h.b16 %v7034
    %v7148 = vunpack.c.l.b16 %v7035
    %v7149 = vunpack.c.h.b16 %v7035
    %v7150 = vunpack.c.l.b16 %v7036
    %v7151 = vunpack.c.h.b16 %v7036
    %v7152 = vunpack.c.l.b16 %v7037
    %v7153 = vunpack.c.h.b16 %v7037
    %v7154 = vunpack.c.l.b16 %v7038
    %v7155 = vunpack.c.h.b16 %v7038
    %v7156 = vunpack.c.l.b16 %v7039
    %v7157 = vunpack.c.h.b16 %v7039
    %v7158 = vunpack.c.l.b16 %v7040
    %v7159 = vunpack.c.h.b16 %v7040
    %v7160 = vunpack.c.l.b16 %v7041
    %v7161 = vunpack.c.h.b16 %v7041
    %v7162 = vunpack.c.l.b16 %v7042
    %v7163 = vunpack.c.h.b16 %v7042
    %v7164 = vpack.c.b16 %v7104, %v7100
    %v7165 = vpack.c.b16 %v7105, %v7101
    %v7166 = vpack.c.b16 %v7106, %v7102
    %v7167 = vpack.c.b16 %v7107, %v7103
    %v7168 = vpack.c.b16 %v7112, %v7108
    %v7169 = vpack.c.b16 %v7113, %v7109
    %v7170 = vpack.c.b16 %v7114, %v7110
    %v7171 = vpack.c.b16 %v7115, %v7111
    %v7172 = vpack.c.b16 %v7120, %v7116
    %v7173 = vpack.c.b16 %v7121, %v7117
    %v7174 = vpack.c.b16 %v7122, %v7118
    %v7175 = vpack.c.b16 %v7123, %v7119
    %v7176 = vpack.c.b16 %v7128, %v7124
    %v7177 = vpack.c.b16 %v7129, %v7125
    %v7178 = vpack.c.b16 %v7130, %v7126
    %v7179 = vpack.c.b16 %v7131, %v7127
    %v7180 = vpack.c.b16 %v7136, %v7132
    %v7181 = vpack.c.b16 %v7137, %v7133
    %v7182 = vpack.c.b16 %v7138, %v7134
    %v7183 = vpack.c.b16 %v7139, %v7135
    %v7184 = vpack.c.b16 %v7144, %v7140
    %v7185 = vpack.c.b16 %v7145, %v7141
    %v7186 = vpack.c.b16 %v7146, %v7142
    %v7187 = vpack.c.b16 %v7147, %v7143
    %v7188 = vpack.c.b16 %v7152, %v7148
    %v7189 = vpack.c.b16 %v7153, %v7149
    %v7190 = vpack.c.b16 %v7154, %v7150
    %v7191 = vpack.c.b16 %v7155, %v7151
    %v7192 = vpack.c.b16 %v7160, %v7156
    %v7193 = vpack.c.b16 %v7161, %v7157
    %v7194 = vpack.c.b16 %v7162, %v7158
    %v7195 = vpack.c.b16 %v7163, %v7159
    %7228 = vmatprep.subr.bf16.mxu0 %v7165
    %7229 = vmatpush1.bf16.msra.mxu0 %v7164
    %7230 = vmatprep.subr.bf16.mxu0 %v7169
    %7231 = vmatpush1.bf16.msra.mxu0 %v7168
    %7232 = vmatprep.subr.bf16.mxu0 %v7173
    %7233 = vmatpush1.bf16.msra.mxu0 %v7172
    %7234 = vmatprep.subr.bf16.mxu0 %v7177
    %7235 = vmatpush1.bf16.msra.mxu0 %v7176
    %7236 = vmatprep.subr.bf16.mxu0 %v7181
    %7237 = vmatpush1.bf16.msra.mxu0 %v7180
    %7238 = vmatprep.subr.bf16.mxu0 %v7185
    %7239 = vmatpush1.bf16.msra.mxu0 %v7184
    %7240 = vmatprep.subr.bf16.mxu0 %v7189
    %7241 = vmatpush1.bf16.msra.mxu0 %v7188
    %7242 = vmatprep.subr.bf16.mxu0 %v7193
    %7243 = vmatpush1.bf16.msra.mxu0 %v7192
    %7244 = vmatprep.subr.bf16.mxu0 0
    %7245 = vmatpush1.bf16.msra.mxu0 0
    %7246 = vmatprep.subr.bf16.mxu0 0
    %7247 = vmatpush1.bf16.msra.mxu0 0
    %7248 = vmatprep.subr.bf16.mxu0 0
    %7249 = vmatpush1.bf16.msra.mxu0 0
    %7250 = vmatprep.subr.bf16.mxu0 0
    %7251 = vmatpush1.bf16.msra.mxu0 0
    %7252 = vmatprep.subr.bf16.mxu0 0
    %7253 = vmatpush1.bf16.msra.mxu0 0
    %7254 = vmatprep.subr.bf16.mxu0 0
    %7255 = vmatpush1.bf16.msra.mxu0 0
    %7256 = vmatprep.subr.bf16.mxu0 0
    %7257 = vmatpush1.bf16.msra.mxu0 0
    %7258 = vmatprep.subr.bf16.mxu0 0
    %7259 = vmatpush1.bf16.msra.mxu0 0
    %7260 = vmatprep.mubr.bf16.mxu0 0
    %7261 = vmatmul.mubr.bf16.gmra.mrb[0].mxu0 %v7066
    %v7262 = vpop.f32.mrb[0].mxu0
    %v7263 = vadd.f32 0.0, %v7262
    %v7264 = vpop.f32.mrb[0].mxu0
    %v7265 = vadd.f32 0.0, %v7264
    %v7266 = vpop.f32.mrb[0].mxu0
    %v7267 = vpop.f32.mrb[0].mxu0
    %7268 = vdwg.mxu0
    %7269 = vmatprep.subr.bf16.mxu0 %v7167
    %7270 = vmatpush1.bf16.msra.mxu0 %v7166
    %7271 = vmatprep.subr.bf16.mxu0 %v7171
    %7272 = vmatpush1.bf16.msra.mxu0 %v7170
    %7273 = vmatprep.subr.bf16.mxu0 %v7175
    %7274 = vmatpush1.bf16.msra.mxu0 %v7174
    %7275 = vmatprep.subr.bf16.mxu0 %v7179
    %7276 = vmatpush1.bf16.msra.mxu0 %v7178
    %7277 = vmatprep.subr.bf16.mxu0 %v7183
    %7278 = vmatpush1.bf16.msra.mxu0 %v7182
    %7279 = vmatprep.subr.bf16.mxu0 %v7187
    %7280 = vmatpush1.bf16.msra.mxu0 %v7186
    %7281 = vmatprep.subr.bf16.mxu0 %v7191
    %7282 = vmatpush1.bf16.msra.mxu0 %v7190
    %7283 = vmatprep.subr.bf16.mxu0 %v7195
    %7284 = vmatpush1.bf16.msra.mxu0 %v7194
    %7285 = vmatprep.subr.bf16.mxu0 0
    %7286 = vmatpush1.bf16.msra.mxu0 0
    %7287 = vmatprep.subr.bf16.mxu0 0
    %7288 = vmatpush1.bf16.msra.mxu0 0
    %7289 = vmatprep.subr.bf16.mxu0 0
    %7290 = vmatpush1.bf16.msra.mxu0 0
    %7291 = vmatprep.subr.bf16.mxu0 0
    %7292 = vmatpush1.bf16.msra.mxu0 0
    %7293 = vmatprep.subr.bf16.mxu0 0
    %7294 = vmatpush1.bf16.msra.mxu0 0
    %7295 = vmatprep.subr.bf16.mxu0 0
    %7296 = vmatpush1.bf16.msra.mxu0 0
    %7297 = vmatprep.subr.bf16.mxu0 0
    %7298 = vmatpush1.bf16.msra.mxu0 0
    %7299 = vmatprep.subr.bf16.mxu0 0
    %7300 = vmatpush1.bf16.msra.mxu0 0
    %7301 = vmatprep.mubr.bf16.mxu0 0
    %7302 = vmatmul.mubr.bf16.gmra.mrb[0].mxu0 %v7066
    %v7303 = vpop.f32.mrb[0].mxu0
    %v7304 = vadd.f32 0.0, %v7303
    %v7305 = vpop.f32.mrb[0].mxu0
    %v7306 = vadd.f32 0.0, %v7305
    %v7307 = vpop.f32.mrb[0].mxu0
    %v7308 = vpop.f32.mrb[0].mxu0
    %7309 = vdwg.mxu0
    %v7314 = vcombine.low %v6884, %v6885
    %v7315 = vcombine.low %v6886, %v6887
    %v7317 = vunpack.c.l.s4 1966171168
    %v7318 = vunpack.c.0.s8 %v7317
    %v7319 = vlaneseq
    %v7320 = vshrl.u32 %v7319, 7
    %v7321 = vsub.s32 %v7318, %v7320
    %v7322 = vrot.slane %v7314, %v7321
    %v7324 = vunpack.c.l.s4 1966171168
    %v7325 = vunpack.c.0.s8 %v7324
    %v7326 = vlaneseq
    %v7327 = vshrl.u32 %v7326, 7
    %v7328 = vsub.s32 %v7325, %v7327
    %v7329 = vrot.slane %v7315, %v7328
    %v7330 = vcombine.low %v7322, %v7329
    %v7332 = vunpack.c.l.s4 1966171168
    %v7333 = vunpack.c.0.s8 %v7332
    %v7334 = vlaneseq
    %v7335 = vshrl.u32 %v7334, 7
    %v7336 = vsub.s32 %v7333, %v7335
    %v7337 = vrot.slane %v7330, %v7336
    %v7371 = vunpack.c.l.b16 %v6888
    %v7372 = vunpack.c.h.b16 %v6888
    %v7373 = vunpack.c.l.b16 %v6889
    %v7374 = vunpack.c.h.b16 %v6889
    %v7375 = vunpack.c.l.b16 %v6890
    %v7376 = vunpack.c.h.b16 %v6890
    %v7377 = vunpack.c.l.b16 %v6891
    %v7378 = vunpack.c.h.b16 %v6891
    %v7379 = vunpack.c.l.b16 %v6892
    %v7380 = vunpack.c.h.b16 %v6892
    %v7381 = vunpack.c.l.b16 %v6893
    %v7382 = vunpack.c.h.b16 %v6893
    %v7383 = vunpack.c.l.b16 %v6894
    %v7384 = vunpack.c.h.b16 %v6894
    %v7385 = vunpack.c.l.b16 %v6895
    %v7386 = vunpack.c.h.b16 %v6895
    %v7387 = vunpack.c.l.b16 %v6896
    %v7388 = vunpack.c.h.b16 %v6896
    %v7389 = vunpack.c.l.b16 %v6897
    %v7390 = vunpack.c.h.b16 %v6897
    %v7391 = vunpack.c.l.b16 %v6898
    %v7392 = vunpack.c.h.b16 %v6898
    %v7393 = vunpack.c.l.b16 %v6899
    %v7394 = vunpack.c.h.b16 %v6899
    %v7395 = vunpack.c.l.b16 %v6900
    %v7396 = vunpack.c.h.b16 %v6900
    %v7397 = vunpack.c.l.b16 %v6901
    %v7398 = vunpack.c.h.b16 %v6901
    %v7399 = vunpack.c.l.b16 %v6902
    %v7400 = vunpack.c.h.b16 %v6902
    %v7401 = vunpack.c.l.b16 %v6903
    %v7402 = vunpack.c.h.b16 %v6903
    %v7403 = vunpack.c.l.b16 %v6904
    %v7404 = vunpack.c.h.b16 %v6904
    %v7405 = vunpack.c.l.b16 %v6905
    %v7406 = vunpack.c.h.b16 %v6905
    %v7407 = vunpack.c.l.b16 %v6906
    %v7408 = vunpack.c.h.b16 %v6906
    %v7409 = vunpack.c.l.b16 %v6907
    %v7410 = vunpack.c.h.b16 %v6907
    %v7411 = vunpack.c.l.b16 %v6908
    %v7412 = vunpack.c.h.b16 %v6908
    %v7413 = vunpack.c.l.b16 %v6909
    %v7414 = vunpack.c.h.b16 %v6909
    %v7415 = vunpack.c.l.b16 %v6910
    %v7416 = vunpack.c.h.b16 %v6910
    %v7417 = vunpack.c.l.b16 %v6911
    %v7418 = vunpack.c.h.b16 %v6911
    %v7419 = vunpack.c.l.b16 %v6912
    %v7420 = vunpack.c.h.b16 %v6912
    %v7421 = vunpack.c.l.b16 %v6913
    %v7422 = vunpack.c.h.b16 %v6913
    %v7423 = vunpack.c.l.b16 %v6914
    %v7424 = vunpack.c.h.b16 %v6914
    %v7425 = vunpack.c.l.b16 %v6915
    %v7426 = vunpack.c.h.b16 %v6915
    %v7427 = vunpack.c.l.b16 %v6916
    %v7428 = vunpack.c.h.b16 %v6916
    %v7429 = vunpack.c.l.b16 %v6917
    %v7430 = vunpack.c.h.b16 %v6917
    %v7431 = vunpack.c.l.b16 %v6918
    %v7432 = vunpack.c.h.b16 %v6918
    %v7433 = vunpack.c.l.b16 %v6919
    %v7434 = vunpack.c.h.b16 %v6919
    %v7435 = vpack.c.b16 %v7375, %v7371
    %v7436 = vpack.c.b16 %v7376, %v7372
    %v7437 = vpack.c.b16 %v7377, %v7373
    %v7438 = vpack.c.b16 %v7378, %v7374
    %v7439 = vpack.c.b16 %v7383, %v7379
    %v7440 = vpack.c.b16 %v7384, %v7380
    %v7441 = vpack.c.b16 %v7385, %v7381
    %v7442 = vpack.c.b16 %v7386, %v7382
    %v7443 = vpack.c.b16 %v7391, %v7387
    %v7444 = vpack.c.b16 %v7392, %v7388
    %v7445 = vpack.c.b16 %v7393, %v7389
    %v7446 = vpack.c.b16 %v7394, %v7390
    %v7447 = vpack.c.b16 %v7399, %v7395
    %v7448 = vpack.c.b16 %v7400, %v7396
    %v7449 = vpack.c.b16 %v7401, %v7397
    %v7450 = vpack.c.b16 %v7402, %v7398
    %v7451 = vpack.c.b16 %v7407, %v7403
    %v7452 = vpack.c.b16 %v7408, %v7404
    %v7453 = vpack.c.b16 %v7409, %v7405
    %v7454 = vpack.c.b16 %v7410, %v7406
    %v7455 = vpack.c.b16 %v7415, %v7411
    %v7456 = vpack.c.b16 %v7416, %v7412
    %v7457 = vpack.c.b16 %v7417, %v7413
    %v7458 = vpack.c.b16 %v7418, %v7414
    %v7459 = vpack.c.b16 %v7423, %v7419
    %v7460 = vpack.c.b16 %v7424, %v7420
    %v7461 = vpack.c.b16 %v7425, %v7421
    %v7462 = vpack.c.b16 %v7426, %v7422
    %v7463 = vpack.c.b16 %v7431, %v7427
    %v7464 = vpack.c.b16 %v7432, %v7428
    %v7465 = vpack.c.b16 %v7433, %v7429
    %v7466 = vpack.c.b16 %v7434, %v7430
    %7499 = vmatprep.subr.bf16.mxu0 %v7436
    %7500 = vmatpush1.bf16.msra.mxu0 %v7435
    %7501 = vmatprep.subr.bf16.mxu0 %v7440
    %7502 = vmatpush1.bf16.msra.mxu0 %v7439
    %7503 = vmatprep.subr.bf16.mxu0 %v7444
    %7504 = vmatpush1.bf16.msra.mxu0 %v7443
    %7505 = vmatprep.subr.bf16.mxu0 %v7448
    %7506 = vmatpush1.bf16.msra.mxu0 %v7447
    %7507 = vmatprep.subr.bf16.mxu0 %v7452
    %7508 = vmatpush1.bf16.msra.mxu0 %v7451
    %7509 = vmatprep.subr.bf16.mxu0 %v7456
    %7510 = vmatpush1.bf16.msra.mxu0 %v7455
    %7511 = vmatprep.subr.bf16.mxu0 %v7460
    %7512 = vmatpush1.bf16.msra.mxu0 %v7459
    %7513 = vmatprep.subr.bf16.mxu0 %v7464
    %7514 = vmatpush1.bf16.msra.mxu0 %v7463
    %7515 = vmatprep.subr.bf16.mxu0 0
    %7516 = vmatpush1.bf16.msra.mxu0 0
    %7517 = vmatprep.subr.bf16.mxu0 0
    %7518 = vmatpush1.bf16.msra.mxu0 0
    %7519 = vmatprep.subr.bf16.mxu0 0
    %7520 = vmatpush1.bf16.msra.mxu0 0
    %7521 = vmatprep.subr.bf16.mxu0 0
    %7522 = vmatpush1.bf16.msra.mxu0 0
    %7523 = vmatprep.subr.bf16.mxu0 0
    %7524 = vmatpush1.bf16.msra.mxu0 0
    %7525 = vmatprep.subr.bf16.mxu0 0
    %7526 = vmatpush1.bf16.msra.mxu0 0
    %7527 = vmatprep.subr.bf16.mxu0 0
    %7528 = vmatpush1.bf16.msra.mxu0 0
    %7529 = vmatprep.subr.bf16.mxu0 0
    %7530 = vmatpush1.bf16.msra.mxu0 0
    %7531 = vmatprep.mubr.bf16.mxu0 0
    %7532 = vmatmul.mubr.bf16.gmra.mrb[0].mxu0 %v7337
    %v7533 = vpop.f32.mrb[0].mxu0
    %v7534 = vadd.f32 %v7263, %v7533
    %v7535 = vpop.f32.mrb[0].mxu0
    %v7536 = vadd.f32 %v7265, %v7535
    %v7537 = vpop.f32.mrb[0].mxu0
    %v7538 = vpop.f32.mrb[0].mxu0
    %7539 = vdwg.mxu0
    %7540 = vmatprep.subr.bf16.mxu0 %v7438
    %7541 = vmatpush1.bf16.msra.mxu0 %v7437
    %7542 = vmatprep.subr.bf16.mxu0 %v7442
    %7543 = vmatpush1.bf16.msra.mxu0 %v7441
    %7544 = vmatprep.subr.bf16.mxu0 %v7446
    %7545 = vmatpush1.bf16.msra.mxu0 %v7445
    %7546 = vmatprep.subr.bf16.mxu0 %v7450
    %7547 = vmatpush1.bf16.msra.mxu0 %v7449
    %7548 = vmatprep.subr.bf16.mxu0 %v7454
    %7549 = vmatpush1.bf16.msra.mxu0 %v7453
    %7550 = vmatprep.subr.bf16.mxu0 %v7458
    %7551 = vmatpush1.bf16.msra.mxu0 %v7457
    %7552 = vmatprep.subr.bf16.mxu0 %v7462
    %7553 = vmatpush1.bf16.msra.mxu0 %v7461
    %7554 = vmatprep.subr.bf16.mxu0 %v7466
    %7555 = vmatpush1.bf16.msra.mxu0 %v7465
    %7556 = vmatprep.subr.bf16.mxu0 0
    %7557 = vmatpush1.bf16.msra.mxu0 0
    %7558 = vmatprep.subr.bf16.mxu0 0
    %7559 = vmatpush1.bf16.msra.mxu0 0
    %7560 = vmatprep.subr.bf16.mxu0 0
    %7561 = vmatpush1.bf16.msra.mxu0 0
    %7562 = vmatprep.subr.bf16.mxu0 0
    %7563 = vmatpush1.bf16.msra.mxu0 0
    %7564 = vmatprep.subr.bf16.mxu0 0
    %7565 = vmatpush1.bf16.msra.mxu0 0
    %7566 = vmatprep.subr.bf16.mxu0 0
    %7567 = vmatpush1.bf16.msra.mxu0 0
    %7568 = vmatprep.subr.bf16.mxu0 0
    %7569 = vmatpush1.bf16.msra.mxu0 0
    %7570 = vmatprep.subr.bf16.mxu0 0
    %7571 = vmatpush1.bf16.msra.mxu0 0
    %7572 = vmatprep.mubr.bf16.mxu0 0
    %7573 = vmatmul.mubr.bf16.gmra.mrb[0].mxu0 %v7337
    %v7574 = vpop.f32.mrb[0].mxu0
    %v7575 = vadd.f32 %v7304, %v7574
    %v7576 = vpop.f32.mrb[0].mxu0
    %v7577 = vadd.f32 %v7306, %v7576
    %v7578 = vpop.f32.mrb[0].mxu0
    %v7579 = vpop.f32.mrb[0].mxu0
    %7580 = vdwg.mxu0
    %v7581 = vld [vmem:[#allocation4] sm:$0x2]
    %v7582 = vld [vmem:[#allocation4 + $0x2] sm:$0x2]
    %v7583 = vld [vmem:[#allocation4 + $0x8] sm:$0x2]
    %v7584 = vld [vmem:[#allocation4 + $0xa] sm:$0x2]
    %v7590 = vunpack.c.l.s4 1966171168
    %v7591 = vunpack.c.0.s8 %v7590
    %v7592 = vlaneseq
    %v7593 = vshrl.u32 %v7592, 7
    %v7594 = vsub.s32 %v7591, %v7593
    %v7595 = vrot.slane %v7581, %v7594
    %v7596 = vcombine.high %v7595, %v7595
    %v7598 = vunpack.c.l.s4 1966171168
    %v7599 = vunpack.c.0.s8 %v7598
    %v7600 = vlaneseq
    %v7601 = vshrl.u32 %v7600, 7
    %v7602 = vsub.s32 %v7599, %v7601
    %v7603 = vrot.slane %v7582, %v7602
    %v7604 = vcombine.high %v7603, %v7603
    %v7606 = vunpack.c.l.s4 1966171168
    %v7607 = vunpack.c.0.s8 %v7606
    %v7608 = vlaneseq
    %v7609 = vshrl.u32 %v7608, 7
    %v7610 = vsub.s32 %v7607, %v7609
    %v7611 = vrot.slane %v7583, %v7610
    %v7612 = vcombine.high %v7611, %v7611
    %v7614 = vunpack.c.l.s4 1966171168
    %v7615 = vunpack.c.0.s8 %v7614
    %v7616 = vlaneseq
    %v7617 = vshrl.u32 %v7616, 7
    %v7618 = vsub.s32 %v7615, %v7617
    %v7619 = vrot.slane %v7584, %v7618
    %v7620 = vcombine.high %v7619, %v7619
    %s7621 = scalar_lea.vmem [#allocation13], 512
    %v7622 = vld [vmem:[%s7621] sm:$0xff]
    %v7623 = vld [vmem:[%s7621 + $0x8] sm:$0xff]
    %v7624 = vld [vmem:[%s7621 + $0x10] sm:$0xff]
    %v7625 = vld [vmem:[%s7621 + $0x18] sm:$0xff]
    %v7626 = vld [vmem:[%s7621 + $0x20] sm:$0xff]
    %v7627 = vld [vmem:[%s7621 + $0x28] sm:$0xff]
    %v7628 = vld [vmem:[%s7621 + $0x30] sm:$0xff]
    %v7629 = vld [vmem:[%s7621 + $0x38] sm:$0xff]
    %v7630 = vld [vmem:[%s7621 + $0x40] sm:$0xff]
    %v7631 = vld [vmem:[%s7621 + $0x48] sm:$0xff]
    %v7632 = vld [vmem:[%s7621 + $0x50] sm:$0xff]
    %v7633 = vld [vmem:[%s7621 + $0x58] sm:$0xff]
    %v7634 = vld [vmem:[%s7621 + $0x60] sm:$0xff]
    %v7635 = vld [vmem:[%s7621 + $0x68] sm:$0xff]
    %v7636 = vld [vmem:[%s7621 + $0x70] sm:$0xff]
    %v7637 = vld [vmem:[%s7621 + $0x78] sm:$0xff]
    %v7638 = vld [vmem:[%s7621 + $0x80] sm:$0xff]
    %v7639 = vld [vmem:[%s7621 + $0x88] sm:$0xff]
    %v7640 = vld [vmem:[%s7621 + $0x90] sm:$0xff]
    %v7641 = vld [vmem:[%s7621 + $0x98] sm:$0xff]
    %v7642 = vld [vmem:[%s7621 + $0xa0] sm:$0xff]
    %v7643 = vld [vmem:[%s7621 + $0xa8] sm:$0xff]
    %v7644 = vld [vmem:[%s7621 + $0xb0] sm:$0xff]
    %v7645 = vld [vmem:[%s7621 + $0xb8] sm:$0xff]
    %v7646 = vld [vmem:[%s7621 + $0xc0] sm:$0xff]
    %v7647 = vld [vmem:[%s7621 + $0xc8] sm:$0xff]
    %v7648 = vld [vmem:[%s7621 + $0xd0] sm:$0xff]
    %v7649 = vld [vmem:[%s7621 + $0xd8] sm:$0xff]
    %v7650 = vld [vmem:[%s7621 + $0xe0] sm:$0xff]
    %v7651 = vld [vmem:[%s7621 + $0xe8] sm:$0xff]
    %v7652 = vld [vmem:[%s7621 + $0xf0] sm:$0xff]
    %v7653 = vld [vmem:[%s7621 + $0xf8] sm:$0xff]
    %v7654 = vcombine.low %v7596, %v7604
    %v7655 = vcombine.low %v7612, %v7620
    %v7657 = vunpack.c.l.s4 1966171168
    %v7658 = vunpack.c.0.s8 %v7657
    %v7659 = vlaneseq
    %v7660 = vshrl.u32 %v7659, 7
    %v7661 = vsub.s32 %v7658, %v7660
    %v7662 = vrot.slane %v7654, %v7661
    %v7664 = vunpack.c.l.s4 1966171168
    %v7665 = vunpack.c.0.s8 %v7664
    %v7666 = vlaneseq
    %v7667 = vshrl.u32 %v7666, 7
    %v7668 = vsub.s32 %v7665, %v7667
    %v7669 = vrot.slane %v7655, %v7668
    %v7670 = vcombine.low %v7662, %v7669
    %v7672 = vunpack.c.l.s4 1966171168
    %v7673 = vunpack.c.0.s8 %v7672
    %v7674 = vlaneseq
    %v7675 = vshrl.u32 %v7674, 7
    %v7676 = vsub.s32 %v7673, %v7675
    %v7677 = vrot.slane %v7670, %v7676
    %v7711 = vunpack.c.l.b16 %v7622
    %v7712 = vunpack.c.h.b16 %v7622
    %v7713 = vunpack.c.l.b16 %v7623
    %v7714 = vunpack.c.h.b16 %v7623
    %v7715 = vunpack.c.l.b16 %v7624
    %v7716 = vunpack.c.h.b16 %v7624
    %v7717 = vunpack.c.l.b16 %v7625
    %v7718 = vunpack.c.h.b16 %v7625
    %v7719 = vunpack.c.l.b16 %v7626
    %v7720 = vunpack.c.h.b16 %v7626
    %v7721 = vunpack.c.l.b16 %v7627
    %v7722 = vunpack.c.h.b16 %v7627
    %v7723 = vunpack.c.l.b16 %v7628
    %v7724 = vunpack.c.h.b16 %v7628
    %v7725 = vunpack.c.l.b16 %v7629
    %v7726 = vunpack.c.h.b16 %v7629
    %v7727 = vunpack.c.l.b16 %v7630
    %v7728 = vunpack.c.h.b16 %v7630
    %v7729 = vunpack.c.l.b16 %v7631
    %v7730 = vunpack.c.h.b16 %v7631
    %v7731 = vunpack.c.l.b16 %v7632
    %v7732 = vunpack.c.h.b16 %v7632
    %v7733 = vunpack.c.l.b16 %v7633
    %v7734 = vunpack.c.h.b16 %v7633
    %v7735 = vunpack.c.l.b16 %v7634
    %v7736 = vunpack.c.h.b16 %v7634
    %v7737 = vunpack.c.l.b16 %v7635
    %v7738 = vunpack.c.h.b16 %v7635
    %v7739 = vunpack.c.l.b16 %v7636
    %v7740 = vunpack.c.h.b16 %v7636
    %v7741 = vunpack.c.l.b16 %v7637
    %v7742 = vunpack.c.h.b16 %v7637
    %v7743 = vunpack.c.l.b16 %v7638
    %v7744 = vunpack.c.h.b16 %v7638
    %v7745 = vunpack.c.l.b16 %v7639
    %v7746 = vunpack.c.h.b16 %v7639
    %v7747 = vunpack.c.l.b16 %v7640
    %v7748 = vunpack.c.h.b16 %v7640
    %v7749 = vunpack.c.l.b16 %v7641
    %v7750 = vunpack.c.h.b16 %v7641
    %v7751 = vunpack.c.l.b16 %v7642
    %v7752 = vunpack.c.h.b16 %v7642
    %v7753 = vunpack.c.l.b16 %v7643
    %v7754 = vunpack.c.h.b16 %v7643
    %v7755 = vunpack.c.l.b16 %v7644
    %v7756 = vunpack.c.h.b16 %v7644
    %v7757 = vunpack.c.l.b16 %v7645
    %v7758 = vunpack.c.h.b16 %v7645
    %v7759 = vunpack.c.l.b16 %v7646
    %v7760 = vunpack.c.h.b16 %v7646
    %v7761 = vunpack.c.l.b16 %v7647
    %v7762 = vunpack.c.h.b16 %v7647
    %v7763 = vunpack.c.l.b16 %v7648
    %v7764 = vunpack.c.h.b16 %v7648
    %v7765 = vunpack.c.l.b16 %v7649
    %v7766 = vunpack.c.h.b16 %v7649
    %v7767 = vunpack.c.l.b16 %v7650
    %v7768 = vunpack.c.h.b16 %v7650
    %v7769 = vunpack.c.l.b16 %v7651
    %v7770 = vunpack.c.h.b16 %v7651
    %v7771 = vunpack.c.l.b16 %v7652
    %v7772 = vunpack.c.h.b16 %v7652
    %v7773 = vunpack.c.l.b16 %v7653
    %v7774 = vunpack.c.h.b16 %v7653
    %v7775 = vpack.c.b16 %v7715, %v7711
    %v7776 = vpack.c.b16 %v7716, %v7712
    %v7777 = vpack.c.b16 %v7717, %v7713
    %v7778 = vpack.c.b16 %v7718, %v7714
    %v7779 = vpack.c.b16 %v7723, %v7719
    %v7780 = vpack.c.b16 %v7724, %v7720
    %v7781 = vpack.c.b16 %v7725, %v7721
    %v7782 = vpack.c.b16 %v7726, %v7722
    %v7783 = vpack.c.b16 %v7731, %v7727
    %v7784 = vpack.c.b16 %v7732, %v7728
    %v7785 = vpack.c.b16 %v7733, %v7729
    %v7786 = vpack.c.b16 %v7734, %v7730
    %v7787 = vpack.c.b16 %v7739, %v7735
    %v7788 = vpack.c.b16 %v7740, %v7736
    %v7789 = vpack.c.b16 %v7741, %v7737
    %v7790 = vpack.c.b16 %v7742, %v7738
    %v7791 = vpack.c.b16 %v7747, %v7743
    %v7792 = vpack.c.b16 %v7748, %v7744
    %v7793 = vpack.c.b16 %v7749, %v7745
    %v7794 = vpack.c.b16 %v7750, %v7746
    %v7795 = vpack.c.b16 %v7755, %v7751
    %v7796 = vpack.c.b16 %v7756, %v7752
    %v7797 = vpack.c.b16 %v7757, %v7753
    %v7798 = vpack.c.b16 %v7758, %v7754
    %v7799 = vpack.c.b16 %v7763, %v7759
    %v7800 = vpack.c.b16 %v7764, %v7760
    %v7801 = vpack.c.b16 %v7765, %v7761
    %v7802 = vpack.c.b16 %v7766, %v7762
    %v7803 = vpack.c.b16 %v7771, %v7767
    %v7804 = vpack.c.b16 %v7772, %v7768
    %v7805 = vpack.c.b16 %v7773, %v7769
    %v7806 = vpack.c.b16 %v7774, %v7770
    %7839 = vmatprep.subr.bf16.mxu0 %v7776
    %7840 = vmatpush1.bf16.msra.mxu0 %v7775
    %7841 = vmatprep.subr.bf16.mxu0 %v7780
    %7842 = vmatpush1.bf16.msra.mxu0 %v7779
    %7843 = vmatprep.subr.bf16.mxu0 %v7784
    %7844 = vmatpush1.bf16.msra.mxu0 %v7783
    %7845 = vmatprep.subr.bf16.mxu0 %v7788
    %7846 = vmatpush1.bf16.msra.mxu0 %v7787
    %7847 = vmatprep.subr.bf16.mxu0 %v7792
    %7848 = vmatpush1.bf16.msra.mxu0 %v7791
    %7849 = vmatprep.subr.bf16.mxu0 %v7796
    %7850 = vmatpush1.bf16.msra.mxu0 %v7795
    %7851 = vmatprep.subr.bf16.mxu0 %v7800
    %7852 = vmatpush1.bf16.msra.mxu0 %v7799
    %7853 = vmatprep.subr.bf16.mxu0 %v7804
    %7854 = vmatpush1.bf16.msra.mxu0 %v7803
    %7855 = vmatprep.subr.bf16.mxu0 0
    %7856 = vmatpush1.bf16.msra.mxu0 0
    %7857 = vmatprep.subr.bf16.mxu0 0
    %7858 = vmatpush1.bf16.msra.mxu0 0
    %7859 = vmatprep.subr.bf16.mxu0 0
    %7860 = vmatpush1.bf16.msra.mxu0 0
    %7861 = vmatprep.subr.bf16.mxu0 0
    %7862 = vmatpush1.bf16.msra.mxu0 0
    %7863 = vmatprep.subr.bf16.mxu0 0
    %7864 = vmatpush1.bf16.msra.mxu0 0
    %7865 = vmatprep.subr.bf16.mxu0 0
    %7866 = vmatpush1.bf16.msra.mxu0 0
    %7867 = vmatprep.subr.bf16.mxu0 0
    %7868 = vmatpush1.bf16.msra.mxu0 0
    %7869 = vmatprep.subr.bf16.mxu0 0
    %7870 = vmatpush1.bf16.msra.mxu0 0
    %7871 = vmatprep.mubr.bf16.mxu0 0
    %7872 = vmatmul.mubr.bf16.gmra.mrb[0].mxu0 %v7677
    %v7873 = vpop.f32.mrb[0].mxu0
    %v7874 = vadd.f32 0.0, %v7873
    %v7875 = vpop.f32.mrb[0].mxu0
    %v7876 = vadd.f32 0.0, %v7875
    %v7877 = vpop.f32.mrb[0].mxu0
    %v7878 = vpop.f32.mrb[0].mxu0
    %7879 = vdwg.mxu0
    %7880 = vmatprep.subr.bf16.mxu0 %v7778
    %7881 = vmatpush1.bf16.msra.mxu0 %v7777
    %7882 = vmatprep.subr.bf16.mxu0 %v7782
    %7883 = vmatpush1.bf16.msra.mxu0 %v7781
    %7884 = vmatprep.subr.bf16.mxu0 %v7786
    %7885 = vmatpush1.bf16.msra.mxu0 %v7785
    %7886 = vmatprep.subr.bf16.mxu0 %v7790
    %7887 = vmatpush1.bf16.msra.mxu0 %v7789
    %7888 = vmatprep.subr.bf16.mxu0 %v7794
    %7889 = vmatpush1.bf16.msra.mxu0 %v7793
    %7890 = vmatprep.subr.bf16.mxu0 %v7798
    %7891 = vmatpush1.bf16.msra.mxu0 %v7797
    %7892 = vmatprep.subr.bf16.mxu0 %v7802
    %7893 = vmatpush1.bf16.msra.mxu0 %v7801
    %7894 = vmatprep.subr.bf16.mxu0 %v7806
    %7895 = vmatpush1.bf16.msra.mxu0 %v7805
    %7896 = vmatprep.subr.bf16.mxu0 0
    %7897 = vmatpush1.bf16.msra.mxu0 0
    %7898 = vmatprep.subr.bf16.mxu0 0
    %7899 = vmatpush1.bf16.msra.mxu0 0
    %7900 = vmatprep.subr.bf16.mxu0 0
    %7901 = vmatpush1.bf16.msra.mxu0 0
    %7902 = vmatprep.subr.bf16.mxu0 0
    %7903 = vmatpush1.bf16.msra.mxu0 0
    %7904 = vmatprep.subr.bf16.mxu0 0
    %7905 = vmatpush1.bf16.msra.mxu0 0
    %7906 = vmatprep.subr.bf16.mxu0 0
    %7907 = vmatpush1.bf16.msra.mxu0 0
    %7908 = vmatprep.subr.bf16.mxu0 0
    %7909 = vmatpush1.bf16.msra.mxu0 0
    %7910 = vmatprep.subr.bf16.mxu0 0
    %7911 = vmatpush1.bf16.msra.mxu0 0
    %7912 = vmatprep.mubr.bf16.mxu0 0
    %7913 = vmatmul.mubr.bf16.gmra.mrb[0].mxu0 %v7677
    %v7914 = vpop.f32.mrb[0].mxu0
    %v7915 = vadd.f32 0.0, %v7914
    %v7916 = vpop.f32.mrb[0].mxu0
    %v7917 = vadd.f32 0.0, %v7916
    %v7918 = vpop.f32.mrb[0].mxu0
    %v7919 = vpop.f32.mrb[0].mxu0
    %7920 = vdwg.mxu0
    %v7921 = vadd.f32 %v7534, %v7874
    %v7922 = vadd.f32 %v7536, %v7876
    %v7923 = vadd.f32 %v7575, %v7915
    %v7924 = vadd.f32 %v7577, %v7917
    %v7925 = vld [vmem:[%s6868] sm:$0x1]
    %v7926 = vld [vmem:[%s6868 + $0x2] sm:$0x1]
    %v7927 = vld [vmem:[%s6868 + $0x8] sm:$0x1]
    %v7928 = vld [vmem:[%s6868 + $0xa] sm:$0x1]
    %s7929 = scalar_lea.vmem [#allocation13], 768
    %v7930 = vld [vmem:[%s7929] sm:$0xff]
    %v7931 = vld [vmem:[%s7929 + $0x8] sm:$0xff]
    %v7932 = vld [vmem:[%s7929 + $0x10] sm:$0xff]
    %v7933 = vld [vmem:[%s7929 + $0x18] sm:$0xff]
    %v7934 = vld [vmem:[%s7929 + $0x20] sm:$0xff]
    %v7935 = vld [vmem:[%s7929 + $0x28] sm:$0xff]
    %v7936 = vld [vmem:[%s7929 + $0x30] sm:$0xff]
    %v7937 = vld [vmem:[%s7929 + $0x38] sm:$0xff]
    %v7938 = vld [vmem:[%s7929 + $0x40] sm:$0xff]
    %v7939 = vld [vmem:[%s7929 + $0x48] sm:$0xff]
    %v7940 = vld [vmem:[%s7929 + $0x50] sm:$0xff]
    %v7941 = vld [vmem:[%s7929 + $0x58] sm:$0xff]
    %v7942 = vld [vmem:[%s7929 + $0x60] sm:$0xff]
    %v7943 = vld [vmem:[%s7929 + $0x68] sm:$0xff]
    %v7944 = vld [vmem:[%s7929 + $0x70] sm:$0xff]
    %v7945 = vld [vmem:[%s7929 + $0x78] sm:$0xff]
    %v7946 = vld [vmem:[%s7929 + $0x80] sm:$0xff]
    %v7947 = vld [vmem:[%s7929 + $0x88] sm:$0xff]
    %v7948 = vld [vmem:[%s7929 + $0x90] sm:$0xff]
    %v7949 = vld [vmem:[%s7929 + $0x98] sm:$0xff]
    %v7950 = vld [vmem:[%s7929 + $0xa0] sm:$0xff]
    %v7951 = vld [vmem:[%s7929 + $0xa8] sm:$0xff]
    %v7952 = vld [vmem:[%s7929 + $0xb0] sm:$0xff]
    %v7953 = vld [vmem:[%s7929 + $0xb8] sm:$0xff]
    %v7954 = vld [vmem:[%s7929 + $0xc0] sm:$0xff]
    %v7955 = vld [vmem:[%s7929 + $0xc8] sm:$0xff]
    %v7956 = vld [vmem:[%s7929 + $0xd0] sm:$0xff]
    %v7957 = vld [vmem:[%s7929 + $0xd8] sm:$0xff]
    %v7958 = vld [vmem:[%s7929 + $0xe0] sm:$0xff]
    %v7959 = vld [vmem:[%s7929 + $0xe8] sm:$0xff]
    %v7960 = vld [vmem:[%s7929 + $0xf0] sm:$0xff]
    %v7961 = vld [vmem:[%s7929 + $0xf8] sm:$0xff]
    %v7966 = vcombine.low %v7925, %v7926
    %v7967 = vcombine.low %v7927, %v7928
    %v7969 = vunpack.c.l.s4 1966171168
    %v7970 = vunpack.c.0.s8 %v7969
    %v7971 = vlaneseq
    %v7972 = vshrl.u32 %v7971, 7
    %v7973 = vsub.s32 %v7970, %v7972
    %v7974 = vrot.slane %v7966, %v7973
    %v7976 = vunpack.c.l.s4 1966171168
    %v7977 = vunpack.c.0.s8 %v7976
    %v7978 = vlaneseq
    %v7979 = vshrl.u32 %v7978, 7
    %v7980 = vsub.s32 %v7977, %v7979
    %v7981 = vrot.slane %v7967, %v7980
    %v7982 = vcombine.low %v7974, %v7981
    %v7984 = vunpack.c.l.s4 1966171168
    %v7985 = vunpack.c.0.s8 %v7984
    %v7986 = vlaneseq
    %v7987 = vshrl.u32 %v7986, 7
    %v7988 = vsub.s32 %v7985, %v7987
    %v7989 = vrot.slane %v7982, %v7988
    %v8023 = vunpack.c.l.b16 %v7930
    %v8024 = vunpack.c.h.b16 %v7930
    %v8025 = vunpack.c.l.b16 %v7931
    %v8026 = vunpack.c.h.b16 %v7931
    %v8027 = vunpack.c.l.b16 %v7932
    %v8028 = vunpack.c.h.b16 %v7932
    %v8029 = vunpack.c.l.b16 %v7933
    %v8030 = vunpack.c.h.b16 %v7933
    %v8031 = vunpack.c.l.b16 %v7934
    %v8032 = vunpack.c.h.b16 %v7934
    %v8033 = vunpack.c.l.b16 %v7935
    %v8034 = vunpack.c.h.b16 %v7935
    %v8035 = vunpack.c.l.b16 %v7936
    %v8036 = vunpack.c.h.b16 %v7936
    %v8037 = vunpack.c.l.b16 %v7937
    %v8038 = vunpack.c.h.b16 %v7937
    %v8039 = vunpack.c.l.b16 %v7938
    %v8040 = vunpack.c.h.b16 %v7938
    %v8041 = vunpack.c.l.b16 %v7939
    %v8042 = vunpack.c.h.b16 %v7939
    %v8043 = vunpack.c.l.b16 %v7940
    %v8044 = vunpack.c.h.b16 %v7940
    %v8045 = vunpack.c.l.b16 %v7941
    %v8046 = vunpack.c.h.b16 %v7941
    %v8047 = vunpack.c.l.b16 %v7942
    %v8048 = vunpack.c.h.b16 %v7942
    %v8049 = vunpack.c.l.b16 %v7943
    %v8050 = vunpack.c.h.b16 %v7943
    %v8051 = vunpack.c.l.b16 %v7944
    %v8052 = vunpack.c.h.b16 %v7944
    %v8053 = vunpack.c.l.b16 %v7945
    %v8054 = vunpack.c.h.b16 %v7945
    %v8055 = vunpack.c.l.b16 %v7946
    %v8056 = vunpack.c.h.b16 %v7946
    %v8057 = vunpack.c.l.b16 %v7947
    %v8058 = vunpack.c.h.b16 %v7947
    %v8059 = vunpack.c.l.b16 %v7948
    %v8060 = vunpack.c.h.b16 %v7948
    %v8061 = vunpack.c.l.b16 %v7949
    %v8062 = vunpack.c.h.b16 %v7949
    %v8063 = vunpack.c.l.b16 %v7950
    %v8064 = vunpack.c.h.b16 %v7950
    %v8065 = vunpack.c.l.b16 %v7951
    %v8066 = vunpack.c.h.b16 %v7951
    %v8067 = vunpack.c.l.b16 %v7952
    %v8068 = vunpack.c.h.b16 %v7952
    %v8069 = vunpack.c.l.b16 %v7953
    %v8070 = vunpack.c.h.b16 %v7953
    %v8071 = vunpack.c.l.b16 %v7954
    %v8072 = vunpack.c.h.b16 %v7954
    %v8073 = vunpack.c.l.b16 %v7955
    %v8074 = vunpack.c.h.b16 %v7955
    %v8075 = vunpack.c.l.b16 %v7956
    %v8076 = vunpack.c.h.b16 %v7956
    %v8077 = vunpack.c.l.b16 %v7957
    %v8078 = vunpack.c.h.b16 %v7957
    %v8079 = vunpack.c.l.b16 %v7958
    %v8080 = vunpack.c.h.b16 %v7958
    %v8081 = vunpack.c.l.b16 %v7959
    %v8082 = vunpack.c.h.b16 %v7959
    %v8083 = vunpack.c.l.b16 %v7960
    %v8084 = vunpack.c.h.b16 %v7960
    %v8085 = vunpack.c.l.b16 %v7961
    %v8086 = vunpack.c.h.b16 %v7961
    %v8087 = vpack.c.b16 %v8027, %v8023
    %v8088 = vpack.c.b16 %v8028, %v8024
    %v8089 = vpack.c.b16 %v8029, %v8025
    %v8090 = vpack.c.b16 %v8030, %v8026
    %v8091 = vpack.c.b16 %v8035, %v8031
    %v8092 = vpack.c.b16 %v8036, %v8032
    %v8093 = vpack.c.b16 %v8037, %v8033
    %v8094 = vpack.c.b16 %v8038, %v8034
    %v8095 = vpack.c.b16 %v8043, %v8039
    %v8096 = vpack.c.b16 %v8044, %v8040
    %v8097 = vpack.c.b16 %v8045, %v8041
    %v8098 = vpack.c.b16 %v8046, %v8042
    %v8099 = vpack.c.b16 %v8051, %v8047
    %v8100 = vpack.c.b16 %v8052, %v8048
    %v8101 = vpack.c.b16 %v8053, %v8049
    %v8102 = vpack.c.b16 %v8054, %v8050
    %v8103 = vpack.c.b16 %v8059, %v8055
    %v8104 = vpack.c.b16 %v8060, %v8056
    %v8105 = vpack.c.b16 %v8061, %v8057
    %v8106 = vpack.c.b16 %v8062, %v8058
    %v8107 = vpack.c.b16 %v8067, %v8063
    %v8108 = vpack.c.b16 %v8068, %v8064
    %v8109 = vpack.c.b16 %v8069, %v8065
    %v8110 = vpack.c.b16 %v8070, %v8066
    %v8111 = vpack.c.b16 %v8075, %v8071
    %v8112 = vpack.c.b16 %v8076, %v8072
    %v8113 = vpack.c.b16 %v8077, %v8073
    %v8114 = vpack.c.b16 %v8078, %v8074
    %v8115 = vpack.c.b16 %v8083, %v8079
    %v8116 = vpack.c.b16 %v8084, %v8080
    %v8117 = vpack.c.b16 %v8085, %v8081
    %v8118 = vpack.c.b16 %v8086, %v8082
    %8151 = vmatprep.subr.bf16.mxu0 %v8088
    %8152 = vmatpush1.bf16.msra.mxu0 %v8087
    %8153 = vmatprep.subr.bf16.mxu0 %v8092
    %8154 = vmatpush1.bf16.msra.mxu0 %v8091
    %8155 = vmatprep.subr.bf16.mxu0 %v8096
    %8156 = vmatpush1.bf16.msra.mxu0 %v8095
    %8157 = vmatprep.subr.bf16.mxu0 %v8100
    %8158 = vmatpush1.bf16.msra.mxu0 %v8099
    %8159 = vmatprep.subr.bf16.mxu0 %v8104
    %8160 = vmatpush1.bf16.msra.mxu0 %v8103
    %8161 = vmatprep.subr.bf16.mxu0 %v8108
    %8162 = vmatpush1.bf16.msra.mxu0 %v8107
    %8163 = vmatprep.subr.bf16.mxu0 %v8112
    %8164 = vmatpush1.bf16.msra.mxu0 %v8111
    %8165 = vmatprep.subr.bf16.mxu0 %v8116
    %8166 = vmatpush1.bf16.msra.mxu0 %v8115
    %8167 = vmatprep.subr.bf16.mxu0 0
    %8168 = vmatpush1.bf16.msra.mxu0 0
    %8169 = vmatprep.subr.bf16.mxu0 0
    %8170 = vmatpush1.bf16.msra.mxu0 0
    %8171 = vmatprep.subr.bf16.mxu0 0
    %8172 = vmatpush1.bf16.msra.mxu0 0
    %8173 = vmatprep.subr.bf16.mxu0 0
    %8174 = vmatpush1.bf16.msra.mxu0 0
    %8175 = vmatprep.subr.bf16.mxu0 0
    %8176 = vmatpush1.bf16.msra.mxu0 0
    %8177 = vmatprep.subr.bf16.mxu0 0
    %8178 = vmatpush1.bf16.msra.mxu0 0
    %8179 = vmatprep.subr.bf16.mxu0 0
    %8180 = vmatpush1.bf16.msra.mxu0 0
    %8181 = vmatprep.subr.bf16.mxu0 0
    %8182 = vmatpush1.bf16.msra.mxu0 0
    %8183 = vmatprep.mubr.bf16.mxu0 0
    %8184 = vmatmul.mubr.bf16.gmra.mrb[0].mxu0 %v7989
    %v8185 = vpop.f32.mrb[0].mxu0
    %v8186 = vadd.f32 0.0, %v8185
    %v8187 = vpop.f32.mrb[0].mxu0
    %v8188 = vadd.f32 0.0, %v8187
    %v8189 = vpop.f32.mrb[0].mxu0
    %v8190 = vpop.f32.mrb[0].mxu0
    %8191 = vdwg.mxu0
    %8192 = vmatprep.subr.bf16.mxu0 %v8090
    %8193 = vmatpush1.bf16.msra.mxu0 %v8089
    %8194 = vmatprep.subr.bf16.mxu0 %v8094
    %8195 = vmatpush1.bf16.msra.mxu0 %v8093
    %8196 = vmatprep.subr.bf16.mxu0 %v8098
    %8197 = vmatpush1.bf16.msra.mxu0 %v8097
    %8198 = vmatprep.subr.bf16.mxu0 %v8102
    %8199 = vmatpush1.bf16.msra.mxu0 %v8101
    %8200 = vmatprep.subr.bf16.mxu0 %v8106
    %8201 = vmatpush1.bf16.msra.mxu0 %v8105
    %8202 = vmatprep.subr.bf16.mxu0 %v8110
    %8203 = vmatpush1.bf16.msra.mxu0 %v8109
    %8204 = vmatprep.subr.bf16.mxu0 %v8114
    %8205 = vmatpush1.bf16.msra.mxu0 %v8113
    %8206 = vmatprep.subr.bf16.mxu0 %v8118
    %8207 = vmatpush1.bf16.msra.mxu0 %v8117
    %8208 = vmatprep.subr.bf16.mxu0 0
    %8209 = vmatpush1.bf16.msra.mxu0 0
    %8210 = vmatprep.subr.bf16.mxu0 0
    %8211 = vmatpush1.bf16.msra.mxu0 0
    %8212 = vmatprep.subr.bf16.mxu0 0
    %8213 = vmatpush1.bf16.msra.mxu0 0
    %8214 = vmatprep.subr.bf16.mxu0 0
    %8215 = vmatpush1.bf16.msra.mxu0 0
    %8216 = vmatprep.subr.bf16.mxu0 0
    %8217 = vmatpush1.bf16.msra.mxu0 0
    %8218 = vmatprep.subr.bf16.mxu0 0
    %8219 = vmatpush1.bf16.msra.mxu0 0
    %8220 = vmatprep.subr.bf16.mxu0 0
    %8221 = vmatpush1.bf16.msra.mxu0 0
    %8222 = vmatprep.subr.bf16.mxu0 0
    %8223 = vmatpush1.bf16.msra.mxu0 0
    %8224 = vmatprep.mubr.bf16.mxu0 0
    %8225 = vmatmul.mubr.bf16.gmra.mrb[0].mxu0 %v7989
    %v8226 = vpop.f32.mrb[0].mxu0
    %v8227 = vadd.f32 0.0, %v8226
    %v8228 = vpop.f32.mrb[0].mxu0
    %v8229 = vadd.f32 0.0, %v8228
    %v8230 = vpop.f32.mrb[0].mxu0
    %v8231 = vpop.f32.mrb[0].mxu0
    %8232 = vdwg.mxu0
    %v8233 = vadd.f32 %v7921, %v8186
    %v8234 = vadd.f32 %v7922, %v8188
    %v8235 = vadd.f32 %v7923, %v8227
    %v8236 = vadd.f32 %v7924, %v8229
    %v8237 = vld [vmem:[%s6868] sm:$0x3]
    %v8238 = vld [vmem:[%s6868 + $0x2] sm:$0x3]
    %v8239 = vld [vmem:[%s6868 + $0x8] sm:$0x3]
    %v8240 = vld [vmem:[%s6868 + $0xa] sm:$0x3]
    %v8246 = vunpack.c.l.s4 1966171168
    %v8247 = vunpack.c.0.s8 %v8246
    %v8248 = vlaneseq
    %v8249 = vshrl.u32 %v8248, 7
    %v8250 = vsub.s32 %v8247, %v8249
    %v8251 = vrot.slane %v8237, %v8250
    %v8252 = vcombine.high %v8251, %v8251
    %v8254 = vunpack.c.l.s4 1966171168
    %v8255 = vunpack.c.0.s8 %v8254
    %v8256 = vlaneseq
    %v8257 = vshrl.u32 %v8256, 7
    %v8258 = vsub.s32 %v8255, %v8257
    %v8259 = vrot.slane %v8238, %v8258
    %v8260 = vcombine.high %v8259, %v8259
    %v8262 = vunpack.c.l.s4 1966171168
    %v8263 = vunpack.c.0.s8 %v8262
    %v8264 = vlaneseq
    %v8265 = vshrl.u32 %v8264, 7
    %v8266 = vsub.s32 %v8263, %v8265
    %v8267 = vrot.slane %v8239, %v8266
    %v8268 = vcombine.high %v8267, %v8267
    %v8270 = vunpack.c.l.s4 1966171168
    %v8271 = vunpack.c.0.s8 %v8270
    %v8272 = vlaneseq
    %v8273 = vshrl.u32 %v8272, 7
    %v8274 = vsub.s32 %v8271, %v8273
    %v8275 = vrot.slane %v8240, %v8274
    %v8276 = vcombine.high %v8275, %v8275
    %v8278 = vshrl.u32 %v8251, 16
    %v8280 = vrot.slane %v8278, 7
    %v8281 = vrot.slane %v8280, 1
    %v8283 = vshll.u32 %v8252, 16
    %v8285 = vsel %vm6973, %v8281, %v8283
    %v8287 = vshrl.u32 %v8259, 16
    %v8289 = vrot.slane %v8287, 7
    %v8290 = vrot.slane %v8289, 1
    %v8292 = vshll.u32 %v8260, 16
    %v8294 = vsel %vm6973, %v8290, %v8292
    %v8296 = vshrl.u32 %v8267, 16
    %v8298 = vrot.slane %v8296, 7
    %v8299 = vrot.slane %v8298, 1
    %v8301 = vshll.u32 %v8268, 16
    %v8303 = vsel %vm6973, %v8299, %v8301
    %v8305 = vshrl.u32 %v8275, 16
    %v8307 = vrot.slane %v8305, 7
    %v8308 = vrot.slane %v8307, 1
    %v8310 = vshll.u32 %v8276, 16
    %v8312 = vsel %vm6973, %v8308, %v8310
    %s8313 = scalar_lea.vmem [#allocation13], 1024
    %v8314 = vld [vmem:[%s8313] sm:$0xff]
    %v8315 = vld [vmem:[%s8313 + $0x8] sm:$0xff]
    %v8316 = vld [vmem:[%s8313 + $0x10] sm:$0xff]
    %v8317 = vld [vmem:[%s8313 + $0x18] sm:$0xff]
    %v8318 = vld [vmem:[%s8313 + $0x20] sm:$0xff]
    %v8319 = vld [vmem:[%s8313 + $0x28] sm:$0xff]
    %v8320 = vld [vmem:[%s8313 + $0x30] sm:$0xff]
    %v8321 = vld [vmem:[%s8313 + $0x38] sm:$0xff]
    %v8322 = vld [vmem:[%s8313 + $0x40] sm:$0xff]
    %v8323 = vld [vmem:[%s8313 + $0x48] sm:$0xff]
    %v8324 = vld [vmem:[%s8313 + $0x50] sm:$0xff]
    %v8325 = vld [vmem:[%s8313 + $0x58] sm:$0xff]
    %v8326 = vld [vmem:[%s8313 + $0x60] sm:$0xff]
    %v8327 = vld [vmem:[%s8313 + $0x68] sm:$0xff]
    %v8328 = vld [vmem:[%s8313 + $0x70] sm:$0xff]
    %v8329 = vld [vmem:[%s8313 + $0x78] sm:$0xff]
    %v8330 = vld [vmem:[%s8313 + $0x80] sm:$0xff]
    %v8331 = vld [vmem:[%s8313 + $0x88] sm:$0xff]
    %v8332 = vld [vmem:[%s8313 + $0x90] sm:$0xff]
    %v8333 = vld [vmem:[%s8313 + $0x98] sm:$0xff]
    %v8334 = vld [vmem:[%s8313 + $0xa0] sm:$0xff]
    %v8335 = vld [vmem:[%s8313 + $0xa8] sm:$0xff]
    %v8336 = vld [vmem:[%s8313 + $0xb0] sm:$0xff]
    %v8337 = vld [vmem:[%s8313 + $0xb8] sm:$0xff]
    %v8338 = vld [vmem:[%s8313 + $0xc0] sm:$0xff]
    %v8339 = vld [vmem:[%s8313 + $0xc8] sm:$0xff]
    %v8340 = vld [vmem:[%s8313 + $0xd0] sm:$0xff]
    %v8341 = vld [vmem:[%s8313 + $0xd8] sm:$0xff]
    %v8342 = vld [vmem:[%s8313 + $0xe0] sm:$0xff]
    %v8343 = vld [vmem:[%s8313 + $0xe8] sm:$0xff]
    %v8344 = vld [vmem:[%s8313 + $0xf0] sm:$0xff]
    %v8345 = vld [vmem:[%s8313 + $0xf8] sm:$0xff]
    %v8346 = vcombine.low %v8285, %v8294
    %v8347 = vcombine.low %v8303, %v8312
    %v8349 = vunpack.c.l.s4 1966171168
    %v8350 = vunpack.c.0.s8 %v8349
    %v8351 = vlaneseq
    %v8352 = vshrl.u32 %v8351, 7
    %v8353 = vsub.s32 %v8350, %v8352
    %v8354 = vrot.slane %v8346, %v8353
    %v8356 = vunpack.c.l.s4 1966171168
    %v8357 = vunpack.c.0.s8 %v8356
    %v8358 = vlaneseq
    %v8359 = vshrl.u32 %v8358, 7
    %v8360 = vsub.s32 %v8357, %v8359
    %v8361 = vrot.slane %v8347, %v8360
    %v8362 = vcombine.low %v8354, %v8361
    %v8364 = vunpack.c.l.s4 1966171168
    %v8365 = vunpack.c.0.s8 %v8364
    %v8366 = vlaneseq
    %v8367 = vshrl.u32 %v8366, 7
    %v8368 = vsub.s32 %v8365, %v8367
    %v8369 = vrot.slane %v8362, %v8368
    %v8403 = vunpack.c.l.b16 %v8314
    %v8404 = vunpack.c.h.b16 %v8314
    %v8405 = vunpack.c.l.b16 %v8315
    %v8406 = vunpack.c.h.b16 %v8315
    %v8407 = vunpack.c.l.b16 %v8316
    %v8408 = vunpack.c.h.b16 %v8316
    %v8409 = vunpack.c.l.b16 %v8317
    %v8410 = vunpack.c.h.b16 %v8317
    %v8411 = vunpack.c.l.b16 %v8318
    %v8412 = vunpack.c.h.b16 %v8318
    %v8413 = vunpack.c.l.b16 %v8319
    %v8414 = vunpack.c.h.b16 %v8319
    %v8415 = vunpack.c.l.b16 %v8320
    %v8416 = vunpack.c.h.b16 %v8320
    %v8417 = vunpack.c.l.b16 %v8321
    %v8418 = vunpack.c.h.b16 %v8321
    %v8419 = vunpack.c.l.b16 %v8322
    %v8420 = vunpack.c.h.b16 %v8322
    %v8421 = vunpack.c.l.b16 %v8323
    %v8422 = vunpack.c.h.b16 %v8323
    %v8423 = vunpack.c.l.b16 %v8324
    %v8424 = vunpack.c.h.b16 %v8324
    %v8425 = vunpack.c.l.b16 %v8325
    %v8426 = vunpack.c.h.b16 %v8325
    %v8427 = vunpack.c.l.b16 %v8326
    %v8428 = vunpack.c.h.b16 %v8326
    %v8429 = vunpack.c.l.b16 %v8327
    %v8430 = vunpack.c.h.b16 %v8327
    %v8431 = vunpack.c.l.b16 %v8328
    %v8432 = vunpack.c.h.b16 %v8328
    %v8433 = vunpack.c.l.b16 %v8329
    %v8434 = vunpack.c.h.b16 %v8329
    %v8435 = vunpack.c.l.b16 %v8330
    %v8436 = vunpack.c.h.b16 %v8330
    %v8437 = vunpack.c.l.b16 %v8331
    %v8438 = vunpack.c.h.b16 %v8331
    %v8439 = vunpack.c.l.b16 %v8332
    %v8440 = vunpack.c.h.b16 %v8332
    %v8441 = vunpack.c.l.b16 %v8333
    %v8442 = vunpack.c.h.b16 %v8333
    %v8443 = vunpack.c.l.b16 %v8334
    %v8444 = vunpack.c.h.b16 %v8334
    %v8445 = vunpack.c.l.b16 %v8335
    %v8446 = vunpack.c.h.b16 %v8335
    %v8447 = vunpack.c.l.b16 %v8336
    %v8448 = vunpack.c.h.b16 %v8336
    %v8449 = vunpack.c.l.b16 %v8337
    %v8450 = vunpack.c.h.b16 %v8337
    %v8451 = vunpack.c.l.b16 %v8338
    %v8452 = vunpack.c.h.b16 %v8338
    %v8453 = vunpack.c.l.b16 %v8339
    %v8454 = vunpack.c.h.b16 %v8339
    %v8455 = vunpack.c.l.b16 %v8340
    %v8456 = vunpack.c.h.b16 %v8340
    %v8457 = vunpack.c.l.b16 %v8341
    %v8458 = vunpack.c.h.b16 %v8341
    %v8459 = vunpack.c.l.b16 %v8342
    %v8460 = vunpack.c.h.b16 %v8342
    %v8461 = vunpack.c.l.b16 %v8343
    %v8462 = vunpack.c.h.b16 %v8343
    %v8463 = vunpack.c.l.b16 %v8344
    %v8464 = vunpack.c.h.b16 %v8344
    %v8465 = vunpack.c.l.b16 %v8345
    %v8466 = vunpack.c.h.b16 %v8345
    %v8467 = vpack.c.b16 %v8407, %v8403
    %v8468 = vpack.c.b16 %v8408, %v8404
    %v8469 = vpack.c.b16 %v8409, %v8405
    %v8470 = vpack.c.b16 %v8410, %v8406
    %v8471 = vpack.c.b16 %v8415, %v8411
    %v8472 = vpack.c.b16 %v8416, %v8412
    %v8473 = vpack.c.b16 %v8417, %v8413
    %v8474 = vpack.c.b16 %v8418, %v8414
    %v8475 = vpack.c.b16 %v8423, %v8419
    %v8476 = vpack.c.b16 %v8424, %v8420
    %v8477 = vpack.c.b16 %v8425, %v8421
    %v8478 = vpack.c.b16 %v8426, %v8422
    %v8479 = vpack.c.b16 %v8431, %v8427
    %v8480 = vpack.c.b16 %v8432, %v8428
    %v8481 = vpack.c.b16 %v8433, %v8429
    %v8482 = vpack.c.b16 %v8434, %v8430
    %v8483 = vpack.c.b16 %v8439, %v8435
    %v8484 = vpack.c.b16 %v8440, %v8436
    %v8485 = vpack.c.b16 %v8441, %v8437
    %v8486 = vpack.c.b16 %v8442, %v8438
    %v8487 = vpack.c.b16 %v8447, %v8443
    %v8488 = vpack.c.b16 %v8448, %v8444
    %v8489 = vpack.c.b16 %v8449, %v8445
    %v8490 = vpack.c.b16 %v8450, %v8446
    %v8491 = vpack.c.b16 %v8455, %v8451
    %v8492 = vpack.c.b16 %v8456, %v8452
    %v8493 = vpack.c.b16 %v8457, %v8453
    %v8494 = vpack.c.b16 %v8458, %v8454
    %v8495 = vpack.c.b16 %v8463, %v8459
    %v8496 = vpack.c.b16 %v8464, %v8460
    %v8497 = vpack.c.b16 %v8465, %v8461
    %v8498 = vpack.c.b16 %v8466, %v8462
    %8531 = vmatprep.subr.bf16.mxu0 %v8468
    %8532 = vmatpush1.bf16.msra.mxu0 %v8467
    %8533 = vmatprep.subr.bf16.mxu0 %v8472
    %8534 = vmatpush1.bf16.msra.mxu0 %v8471
    %8535 = vmatprep.subr.bf16.mxu0 %v8476
    %8536 = vmatpush1.bf16.msra.mxu0 %v8475
    %8537 = vmatprep.subr.bf16.mxu0 %v8480
    %8538 = vmatpush1.bf16.msra.mxu0 %v8479
    %8539 = vmatprep.subr.bf16.mxu0 %v8484
    %8540 = vmatpush1.bf16.msra.mxu0 %v8483
    %8541 = vmatprep.subr.bf16.mxu0 %v8488
    %8542 = vmatpush1.bf16.msra.mxu0 %v8487
    %8543 = vmatprep.subr.bf16.mxu0 %v8492
    %8544 = vmatpush1.bf16.msra.mxu0 %v8491
    %8545 = vmatprep.subr.bf16.mxu0 %v8496
    %8546 = vmatpush1.bf16.msra.mxu0 %v8495
    %8547 = vmatprep.subr.bf16.mxu0 0
    %8548 = vmatpush1.bf16.msra.mxu0 0
    %8549 = vmatprep.subr.bf16.mxu0 0
    %8550 = vmatpush1.bf16.msra.mxu0 0
    %8551 = vmatprep.subr.bf16.mxu0 0
    %8552 = vmatpush1.bf16.msra.mxu0 0
    %8553 = vmatprep.subr.bf16.mxu0 0
    %8554 = vmatpush1.bf16.msra.mxu0 0
    %8555 = vmatprep.subr.bf16.mxu0 0
    %8556 = vmatpush1.bf16.msra.mxu0 0
    %8557 = vmatprep.subr.bf16.mxu0 0
    %8558 = vmatpush1.bf16.msra.mxu0 0
    %8559 = vmatprep.subr.bf16.mxu0 0
    %8560 = vmatpush1.bf16.msra.mxu0 0
    %8561 = vmatprep.subr.bf16.mxu0 0
    %8562 = vmatpush1.bf16.msra.mxu0 0
    %8563 = vmatprep.mubr.bf16.mxu0 0
    %8564 = vmatmul.mubr.bf16.gmra.mrb[0].mxu0 %v8369
    %v8565 = vpop.f32.mrb[0].mxu0
    %v8566 = vadd.f32 0.0, %v8565
    %v8567 = vpop.f32.mrb[0].mxu0
    %v8568 = vadd.f32 0.0, %v8567
    %v8569 = vpop.f32.mrb[0].mxu0
    %v8570 = vpop.f32.mrb[0].mxu0
    %8571 = vdwg.mxu0
    %8572 = vmatprep.subr.bf16.mxu0 %v8470
    %8573 = vmatpush1.bf16.msra.mxu0 %v8469
    %8574 = vmatprep.subr.bf16.mxu0 %v8474
    %8575 = vmatpush1.bf16.msra.mxu0 %v8473
    %8576 = vmatprep.subr.bf16.mxu0 %v8478
    %8577 = vmatpush1.bf16.msra.mxu0 %v8477
    %8578 = vmatprep.subr.bf16.mxu0 %v8482
    %8579 = vmatpush1.bf16.msra.mxu0 %v8481
    %8580 = vmatprep.subr.bf16.mxu0 %v8486
    %8581 = vmatpush1.bf16.msra.mxu0 %v8485
    %8582 = vmatprep.subr.bf16.mxu0 %v8490
    %8583 = vmatpush1.bf16.msra.mxu0 %v8489
    %8584 = vmatprep.subr.bf16.mxu0 %v8494
    %8585 = vmatpush1.bf16.msra.mxu0 %v8493
    %8586 = vmatprep.subr.bf16.mxu0 %v8498
    %8587 = vmatpush1.bf16.msra.mxu0 %v8497
    %8588 = vmatprep.subr.bf16.mxu0 0
    %8589 = vmatpush1.bf16.msra.mxu0 0
    %8590 = vmatprep.subr.bf16.mxu0 0
    %8591 = vmatpush1.bf16.msra.mxu0 0
    %8592 = vmatprep.subr.bf16.mxu0 0
    %8593 = vmatpush1.bf16.msra.mxu0 0
    %8594 = vmatprep.subr.bf16.mxu0 0
    %8595 = vmatpush1.bf16.msra.mxu0 0
    %8596 = vmatprep.subr.bf16.mxu0 0
    %8597 = vmatpush1.bf16.msra.mxu0 0
    %8598 = vmatprep.subr.bf16.mxu0 0
    %8599 = vmatpush1.bf16.msra.mxu0 0
    %8600 = vmatprep.subr.bf16.mxu0 0
    %8601 = vmatpush1.bf16.msra.mxu0 0
    %8602 = vmatprep.subr.bf16.mxu0 0
    %8603 = vmatpush1.bf16.msra.mxu0 0
    %8604 = vmatprep.mubr.bf16.mxu0 0
    %8605 = vmatmul.mubr.bf16.gmra.mrb[0].mxu0 %v8369
    %v8606 = vpop.f32.mrb[0].mxu0
    %v8607 = vadd.f32 0.0, %v8606
    %v8608 = vpop.f32.mrb[0].mxu0
    %v8609 = vadd.f32 0.0, %v8608
    %v8610 = vpop.f32.mrb[0].mxu0
    %v8611 = vpop.f32.mrb[0].mxu0
    %8612 = vdwg.mxu0
    %v8613 = vadd.f32 %v8233, %v8566
    %v8614 = vadd.f32 %v8234, %v8568
    %v8615 = vadd.f32 %v8235, %v8607
    %v8616 = vadd.f32 %v8236, %v8609
    %v8617 = vld [vmem:[%s6868] sm:$0x2]
    %v8618 = vld [vmem:[%s6868 + $0x2] sm:$0x2]
    %v8619 = vld [vmem:[%s6868 + $0x8] sm:$0x2]
    %v8620 = vld [vmem:[%s6868 + $0xa] sm:$0x2]
    %v8626 = vunpack.c.l.s4 1966171168
    %v8627 = vunpack.c.0.s8 %v8626
    %v8628 = vlaneseq
    %v8629 = vshrl.u32 %v8628, 7
    %v8630 = vsub.s32 %v8627, %v8629
    %v8631 = vrot.slane %v8617, %v8630
    %v8632 = vcombine.high %v8631, %v8631
    %v8634 = vunpack.c.l.s4 1966171168
    %v8635 = vunpack.c.0.s8 %v8634
    %v8636 = vlaneseq
    %v8637 = vshrl.u32 %v8636, 7
    %v8638 = vsub.s32 %v8635, %v8637
    %v8639 = vrot.slane %v8618, %v8638
    %v8640 = vcombine.high %v8639, %v8639
    %v8642 = vunpack.c.l.s4 1966171168
    %v8643 = vunpack.c.0.s8 %v8642
    %v8644 = vlaneseq
    %v8645 = vshrl.u32 %v8644, 7
    %v8646 = vsub.s32 %v8643, %v8645
    %v8647 = vrot.slane %v8619, %v8646
    %v8648 = vcombine.high %v8647, %v8647
    %v8650 = vunpack.c.l.s4 1966171168
    %v8651 = vunpack.c.0.s8 %v8650
    %v8652 = vlaneseq
    %v8653 = vshrl.u32 %v8652, 7
    %v8654 = vsub.s32 %v8651, %v8653
    %v8655 = vrot.slane %v8620, %v8654
    %v8656 = vcombine.high %v8655, %v8655
    %s8657 = scalar_lea.vmem [#allocation13], 1280
    %v8658 = vld [vmem:[%s8657] sm:$0xff]
    %v8659 = vld [vmem:[%s8657 + $0x8] sm:$0xff]
    %v8660 = vld [vmem:[%s8657 + $0x10] sm:$0xff]
    %v8661 = vld [vmem:[%s8657 + $0x18] sm:$0xff]
    %v8662 = vld [vmem:[%s8657 + $0x20] sm:$0xff]
    %v8663 = vld [vmem:[%s8657 + $0x28] sm:$0xff]
    %v8664 = vld [vmem:[%s8657 + $0x30] sm:$0xff]
    %v8665 = vld [vmem:[%s8657 + $0x38] sm:$0xff]
    %v8666 = vld [vmem:[%s8657 + $0x40] sm:$0xff]
    %v8667 = vld [vmem:[%s8657 + $0x48] sm:$0xff]
    %v8668 = vld [vmem:[%s8657 + $0x50] sm:$0xff]
    %v8669 = vld [vmem:[%s8657 + $0x58] sm:$0xff]
    %v8670 = vld [vmem:[%s8657 + $0x60] sm:$0xff]
    %v8671 = vld [vmem:[%s8657 + $0x68] sm:$0xff]
    %v8672 = vld [vmem:[%s8657 + $0x70] sm:$0xff]
    %v8673 = vld [vmem:[%s8657 + $0x78] sm:$0xff]
    %v8674 = vld [vmem:[%s8657 + $0x80] sm:$0xff]
    %v8675 = vld [vmem:[%s8657 + $0x88] sm:$0xff]
    %v8676 = vld [vmem:[%s8657 + $0x90] sm:$0xff]
    %v8677 = vld [vmem:[%s8657 + $0x98] sm:$0xff]
    %v8678 = vld [vmem:[%s8657 + $0xa0] sm:$0xff]
    %v8679 = vld [vmem:[%s8657 + $0xa8] sm:$0xff]
    %v8680 = vld [vmem:[%s8657 + $0xb0] sm:$0xff]
    %v8681 = vld [vmem:[%s8657 + $0xb8] sm:$0xff]
    %v8682 = vld [vmem:[%s8657 + $0xc0] sm:$0xff]
    %v8683 = vld [vmem:[%s8657 + $0xc8] sm:$0xff]
    %v8684 = vld [vmem:[%s8657 + $0xd0] sm:$0xff]
    %v8685 = vld [vmem:[%s8657 + $0xd8] sm:$0xff]
    %v8686 = vld [vmem:[%s8657 + $0xe0] sm:$0xff]
    %v8687 = vld [vmem:[%s8657 + $0xe8] sm:$0xff]
    %v8688 = vld [vmem:[%s8657 + $0xf0] sm:$0xff]
    %v8689 = vld [vmem:[%s8657 + $0xf8] sm:$0xff]
    %v8690 = vcombine.low %v8632, %v8640
    %v8691 = vcombine.low %v8648, %v8656
    %v8693 = vunpack.c.l.s4 1966171168
    %v8694 = vunpack.c.0.s8 %v8693
    %v8695 = vlaneseq
    %v8696 = vshrl.u32 %v8695, 7
    %v8697 = vsub.s32 %v8694, %v8696
    %v8698 = vrot.slane %v8690, %v8697
    %v8700 = vunpack.c.l.s4 1966171168
    %v8701 = vunpack.c.0.s8 %v8700
    %v8702 = vlaneseq
    %v8703 = vshrl.u32 %v8702, 7
    %v8704 = vsub.s32 %v8701, %v8703
    %v8705 = vrot.slane %v8691, %v8704
    %v8706 = vcombine.low %v8698, %v8705
    %v8708 = vunpack.c.l.s4 1966171168
    %v8709 = vunpack.c.0.s8 %v8708
    %v8710 = vlaneseq
    %v8711 = vshrl.u32 %v8710, 7
    %v8712 = vsub.s32 %v8709, %v8711
    %v8713 = vrot.slane %v8706, %v8712
    %v8747 = vunpack.c.l.b16 %v8658
    %v8748 = vunpack.c.h.b16 %v8658
    %v8749 = vunpack.c.l.b16 %v8659
    %v8750 = vunpack.c.h.b16 %v8659
    %v8751 = vunpack.c.l.b16 %v8660
    %v8752 = vunpack.c.h.b16 %v8660
    %v8753 = vunpack.c.l.b16 %v8661
    %v8754 = vunpack.c.h.b16 %v8661
    %v8755 = vunpack.c.l.b16 %v8662
    %v8756 = vunpack.c.h.b16 %v8662
    %v8757 = vunpack.c.l.b16 %v8663
    %v8758 = vunpack.c.h.b16 %v8663
    %v8759 = vunpack.c.l.b16 %v8664
    %v8760 = vunpack.c.h.b16 %v8664
    %v8761 = vunpack.c.l.b16 %v8665
    %v8762 = vunpack.c.h.b16 %v8665
    %v8763 = vunpack.c.l.b16 %v8666
    %v8764 = vunpack.c.h.b16 %v8666
    %v8765 = vunpack.c.l.b16 %v8667
    %v8766 = vunpack.c.h.b16 %v8667
    %v8767 = vunpack.c.l.b16 %v8668
    %v8768 = vunpack.c.h.b16 %v8668
    %v8769 = vunpack.c.l.b16 %v8669
    %v8770 = vunpack.c.h.b16 %v8669
    %v8771 = vunpack.c.l.b16 %v8670
    %v8772 = vunpack.c.h.b16 %v8670
    %v8773 = vunpack.c.l.b16 %v8671
    %v8774 = vunpack.c.h.b16 %v8671
    %v8775 = vunpack.c.l.b16 %v8672
    %v8776 = vunpack.c.h.b16 %v8672
    %v8777 = vunpack.c.l.b16 %v8673
    %v8778 = vunpack.c.h.b16 %v8673
    %v8779 = vunpack.c.l.b16 %v8674
    %v8780 = vunpack.c.h.b16 %v8674
    %v8781 = vunpack.c.l.b16 %v8675
    %v8782 = vunpack.c.h.b16 %v8675
    %v8783 = vunpack.c.l.b16 %v8676
    %v8784 = vunpack.c.h.b16 %v8676
    %v8785 = vunpack.c.l.b16 %v8677
    %v8786 = vunpack.c.h.b16 %v8677
    %v8787 = vunpack.c.l.b16 %v8678
    %v8788 = vunpack.c.h.b16 %v8678
    %v8789 = vunpack.c.l.b16 %v8679
    %v8790 = vunpack.c.h.b16 %v8679
    %v8791 = vunpack.c.l.b16 %v8680
    %v8792 = vunpack.c.h.b16 %v8680
    %v8793 = vunpack.c.l.b16 %v8681
    %v8794 = vunpack.c.h.b16 %v8681
    %v8795 = vunpack.c.l.b16 %v8682
    %v8796 = vunpack.c.h.b16 %v8682
    %v8797 = vunpack.c.l.b16 %v8683
    %v8798 = vunpack.c.h.b16 %v8683
    %v8799 = vunpack.c.l.b16 %v8684
    %v8800 = vunpack.c.h.b16 %v8684
    %v8801 = vunpack.c.l.b16 %v8685
    %v8802 = vunpack.c.h.b16 %v8685
    %v8803 = vunpack.c.l.b16 %v8686
    %v8804 = vunpack.c.h.b16 %v8686
    %v8805 = vunpack.c.l.b16 %v8687
    %v8806 = vunpack.c.h.b16 %v8687
    %v8807 = vunpack.c.l.b16 %v8688
    %v8808 = vunpack.c.h.b16 %v8688
    %v8809 = vunpack.c.l.b16 %v8689
    %v8810 = vunpack.c.h.b16 %v8689
    %v8811 = vpack.c.b16 %v8751, %v8747
    %v8812 = vpack.c.b16 %v8752, %v8748
    %v8813 = vpack.c.b16 %v8753, %v8749
    %v8814 = vpack.c.b16 %v8754, %v8750
    %v8815 = vpack.c.b16 %v8759, %v8755
    %v8816 = vpack.c.b16 %v8760, %v8756
    %v8817 = vpack.c.b16 %v8761, %v8757
    %v8818 = vpack.c.b16 %v8762, %v8758
    %v8819 = vpack.c.b16 %v8767, %v8763
    %v8820 = vpack.c.b16 %v8768, %v8764
    %v8821 = vpack.c.b16 %v8769, %v8765
    %v8822 = vpack.c.b16 %v8770, %v8766
    %v8823 = vpack.c.b16 %v8775, %v8771
    %v8824 = vpack.c.b16 %v8776, %v8772
    %v8825 = vpack.c.b16 %v8777, %v8773
    %v8826 = vpack.c.b16 %v8778, %v8774
    %v8827 = vpack.c.b16 %v8783, %v8779
    %v8828 = vpack.c.b16 %v8784, %v8780
    %v8829 = vpack.c.b16 %v8785, %v8781
    %v8830 = vpack.c.b16 %v8786, %v8782
    %v8831 = vpack.c.b16 %v8791, %v8787
    %v8832 = vpack.c.b16 %v8792, %v8788
    %v8833 = vpack.c.b16 %v8793, %v8789
    %v8834 = vpack.c.b16 %v8794, %v8790
    %v8835 = vpack.c.b16 %v8799, %v8795
    %v8836 = vpack.c.b16 %v8800, %v8796
    %v8837 = vpack.c.b16 %v8801, %v8797
    %v8838 = vpack.c.b16 %v8802, %v8798
    %v8839 = vpack.c.b16 %v8807, %v8803
    %v8840 = vpack.c.b16 %v8808, %v8804
    %v8841 = vpack.c.b16 %v8809, %v8805
    %v8842 = vpack.c.b16 %v8810, %v8806
    %8875 = vmatprep.subr.bf16.mxu0 %v8812
    %8876 = vmatpush1.bf16.msra.mxu0 %v8811
    %8877 = vmatprep.subr.bf16.mxu0 %v8816
    %8878 = vmatpush1.bf16.msra.mxu0 %v8815
    %8879 = vmatprep.subr.bf16.mxu0 %v8820
    %8880 = vmatpush1.bf16.msra.mxu0 %v8819
    %8881 = vmatprep.subr.bf16.mxu0 %v8824
    %8882 = vmatpush1.bf16.msra.mxu0 %v8823
    %8883 = vmatprep.subr.bf16.mxu0 %v8828
    %8884 = vmatpush1.bf16.msra.mxu0 %v8827
    %8885 = vmatprep.subr.bf16.mxu0 %v8832
    %8886 = vmatpush1.bf16.msra.mxu0 %v8831
    %8887 = vmatprep.subr.bf16.mxu0 %v8836
    %8888 = vmatpush1.bf16.msra.mxu0 %v8835
    %8889 = vmatprep.subr.bf16.mxu0 %v8840
    %8890 = vmatpush1.bf16.msra.mxu0 %v8839
    %8891 = vmatprep.subr.bf16.mxu0 0
    %8892 = vmatpush1.bf16.msra.mxu0 0
    %8893 = vmatprep.subr.bf16.mxu0 0
    %8894 = vmatpush1.bf16.msra.mxu0 0
    %8895 = vmatprep.subr.bf16.mxu0 0
    %8896 = vmatpush1.bf16.msra.mxu0 0
    %8897 = vmatprep.subr.bf16.mxu0 0
    %8898 = vmatpush1.bf16.msra.mxu0 0
    %8899 = vmatprep.subr.bf16.mxu0 0
    %8900 = vmatpush1.bf16.msra.mxu0 0
    %8901 = vmatprep.subr.bf16.mxu0 0
    %8902 = vmatpush1.bf16.msra.mxu0 0
    %8903 = vmatprep.subr.bf16.mxu0 0
    %8904 = vmatpush1.bf16.msra.mxu0 0
    %8905 = vmatprep.subr.bf16.mxu0 0
    %8906 = vmatpush1.bf16.msra.mxu0 0
    %8907 = vmatprep.mubr.bf16.mxu0 0
    %8908 = vmatmul.mubr.bf16.gmra.mrb[0].mxu0 %v8713
    %v8909 = vpop.f32.mrb[0].mxu0
    %v8910 = vadd.f32 0.0, %v8909
    %v8911 = vpop.f32.mrb[0].mxu0
    %v8912 = vadd.f32 0.0, %v8911
    %v8913 = vpop.f32.mrb[0].mxu0
    %v8914 = vpop.f32.mrb[0].mxu0
    %8915 = vdwg.mxu0
    %8916 = vmatprep.subr.bf16.mxu0 %v8814
    %8917 = vmatpush1.bf16.msra.mxu0 %v8813
    %8918 = vmatprep.subr.bf16.mxu0 %v8818
    %8919 = vmatpush1.bf16.msra.mxu0 %v8817
    %8920 = vmatprep.subr.bf16.mxu0 %v8822
    %8921 = vmatpush1.bf16.msra.mxu0 %v8821
    %8922 = vmatprep.subr.bf16.mxu0 %v8826
    %8923 = vmatpush1.bf16.msra.mxu0 %v8825
    %8924 = vmatprep.subr.bf16.mxu0 %v8830
    %8925 = vmatpush1.bf16.msra.mxu0 %v8829
    %8926 = vmatprep.subr.bf16.mxu0 %v8834
    %8927 = vmatpush1.bf16.msra.mxu0 %v8833
    %8928 = vmatprep.subr.bf16.mxu0 %v8838
    %8929 = vmatpush1.bf16.msra.mxu0 %v8837
    %8930 = vmatprep.subr.bf16.mxu0 %v8842
    %8931 = vmatpush1.bf16.msra.mxu0 %v8841
    %8932 = vmatprep.subr.bf16.mxu0 0
    %8933 = vmatpush1.bf16.msra.mxu0 0
    %8934 = vmatprep.subr.bf16.mxu0 0
    %8935 = vmatpush1.bf16.msra.mxu0 0
    %8936 = vmatprep.subr.bf16.mxu0 0
    %8937 = vmatpush1.bf16.msra.mxu0 0
    %8938 = vmatprep.subr.bf16.mxu0 0
    %8939 = vmatpush1.bf16.msra.mxu0 0
    %8940 = vmatprep.subr.bf16.mxu0 0
    %8941 = vmatpush1.bf16.msra.mxu0 0
    %8942 = vmatprep.subr.bf16.mxu0 0
    %8943 = vmatpush1.bf16.msra.mxu0 0
    %8944 = vmatprep.subr.bf16.mxu0 0
    %8945 = vmatpush1.bf16.msra.mxu0 0
    %8946 = vmatprep.subr.bf16.mxu0 0
    %8947 = vmatpush1.bf16.msra.mxu0 0
    %8948 = vmatprep.mubr.bf16.mxu0 0
    %8949 = vmatmul.mubr.bf16.gmra.mrb[0].mxu0 %v8713
    %v8950 = vpop.f32.mrb[0].mxu0
    %v8951 = vadd.f32 0.0, %v8950
    %v8952 = vpop.f32.mrb[0].mxu0
    %v8953 = vadd.f32 0.0, %v8952
    %v8954 = vpop.f32.mrb[0].mxu0
    %v8955 = vpop.f32.mrb[0].mxu0
    %8956 = vdwg.mxu0
    %v8957 = vadd.f32 %v8613, %v8910
    %v8958 = vadd.f32 %v8614, %v8912
    %v8959 = vadd.f32 %v8615, %v8951
    %v8960 = vadd.f32 %v8616, %v8953
    %s8961 = scalar_lea.vmem [#allocation4], 4
    %v8962 = vld [vmem:[%s8961] sm:$0x1]
    %v8963 = vld [vmem:[%s8961 + $0x2] sm:$0x1]
    %v8964 = vld [vmem:[%s8961 + $0x8] sm:$0x1]
    %v8965 = vld [vmem:[%s8961 + $0xa] sm:$0x1]
    %s8966 = scalar_lea.vmem [#allocation13], 1536
    %v8967 = vld [vmem:[%s8966] sm:$0xff]
    %v8968 = vld [vmem:[%s8966 + $0x8] sm:$0xff]
    %v8969 = vld [vmem:[%s8966 + $0x10] sm:$0xff]
    %v8970 = vld [vmem:[%s8966 + $0x18] sm:$0xff]
    %v8971 = vld [vmem:[%s8966 + $0x20] sm:$0xff]
    %v8972 = vld [vmem:[%s8966 + $0x28] sm:$0xff]
    %v8973 = vld [vmem:[%s8966 + $0x30] sm:$0xff]
    %v8974 = vld [vmem:[%s8966 + $0x38] sm:$0xff]
    %v8975 = vld [vmem:[%s8966 + $0x40] sm:$0xff]
    %v8976 = vld [vmem:[%s8966 + $0x48] sm:$0xff]
    %v8977 = vld [vmem:[%s8966 + $0x50] sm:$0xff]
    %v8978 = vld [vmem:[%s8966 + $0x58] sm:$0xff]
    %v8979 = vld [vmem:[%s8966 + $0x60] sm:$0xff]
    %v8980 = vld [vmem:[%s8966 + $0x68] sm:$0xff]
    %v8981 = vld [vmem:[%s8966 + $0x70] sm:$0xff]
    %v8982 = vld [vmem:[%s8966 + $0x78] sm:$0xff]
    %v8983 = vld [vmem:[%s8966 + $0x80] sm:$0xff]
    %v8984 = vld [vmem:[%s8966 + $0x88] sm:$0xff]
    %v8985 = vld [vmem:[%s8966 + $0x90] sm:$0xff]
    %v8986 = vld [vmem:[%s8966 + $0x98] sm:$0xff]
    %v8987 = vld [vmem:[%s8966 + $0xa0] sm:$0xff]
    %v8988 = vld [vmem:[%s8966 + $0xa8] sm:$0xff]
    %v8989 = vld [vmem:[%s8966 + $0xb0] sm:$0xff]
    %v8990 = vld [vmem:[%s8966 + $0xb8] sm:$0xff]
    %v8991 = vld [vmem:[%s8966 + $0xc0] sm:$0xff]
    %v8992 = vld [vmem:[%s8966 + $0xc8] sm:$0xff]
    %v8993 = vld [vmem:[%s8966 + $0xd0] sm:$0xff]
    %v8994 = vld [vmem:[%s8966 + $0xd8] sm:$0xff]
    %v8995 = vld [vmem:[%s8966 + $0xe0] sm:$0xff]
    %v8996 = vld [vmem:[%s8966 + $0xe8] sm:$0xff]
    %v8997 = vld [vmem:[%s8966 + $0xf0] sm:$0xff]
    %v8998 = vld [vmem:[%s8966 + $0xf8] sm:$0xff]
    %v9003 = vcombine.low %v8962, %v8963
    %v9004 = vcombine.low %v8964, %v8965
    %v9006 = vunpack.c.l.s4 1966171168
    %v9007 = vunpack.c.0.s8 %v9006
    %v9008 = vlaneseq
    %v9009 = vshrl.u32 %v9008, 7
    %v9010 = vsub.s32 %v9007, %v9009
    %v9011 = vrot.slane %v9003, %v9010
    %v9013 = vunpack.c.l.s4 1966171168
    %v9014 = vunpack.c.0.s8 %v9013
    %v9015 = vlaneseq
    %v9016 = vshrl.u32 %v9015, 7
    %v9017 = vsub.s32 %v9014, %v9016
    %v9018 = vrot.slane %v9004, %v9017
    %v9019 = vcombine.low %v9011, %v9018
    %v9021 = vunpack.c.l.s4 1966171168
    %v9022 = vunpack.c.0.s8 %v9021
    %v9023 = vlaneseq
    %v9024 = vshrl.u32 %v9023, 7
    %v9025 = vsub.s32 %v9022, %v9024
    %v9026 = vrot.slane %v9019, %v9025
    %v9060 = vunpack.c.l.b16 %v8967
    %v9061 = vunpack.c.h.b16 %v8967
    %v9062 = vunpack.c.l.b16 %v8968
    %v9063 = vunpack.c.h.b16 %v8968
    %v9064 = vunpack.c.l.b16 %v8969
    %v9065 = vunpack.c.h.b16 %v8969
    %v9066 = vunpack.c.l.b16 %v8970
    %v9067 = vunpack.c.h.b16 %v8970
    %v9068 = vunpack.c.l.b16 %v8971
    %v9069 = vunpack.c.h.b16 %v8971
    %v9070 = vunpack.c.l.b16 %v8972
    %v9071 = vunpack.c.h.b16 %v8972
    %v9072 = vunpack.c.l.b16 %v8973
    %v9073 = vunpack.c.h.b16 %v8973
    %v9074 = vunpack.c.l.b16 %v8974
    %v9075 = vunpack.c.h.b16 %v8974
    %v9076 = vunpack.c.l.b16 %v8975
    %v9077 = vunpack.c.h.b16 %v8975
    %v9078 = vunpack.c.l.b16 %v8976
    %v9079 = vunpack.c.h.b16 %v8976
    %v9080 = vunpack.c.l.b16 %v8977
    %v9081 = vunpack.c.h.b16 %v8977
    %v9082 = vunpack.c.l.b16 %v8978
    %v9083 = vunpack.c.h.b16 %v8978
    %v9084 = vunpack.c.l.b16 %v8979
    %v9085 = vunpack.c.h.b16 %v8979
    %v9086 = vunpack.c.l.b16 %v8980
    %v9087 = vunpack.c.h.b16 %v8980
    %v9088 = vunpack.c.l.b16 %v8981
    %v9089 = vunpack.c.h.b16 %v8981
    %v9090 = vunpack.c.l.b16 %v8982
    %v9091 = vunpack.c.h.b16 %v8982
    %v9092 = vunpack.c.l.b16 %v8983
    %v9093 = vunpack.c.h.b16 %v8983
    %v9094 = vunpack.c.l.b16 %v8984
    %v9095 = vunpack.c.h.b16 %v8984
    %v9096 = vunpack.c.l.b16 %v8985
    %v9097 = vunpack.c.h.b16 %v8985
    %v9098 = vunpack.c.l.b16 %v8986
    %v9099 = vunpack.c.h.b16 %v8986
    %v9100 = vunpack.c.l.b16 %v8987
    %v9101 = vunpack.c.h.b16 %v8987
    %v9102 = vunpack.c.l.b16 %v8988
    %v9103 = vunpack.c.h.b16 %v8988
    %v9104 = vunpack.c.l.b16 %v8989
    %v9105 = vunpack.c.h.b16 %v8989
    %v9106 = vunpack.c.l.b16 %v8990
    %v9107 = vunpack.c.h.b16 %v8990
    %v9108 = vunpack.c.l.b16 %v8991
    %v9109 = vunpack.c.h.b16 %v8991
    %v9110 = vunpack.c.l.b16 %v8992
    %v9111 = vunpack.c.h.b16 %v8992
    %v9112 = vunpack.c.l.b16 %v8993
    %v9113 = vunpack.c.h.b16 %v8993
    %v9114 = vunpack.c.l.b16 %v8994
    %v9115 = vunpack.c.h.b16 %v8994
    %v9116 = vunpack.c.l.b16 %v8995
    %v9117 = vunpack.c.h.b16 %v8995
    %v9118 = vunpack.c.l.b16 %v8996
    %v9119 = vunpack.c.h.b16 %v8996
    %v9120 = vunpack.c.l.b16 %v8997
    %v9121 = vunpack.c.h.b16 %v8997
    %v9122 = vunpack.c.l.b16 %v8998
    %v9123 = vunpack.c.h.b16 %v8998
    %v9124 = vpack.c.b16 %v9064, %v9060
    %v9125 = vpack.c.b16 %v9065, %v9061
    %v9126 = vpack.c.b16 %v9066, %v9062
    %v9127 = vpack.c.b16 %v9067, %v9063
    %v9128 = vpack.c.b16 %v9072, %v9068
    %v9129 = vpack.c.b16 %v9073, %v9069
    %v9130 = vpack.c.b16 %v9074, %v9070
    %v9131 = vpack.c.b16 %v9075, %v9071
    %v9132 = vpack.c.b16 %v9080, %v9076
    %v9133 = vpack.c.b16 %v9081, %v9077
    %v9134 = vpack.c.b16 %v9082, %v9078
    %v9135 = vpack.c.b16 %v9083, %v9079
    %v9136 = vpack.c.b16 %v9088, %v9084
    %v9137 = vpack.c.b16 %v9089, %v9085
    %v9138 = vpack.c.b16 %v9090, %v9086
    %v9139 = vpack.c.b16 %v9091, %v9087
    %v9140 = vpack.c.b16 %v9096, %v9092
    %v9141 = vpack.c.b16 %v9097, %v9093
    %v9142 = vpack.c.b16 %v9098, %v9094
    %v9143 = vpack.c.b16 %v9099, %v9095
    %v9144 = vpack.c.b16 %v9104, %v9100
    %v9145 = vpack.c.b16 %v9105, %v9101
    %v9146 = vpack.c.b16 %v9106, %v9102
    %v9147 = vpack.c.b16 %v9107, %v9103
    %v9148 = vpack.c.b16 %v9112, %v9108
    %v9149 = vpack.c.b16 %v9113, %v9109
    %v9150 = vpack.c.b16 %v9114, %v9110
    %v9151 = vpack.c.b16 %v9115, %v9111
    %v9152 = vpack.c.b16 %v9120, %v9116
    %v9153 = vpack.c.b16 %v9121, %v9117
    %v9154 = vpack.c.b16 %v9122, %v9118
    %v9155 = vpack.c.b16 %v9123, %v9119
    %9188 = vmatprep.subr.bf16.mxu0 %v9125
    %9189 = vmatpush1.bf16.msra.mxu0 %v9124
    %9190 = vmatprep.subr.bf16.mxu0 %v9129
    %9191 = vmatpush1.bf16.msra.mxu0 %v9128
    %9192 = vmatprep.subr.bf16.mxu0 %v9133
    %9193 = vmatpush1.bf16.msra.mxu0 %v9132
    %9194 = vmatprep.subr.bf16.mxu0 %v9137
    %9195 = vmatpush1.bf16.msra.mxu0 %v9136
    %9196 = vmatprep.subr.bf16.mxu0 %v9141
    %9197 = vmatpush1.bf16.msra.mxu0 %v9140
    %9198 = vmatprep.subr.bf16.mxu0 %v9145
    %9199 = vmatpush1.bf16.msra.mxu0 %v9144
    %9200 = vmatprep.subr.bf16.mxu0 %v9149
    %9201 = vmatpush1.bf16.msra.mxu0 %v9148
    %9202 = vmatprep.subr.bf16.mxu0 %v9153
    %9203 = vmatpush1.bf16.msra.mxu0 %v9152
    %9204 = vmatprep.subr.bf16.mxu0 0
    %9205 = vmatpush1.bf16.msra.mxu0 0
    %9206 = vmatprep.subr.bf16.mxu0 0
    %9207 = vmatpush1.bf16.msra.mxu0 0
    %9208 = vmatprep.subr.bf16.mxu0 0
    %9209 = vmatpush1.bf16.msra.mxu0 0
    %9210 = vmatprep.subr.bf16.mxu0 0
    %9211 = vmatpush1.bf16.msra.mxu0 0
    %9212 = vmatprep.subr.bf16.mxu0 0
    %9213 = vmatpush1.bf16.msra.mxu0 0
    %9214 = vmatprep.subr.bf16.mxu0 0
    %9215 = vmatpush1.bf16.msra.mxu0 0
    %9216 = vmatprep.subr.bf16.mxu0 0
    %9217 = vmatpush1.bf16.msra.mxu0 0
    %9218 = vmatprep.subr.bf16.mxu0 0
    %9219 = vmatpush1.bf16.msra.mxu0 0
    %9220 = vmatprep.mubr.bf16.mxu0 0
    %9221 = vmatmul.mubr.bf16.gmra.mrb[0].mxu0 %v9026
    %v9222 = vpop.f32.mrb[0].mxu0
    %v9223 = vadd.f32 0.0, %v9222
    %v9224 = vpop.f32.mrb[0].mxu0
    %v9225 = vadd.f32 0.0, %v9224
    %v9226 = vpop.f32.mrb[0].mxu0
    %v9227 = vpop.f32.mrb[0].mxu0
    %9228 = vdwg.mxu0
    %9229 = vmatprep.subr.bf16.mxu0 %v9127
    %9230 = vmatpush1.bf16.msra.mxu0 %v9126
    %9231 = vmatprep.subr.bf16.mxu0 %v9131
    %9232 = vmatpush1.bf16.msra.mxu0 %v9130
    %9233 = vmatprep.subr.bf16.mxu0 %v9135
    %9234 = vmatpush1.bf16.msra.mxu0 %v9134
    %9235 = vmatprep.subr.bf16.mxu0 %v9139
    %9236 = vmatpush1.bf16.msra.mxu0 %v9138
    %9237 = vmatprep.subr.bf16.mxu0 %v9143
    %9238 = vmatpush1.bf16.msra.mxu0 %v9142
    %9239 = vmatprep.subr.bf16.mxu0 %v9147
    %9240 = vmatpush1.bf16.msra.mxu0 %v9146
    %9241 = vmatprep.subr.bf16.mxu0 %v9151
    %9242 = vmatpush1.bf16.msra.mxu0 %v9150
    %9243 = vmatprep.subr.bf16.mxu0 %v9155
    %9244 = vmatpush1.bf16.msra.mxu0 %v9154
    %9245 = vmatprep.subr.bf16.mxu0 0
    %9246 = vmatpush1.bf16.msra.mxu0 0
    %9247 = vmatprep.subr.bf16.mxu0 0
    %9248 = vmatpush1.bf16.msra.mxu0 0
    %9249 = vmatprep.subr.bf16.mxu0 0
    %9250 = vmatpush1.bf16.msra.mxu0 0
    %9251 = vmatprep.subr.bf16.mxu0 0
    %9252 = vmatpush1.bf16.msra.mxu0 0
    %9253 = vmatprep.subr.bf16.mxu0 0
    %9254 = vmatpush1.bf16.msra.mxu0 0
    %9255 = vmatprep.subr.bf16.mxu0 0
    %9256 = vmatpush1.bf16.msra.mxu0 0
    %9257 = vmatprep.subr.bf16.mxu0 0
    %9258 = vmatpush1.bf16.msra.mxu0 0
    %9259 = vmatprep.subr.bf16.mxu0 0
    %9260 = vmatpush1.bf16.msra.mxu0 0
    %9261 = vmatprep.mubr.bf16.mxu0 0
    %9262 = vmatmul.mubr.bf16.gmra.mrb[0].mxu0 %v9026
    %v9263 = vpop.f32.mrb[0].mxu0
    %v9264 = vadd.f32 0.0, %v9263
    %v9265 = vpop.f32.mrb[0].mxu0
    %v9266 = vadd.f32 0.0, %v9265
    %v9267 = vpop.f32.mrb[0].mxu0
    %v9268 = vpop.f32.mrb[0].mxu0
    %9269 = vdwg.mxu0
    %v9270 = vadd.f32 %v8957, %v9223
    %v9271 = vadd.f32 %v8958, %v9225
    %v9272 = vadd.f32 %v8959, %v9264
    %v9273 = vadd.f32 %v8960, %v9266
    %v9274 = vld [vmem:[%s8961] sm:$0x3]
    %v9275 = vld [vmem:[%s8961 + $0x2] sm:$0x3]
    %v9276 = vld [vmem:[%s8961 + $0x8] sm:$0x3]
    %v9277 = vld [vmem:[%s8961 + $0xa] sm:$0x3]
    %v9283 = vunpack.c.l.s4 1966171168
    %v9284 = vunpack.c.0.s8 %v9283
    %v9285 = vlaneseq
    %v9286 = vshrl.u32 %v9285, 7
    %v9287 = vsub.s32 %v9284, %v9286
    %v9288 = vrot.slane %v9274, %v9287
    %v9289 = vcombine.high %v9288, %v9288
    %v9291 = vunpack.c.l.s4 1966171168
    %v9292 = vunpack.c.0.s8 %v9291
    %v9293 = vlaneseq
    %v9294 = vshrl.u32 %v9293, 7
    %v9295 = vsub.s32 %v9292, %v9294
    %v9296 = vrot.slane %v9275, %v9295
    %v9297 = vcombine.high %v9296, %v9296
    %v9299 = vunpack.c.l.s4 1966171168
    %v9300 = vunpack.c.0.s8 %v9299
    %v9301 = vlaneseq
    %v9302 = vshrl.u32 %v9301, 7
    %v9303 = vsub.s32 %v9300, %v9302
    %v9304 = vrot.slane %v9276, %v9303
    %v9305 = vcombine.high %v9304, %v9304
    %v9307 = vunpack.c.l.s4 1966171168
    %v9308 = vunpack.c.0.s8 %v9307
    %v9309 = vlaneseq
    %v9310 = vshrl.u32 %v9309, 7
    %v9311 = vsub.s32 %v9308, %v9310
    %v9312 = vrot.slane %v9277, %v9311
    %v9313 = vcombine.high %v9312, %v9312
    %v9315 = vshrl.u32 %v9288, 16
    %v9317 = vrot.slane %v9315, 7
    %v9318 = vrot.slane %v9317, 1
    %v9320 = vshll.u32 %v9289, 16
    %v9322 = vsel %vm6973, %v9318, %v9320
    %v9324 = vshrl.u32 %v9296, 16
    %v9326 = vrot.slane %v9324, 7
    %v9327 = vrot.slane %v9326, 1
    %v9329 = vshll.u32 %v9297, 16
    %v9331 = vsel %vm6973, %v9327, %v9329
    %v9333 = vshrl.u32 %v9304, 16
    %v9335 = vrot.slane %v9333, 7
    %v9336 = vrot.slane %v9335, 1
    %v9338 = vshll.u32 %v9305, 16
    %v9340 = vsel %vm6973, %v9336, %v9338
    %v9342 = vshrl.u32 %v9312, 16
    %v9344 = vrot.slane %v9342, 7
    %v9345 = vrot.slane %v9344, 1
    %v9347 = vshll.u32 %v9313, 16
    %v9349 = vsel %vm6973, %v9345, %v9347
    %s9350 = scalar_lea.vmem [#allocation13], 1792
    %v9351 = vld [vmem:[%s9350] sm:$0xff]
    %v9352 = vld [vmem:[%s9350 + $0x8] sm:$0xff]
    %v9353 = vld [vmem:[%s9350 + $0x10] sm:$0xff]
    %v9354 = vld [vmem:[%s9350 + $0x18] sm:$0xff]
    %v9355 = vld [vmem:[%s9350 + $0x20] sm:$0xff]
    %v9356 = vld [vmem:[%s9350 + $0x28] sm:$0xff]
    %v9357 = vld [vmem:[%s9350 + $0x30] sm:$0xff]
    %v9358 = vld [vmem:[%s9350 + $0x38] sm:$0xff]
    %v9359 = vld [vmem:[%s9350 + $0x40] sm:$0xff]
    %v9360 = vld [vmem:[%s9350 + $0x48] sm:$0xff]
    %v9361 = vld [vmem:[%s9350 + $0x50] sm:$0xff]
    %v9362 = vld [vmem:[%s9350 + $0x58] sm:$0xff]
    %v9363 = vld [vmem:[%s9350 + $0x60] sm:$0xff]
    %v9364 = vld [vmem:[%s9350 + $0x68] sm:$0xff]
    %v9365 = vld [vmem:[%s9350 + $0x70] sm:$0xff]
    %v9366 = vld [vmem:[%s9350 + $0x78] sm:$0xff]
    %v9367 = vld [vmem:[%s9350 + $0x80] sm:$0xff]
    %v9368 = vld [vmem:[%s9350 + $0x88] sm:$0xff]
    %v9369 = vld [vmem:[%s9350 + $0x90] sm:$0xff]
    %v9370 = vld [vmem:[%s9350 + $0x98] sm:$0xff]
    %v9371 = vld [vmem:[%s9350 + $0xa0] sm:$0xff]
    %v9372 = vld [vmem:[%s9350 + $0xa8] sm:$0xff]
    %v9373 = vld [vmem:[%s9350 + $0xb0] sm:$0xff]
    %v9374 = vld [vmem:[%s9350 + $0xb8] sm:$0xff]
    %v9375 = vld [vmem:[%s9350 + $0xc0] sm:$0xff]
    %v9376 = vld [vmem:[%s9350 + $0xc8] sm:$0xff]
    %v9377 = vld [vmem:[%s9350 + $0xd0] sm:$0xff]
    %v9378 = vld [vmem:[%s9350 + $0xd8] sm:$0xff]
    %v9379 = vld [vmem:[%s9350 + $0xe0] sm:$0xff]
    %v9380 = vld [vmem:[%s9350 + $0xe8] sm:$0xff]
    %v9381 = vld [vmem:[%s9350 + $0xf0] sm:$0xff]
    %v9382 = vld [vmem:[%s9350 + $0xf8] sm:$0xff]
    %v9383 = vcombine.low %v9322, %v9331
    %v9384 = vcombine.low %v9340, %v9349
    %v9386 = vunpack.c.l.s4 1966171168
    %v9387 = vunpack.c.0.s8 %v9386
    %v9388 = vlaneseq
    %v9389 = vshrl.u32 %v9388, 7
    %v9390 = vsub.s32 %v9387, %v9389
    %v9391 = vrot.slane %v9383, %v9390
    %v9393 = vunpack.c.l.s4 1966171168
    %v9394 = vunpack.c.0.s8 %v9393
    %v9395 = vlaneseq
    %v9396 = vshrl.u32 %v9395, 7
    %v9397 = vsub.s32 %v9394, %v9396
    %v9398 = vrot.slane %v9384, %v9397
    %v9399 = vcombine.low %v9391, %v9398
    %v9401 = vunpack.c.l.s4 1966171168
    %v9402 = vunpack.c.0.s8 %v9401
    %v9403 = vlaneseq
    %v9404 = vshrl.u32 %v9403, 7
    %v9405 = vsub.s32 %v9402, %v9404
    %v9406 = vrot.slane %v9399, %v9405
    %v9440 = vunpack.c.l.b16 %v9351
    %v9441 = vunpack.c.h.b16 %v9351
    %v9442 = vunpack.c.l.b16 %v9352
    %v9443 = vunpack.c.h.b16 %v9352
    %v9444 = vunpack.c.l.b16 %v9353
    %v9445 = vunpack.c.h.b16 %v9353
    %v9446 = vunpack.c.l.b16 %v9354
    %v9447 = vunpack.c.h.b16 %v9354
    %v9448 = vunpack.c.l.b16 %v9355
    %v9449 = vunpack.c.h.b16 %v9355
    %v9450 = vunpack.c.l.b16 %v9356
    %v9451 = vunpack.c.h.b16 %v9356
    %v9452 = vunpack.c.l.b16 %v9357
    %v9453 = vunpack.c.h.b16 %v9357
    %v9454 = vunpack.c.l.b16 %v9358
    %v9455 = vunpack.c.h.b16 %v9358
    %v9456 = vunpack.c.l.b16 %v9359
    %v9457 = vunpack.c.h.b16 %v9359
    %v9458 = vunpack.c.l.b16 %v9360
    %v9459 = vunpack.c.h.b16 %v9360
    %v9460 = vunpack.c.l.b16 %v9361
    %v9461 = vunpack.c.h.b16 %v9361
    %v9462 = vunpack.c.l.b16 %v9362
    %v9463 = vunpack.c.h.b16 %v9362
    %v9464 = vunpack.c.l.b16 %v9363
    %v9465 = vunpack.c.h.b16 %v9363
    %v9466 = vunpack.c.l.b16 %v9364
    %v9467 = vunpack.c.h.b16 %v9364
    %v9468 = vunpack.c.l.b16 %v9365
    %v9469 = vunpack.c.h.b16 %v9365
    %v9470 = vunpack.c.l.b16 %v9366
    %v9471 = vunpack.c.h.b16 %v9366
    %v9472 = vunpack.c.l.b16 %v9367
    %v9473 = vunpack.c.h.b16 %v9367
    %v9474 = vunpack.c.l.b16 %v9368
    %v9475 = vunpack.c.h.b16 %v9368
    %v9476 = vunpack.c.l.b16 %v9369
    %v9477 = vunpack.c.h.b16 %v9369
    %v9478 = vunpack.c.l.b16 %v9370
    %v9479 = vunpack.c.h.b16 %v9370
    %v9480 = vunpack.c.l.b16 %v9371
    %v9481 = vunpack.c.h.b16 %v9371
    %v9482 = vunpack.c.l.b16 %v9372
    %v9483 = vunpack.c.h.b16 %v9372
    %v9484 = vunpack.c.l.b16 %v9373
    %v9485 = vunpack.c.h.b16 %v9373
    %v9486 = vunpack.c.l.b16 %v9374
    %v9487 = vunpack.c.h.b16 %v9374
    %v9488 = vunpack.c.l.b16 %v9375
    %v9489 = vunpack.c.h.b16 %v9375
    %v9490 = vunpack.c.l.b16 %v9376
    %v9491 = vunpack.c.h.b16 %v9376
    %v9492 = vunpack.c.l.b16 %v9377
    %v9493 = vunpack.c.h.b16 %v9377
    %v9494 = vunpack.c.l.b16 %v9378
    %v9495 = vunpack.c.h.b16 %v9378
    %v9496 = vunpack.c.l.b16 %v9379
    %v9497 = vunpack.c.h.b16 %v9379
    %v9498 = vunpack.c.l.b16 %v9380
    %v9499 = vunpack.c.h.b16 %v9380
    %v9500 = vunpack.c.l.b16 %v9381
    %v9501 = vunpack.c.h.b16 %v9381
    %v9502 = vunpack.c.l.b16 %v9382
    %v9503 = vunpack.c.h.b16 %v9382
    %v9504 = vpack.c.b16 %v9444, %v9440
    %v9505 = vpack.c.b16 %v9445, %v9441
    %v9506 = vpack.c.b16 %v9446, %v9442
    %v9507 = vpack.c.b16 %v9447, %v9443
    %v9508 = vpack.c.b16 %v9452, %v9448
    %v9509 = vpack.c.b16 %v9453, %v9449
    %v9510 = vpack.c.b16 %v9454, %v9450
    %v9511 = vpack.c.b16 %v9455, %v9451
    %v9512 = vpack.c.b16 %v9460, %v9456
    %v9513 = vpack.c.b16 %v9461, %v9457
    %v9514 = vpack.c.b16 %v9462, %v9458
    %v9515 = vpack.c.b16 %v9463, %v9459
    %v9516 = vpack.c.b16 %v9468, %v9464
    %v9517 = vpack.c.b16 %v9469, %v9465
    %v9518 = vpack.c.b16 %v9470, %v9466
    %v9519 = vpack.c.b16 %v9471, %v9467
    %v9520 = vpack.c.b16 %v9476, %v9472
    %v9521 = vpack.c.b16 %v9477, %v9473
    %v9522 = vpack.c.b16 %v9478, %v9474
    %v9523 = vpack.c.b16 %v9479, %v9475
    %v9524 = vpack.c.b16 %v9484, %v9480
    %v9525 = vpack.c.b16 %v9485, %v9481
    %v9526 = vpack.c.b16 %v9486, %v9482
    %v9527 = vpack.c.b16 %v9487, %v9483
    %v9528 = vpack.c.b16 %v9492, %v9488
    %v9529 = vpack.c.b16 %v9493, %v9489
    %v9530 = vpack.c.b16 %v9494, %v9490
    %v9531 = vpack.c.b16 %v9495, %v9491
    %v9532 = vpack.c.b16 %v9500, %v9496
    %v9533 = vpack.c.b16 %v9501, %v9497
    %v9534 = vpack.c.b16 %v9502, %v9498
    %v9535 = vpack.c.b16 %v9503, %v9499
    %9568 = vmatprep.subr.bf16.mxu0 %v9505
    %9569 = vmatpush1.bf16.msra.mxu0 %v9504
    %9570 = vmatprep.subr.bf16.mxu0 %v9509
    %9571 = vmatpush1.bf16.msra.mxu0 %v9508
    %9572 = vmatprep.subr.bf16.mxu0 %v9513
    %9573 = vmatpush1.bf16.msra.mxu0 %v9512
    %9574 = vmatprep.subr.bf16.mxu0 %v9517
    %9575 = vmatpush1.bf16.msra.mxu0 %v9516
    %9576 = vmatprep.subr.bf16.mxu0 %v9521
    %9577 = vmatpush1.bf16.msra.mxu0 %v9520
    %9578 = vmatprep.subr.bf16.mxu0 %v9525
    %9579 = vmatpush1.bf16.msra.mxu0 %v9524
    %9580 = vmatprep.subr.bf16.mxu0 %v9529
    %9581 = vmatpush1.bf16.msra.mxu0 %v9528
    %9582 = vmatprep.subr.bf16.mxu0 %v9533
    %9583 = vmatpush1.bf16.msra.mxu0 %v9532
    %9584 = vmatprep.subr.bf16.mxu0 0
    %9585 = vmatpush1.bf16.msra.mxu0 0
    %9586 = vmatprep.subr.bf16.mxu0 0
    %9587 = vmatpush1.bf16.msra.mxu0 0
    %9588 = vmatprep.subr.bf16.mxu0 0
    %9589 = vmatpush1.bf16.msra.mxu0 0
    %9590 = vmatprep.subr.bf16.mxu0 0
    %9591 = vmatpush1.bf16.msra.mxu0 0
    %9592 = vmatprep.subr.bf16.mxu0 0
    %9593 = vmatpush1.bf16.msra.mxu0 0
    %9594 = vmatprep.subr.bf16.mxu0 0
    %9595 = vmatpush1.bf16.msra.mxu0 0
    %9596 = vmatprep.subr.bf16.mxu0 0
    %9597 = vmatpush1.bf16.msra.mxu0 0
    %9598 = vmatprep.subr.bf16.mxu0 0
    %9599 = vmatpush1.bf16.msra.mxu0 0
    %9600 = vmatprep.mubr.bf16.mxu0 0
    %9601 = vmatmul.mubr.bf16.gmra.mrb[0].mxu0 %v9406
    %v9602 = vpop.f32.mrb[0].mxu0
    %v9603 = vadd.f32 0.0, %v9602
    %v9604 = vpop.f32.mrb[0].mxu0
    %v9605 = vadd.f32 0.0, %v9604
    %v9606 = vpop.f32.mrb[0].mxu0
    %v9607 = vpop.f32.mrb[0].mxu0
    %9608 = vdwg.mxu0
    %9609 = vmatprep.subr.bf16.mxu0 %v9507
    %9610 = vmatpush1.bf16.msra.mxu0 %v9506
    %9611 = vmatprep.subr.bf16.mxu0 %v9511
    %9612 = vmatpush1.bf16.msra.mxu0 %v9510
    %9613 = vmatprep.subr.bf16.mxu0 %v9515
    %9614 = vmatpush1.bf16.msra.mxu0 %v9514
    %9615 = vmatprep.subr.bf16.mxu0 %v9519
    %9616 = vmatpush1.bf16.msra.mxu0 %v9518
    %9617 = vmatprep.subr.bf16.mxu0 %v9523
    %9618 = vmatpush1.bf16.msra.mxu0 %v9522
    %9619 = vmatprep.subr.bf16.mxu0 %v9527
    %9620 = vmatpush1.bf16.msra.mxu0 %v9526
    %9621 = vmatprep.subr.bf16.mxu0 %v9531
    %9622 = vmatpush1.bf16.msra.mxu0 %v9530
    %9623 = vmatprep.subr.bf16.mxu0 %v9535
    %9624 = vmatpush1.bf16.msra.mxu0 %v9534
    %9625 = vmatprep.subr.bf16.mxu0 0
    %9626 = vmatpush1.bf16.msra.mxu0 0
    %9627 = vmatprep.subr.bf16.mxu0 0
    %9628 = vmatpush1.bf16.msra.mxu0 0
    %9629 = vmatprep.subr.bf16.mxu0 0
    %9630 = vmatpush1.bf16.msra.mxu0 0
    %9631 = vmatprep.subr.bf16.mxu0 0
    %9632 = vmatpush1.bf16.msra.mxu0 0
    %9633 = vmatprep.subr.bf16.mxu0 0
    %9634 = vmatpush1.bf16.msra.mxu0 0
    %9635 = vmatprep.subr.bf16.mxu0 0
    %9636 = vmatpush1.bf16.msra.mxu0 0
    %9637 = vmatprep.subr.bf16.mxu0 0
    %9638 = vmatpush1.bf16.msra.mxu0 0
    %9639 = vmatprep.subr.bf16.mxu0 0
    %9640 = vmatpush1.bf16.msra.mxu0 0
    %9641 = vmatprep.mubr.bf16.mxu0 0
    %9642 = vmatmul.mubr.bf16.gmra.mrb[0].mxu0 %v9406
    %v9643 = vpop.f32.mrb[0].mxu0
    %v9644 = vadd.f32 0.0, %v9643
    %v9645 = vpop.f32.mrb[0].mxu0
    %v9646 = vadd.f32 0.0, %v9645
    %v9647 = vpop.f32.mrb[0].mxu0
    %v9648 = vpop.f32.mrb[0].mxu0
    %9649 = vdwg.mxu0
    %v9650 = vadd.f32 %v9270, %v9603
    %v9651 = vadd.f32 %v9271, %v9605
    %v9652 = vadd.f32 %v9272, %v9644
    %v9653 = vadd.f32 %v9273, %v9646
    %v9654 = vld [vmem:[%s8961] sm:$0x2]
    %v9655 = vld [vmem:[%s8961 + $0x2] sm:$0x2]
    %v9656 = vld [vmem:[%s8961 + $0x8] sm:$0x2]
    %v9657 = vld [vmem:[%s8961 + $0xa] sm:$0x2]
    %v9663 = vunpack.c.l.s4 1966171168
    %v9664 = vunpack.c.0.s8 %v9663
    %v9665 = vlaneseq
    %v9666 = vshrl.u32 %v9665, 7
    %v9667 = vsub.s32 %v9664, %v9666
    %v9668 = vrot.slane %v9654, %v9667
    %v9669 = vcombine.high %v9668, %v9668
    %v9671 = vunpack.c.l.s4 1966171168
    %v9672 = vunpack.c.0.s8 %v9671
    %v9673 = vlaneseq
    %v9674 = vshrl.u32 %v9673, 7
    %v9675 = vsub.s32 %v9672, %v9674
    %v9676 = vrot.slane %v9655, %v9675
    %v9677 = vcombine.high %v9676, %v9676
    %v9679 = vunpack.c.l.s4 1966171168
    %v9680 = vunpack.c.0.s8 %v9679
    %v9681 = vlaneseq
    %v9682 = vshrl.u32 %v9681, 7
    %v9683 = vsub.s32 %v9680, %v9682
    %v9684 = vrot.slane %v9656, %v9683
    %v9685 = vcombine.high %v9684, %v9684
    %v9687 = vunpack.c.l.s4 1966171168
    %v9688 = vunpack.c.0.s8 %v9687
    %v9689 = vlaneseq
    %v9690 = vshrl.u32 %v9689, 7
    %v9691 = vsub.s32 %v9688, %v9690
    %v9692 = vrot.slane %v9657, %v9691
    %v9693 = vcombine.high %v9692, %v9692
    %s9694 = scalar_lea.vmem [#allocation13], 2048
    %v9695 = vld [vmem:[%s9694] sm:$0xff]
    %v9696 = vld [vmem:[%s9694 + $0x8] sm:$0xff]
    %v9697 = vld [vmem:[%s9694 + $0x10] sm:$0xff]
    %v9698 = vld [vmem:[%s9694 + $0x18] sm:$0xff]
    %v9699 = vld [vmem:[%s9694 + $0x20] sm:$0xff]
    %v9700 = vld [vmem:[%s9694 + $0x28] sm:$0xff]
    %v9701 = vld [vmem:[%s9694 + $0x30] sm:$0xff]
    %v9702 = vld [vmem:[%s9694 + $0x38] sm:$0xff]
    %v9703 = vld [vmem:[%s9694 + $0x40] sm:$0xff]
    %v9704 = vld [vmem:[%s9694 + $0x48] sm:$0xff]
    %v9705 = vld [vmem:[%s9694 + $0x50] sm:$0xff]
    %v9706 = vld [vmem:[%s9694 + $0x58] sm:$0xff]
    %v9707 = vld [vmem:[%s9694 + $0x60] sm:$0xff]
    %v9708 = vld [vmem:[%s9694 + $0x68] sm:$0xff]
    %v9709 = vld [vmem:[%s9694 + $0x70] sm:$0xff]
    %v9710 = vld [vmem:[%s9694 + $0x78] sm:$0xff]
    %v9711 = vld [vmem:[%s9694 + $0x80] sm:$0xff]
    %v9712 = vld [vmem:[%s9694 + $0x88] sm:$0xff]
    %v9713 = vld [vmem:[%s9694 + $0x90] sm:$0xff]
    %v9714 = vld [vmem:[%s9694 + $0x98] sm:$0xff]
    %v9715 = vld [vmem:[%s9694 + $0xa0] sm:$0xff]
    %v9716 = vld [vmem:[%s9694 + $0xa8] sm:$0xff]
    %v9717 = vld [vmem:[%s9694 + $0xb0] sm:$0xff]
    %v9718 = vld [vmem:[%s9694 + $0xb8] sm:$0xff]
    %v9719 = vld [vmem:[%s9694 + $0xc0] sm:$0xff]
    %v9720 = vld [vmem:[%s9694 + $0xc8] sm:$0xff]
    %v9721 = vld [vmem:[%s9694 + $0xd0] sm:$0xff]
    %v9722 = vld [vmem:[%s9694 + $0xd8] sm:$0xff]
    %v9723 = vld [vmem:[%s9694 + $0xe0] sm:$0xff]
    %v9724 = vld [vmem:[%s9694 + $0xe8] sm:$0xff]
    %v9725 = vld [vmem:[%s9694 + $0xf0] sm:$0xff]
    %v9726 = vld [vmem:[%s9694 + $0xf8] sm:$0xff]
    %v9727 = vcombine.low %v9669, %v9677
    %v9728 = vcombine.low %v9685, %v9693
    %v9730 = vunpack.c.l.s4 1966171168
    %v9731 = vunpack.c.0.s8 %v9730
    %v9732 = vlaneseq
    %v9733 = vshrl.u32 %v9732, 7
    %v9734 = vsub.s32 %v9731, %v9733
    %v9735 = vrot.slane %v9727, %v9734
    %v9737 = vunpack.c.l.s4 1966171168
    %v9738 = vunpack.c.0.s8 %v9737
    %v9739 = vlaneseq
    %v9740 = vshrl.u32 %v9739, 7
    %v9741 = vsub.s32 %v9738, %v9740
    %v9742 = vrot.slane %v9728, %v9741
    %v9743 = vcombine.low %v9735, %v9742
    %v9745 = vunpack.c.l.s4 1966171168
    %v9746 = vunpack.c.0.s8 %v9745
    %v9747 = vlaneseq
    %v9748 = vshrl.u32 %v9747, 7
    %v9749 = vsub.s32 %v9746, %v9748
    %v9750 = vrot.slane %v9743, %v9749
    %v9784 = vunpack.c.l.b16 %v9695
    %v9785 = vunpack.c.h.b16 %v9695
    %v9786 = vunpack.c.l.b16 %v9696
    %v9787 = vunpack.c.h.b16 %v9696
    %v9788 = vunpack.c.l.b16 %v9697
    %v9789 = vunpack.c.h.b16 %v9697
    %v9790 = vunpack.c.l.b16 %v9698
    %v9791 = vunpack.c.h.b16 %v9698
    %v9792 = vunpack.c.l.b16 %v9699
    %v9793 = vunpack.c.h.b16 %v9699
    %v9794 = vunpack.c.l.b16 %v9700
    %v9795 = vunpack.c.h.b16 %v9700
    %v9796 = vunpack.c.l.b16 %v9701
    %v9797 = vunpack.c.h.b16 %v9701
    %v9798 = vunpack.c.l.b16 %v9702
    %v9799 = vunpack.c.h.b16 %v9702
    %v9800 = vunpack.c.l.b16 %v9703
    %v9801 = vunpack.c.h.b16 %v9703
    %v9802 = vunpack.c.l.b16 %v9704
    %v9803 = vunpack.c.h.b16 %v9704
    %v9804 = vunpack.c.l.b16 %v9705
    %v9805 = vunpack.c.h.b16 %v9705
    %v9806 = vunpack.c.l.b16 %v9706
    %v9807 = vunpack.c.h.b16 %v9706
    %v9808 = vunpack.c.l.b16 %v9707
    %v9809 = vunpack.c.h.b16 %v9707
    %v9810 = vunpack.c.l.b16 %v9708
    %v9811 = vunpack.c.h.b16 %v9708
    %v9812 = vunpack.c.l.b16 %v9709
    %v9813 = vunpack.c.h.b16 %v9709
    %v9814 = vunpack.c.l.b16 %v9710
    %v9815 = vunpack.c.h.b16 %v9710
    %v9816 = vunpack.c.l.b16 %v9711
    %v9817 = vunpack.c.h.b16 %v9711
    %v9818 = vunpack.c.l.b16 %v9712
    %v9819 = vunpack.c.h.b16 %v9712
    %v9820 = vunpack.c.l.b16 %v9713
    %v9821 = vunpack.c.h.b16 %v9713
    %v9822 = vunpack.c.l.b16 %v9714
    %v9823 = vunpack.c.h.b16 %v9714
    %v9824 = vunpack.c.l.b16 %v9715
    %v9825 = vunpack.c.h.b16 %v9715
    %v9826 = vunpack.c.l.b16 %v9716
    %v9827 = vunpack.c.h.b16 %v9716
    %v9828 = vunpack.c.l.b16 %v9717
    %v9829 = vunpack.c.h.b16 %v9717
    %v9830 = vunpack.c.l.b16 %v9718
    %v9831 = vunpack.c.h.b16 %v9718
    %v9832 = vunpack.c.l.b16 %v9719
    %v9833 = vunpack.c.h.b16 %v9719
    %v9834 = vunpack.c.l.b16 %v9720
    %v9835 = vunpack.c.h.b16 %v9720
    %v9836 = vunpack.c.l.b16 %v9721
    %v9837 = vunpack.c.h.b16 %v9721
    %v9838 = vunpack.c.l.b16 %v9722
    %v9839 = vunpack.c.h.b16 %v9722
    %v9840 = vunpack.c.l.b16 %v9723
    %v9841 = vunpack.c.h.b16 %v9723
    %v9842 = vunpack.c.l.b16 %v9724
    %v9843 = vunpack.c.h.b16 %v9724
    %v9844 = vunpack.c.l.b16 %v9725
    %v9845 = vunpack.c.h.b16 %v9725
    %v9846 = vunpack.c.l.b16 %v9726
    %v9847 = vunpack.c.h.b16 %v9726
    %v9848 = vpack.c.b16 %v9788, %v9784
    %v9849 = vpack.c.b16 %v9789, %v9785
    %v9850 = vpack.c.b16 %v9790, %v9786
    %v9851 = vpack.c.b16 %v9791, %v9787
    %v9852 = vpack.c.b16 %v9796, %v9792
    %v9853 = vpack.c.b16 %v9797, %v9793
    %v9854 = vpack.c.b16 %v9798, %v9794
    %v9855 = vpack.c.b16 %v9799, %v9795
    %v9856 = vpack.c.b16 %v9804, %v9800
    %v9857 = vpack.c.b16 %v9805, %v9801
    %v9858 = vpack.c.b16 %v9806, %v9802
    %v9859 = vpack.c.b16 %v9807, %v9803
    %v9860 = vpack.c.b16 %v9812, %v9808
    %v9861 = vpack.c.b16 %v9813, %v9809
    %v9862 = vpack.c.b16 %v9814, %v9810
    %v9863 = vpack.c.b16 %v9815, %v9811
    %v9864 = vpack.c.b16 %v9820, %v9816
    %v9865 = vpack.c.b16 %v9821, %v9817
    %v9866 = vpack.c.b16 %v9822, %v9818
    %v9867 = vpack.c.b16 %v9823, %v9819
    %v9868 = vpack.c.b16 %v9828, %v9824
    %v9869 = vpack.c.b16 %v9829, %v9825
    %v9870 = vpack.c.b16 %v9830, %v9826
    %v9871 = vpack.c.b16 %v9831, %v9827
    %v9872 = vpack.c.b16 %v9836, %v9832
    %v9873 = vpack.c.b16 %v9837, %v9833
    %v9874 = vpack.c.b16 %v9838, %v9834
    %v9875 = vpack.c.b16 %v9839, %v9835
    %v9876 = vpack.c.b16 %v9844, %v9840
    %v9877 = vpack.c.b16 %v9845, %v9841
    %v9878 = vpack.c.b16 %v9846, %v9842
    %v9879 = vpack.c.b16 %v9847, %v9843
    %9912 = vmatprep.subr.bf16.mxu0 %v9849
    %9913 = vmatpush1.bf16.msra.mxu0 %v9848
    %9914 = vmatprep.subr.bf16.mxu0 %v9853
    %9915 = vmatpush1.bf16.msra.mxu0 %v9852
    %9916 = vmatprep.subr.bf16.mxu0 %v9857
    %9917 = vmatpush1.bf16.msra.mxu0 %v9856
    %9918 = vmatprep.subr.bf16.mxu0 %v9861
    %9919 = vmatpush1.bf16.msra.mxu0 %v9860
    %9920 = vmatprep.subr.bf16.mxu0 %v9865
    %9921 = vmatpush1.bf16.msra.mxu0 %v9864
    %9922 = vmatprep.subr.bf16.mxu0 %v9869
    %9923 = vmatpush1.bf16.msra.mxu0 %v9868
    %9924 = vmatprep.subr.bf16.mxu0 %v9873
    %9925 = vmatpush1.bf16.msra.mxu0 %v9872
    %9926 = vmatprep.subr.bf16.mxu0 %v9877
    %9927 = vmatpush1.bf16.msra.mxu0 %v9876
    %9928 = vmatprep.subr.bf16.mxu0 0
    %9929 = vmatpush1.bf16.msra.mxu0 0
    %9930 = vmatprep.subr.bf16.mxu0 0
    %9931 = vmatpush1.bf16.msra.mxu0 0
    %9932 = vmatprep.subr.bf16.mxu0 0
    %9933 = vmatpush1.bf16.msra.mxu0 0
    %9934 = vmatprep.subr.bf16.mxu0 0
    %9935 = vmatpush1.bf16.msra.mxu0 0
    %9936 = vmatprep.subr.bf16.mxu0 0
    %9937 = vmatpush1.bf16.msra.mxu0 0
    %9938 = vmatprep.subr.bf16.mxu0 0
    %9939 = vmatpush1.bf16.msra.mxu0 0
    %9940 = vmatprep.subr.bf16.mxu0 0
    %9941 = vmatpush1.bf16.msra.mxu0 0
    %9942 = vmatprep.subr.bf16.mxu0 0
    %9943 = vmatpush1.bf16.msra.mxu0 0
    %9944 = vmatprep.mubr.bf16.mxu0 0
    %9945 = vmatmul.mubr.bf16.gmra.mrb[0].mxu0 %v9750
    %v9946 = vpop.f32.mrb[0].mxu0
    %v9947 = vadd.f32 0.0, %v9946
    %v9948 = vpop.f32.mrb[0].mxu0
    %v9949 = vadd.f32 0.0, %v9948
    %v9950 = vpop.f32.mrb[0].mxu0
    %v9951 = vpop.f32.mrb[0].mxu0
    %9952 = vdwg.mxu0
    %9953 = vmatprep.subr.bf16.mxu0 %v9851
    %9954 = vmatpush1.bf16.msra.mxu0 %v9850
    %9955 = vmatprep.subr.bf16.mxu0 %v9855
    %9956 = vmatpush1.bf16.msra.mxu0 %v9854
    %9957 = vmatprep.subr.bf16.mxu0 %v9859
    %9958 = vmatpush1.bf16.msra.mxu0 %v9858
    %9959 = vmatprep.subr.bf16.mxu0 %v9863
    %9960 = vmatpush1.bf16.msra.mxu0 %v9862
    %9961 = vmatprep.subr.bf16.mxu0 %v9867
    %9962 = vmatpush1.bf16.msra.mxu0 %v9866
    %9963 = vmatprep.subr.bf16.mxu0 %v9871
    %9964 = vmatpush1.bf16.msra.mxu0 %v9870
    %9965 = vmatprep.subr.bf16.mxu0 %v9875
    %9966 = vmatpush1.bf16.msra.mxu0 %v9874
    %9967 = vmatprep.subr.bf16.mxu0 %v9879
    %9968 = vmatpush1.bf16.msra.mxu0 %v9878
    %9969 = vmatprep.subr.bf16.mxu0 0
    %9970 = vmatpush1.bf16.msra.mxu0 0
    %9971 = vmatprep.subr.bf16.mxu0 0
    %9972 = vmatpush1.bf16.msra.mxu0 0
    %9973 = vmatprep.subr.bf16.mxu0 0
    %9974 = vmatpush1.bf16.msra.mxu0 0
    %9975 = vmatprep.subr.bf16.mxu0 0
    %9976 = vmatpush1.bf16.msra.mxu0 0
    %9977 = vmatprep.subr.bf16.mxu0 0
    %9978 = vmatpush1.bf16.msra.mxu0 0
    %9979 = vmatprep.subr.bf16.mxu0 0
    %9980 = vmatpush1.bf16.msra.mxu0 0
    %9981 = vmatprep.subr.bf16.mxu0 0
    %9982 = vmatpush1.bf16.msra.mxu0 0
    %9983 = vmatprep.subr.bf16.mxu0 0
    %9984 = vmatpush1.bf16.msra.mxu0 0
    %9985 = vmatprep.mubr.bf16.mxu0 0
    %9986 = vmatmul.mubr.bf16.gmra.mrb[0].mxu0 %v9750
    %v9987 = vpop.f32.mrb[0].mxu0
    %v9988 = vadd.f32 0.0, %v9987
    %v9989 = vpop.f32.mrb[0].mxu0
    %v9990 = vadd.f32 0.0, %v9989
    %v9991 = vpop.f32.mrb[0].mxu0
    %v9992 = vpop.f32.mrb[0].mxu0
    %9993 = vdwg.mxu0
    %v9994 = vadd.f32 %v9650, %v9947
    %v9995 = vadd.f32 %v9651, %v9949
    %v9996 = vadd.f32 %v9652, %v9988
    %v9997 = vadd.f32 %v9653, %v9990
    %v9998 = vld [vmem:[#allocation14] sm:$0xf]
    %v10000 = vlaneseq
    %v10001 = vshrl.u32 %v10000, 7
    %v10002 = vsub.s32 0, %v10001
    %v10003 = vrot.slane %v9998, %v10002
    %v10004 = vlaneseq
    %v10005 = vshrl.u32 %v10004, 7
    %v10006 = vsub.s32 1, %v10005
    %v10007 = vrot.slane %v9998, %v10006
    %v10008 = vlaneseq
    %v10009 = vshrl.u32 %v10008, 7
    %v10010 = vsub.s32 2, %v10009
    %v10011 = vrot.slane %v9998, %v10010
    %v10012 = vlaneseq
    %v10013 = vshrl.u32 %v10012, 7
    %v10014 = vsub.s32 3, %v10013
    %v10015 = vrot.slane %v9998, %v10014
    %v10020 = vadd.f32 %v9994, %v10003
    %v10021 = vadd.f32 %v9995, %v10007
    %v10022 = vadd.f32 %v9996, %v10011
    %v10023 = vadd.f32 %v9997, %v10015
    %v10024 = vmax.f32 %v10020, 0.0
    %v10025 = vmax.f32 %v10021, 0.0
    %v10026 = vmax.f32 %v10022, 0.0
    %v10027 = vmax.f32 %v10023, 0.0
    %v10032 = vcombine.low %v10024, %v10025
    %v10033 = vcombine.high %v10024, %v10025
    %v10034 = vcombine.low %v10026, %v10027
    %v10035 = vcombine.high %v10026, %v10027
    %v10037 = vunpack.c.l.s4 1983009808
    %v10038 = vunpack.c.0.s8 %v10037
    %v10039 = vlaneseq
    %v10040 = vshrl.u32 %v10039, 7
    %v10041 = vsub.s32 %v10038, %v10040
    %v10042 = vrot.slane %v10032, %v10041
    %v10044 = vunpack.c.l.s4 1983009808
    %v10045 = vunpack.c.0.s8 %v10044
    %v10046 = vlaneseq
    %v10047 = vshrl.u32 %v10046, 7
    %v10048 = vsub.s32 %v10045, %v10047
    %v10049 = vrot.slane %v10033, %v10048
    %v10051 = vunpack.c.l.s4 1983009808
    %v10052 = vunpack.c.0.s8 %v10051
    %v10053 = vlaneseq
    %v10054 = vshrl.u32 %v10053, 7
    %v10055 = vsub.s32 %v10052, %v10054
    %v10056 = vrot.slane %v10034, %v10055
    %v10058 = vunpack.c.l.s4 1983009808
    %v10059 = vunpack.c.0.s8 %v10058
    %v10060 = vlaneseq
    %v10061 = vshrl.u32 %v10060, 7
    %v10062 = vsub.s32 %v10059, %v10061
    %v10063 = vrot.slane %v10035, %v10062
    %v10064 = vcombine.low %v10042, %v10056
    %v10065 = vcombine.high %v10042, %v10056
    %v10066 = vcombine.low %v10049, %v10063
    %v10067 = vcombine.high %v10049, %v10063
    %v10068 = vcombine.high %v10064, %v10064
    %v10070 = vunpack.c.l.s4 1983009808
    %v10071 = vunpack.c.0.s8 %v10070
    %v10072 = vlaneseq
    %v10073 = vshrl.u32 %v10072, 7
    %v10074 = vsub.s32 %v10071, %v10073
    %v10075 = vrot.slane %v10064, %v10074
    %v10077 = vunpack.c.l.s4 1983009808
    %v10078 = vunpack.c.0.s8 %v10077
    %v10079 = vlaneseq
    %v10080 = vshrl.u32 %v10079, 7
    %v10081 = vsub.s32 %v10078, %v10080
    %v10082 = vrot.slane %v10068, %v10081
    %v10083 = vcombine.high %v10075, %v10075
    %v10084 = vcombine.high %v10082, %v10082
    %v10085 = vcombine.high %v10065, %v10065
    %v10087 = vunpack.c.l.s4 1983009808
    %v10088 = vunpack.c.0.s8 %v10087
    %v10089 = vlaneseq
    %v10090 = vshrl.u32 %v10089, 7
    %v10091 = vsub.s32 %v10088, %v10090
    %v10092 = vrot.slane %v10065, %v10091
    %v10094 = vunpack.c.l.s4 1983009808
    %v10095 = vunpack.c.0.s8 %v10094
    %v10096 = vlaneseq
    %v10097 = vshrl.u32 %v10096, 7
    %v10098 = vsub.s32 %v10095, %v10097
    %v10099 = vrot.slane %v10085, %v10098
    %v10100 = vcombine.high %v10092, %v10092
    %v10101 = vcombine.high %v10099, %v10099
    %v10102 = vcombine.high %v10066, %v10066
    %v10104 = vunpack.c.l.s4 1983009808
    %v10105 = vunpack.c.0.s8 %v10104
    %v10106 = vlaneseq
    %v10107 = vshrl.u32 %v10106, 7
    %v10108 = vsub.s32 %v10105, %v10107
    %v10109 = vrot.slane %v10066, %v10108
    %v10111 = vunpack.c.l.s4 1983009808
    %v10112 = vunpack.c.0.s8 %v10111
    %v10113 = vlaneseq
    %v10114 = vshrl.u32 %v10113, 7
    %v10115 = vsub.s32 %v10112, %v10114
    %v10116 = vrot.slane %v10102, %v10115
    %v10117 = vcombine.high %v10109, %v10109
    %v10118 = vcombine.high %v10116, %v10116
    %v10119 = vcombine.high %v10067, %v10067
    %v10121 = vunpack.c.l.s4 1983009808
    %v10122 = vunpack.c.0.s8 %v10121
    %v10123 = vlaneseq
    %v10124 = vshrl.u32 %v10123, 7
    %v10125 = vsub.s32 %v10122, %v10124
    %v10126 = vrot.slane %v10067, %v10125
    %v10128 = vunpack.c.l.s4 1983009808
    %v10129 = vunpack.c.0.s8 %v10128
    %v10130 = vlaneseq
    %v10131 = vshrl.u32 %v10130, 7
    %v10132 = vsub.s32 %v10129, %v10131
    %v10133 = vrot.slane %v10119, %v10132
    %v10134 = vcombine.high %v10126, %v10126
    %v10135 = vcombine.high %v10133, %v10133
    %v10152 = vsel %vm829, %v10075, -inf
    %v10153 = vrot.slane %v10152, 4
    %v10154 = vmax.f32 %v10152, %v10153
    %v10155 = vrot.slane %v10154, 2
    %v10156 = vmax.f32 %v10154, %v10155
    %v10157 = vrot.slane %v10156, 1
    %v10158 = vmax.f32 %v10156, %v10157
    %v10159 = vsel %vm829, %v10083, -inf
    %v10160 = vrot.slane %v10159, 4
    %v10161 = vmax.f32 %v10159, %v10160
    %v10162 = vrot.slane %v10161, 2
    %v10163 = vmax.f32 %v10161, %v10162
    %v10164 = vrot.slane %v10163, 1
    %v10165 = vmax.f32 %v10163, %v10164
    %v10166 = vsel %vm829, %v10082, -inf
    %v10167 = vrot.slane %v10166, 4
    %v10168 = vmax.f32 %v10166, %v10167
    %v10169 = vrot.slane %v10168, 2
    %v10170 = vmax.f32 %v10168, %v10169
    %v10171 = vrot.slane %v10170, 1
    %v10172 = vmax.f32 %v10170, %v10171
    %v10173 = vsel %vm829, %v10084, -inf
    %v10174 = vrot.slane %v10173, 4
    %v10175 = vmax.f32 %v10173, %v10174
    %v10176 = vrot.slane %v10175, 2
    %v10177 = vmax.f32 %v10175, %v10176
    %v10178 = vrot.slane %v10177, 1
    %v10179 = vmax.f32 %v10177, %v10178
    %v10180 = vsel %vm829, %v10092, -inf
    %v10181 = vrot.slane %v10180, 4
    %v10182 = vmax.f32 %v10180, %v10181
    %v10183 = vrot.slane %v10182, 2
    %v10184 = vmax.f32 %v10182, %v10183
    %v10185 = vrot.slane %v10184, 1
    %v10186 = vmax.f32 %v10184, %v10185
    %v10187 = vsel %vm829, %v10100, -inf
    %v10188 = vrot.slane %v10187, 4
    %v10189 = vmax.f32 %v10187, %v10188
    %v10190 = vrot.slane %v10189, 2
    %v10191 = vmax.f32 %v10189, %v10190
    %v10192 = vrot.slane %v10191, 1
    %v10193 = vmax.f32 %v10191, %v10192
    %v10194 = vsel %vm829, %v10099, -inf
    %v10195 = vrot.slane %v10194, 4
    %v10196 = vmax.f32 %v10194, %v10195
    %v10197 = vrot.slane %v10196, 2
    %v10198 = vmax.f32 %v10196, %v10197
    %v10199 = vrot.slane %v10198, 1
    %v10200 = vmax.f32 %v10198, %v10199
    %v10201 = vsel %vm829, %v10101, -inf
    %v10202 = vrot.slane %v10201, 4
    %v10203 = vmax.f32 %v10201, %v10202
    %v10204 = vrot.slane %v10203, 2
    %v10205 = vmax.f32 %v10203, %v10204
    %v10206 = vrot.slane %v10205, 1
    %v10207 = vmax.f32 %v10205, %v10206
    %v10208 = vsel %vm829, %v10109, -inf
    %v10209 = vrot.slane %v10208, 4
    %v10210 = vmax.f32 %v10208, %v10209
    %v10211 = vrot.slane %v10210, 2
    %v10212 = vmax.f32 %v10210, %v10211
    %v10213 = vrot.slane %v10212, 1
    %v10214 = vmax.f32 %v10212, %v10213
    %v10215 = vsel %vm829, %v10117, -inf
    %v10216 = vrot.slane %v10215, 4
    %v10217 = vmax.f32 %v10215, %v10216
    %v10218 = vrot.slane %v10217, 2
    %v10219 = vmax.f32 %v10217, %v10218
    %v10220 = vrot.slane %v10219, 1
    %v10221 = vmax.f32 %v10219, %v10220
    %v10222 = vsel %vm829, %v10116, -inf
    %v10223 = vrot.slane %v10222, 4
    %v10224 = vmax.f32 %v10222, %v10223
    %v10225 = vrot.slane %v10224, 2
    %v10226 = vmax.f32 %v10224, %v10225
    %v10227 = vrot.slane %v10226, 1
    %v10228 = vmax.f32 %v10226, %v10227
    %v10229 = vsel %vm829, %v10118, -inf
    %v10230 = vrot.slane %v10229, 4
    %v10231 = vmax.f32 %v10229, %v10230
    %v10232 = vrot.slane %v10231, 2
    %v10233 = vmax.f32 %v10231, %v10232
    %v10234 = vrot.slane %v10233, 1
    %v10235 = vmax.f32 %v10233, %v10234
    %v10236 = vsel %vm829, %v10126, -inf
    %v10237 = vrot.slane %v10236, 4
    %v10238 = vmax.f32 %v10236, %v10237
    %v10239 = vrot.slane %v10238, 2
    %v10240 = vmax.f32 %v10238, %v10239
    %v10241 = vrot.slane %v10240, 1
    %v10242 = vmax.f32 %v10240, %v10241
    %v10243 = vsel %vm829, %v10134, -inf
    %v10244 = vrot.slane %v10243, 4
    %v10245 = vmax.f32 %v10243, %v10244
    %v10246 = vrot.slane %v10245, 2
    %v10247 = vmax.f32 %v10245, %v10246
    %v10248 = vrot.slane %v10247, 1
    %v10249 = vmax.f32 %v10247, %v10248
    %v10250 = vsel %vm829, %v10133, -inf
    %v10251 = vrot.slane %v10250, 4
    %v10252 = vmax.f32 %v10250, %v10251
    %v10253 = vrot.slane %v10252, 2
    %v10254 = vmax.f32 %v10252, %v10253
    %v10255 = vrot.slane %v10254, 1
    %v10256 = vmax.f32 %v10254, %v10255
    %v10257 = vsel %vm829, %v10135, -inf
    %v10258 = vrot.slane %v10257, 4
    %v10259 = vmax.f32 %v10257, %v10258
    %v10260 = vrot.slane %v10259, 2
    %v10261 = vmax.f32 %v10259, %v10260
    %v10262 = vrot.slane %v10261, 1
    %v10263 = vmax.f32 %v10261, %v10262
    %v10264 = vmax.f32 %v10158, %v10186
    %v10265 = vmax.f32 %v10165, %v10193
    %v10266 = vmax.f32 %v10172, %v10200
    %v10267 = vmax.f32 %v10179, %v10207
    %v10268 = vmax.f32 %v10214, %v10242
    %v10269 = vmax.f32 %v10221, %v10249
    %v10270 = vmax.f32 %v10228, %v10256
    %v10271 = vmax.f32 %v10235, %v10263
    %v10272 = vpack.c.bf16 %v10264, %v10264
    %v10273 = vpack.c.bf16 %v10265, %v10265
    %v10274 = vpack.c.bf16 %v10266, %v10266
    %v10275 = vpack.c.bf16 %v10267, %v10267
    %v10276 = vpack.c.bf16 %v10268, %v10268
    %v10277 = vpack.c.bf16 %v10269, %v10269
    %v10278 = vpack.c.bf16 %v10270, %v10270
    %v10279 = vpack.c.bf16 %v10271, %v10271
    %v10280 = vld [vmem:[#allocation16] sm:$0xff]
    %v10281 = vld [vmem:[#allocation16 + $0x8] sm:$0xff]
    %v10282 = vld [vmem:[#allocation16 + $0x10] sm:$0xff]
    %v10283 = vld [vmem:[#allocation16 + $0x18] sm:$0xff]
    %v10284 = vld [vmem:[#allocation16 + $0x20] sm:$0xff]
    %v10285 = vld [vmem:[#allocation16 + $0x28] sm:$0xff]
    %v10286 = vld [vmem:[#allocation16 + $0x30] sm:$0xff]
    %v10287 = vld [vmem:[#allocation16 + $0x38] sm:$0xff]
    %v10288 = vld [vmem:[#allocation16 + $0x40] sm:$0xff]
    %v10289 = vld [vmem:[#allocation16 + $0x48] sm:$0xff]
    %v10290 = vld [vmem:[#allocation16 + $0x50] sm:$0xff]
    %v10291 = vld [vmem:[#allocation16 + $0x58] sm:$0xff]
    %v10292 = vld [vmem:[#allocation16 + $0x60] sm:$0xff]
    %v10293 = vld [vmem:[#allocation16 + $0x68] sm:$0xff]
    %v10294 = vld [vmem:[#allocation16 + $0x70] sm:$0xff]
    %v10295 = vld [vmem:[#allocation16 + $0x78] sm:$0xff]
    %v10296 = vld [vmem:[#allocation16 + $0x80] sm:$0xff]
    %v10297 = vld [vmem:[#allocation16 + $0x88] sm:$0xff]
    %v10298 = vld [vmem:[#allocation16 + $0x90] sm:$0xff]
    %v10299 = vld [vmem:[#allocation16 + $0x98] sm:$0xff]
    %v10300 = vld [vmem:[#allocation16 + $0xa0] sm:$0xff]
    %v10301 = vld [vmem:[#allocation16 + $0xa8] sm:$0xff]
    %v10302 = vld [vmem:[#allocation16 + $0xb0] sm:$0xff]
    %v10303 = vld [vmem:[#allocation16 + $0xb8] sm:$0xff]
    %v10304 = vld [vmem:[#allocation16 + $0xc0] sm:$0xff]
    %v10305 = vld [vmem:[#allocation16 + $0xc8] sm:$0xff]
    %v10306 = vld [vmem:[#allocation16 + $0xd0] sm:$0xff]
    %v10307 = vld [vmem:[#allocation16 + $0xd8] sm:$0xff]
    %v10308 = vld [vmem:[#allocation16 + $0xe0] sm:$0xff]
    %v10309 = vld [vmem:[#allocation16 + $0xe8] sm:$0xff]
    %v10310 = vld [vmem:[#allocation16 + $0xf0] sm:$0xff]
    %v10311 = vld [vmem:[#allocation16 + $0xf8] sm:$0xff]
    %v10312 = vld [vmem:[#allocation16 + $0x100] sm:$0xff]
    %v10313 = vld [vmem:[#allocation16 + $0x108] sm:$0xff]
    %v10314 = vld [vmem:[#allocation16 + $0x110] sm:$0xff]
    %v10315 = vld [vmem:[#allocation16 + $0x118] sm:$0xff]
    %v10316 = vld [vmem:[#allocation16 + $0x120] sm:$0xff]
    %v10317 = vld [vmem:[#allocation16 + $0x128] sm:$0xff]
    %v10318 = vld [vmem:[#allocation16 + $0x130] sm:$0xff]
    %v10319 = vld [vmem:[#allocation16 + $0x138] sm:$0xff]
    %v10320 = vld [vmem:[#allocation16 + $0x140] sm:$0xff]
    %v10321 = vld [vmem:[#allocation16 + $0x148] sm:$0xff]
    %v10322 = vld [vmem:[#allocation16 + $0x150] sm:$0xff]
    %v10323 = vld [vmem:[#allocation16 + $0x158] sm:$0xff]
    %v10324 = vld [vmem:[#allocation16 + $0x160] sm:$0xff]
    %v10325 = vld [vmem:[#allocation16 + $0x168] sm:$0xff]
    %v10326 = vld [vmem:[#allocation16 + $0x170] sm:$0xff]
    %v10327 = vld [vmem:[#allocation16 + $0x178] sm:$0xff]
    %v10328 = vld [vmem:[#allocation16 + $0x180] sm:$0xff]
    %v10329 = vld [vmem:[#allocation16 + $0x188] sm:$0xff]
    %v10330 = vld [vmem:[#allocation16 + $0x190] sm:$0xff]
    %v10331 = vld [vmem:[#allocation16 + $0x198] sm:$0xff]
    %v10332 = vld [vmem:[#allocation16 + $0x1a0] sm:$0xff]
    %v10333 = vld [vmem:[#allocation16 + $0x1a8] sm:$0xff]
    %v10334 = vld [vmem:[#allocation16 + $0x1b0] sm:$0xff]
    %v10335 = vld [vmem:[#allocation16 + $0x1b8] sm:$0xff]
    %v10336 = vld [vmem:[#allocation16 + $0x1c0] sm:$0xff]
    %v10337 = vld [vmem:[#allocation16 + $0x1c8] sm:$0xff]
    %v10338 = vld [vmem:[#allocation16 + $0x1d0] sm:$0xff]
    %v10339 = vld [vmem:[#allocation16 + $0x1d8] sm:$0xff]
    %v10340 = vld [vmem:[#allocation16 + $0x1e0] sm:$0xff]
    %v10341 = vld [vmem:[#allocation16 + $0x1e8] sm:$0xff]
    %v10342 = vld [vmem:[#allocation16 + $0x1f0] sm:$0xff]
    %v10343 = vld [vmem:[#allocation16 + $0x1f8] sm:$0xff]
    %v10344 = vld [vmem:[#allocation16 + $0x200] sm:$0xff]
    %v10345 = vld [vmem:[#allocation16 + $0x208] sm:$0xff]
    %v10346 = vld [vmem:[#allocation16 + $0x210] sm:$0xff]
    %v10347 = vld [vmem:[#allocation16 + $0x218] sm:$0xff]
    %v10348 = vld [vmem:[#allocation16 + $0x220] sm:$0xff]
    %v10349 = vld [vmem:[#allocation16 + $0x228] sm:$0xff]
    %v10350 = vld [vmem:[#allocation16 + $0x230] sm:$0xff]
    %v10351 = vld [vmem:[#allocation16 + $0x238] sm:$0xff]
    %v10352 = vld [vmem:[#allocation16 + $0x240] sm:$0xff]
    %v10353 = vld [vmem:[#allocation16 + $0x248] sm:$0xff]
    %v10354 = vld [vmem:[#allocation16 + $0x250] sm:$0xff]
    %v10355 = vld [vmem:[#allocation16 + $0x258] sm:$0xff]
    %v10356 = vld [vmem:[#allocation16 + $0x260] sm:$0xff]
    %v10357 = vld [vmem:[#allocation16 + $0x268] sm:$0xff]
    %v10358 = vld [vmem:[#allocation16 + $0x270] sm:$0xff]
    %v10359 = vld [vmem:[#allocation16 + $0x278] sm:$0xff]
    %v10360 = vld [vmem:[#allocation16 + $0x280] sm:$0xff]
    %v10361 = vld [vmem:[#allocation16 + $0x288] sm:$0xff]
    %v10362 = vld [vmem:[#allocation16 + $0x290] sm:$0xff]
    %v10363 = vld [vmem:[#allocation16 + $0x298] sm:$0xff]
    %v10364 = vld [vmem:[#allocation16 + $0x2a0] sm:$0xff]
    %v10365 = vld [vmem:[#allocation16 + $0x2a8] sm:$0xff]
    %v10366 = vld [vmem:[#allocation16 + $0x2b0] sm:$0xff]
    %v10367 = vld [vmem:[#allocation16 + $0x2b8] sm:$0xff]
    %v10368 = vld [vmem:[#allocation16 + $0x2c0] sm:$0xff]
    %v10369 = vld [vmem:[#allocation16 + $0x2c8] sm:$0xff]
    %v10370 = vld [vmem:[#allocation16 + $0x2d0] sm:$0xff]
    %v10371 = vld [vmem:[#allocation16 + $0x2d8] sm:$0xff]
    %v10372 = vld [vmem:[#allocation16 + $0x2e0] sm:$0xff]
    %v10373 = vld [vmem:[#allocation16 + $0x2e8] sm:$0xff]
    %v10374 = vld [vmem:[#allocation16 + $0x2f0] sm:$0xff]
    %v10375 = vld [vmem:[#allocation16 + $0x2f8] sm:$0xff]
    %v10376 = vld [vmem:[#allocation16 + $0x300] sm:$0xff]
    %v10377 = vld [vmem:[#allocation16 + $0x308] sm:$0xff]
    %v10378 = vld [vmem:[#allocation16 + $0x310] sm:$0xff]
    %v10379 = vld [vmem:[#allocation16 + $0x318] sm:$0xff]
    %v10380 = vld [vmem:[#allocation16 + $0x320] sm:$0xff]
    %v10381 = vld [vmem:[#allocation16 + $0x328] sm:$0xff]
    %v10382 = vld [vmem:[#allocation16 + $0x330] sm:$0xff]
    %v10383 = vld [vmem:[#allocation16 + $0x338] sm:$0xff]
    %v10384 = vld [vmem:[#allocation16 + $0x340] sm:$0xff]
    %v10385 = vld [vmem:[#allocation16 + $0x348] sm:$0xff]
    %v10386 = vld [vmem:[#allocation16 + $0x350] sm:$0xff]
    %v10387 = vld [vmem:[#allocation16 + $0x358] sm:$0xff]
    %v10388 = vld [vmem:[#allocation16 + $0x360] sm:$0xff]
    %v10389 = vld [vmem:[#allocation16 + $0x368] sm:$0xff]
    %v10390 = vld [vmem:[#allocation16 + $0x370] sm:$0xff]
    %v10391 = vld [vmem:[#allocation16 + $0x378] sm:$0xff]
    %v10392 = vld [vmem:[#allocation16 + $0x380] sm:$0xff]
    %v10393 = vld [vmem:[#allocation16 + $0x388] sm:$0xff]
    %v10394 = vld [vmem:[#allocation16 + $0x390] sm:$0xff]
    %v10395 = vld [vmem:[#allocation16 + $0x398] sm:$0xff]
    %v10396 = vld [vmem:[#allocation16 + $0x3a0] sm:$0xff]
    %v10397 = vld [vmem:[#allocation16 + $0x3a8] sm:$0xff]
    %v10398 = vld [vmem:[#allocation16 + $0x3b0] sm:$0xff]
    %v10399 = vld [vmem:[#allocation16 + $0x3b8] sm:$0xff]
    %v10400 = vld [vmem:[#allocation16 + $0x3c0] sm:$0xff]
    %v10401 = vld [vmem:[#allocation16 + $0x3c8] sm:$0xff]
    %v10402 = vld [vmem:[#allocation16 + $0x3d0] sm:$0xff]
    %v10403 = vld [vmem:[#allocation16 + $0x3d8] sm:$0xff]
    %v10404 = vld [vmem:[#allocation16 + $0x3e0] sm:$0xff]
    %v10405 = vld [vmem:[#allocation16 + $0x3e8] sm:$0xff]
    %v10406 = vld [vmem:[#allocation16 + $0x3f0] sm:$0xff]
    %v10407 = vld [vmem:[#allocation16 + $0x3f8] sm:$0xff]
    %v10408 = vld [vmem:[#allocation17] sm:$0xf]
    %v10409 = vld [vmem:[#allocation19] sm:$0xff]
    %v10410 = vld [vmem:[#allocation19 + $0x8] sm:$0xff]
    %v10411 = vld [vmem:[#allocation19 + $0x10] sm:$0xff]
    %v10412 = vld [vmem:[#allocation19 + $0x18] sm:$0xff]
    %v10413 = vld [vmem:[#allocation19 + $0x20] sm:$0xff]
    %v10414 = vld [vmem:[#allocation19 + $0x28] sm:$0xff]
    %v10415 = vld [vmem:[#allocation19 + $0x30] sm:$0xff]
    %v10416 = vld [vmem:[#allocation19 + $0x38] sm:$0xff]
    %v10417 = vld [vmem:[#allocation19 + $0x40] sm:$0xff]
    %v10418 = vld [vmem:[#allocation19 + $0x48] sm:$0xff]
    %v10419 = vld [vmem:[#allocation19 + $0x50] sm:$0xff]
    %v10420 = vld [vmem:[#allocation19 + $0x58] sm:$0xff]
    %v10421 = vld [vmem:[#allocation19 + $0x60] sm:$0xff]
    %v10422 = vld [vmem:[#allocation19 + $0x68] sm:$0xff]
    %v10423 = vld [vmem:[#allocation19 + $0x70] sm:$0xff]
    %v10424 = vld [vmem:[#allocation19 + $0x78] sm:$0xff]
    %v10425 = vld [vmem:[#allocation19 + $0x80] sm:$0xff]
    %v10426 = vld [vmem:[#allocation19 + $0x88] sm:$0xff]
    %v10427 = vld [vmem:[#allocation19 + $0x90] sm:$0xff]
    %v10428 = vld [vmem:[#allocation19 + $0x98] sm:$0xff]
    %v10429 = vld [vmem:[#allocation19 + $0xa0] sm:$0xff]
    %v10430 = vld [vmem:[#allocation19 + $0xa8] sm:$0xff]
    %v10431 = vld [vmem:[#allocation19 + $0xb0] sm:$0xff]
    %v10432 = vld [vmem:[#allocation19 + $0xb8] sm:$0xff]
    %v10433 = vld [vmem:[#allocation19 + $0xc0] sm:$0xff]
    %v10434 = vld [vmem:[#allocation19 + $0xc8] sm:$0xff]
    %v10435 = vld [vmem:[#allocation19 + $0xd0] sm:$0xff]
    %v10436 = vld [vmem:[#allocation19 + $0xd8] sm:$0xff]
    %v10437 = vld [vmem:[#allocation19 + $0xe0] sm:$0xff]
    %v10438 = vld [vmem:[#allocation19 + $0xe8] sm:$0xff]
    %v10439 = vld [vmem:[#allocation19 + $0xf0] sm:$0xff]
    %v10440 = vld [vmem:[#allocation19 + $0xf8] sm:$0xff]
    %v10441 = vld [vmem:[#allocation19 + $0x100] sm:$0xff]
    %v10442 = vld [vmem:[#allocation19 + $0x108] sm:$0xff]
    %v10443 = vld [vmem:[#allocation19 + $0x110] sm:$0xff]
    %v10444 = vld [vmem:[#allocation19 + $0x118] sm:$0xff]
    %v10445 = vld [vmem:[#allocation19 + $0x120] sm:$0xff]
    %v10446 = vld [vmem:[#allocation19 + $0x128] sm:$0xff]
    %v10447 = vld [vmem:[#allocation19 + $0x130] sm:$0xff]
    %v10448 = vld [vmem:[#allocation19 + $0x138] sm:$0xff]
    %v10449 = vld [vmem:[#allocation19 + $0x140] sm:$0xff]
    %v10450 = vld [vmem:[#allocation19 + $0x148] sm:$0xff]
    %v10451 = vld [vmem:[#allocation19 + $0x150] sm:$0xff]
    %v10452 = vld [vmem:[#allocation19 + $0x158] sm:$0xff]
    %v10453 = vld [vmem:[#allocation19 + $0x160] sm:$0xff]
    %v10454 = vld [vmem:[#allocation19 + $0x168] sm:$0xff]
    %v10455 = vld [vmem:[#allocation19 + $0x170] sm:$0xff]
    %v10456 = vld [vmem:[#allocation19 + $0x178] sm:$0xff]
    %v10457 = vld [vmem:[#allocation19 + $0x180] sm:$0xff]
    %v10458 = vld [vmem:[#allocation19 + $0x188] sm:$0xff]
    %v10459 = vld [vmem:[#allocation19 + $0x190] sm:$0xff]
    %v10460 = vld [vmem:[#allocation19 + $0x198] sm:$0xff]
    %v10461 = vld [vmem:[#allocation19 + $0x1a0] sm:$0xff]
    %v10462 = vld [vmem:[#allocation19 + $0x1a8] sm:$0xff]
    %v10463 = vld [vmem:[#allocation19 + $0x1b0] sm:$0xff]
    %v10464 = vld [vmem:[#allocation19 + $0x1b8] sm:$0xff]
    %v10465 = vld [vmem:[#allocation19 + $0x1c0] sm:$0xff]
    %v10466 = vld [vmem:[#allocation19 + $0x1c8] sm:$0xff]
    %v10467 = vld [vmem:[#allocation19 + $0x1d0] sm:$0xff]
    %v10468 = vld [vmem:[#allocation19 + $0x1d8] sm:$0xff]
    %v10469 = vld [vmem:[#allocation19 + $0x1e0] sm:$0xff]
    %v10470 = vld [vmem:[#allocation19 + $0x1e8] sm:$0xff]
    %v10471 = vld [vmem:[#allocation19 + $0x1f0] sm:$0xff]
    %v10472 = vld [vmem:[#allocation19 + $0x1f8] sm:$0xff]
    %v10473 = vld [vmem:[#allocation19 + $0x200] sm:$0xff]
    %v10474 = vld [vmem:[#allocation19 + $0x208] sm:$0xff]
    %v10475 = vld [vmem:[#allocation19 + $0x210] sm:$0xff]
    %v10476 = vld [vmem:[#allocation19 + $0x218] sm:$0xff]
    %v10477 = vld [vmem:[#allocation19 + $0x220] sm:$0xff]
    %v10478 = vld [vmem:[#allocation19 + $0x228] sm:$0xff]
    %v10479 = vld [vmem:[#allocation19 + $0x230] sm:$0xff]
    %v10480 = vld [vmem:[#allocation19 + $0x238] sm:$0xff]
    %v10481 = vld [vmem:[#allocation19 + $0x240] sm:$0xff]
    %v10482 = vld [vmem:[#allocation19 + $0x248] sm:$0xff]
    %v10483 = vld [vmem:[#allocation19 + $0x250] sm:$0xff]
    %v10484 = vld [vmem:[#allocation19 + $0x258] sm:$0xff]
    %v10485 = vld [vmem:[#allocation19 + $0x260] sm:$0xff]
    %v10486 = vld [vmem:[#allocation19 + $0x268] sm:$0xff]
    %v10487 = vld [vmem:[#allocation19 + $0x270] sm:$0xff]
    %v10488 = vld [vmem:[#allocation19 + $0x278] sm:$0xff]
    %v10489 = vld [vmem:[#allocation19 + $0x280] sm:$0xff]
    %v10490 = vld [vmem:[#allocation19 + $0x288] sm:$0xff]
    %v10491 = vld [vmem:[#allocation19 + $0x290] sm:$0xff]
    %v10492 = vld [vmem:[#allocation19 + $0x298] sm:$0xff]
    %v10493 = vld [vmem:[#allocation19 + $0x2a0] sm:$0xff]
    %v10494 = vld [vmem:[#allocation19 + $0x2a8] sm:$0xff]
    %v10495 = vld [vmem:[#allocation19 + $0x2b0] sm:$0xff]
    %v10496 = vld [vmem:[#allocation19 + $0x2b8] sm:$0xff]
    %v10497 = vld [vmem:[#allocation19 + $0x2c0] sm:$0xff]
    %v10498 = vld [vmem:[#allocation19 + $0x2c8] sm:$0xff]
    %v10499 = vld [vmem:[#allocation19 + $0x2d0] sm:$0xff]
    %v10500 = vld [vmem:[#allocation19 + $0x2d8] sm:$0xff]
    %v10501 = vld [vmem:[#allocation19 + $0x2e0] sm:$0xff]
    %v10502 = vld [vmem:[#allocation19 + $0x2e8] sm:$0xff]
    %v10503 = vld [vmem:[#allocation19 + $0x2f0] sm:$0xff]
    %v10504 = vld [vmem:[#allocation19 + $0x2f8] sm:$0xff]
    %v10505 = vld [vmem:[#allocation19 + $0x300] sm:$0xff]
    %v10506 = vld [vmem:[#allocation19 + $0x308] sm:$0xff]
    %v10507 = vld [vmem:[#allocation19 + $0x310] sm:$0xff]
    %v10508 = vld [vmem:[#allocation19 + $0x318] sm:$0xff]
    %v10509 = vld [vmem:[#allocation19 + $0x320] sm:$0xff]
    %v10510 = vld [vmem:[#allocation19 + $0x328] sm:$0xff]
    %v10511 = vld [vmem:[#allocation19 + $0x330] sm:$0xff]
    %v10512 = vld [vmem:[#allocation19 + $0x338] sm:$0xff]
    %v10513 = vld [vmem:[#allocation19 + $0x340] sm:$0xff]
    %v10514 = vld [vmem:[#allocation19 + $0x348] sm:$0xff]
    %v10515 = vld [vmem:[#allocation19 + $0x350] sm:$0xff]
    %v10516 = vld [vmem:[#allocation19 + $0x358] sm:$0xff]
    %v10517 = vld [vmem:[#allocation19 + $0x360] sm:$0xff]
    %v10518 = vld [vmem:[#allocation19 + $0x368] sm:$0xff]
    %v10519 = vld [vmem:[#allocation19 + $0x370] sm:$0xff]
    %v10520 = vld [vmem:[#allocation19 + $0x378] sm:$0xff]
    %v10521 = vld [vmem:[#allocation19 + $0x380] sm:$0xff]
    %v10522 = vld [vmem:[#allocation19 + $0x388] sm:$0xff]
    %v10523 = vld [vmem:[#allocation19 + $0x390] sm:$0xff]
    %v10524 = vld [vmem:[#allocation19 + $0x398] sm:$0xff]
    %v10525 = vld [vmem:[#allocation19 + $0x3a0] sm:$0xff]
    %v10526 = vld [vmem:[#allocation19 + $0x3a8] sm:$0xff]
    %v10527 = vld [vmem:[#allocation19 + $0x3b0] sm:$0xff]
    %v10528 = vld [vmem:[#allocation19 + $0x3b8] sm:$0xff]
    %v10529 = vld [vmem:[#allocation19 + $0x3c0] sm:$0xff]
    %v10530 = vld [vmem:[#allocation19 + $0x3c8] sm:$0xff]
    %v10531 = vld [vmem:[#allocation19 + $0x3d0] sm:$0xff]
    %v10532 = vld [vmem:[#allocation19 + $0x3d8] sm:$0xff]
    %v10533 = vld [vmem:[#allocation19 + $0x3e0] sm:$0xff]
    %v10534 = vld [vmem:[#allocation19 + $0x3e8] sm:$0xff]
    %v10535 = vld [vmem:[#allocation19 + $0x3f0] sm:$0xff]
    %v10536 = vld [vmem:[#allocation19 + $0x3f8] sm:$0xff]
    %v10537 = vld [vmem:[#allocation20] sm:$0xf]
    %v10538 = vld [vmem:[#allocation22] sm:$0xf]
    %v10539 = vld [vmem:[#allocation22 + $0x4] sm:$0xf]
    %v10540 = vld [vmem:[#allocation22 + $0x8] sm:$0xf]
    %v10541 = vld [vmem:[#allocation22 + $0xc] sm:$0xf]
    %v10542 = vld [vmem:[#allocation22 + $0x10] sm:$0xf]
    %v10543 = vld [vmem:[#allocation22 + $0x14] sm:$0xf]
    %v10544 = vld [vmem:[#allocation22 + $0x18] sm:$0xf]
    %v10545 = vld [vmem:[#allocation22 + $0x1c] sm:$0xf]
    %v10546 = vld [vmem:[#allocation22 + $0x20] sm:$0xf]
    %v10547 = vld [vmem:[#allocation22 + $0x24] sm:$0xf]
    %v10548 = vld [vmem:[#allocation22 + $0x28] sm:$0xf]
    %v10549 = vld [vmem:[#allocation22 + $0x2c] sm:$0xf]
    %v10550 = vld [vmem:[#allocation22 + $0x30] sm:$0xf]
    %v10551 = vld [vmem:[#allocation22 + $0x34] sm:$0xf]
    %v10552 = vld [vmem:[#allocation22 + $0x38] sm:$0xf]
    %v10553 = vld [vmem:[#allocation22 + $0x3c] sm:$0xf]
    %v10554 = vld [vmem:[#allocation22 + $0x40] sm:$0xf]
    %v10555 = vld [vmem:[#allocation22 + $0x44] sm:$0xf]
    %v10556 = vld [vmem:[#allocation22 + $0x48] sm:$0xf]
    %v10557 = vld [vmem:[#allocation22 + $0x4c] sm:$0xf]
    %v10558 = vld [vmem:[#allocation22 + $0x50] sm:$0xf]
    %v10559 = vld [vmem:[#allocation22 + $0x54] sm:$0xf]
    %v10560 = vld [vmem:[#allocation22 + $0x58] sm:$0xf]
    %v10561 = vld [vmem:[#allocation22 + $0x5c] sm:$0xf]
    %v10562 = vld [vmem:[#allocation22 + $0x60] sm:$0xf]
    %v10563 = vld [vmem:[#allocation22 + $0x64] sm:$0xf]
    %v10564 = vld [vmem:[#allocation22 + $0x68] sm:$0xf]
    %v10565 = vld [vmem:[#allocation22 + $0x6c] sm:$0xf]
    %v10566 = vld [vmem:[#allocation22 + $0x70] sm:$0xf]
    %v10567 = vld [vmem:[#allocation22 + $0x74] sm:$0xf]
    %v10568 = vld [vmem:[#allocation22 + $0x78] sm:$0xf]
    %v10569 = vld [vmem:[#allocation22 + $0x7c] sm:$0xf]
    %v10570 = vld [vmem:[#allocation22 + $0x80] sm:$0xf]
    %v10571 = vld [vmem:[#allocation22 + $0x84] sm:$0xf]
    %v10572 = vld [vmem:[#allocation22 + $0x88] sm:$0xf]
    %v10573 = vld [vmem:[#allocation22 + $0x8c] sm:$0xf]
    %v10574 = vld [vmem:[#allocation22 + $0x90] sm:$0xf]
    %v10575 = vld [vmem:[#allocation22 + $0x94] sm:$0xf]
    %v10576 = vld [vmem:[#allocation22 + $0x98] sm:$0xf]
    %v10577 = vld [vmem:[#allocation22 + $0x9c] sm:$0xf]
    %v10578 = vld [vmem:[#allocation22 + $0xa0] sm:$0xf]
    %v10579 = vld [vmem:[#allocation22 + $0xa4] sm:$0xf]
    %v10580 = vld [vmem:[#allocation22 + $0xa8] sm:$0xf]
    %v10581 = vld [vmem:[#allocation22 + $0xac] sm:$0xf]
    %v10582 = vld [vmem:[#allocation22 + $0xb0] sm:$0xf]
    %v10583 = vld [vmem:[#allocation22 + $0xb4] sm:$0xf]
    %v10584 = vld [vmem:[#allocation22 + $0xb8] sm:$0xf]
    %v10585 = vld [vmem:[#allocation22 + $0xbc] sm:$0xf]
    %v10586 = vld [vmem:[#allocation22 + $0xc0] sm:$0xf]
    %v10587 = vld [vmem:[#allocation22 + $0xc4] sm:$0xf]
    %v10588 = vld [vmem:[#allocation22 + $0xc8] sm:$0xf]
    %v10589 = vld [vmem:[#allocation22 + $0xcc] sm:$0xf]
    %v10590 = vld [vmem:[#allocation22 + $0xd0] sm:$0xf]
    %v10591 = vld [vmem:[#allocation22 + $0xd4] sm:$0xf]
    %v10592 = vld [vmem:[#allocation22 + $0xd8] sm:$0xf]
    %v10593 = vld [vmem:[#allocation22 + $0xdc] sm:$0xf]
    %v10594 = vld [vmem:[#allocation22 + $0xe0] sm:$0xf]
    %v10595 = vld [vmem:[#allocation22 + $0xe4] sm:$0xf]
    %v10596 = vld [vmem:[#allocation22 + $0xe8] sm:$0xf]
    %v10597 = vld [vmem:[#allocation22 + $0xec] sm:$0xf]
    %v10598 = vld [vmem:[#allocation22 + $0xf0] sm:$0xf]
    %v10599 = vld [vmem:[#allocation22 + $0xf4] sm:$0xf]
    %v10600 = vld [vmem:[#allocation22 + $0xf8] sm:$0xf]
    %v10601 = vld [vmem:[#allocation22 + $0xfc] sm:$0xf]
    %v10602 = vld [vmem:[#allocation23] sm:$0x1]
    %v10604 = vlaneseq
    %v10605 = vshrl.u32 %v10604, 7
    %v10606 = vsub.s32 0, %v10605
    %v10607 = vrot.slane %v10408, %v10606
    %v10608 = vlaneseq
    %v10609 = vshrl.u32 %v10608, 7
    %v10610 = vsub.s32 1, %v10609
    %v10611 = vrot.slane %v10408, %v10610
    %v10612 = vlaneseq
    %v10613 = vshrl.u32 %v10612, 7
    %v10614 = vsub.s32 2, %v10613
    %v10615 = vrot.slane %v10408, %v10614
    %v10616 = vlaneseq
    %v10617 = vshrl.u32 %v10616, 7
    %v10618 = vsub.s32 3, %v10617
    %v10619 = vrot.slane %v10408, %v10618
    %v10632 = vunpack.c.l.b16 %v10272
    %v10633 = vunpack.c.l.b16 %v10273
    %v10634 = vunpack.c.l.b16 %v10274
    %v10635 = vunpack.c.l.b16 %v10275
    %v10636 = vunpack.c.l.b16 %v10276
    %v10637 = vunpack.c.l.b16 %v10277
    %v10638 = vunpack.c.l.b16 %v10278
    %v10639 = vunpack.c.l.b16 %v10279
    %vm10640 = vcmask 1041409
    %v10641 = vsel %vm10640, %v10636, %v10632
    %v10642 = vsel %vm10640, %v10637, %v10633
    %v10643 = vsel %vm10640, %v10638, %v10634
    %v10644 = vsel %vm10640, %v10639, %v10635
    %v10645 = vpack.c.b16 %v10641, %v10641
    %v10646 = vpack.c.b16 %v10642, %v10642
    %v10647 = vpack.c.b16 %v10643, %v10643
    %v10648 = vpack.c.b16 %v10644, %v10644
    %v10781 = vunpack.c.l.b16 %v10280
    %v10782 = vunpack.c.h.b16 %v10280
    %v10783 = vunpack.c.l.b16 %v10281
    %v10784 = vunpack.c.h.b16 %v10281
    %v10785 = vunpack.c.l.b16 %v10282
    %v10786 = vunpack.c.h.b16 %v10282
    %v10787 = vunpack.c.l.b16 %v10283
    %v10788 = vunpack.c.h.b16 %v10283
    %v10789 = vunpack.c.l.b16 %v10284
    %v10790 = vunpack.c.h.b16 %v10284
    %v10791 = vunpack.c.l.b16 %v10285
    %v10792 = vunpack.c.h.b16 %v10285
    %v10793 = vunpack.c.l.b16 %v10286
    %v10794 = vunpack.c.h.b16 %v10286
    %v10795 = vunpack.c.l.b16 %v10287
    %v10796 = vunpack.c.h.b16 %v10287
    %v10797 = vunpack.c.l.b16 %v10288
    %v10798 = vunpack.c.h.b16 %v10288
    %v10799 = vunpack.c.l.b16 %v10289
    %v10800 = vunpack.c.h.b16 %v10289
    %v10801 = vunpack.c.l.b16 %v10290
    %v10802 = vunpack.c.h.b16 %v10290
    %v10803 = vunpack.c.l.b16 %v10291
    %v10804 = vunpack.c.h.b16 %v10291
    %v10805 = vunpack.c.l.b16 %v10292
    %v10806 = vunpack.c.h.b16 %v10292
    %v10807 = vunpack.c.l.b16 %v10293
    %v10808 = vunpack.c.h.b16 %v10293
    %v10809 = vunpack.c.l.b16 %v10294
    %v10810 = vunpack.c.h.b16 %v10294
    %v10811 = vunpack.c.l.b16 %v10295
    %v10812 = vunpack.c.h.b16 %v10295
    %v10813 = vunpack.c.l.b16 %v10296
    %v10814 = vunpack.c.h.b16 %v10296
    %v10815 = vunpack.c.l.b16 %v10297
    %v10816 = vunpack.c.h.b16 %v10297
    %v10817 = vunpack.c.l.b16 %v10298
    %v10818 = vunpack.c.h.b16 %v10298
    %v10819 = vunpack.c.l.b16 %v10299
    %v10820 = vunpack.c.h.b16 %v10299
    %v10821 = vunpack.c.l.b16 %v10300
    %v10822 = vunpack.c.h.b16 %v10300
    %v10823 = vunpack.c.l.b16 %v10301
    %v10824 = vunpack.c.h.b16 %v10301
    %v10825 = vunpack.c.l.b16 %v10302
    %v10826 = vunpack.c.h.b16 %v10302
    %v10827 = vunpack.c.l.b16 %v10303
    %v10828 = vunpack.c.h.b16 %v10303
    %v10829 = vunpack.c.l.b16 %v10304
    %v10830 = vunpack.c.h.b16 %v10304
    %v10831 = vunpack.c.l.b16 %v10305
    %v10832 = vunpack.c.h.b16 %v10305
    %v10833 = vunpack.c.l.b16 %v10306
    %v10834 = vunpack.c.h.b16 %v10306
    %v10835 = vunpack.c.l.b16 %v10307
    %v10836 = vunpack.c.h.b16 %v10307
    %v10837 = vunpack.c.l.b16 %v10308
    %v10838 = vunpack.c.h.b16 %v10308
    %v10839 = vunpack.c.l.b16 %v10309
    %v10840 = vunpack.c.h.b16 %v10309
    %v10841 = vunpack.c.l.b16 %v10310
    %v10842 = vunpack.c.h.b16 %v10310
    %v10843 = vunpack.c.l.b16 %v10311
    %v10844 = vunpack.c.h.b16 %v10311
    %v10845 = vunpack.c.l.b16 %v10312
    %v10846 = vunpack.c.h.b16 %v10312
    %v10847 = vunpack.c.l.b16 %v10313
    %v10848 = vunpack.c.h.b16 %v10313
    %v10849 = vunpack.c.l.b16 %v10314
    %v10850 = vunpack.c.h.b16 %v10314
    %v10851 = vunpack.c.l.b16 %v10315
    %v10852 = vunpack.c.h.b16 %v10315
    %v10853 = vunpack.c.l.b16 %v10316
    %v10854 = vunpack.c.h.b16 %v10316
    %v10855 = vunpack.c.l.b16 %v10317
    %v10856 = vunpack.c.h.b16 %v10317
    %v10857 = vunpack.c.l.b16 %v10318
    %v10858 = vunpack.c.h.b16 %v10318
    %v10859 = vunpack.c.l.b16 %v10319
    %v10860 = vunpack.c.h.b16 %v10319
    %v10861 = vunpack.c.l.b16 %v10320
    %v10862 = vunpack.c.h.b16 %v10320
    %v10863 = vunpack.c.l.b16 %v10321
    %v10864 = vunpack.c.h.b16 %v10321
    %v10865 = vunpack.c.l.b16 %v10322
    %v10866 = vunpack.c.h.b16 %v10322
    %v10867 = vunpack.c.l.b16 %v10323
    %v10868 = vunpack.c.h.b16 %v10323
    %v10869 = vunpack.c.l.b16 %v10324
    %v10870 = vunpack.c.h.b16 %v10324
    %v10871 = vunpack.c.l.b16 %v10325
    %v10872 = vunpack.c.h.b16 %v10325
    %v10873 = vunpack.c.l.b16 %v10326
    %v10874 = vunpack.c.h.b16 %v10326
    %v10875 = vunpack.c.l.b16 %v10327
    %v10876 = vunpack.c.h.b16 %v10327
    %v10877 = vunpack.c.l.b16 %v10328
    %v10878 = vunpack.c.h.b16 %v10328
    %v10879 = vunpack.c.l.b16 %v10329
    %v10880 = vunpack.c.h.b16 %v10329
    %v10881 = vunpack.c.l.b16 %v10330
    %v10882 = vunpack.c.h.b16 %v10330
    %v10883 = vunpack.c.l.b16 %v10331
    %v10884 = vunpack.c.h.b16 %v10331
    %v10885 = vunpack.c.l.b16 %v10332
    %v10886 = vunpack.c.h.b16 %v10332
    %v10887 = vunpack.c.l.b16 %v10333
    %v10888 = vunpack.c.h.b16 %v10333
    %v10889 = vunpack.c.l.b16 %v10334
    %v10890 = vunpack.c.h.b16 %v10334
    %v10891 = vunpack.c.l.b16 %v10335
    %v10892 = vunpack.c.h.b16 %v10335
    %v10893 = vunpack.c.l.b16 %v10336
    %v10894 = vunpack.c.h.b16 %v10336
    %v10895 = vunpack.c.l.b16 %v10337
    %v10896 = vunpack.c.h.b16 %v10337
    %v10897 = vunpack.c.l.b16 %v10338
    %v10898 = vunpack.c.h.b16 %v10338
    %v10899 = vunpack.c.l.b16 %v10339
    %v10900 = vunpack.c.h.b16 %v10339
    %v10901 = vunpack.c.l.b16 %v10340
    %v10902 = vunpack.c.h.b16 %v10340
    %v10903 = vunpack.c.l.b16 %v10341
    %v10904 = vunpack.c.h.b16 %v10341
    %v10905 = vunpack.c.l.b16 %v10342
    %v10906 = vunpack.c.h.b16 %v10342
    %v10907 = vunpack.c.l.b16 %v10343
    %v10908 = vunpack.c.h.b16 %v10343
    %v10909 = vunpack.c.l.b16 %v10344
    %v10910 = vunpack.c.h.b16 %v10344
    %v10911 = vunpack.c.l.b16 %v10345
    %v10912 = vunpack.c.h.b16 %v10345
    %v10913 = vunpack.c.l.b16 %v10346
    %v10914 = vunpack.c.h.b16 %v10346
    %v10915 = vunpack.c.l.b16 %v10347
    %v10916 = vunpack.c.h.b16 %v10347
    %v10917 = vunpack.c.l.b16 %v10348
    %v10918 = vunpack.c.h.b16 %v10348
    %v10919 = vunpack.c.l.b16 %v10349
    %v10920 = vunpack.c.h.b16 %v10349
    %v10921 = vunpack.c.l.b16 %v10350
    %v10922 = vunpack.c.h.b16 %v10350
    %v10923 = vunpack.c.l.b16 %v10351
    %v10924 = vunpack.c.h.b16 %v10351
    %v10925 = vunpack.c.l.b16 %v10352
    %v10926 = vunpack.c.h.b16 %v10352
    %v10927 = vunpack.c.l.b16 %v10353
    %v10928 = vunpack.c.h.b16 %v10353
    %v10929 = vunpack.c.l.b16 %v10354
    %v10930 = vunpack.c.h.b16 %v10354
    %v10931 = vunpack.c.l.b16 %v10355
    %v10932 = vunpack.c.h.b16 %v10355
    %v10933 = vunpack.c.l.b16 %v10356
    %v10934 = vunpack.c.h.b16 %v10356
    %v10935 = vunpack.c.l.b16 %v10357
    %v10936 = vunpack.c.h.b16 %v10357
    %v10937 = vunpack.c.l.b16 %v10358
    %v10938 = vunpack.c.h.b16 %v10358
    %v10939 = vunpack.c.l.b16 %v10359
    %v10940 = vunpack.c.h.b16 %v10359
    %v10941 = vunpack.c.l.b16 %v10360
    %v10942 = vunpack.c.h.b16 %v10360
    %v10943 = vunpack.c.l.b16 %v10361
    %v10944 = vunpack.c.h.b16 %v10361
    %v10945 = vunpack.c.l.b16 %v10362
    %v10946 = vunpack.c.h.b16 %v10362
    %v10947 = vunpack.c.l.b16 %v10363
    %v10948 = vunpack.c.h.b16 %v10363
    %v10949 = vunpack.c.l.b16 %v10364
    %v10950 = vunpack.c.h.b16 %v10364
    %v10951 = vunpack.c.l.b16 %v10365
    %v10952 = vunpack.c.h.b16 %v10365
    %v10953 = vunpack.c.l.b16 %v10366
    %v10954 = vunpack.c.h.b16 %v10366
    %v10955 = vunpack.c.l.b16 %v10367
    %v10956 = vunpack.c.h.b16 %v10367
    %v10957 = vunpack.c.l.b16 %v10368
    %v10958 = vunpack.c.h.b16 %v10368
    %v10959 = vunpack.c.l.b16 %v10369
    %v10960 = vunpack.c.h.b16 %v10369
    %v10961 = vunpack.c.l.b16 %v10370
    %v10962 = vunpack.c.h.b16 %v10370
    %v10963 = vunpack.c.l.b16 %v10371
    %v10964 = vunpack.c.h.b16 %v10371
    %v10965 = vunpack.c.l.b16 %v10372
    %v10966 = vunpack.c.h.b16 %v10372
    %v10967 = vunpack.c.l.b16 %v10373
    %v10968 = vunpack.c.h.b16 %v10373
    %v10969 = vunpack.c.l.b16 %v10374
    %v10970 = vunpack.c.h.b16 %v10374
    %v10971 = vunpack.c.l.b16 %v10375
    %v10972 = vunpack.c.h.b16 %v10375
    %v10973 = vunpack.c.l.b16 %v10376
    %v10974 = vunpack.c.h.b16 %v10376
    %v10975 = vunpack.c.l.b16 %v10377
    %v10976 = vunpack.c.h.b16 %v10377
    %v10977 = vunpack.c.l.b16 %v10378
    %v10978 = vunpack.c.h.b16 %v10378
    %v10979 = vunpack.c.l.b16 %v10379
    %v10980 = vunpack.c.h.b16 %v10379
    %v10981 = vunpack.c.l.b16 %v10380
    %v10982 = vunpack.c.h.b16 %v10380
    %v10983 = vunpack.c.l.b16 %v10381
    %v10984 = vunpack.c.h.b16 %v10381
    %v10985 = vunpack.c.l.b16 %v10382
    %v10986 = vunpack.c.h.b16 %v10382
    %v10987 = vunpack.c.l.b16 %v10383
    %v10988 = vunpack.c.h.b16 %v10383
    %v10989 = vunpack.c.l.b16 %v10384
    %v10990 = vunpack.c.h.b16 %v10384
    %v10991 = vunpack.c.l.b16 %v10385
    %v10992 = vunpack.c.h.b16 %v10385
    %v10993 = vunpack.c.l.b16 %v10386
    %v10994 = vunpack.c.h.b16 %v10386
    %v10995 = vunpack.c.l.b16 %v10387
    %v10996 = vunpack.c.h.b16 %v10387
    %v10997 = vunpack.c.l.b16 %v10388
    %v10998 = vunpack.c.h.b16 %v10388
    %v10999 = vunpack.c.l.b16 %v10389
    %v11000 = vunpack.c.h.b16 %v10389
    %v11001 = vunpack.c.l.b16 %v10390
    %v11002 = vunpack.c.h.b16 %v10390
    %v11003 = vunpack.c.l.b16 %v10391
    %v11004 = vunpack.c.h.b16 %v10391
    %v11005 = vunpack.c.l.b16 %v10392
    %v11006 = vunpack.c.h.b16 %v10392
    %v11007 = vunpack.c.l.b16 %v10393
    %v11008 = vunpack.c.h.b16 %v10393
    %v11009 = vunpack.c.l.b16 %v10394
    %v11010 = vunpack.c.h.b16 %v10394
    %v11011 = vunpack.c.l.b16 %v10395
    %v11012 = vunpack.c.h.b16 %v10395
    %v11013 = vunpack.c.l.b16 %v10396
    %v11014 = vunpack.c.h.b16 %v10396
    %v11015 = vunpack.c.l.b16 %v10397
    %v11016 = vunpack.c.h.b16 %v10397
    %v11017 = vunpack.c.l.b16 %v10398
    %v11018 = vunpack.c.h.b16 %v10398
    %v11019 = vunpack.c.l.b16 %v10399
    %v11020 = vunpack.c.h.b16 %v10399
    %v11021 = vunpack.c.l.b16 %v10400
    %v11022 = vunpack.c.h.b16 %v10400
    %v11023 = vunpack.c.l.b16 %v10401
    %v11024 = vunpack.c.h.b16 %v10401
    %v11025 = vunpack.c.l.b16 %v10402
    %v11026 = vunpack.c.h.b16 %v10402
    %v11027 = vunpack.c.l.b16 %v10403
    %v11028 = vunpack.c.h.b16 %v10403
    %v11029 = vunpack.c.l.b16 %v10404
    %v11030 = vunpack.c.h.b16 %v10404
    %v11031 = vunpack.c.l.b16 %v10405
    %v11032 = vunpack.c.h.b16 %v10405
    %v11033 = vunpack.c.l.b16 %v10406
    %v11034 = vunpack.c.h.b16 %v10406
    %v11035 = vunpack.c.l.b16 %v10407
    %v11036 = vunpack.c.h.b16 %v10407
    %v11037 = vpack.c.b16 %v10785, %v10781
    %v11038 = vpack.c.b16 %v10786, %v10782
    %v11039 = vpack.c.b16 %v10787, %v10783
    %v11040 = vpack.c.b16 %v10788, %v10784
    %v11041 = vpack.c.b16 %v10793, %v10789
    %v11042 = vpack.c.b16 %v10794, %v10790
    %v11043 = vpack.c.b16 %v10795, %v10791
    %v11044 = vpack.c.b16 %v10796, %v10792
    %v11045 = vpack.c.b16 %v10801, %v10797
    %v11046 = vpack.c.b16 %v10802, %v10798
    %v11047 = vpack.c.b16 %v10803, %v10799
    %v11048 = vpack.c.b16 %v10804, %v10800
    %v11049 = vpack.c.b16 %v10809, %v10805
    %v11050 = vpack.c.b16 %v10810, %v10806
    %v11051 = vpack.c.b16 %v10811, %v10807
    %v11052 = vpack.c.b16 %v10812, %v10808
    %v11053 = vpack.c.b16 %v10817, %v10813
    %v11054 = vpack.c.b16 %v10818, %v10814
    %v11055 = vpack.c.b16 %v10819, %v10815
    %v11056 = vpack.c.b16 %v10820, %v10816
    %v11057 = vpack.c.b16 %v10825, %v10821
    %v11058 = vpack.c.b16 %v10826, %v10822
    %v11059 = vpack.c.b16 %v10827, %v10823
    %v11060 = vpack.c.b16 %v10828, %v10824
    %v11061 = vpack.c.b16 %v10833, %v10829
    %v11062 = vpack.c.b16 %v10834, %v10830
    %v11063 = vpack.c.b16 %v10835, %v10831
    %v11064 = vpack.c.b16 %v10836, %v10832
    %v11065 = vpack.c.b16 %v10841, %v10837
    %v11066 = vpack.c.b16 %v10842, %v10838
    %v11067 = vpack.c.b16 %v10843, %v10839
    %v11068 = vpack.c.b16 %v10844, %v10840
    %v11069 = vpack.c.b16 %v10849, %v10845
    %v11070 = vpack.c.b16 %v10850, %v10846
    %v11071 = vpack.c.b16 %v10851, %v10847
    %v11072 = vpack.c.b16 %v10852, %v10848
    %v11073 = vpack.c.b16 %v10857, %v10853
    %v11074 = vpack.c.b16 %v10858, %v10854
    %v11075 = vpack.c.b16 %v10859, %v10855
    %v11076 = vpack.c.b16 %v10860, %v10856
    %v11077 = vpack.c.b16 %v10865, %v10861
    %v11078 = vpack.c.b16 %v10866, %v10862
    %v11079 = vpack.c.b16 %v10867, %v10863
    %v11080 = vpack.c.b16 %v10868, %v10864
    %v11081 = vpack.c.b16 %v10873, %v10869
    %v11082 = vpack.c.b16 %v10874, %v10870
    %v11083 = vpack.c.b16 %v10875, %v10871
    %v11084 = vpack.c.b16 %v10876, %v10872
    %v11085 = vpack.c.b16 %v10881, %v10877
    %v11086 = vpack.c.b16 %v10882, %v10878
    %v11087 = vpack.c.b16 %v10883, %v10879
    %v11088 = vpack.c.b16 %v10884, %v10880
    %v11089 = vpack.c.b16 %v10889, %v10885
    %v11090 = vpack.c.b16 %v10890, %v10886
    %v11091 = vpack.c.b16 %v10891, %v10887
    %v11092 = vpack.c.b16 %v10892, %v10888
    %v11093 = vpack.c.b16 %v10897, %v10893
    %v11094 = vpack.c.b16 %v10898, %v10894
    %v11095 = vpack.c.b16 %v10899, %v10895
    %v11096 = vpack.c.b16 %v10900, %v10896
    %v11097 = vpack.c.b16 %v10905, %v10901
    %v11098 = vpack.c.b16 %v10906, %v10902
    %v11099 = vpack.c.b16 %v10907, %v10903
    %v11100 = vpack.c.b16 %v10908, %v10904
    %v11101 = vpack.c.b16 %v10913, %v10909
    %v11102 = vpack.c.b16 %v10914, %v10910
    %v11103 = vpack.c.b16 %v10915, %v10911
    %v11104 = vpack.c.b16 %v10916, %v10912
    %v11105 = vpack.c.b16 %v10921, %v10917
    %v11106 = vpack.c.b16 %v10922, %v10918
    %v11107 = vpack.c.b16 %v10923, %v10919
    %v11108 = vpack.c.b16 %v10924, %v10920
    %v11109 = vpack.c.b16 %v10929, %v10925
    %v11110 = vpack.c.b16 %v10930, %v10926
    %v11111 = vpack.c.b16 %v10931, %v10927
    %v11112 = vpack.c.b16 %v10932, %v10928
    %v11113 = vpack.c.b16 %v10937, %v10933
    %v11114 = vpack.c.b16 %v10938, %v10934
    %v11115 = vpack.c.b16 %v10939, %v10935
    %v11116 = vpack.c.b16 %v10940, %v10936
    %v11117 = vpack.c.b16 %v10945, %v10941
    %v11118 = vpack.c.b16 %v10946, %v10942
    %v11119 = vpack.c.b16 %v10947, %v10943
    %v11120 = vpack.c.b16 %v10948, %v10944
    %v11121 = vpack.c.b16 %v10953, %v10949
    %v11122 = vpack.c.b16 %v10954, %v10950
    %v11123 = vpack.c.b16 %v10955, %v10951
    %v11124 = vpack.c.b16 %v10956, %v10952
    %v11125 = vpack.c.b16 %v10961, %v10957
    %v11126 = vpack.c.b16 %v10962, %v10958
    %v11127 = vpack.c.b16 %v10963, %v10959
    %v11128 = vpack.c.b16 %v10964, %v10960
    %v11129 = vpack.c.b16 %v10969, %v10965
    %v11130 = vpack.c.b16 %v10970, %v10966
    %v11131 = vpack.c.b16 %v10971, %v10967
    %v11132 = vpack.c.b16 %v10972, %v10968
    %v11133 = vpack.c.b16 %v10977, %v10973
    %v11134 = vpack.c.b16 %v10978, %v10974
    %v11135 = vpack.c.b16 %v10979, %v10975
    %v11136 = vpack.c.b16 %v10980, %v10976
    %v11137 = vpack.c.b16 %v10985, %v10981
    %v11138 = vpack.c.b16 %v10986, %v10982
    %v11139 = vpack.c.b16 %v10987, %v10983
    %v11140 = vpack.c.b16 %v10988, %v10984
    %v11141 = vpack.c.b16 %v10993, %v10989
    %v11142 = vpack.c.b16 %v10994, %v10990
    %v11143 = vpack.c.b16 %v10995, %v10991
    %v11144 = vpack.c.b16 %v10996, %v10992
    %v11145 = vpack.c.b16 %v11001, %v10997
    %v11146 = vpack.c.b16 %v11002, %v10998
    %v11147 = vpack.c.b16 %v11003, %v10999
    %v11148 = vpack.c.b16 %v11004, %v11000
    %v11149 = vpack.c.b16 %v11009, %v11005
    %v11150 = vpack.c.b16 %v11010, %v11006
    %v11151 = vpack.c.b16 %v11011, %v11007
    %v11152 = vpack.c.b16 %v11012, %v11008
    %v11153 = vpack.c.b16 %v11017, %v11013
    %v11154 = vpack.c.b16 %v11018, %v11014
    %v11155 = vpack.c.b16 %v11019, %v11015
    %v11156 = vpack.c.b16 %v11020, %v11016
    %v11157 = vpack.c.b16 %v11025, %v11021
    %v11158 = vpack.c.b16 %v11026, %v11022
    %v11159 = vpack.c.b16 %v11027, %v11023
    %v11160 = vpack.c.b16 %v11028, %v11024
    %v11161 = vpack.c.b16 %v11033, %v11029
    %v11162 = vpack.c.b16 %v11034, %v11030
    %v11163 = vpack.c.b16 %v11035, %v11031
    %v11164 = vpack.c.b16 %v11036, %v11032
    %11293 = vmatprep.subr.bf16.mxu0 %v11038
    %11294 = vmatpush1.bf16.msra.mxu0 %v11037
    %11295 = vmatprep.subr.bf16.mxu0 %v11042
    %11296 = vmatpush1.bf16.msra.mxu0 %v11041
    %11297 = vmatprep.subr.bf16.mxu0 %v11046
    %11298 = vmatpush1.bf16.msra.mxu0 %v11045
    %11299 = vmatprep.subr.bf16.mxu0 %v11050
    %11300 = vmatpush1.bf16.msra.mxu0 %v11049
    %11301 = vmatprep.subr.bf16.mxu0 %v11054
    %11302 = vmatpush1.bf16.msra.mxu0 %v11053
    %11303 = vmatprep.subr.bf16.mxu0 %v11058
    %11304 = vmatpush1.bf16.msra.mxu0 %v11057
    %11305 = vmatprep.subr.bf16.mxu0 %v11062
    %11306 = vmatpush1.bf16.msra.mxu0 %v11061
    %11307 = vmatprep.subr.bf16.mxu0 %v11066
    %11308 = vmatpush1.bf16.msra.mxu0 %v11065
    %11309 = vmatprep.subr.bf16.mxu0 %v11070
    %11310 = vmatpush1.bf16.msra.mxu0 %v11069
    %11311 = vmatprep.subr.bf16.mxu0 %v11074
    %11312 = vmatpush1.bf16.msra.mxu0 %v11073
    %11313 = vmatprep.subr.bf16.mxu0 %v11078
    %11314 = vmatpush1.bf16.msra.mxu0 %v11077
    %11315 = vmatprep.subr.bf16.mxu0 %v11082
    %11316 = vmatpush1.bf16.msra.mxu0 %v11081
    %11317 = vmatprep.subr.bf16.mxu0 %v11086
    %11318 = vmatpush1.bf16.msra.mxu0 %v11085
    %11319 = vmatprep.subr.bf16.mxu0 %v11090
    %11320 = vmatpush1.bf16.msra.mxu0 %v11089
    %11321 = vmatprep.subr.bf16.mxu0 %v11094
    %11322 = vmatpush1.bf16.msra.mxu0 %v11093
    %11323 = vmatprep.subr.bf16.mxu0 %v11098
    %11324 = vmatpush1.bf16.msra.mxu0 %v11097
    %11325 = vmatprep.mubr.bf16.mxu0 %v10646
    %11326 = vmatmul.mubr.bf16.gmra.mrb[0].mxu0 %v10645
    %v11327 = vpop.f32.mrb[0].mxu0
    %v11328 = vadd.f32 %v10607, %v11327
    %v11329 = vpop.f32.mrb[0].mxu0
    %v11330 = vadd.f32 %v10611, %v11329
    %v11331 = vpop.f32.mrb[0].mxu0
    %v11332 = vpop.f32.mrb[0].mxu0
    %11333 = vdwg.mxu0
    %11334 = vmatprep.subr.bf16.mxu0 %v11102
    %11335 = vmatpush1.bf16.msra.mxu0 %v11101
    %11336 = vmatprep.subr.bf16.mxu0 %v11106
    %11337 = vmatpush1.bf16.msra.mxu0 %v11105
    %11338 = vmatprep.subr.bf16.mxu0 %v11110
    %11339 = vmatpush1.bf16.msra.mxu0 %v11109
    %11340 = vmatprep.subr.bf16.mxu0 %v11114
    %11341 = vmatpush1.bf16.msra.mxu0 %v11113
    %11342 = vmatprep.subr.bf16.mxu0 %v11118
    %11343 = vmatpush1.bf16.msra.mxu0 %v11117
    %11344 = vmatprep.subr.bf16.mxu0 %v11122
    %11345 = vmatpush1.bf16.msra.mxu0 %v11121
    %11346 = vmatprep.subr.bf16.mxu0 %v11126
    %11347 = vmatpush1.bf16.msra.mxu0 %v11125
    %11348 = vmatprep.subr.bf16.mxu0 %v11130
    %11349 = vmatpush1.bf16.msra.mxu0 %v11129
    %11350 = vmatprep.subr.bf16.mxu0 %v11134
    %11351 = vmatpush1.bf16.msra.mxu0 %v11133
    %11352 = vmatprep.subr.bf16.mxu0 %v11138
    %11353 = vmatpush1.bf16.msra.mxu0 %v11137
    %11354 = vmatprep.subr.bf16.mxu0 %v11142
    %11355 = vmatpush1.bf16.msra.mxu0 %v11141
    %11356 = vmatprep.subr.bf16.mxu0 %v11146
    %11357 = vmatpush1.bf16.msra.mxu0 %v11145
    %11358 = vmatprep.subr.bf16.mxu0 %v11150
    %11359 = vmatpush1.bf16.msra.mxu0 %v11149
    %11360 = vmatprep.subr.bf16.mxu0 %v11154
    %11361 = vmatpush1.bf16.msra.mxu0 %v11153
    %11362 = vmatprep.subr.bf16.mxu0 %v11158
    %11363 = vmatpush1.bf16.msra.mxu0 %v11157
    %11364 = vmatprep.subr.bf16.mxu0 %v11162
    %11365 = vmatpush1.bf16.msra.mxu0 %v11161
    %11366 = vmatprep.mubr.bf16.mxu0 %v10648
    %11367 = vmatmul.mubr.bf16.gmra.mrb[0].mxu0 %v10647
    %v11368 = vpop.f32.mrb[0].mxu0
    %v11369 = vadd.f32 %v11328, %v11368
    %v11370 = vpop.f32.mrb[0].mxu0
    %v11371 = vadd.f32 %v11330, %v11370
    %v11372 = vpop.f32.mrb[0].mxu0
    %v11373 = vpop.f32.mrb[0].mxu0
    %11374 = vdwg.mxu0
    %11375 = vmatprep.subr.bf16.mxu0 %v11040
    %11376 = vmatpush1.bf16.msra.mxu0 %v11039
    %11377 = vmatprep.subr.bf16.mxu0 %v11044
    %11378 = vmatpush1.bf16.msra.mxu0 %v11043
    %11379 = vmatprep.subr.bf16.mxu0 %v11048
    %11380 = vmatpush1.bf16.msra.mxu0 %v11047
    %11381 = vmatprep.subr.bf16.mxu0 %v11052
    %11382 = vmatpush1.bf16.msra.mxu0 %v11051
    %11383 = vmatprep.subr.bf16.mxu0 %v11056
    %11384 = vmatpush1.bf16.msra.mxu0 %v11055
    %11385 = vmatprep.subr.bf16.mxu0 %v11060
    %11386 = vmatpush1.bf16.msra.mxu0 %v11059
    %11387 = vmatprep.subr.bf16.mxu0 %v11064
    %11388 = vmatpush1.bf16.msra.mxu0 %v11063
    %11389 = vmatprep.subr.bf16.mxu0 %v11068
    %11390 = vmatpush1.bf16.msra.mxu0 %v11067
    %11391 = vmatprep.subr.bf16.mxu0 %v11072
    %11392 = vmatpush1.bf16.msra.mxu0 %v11071
    %11393 = vmatprep.subr.bf16.mxu0 %v11076
    %11394 = vmatpush1.bf16.msra.mxu0 %v11075
    %11395 = vmatprep.subr.bf16.mxu0 %v11080
    %11396 = vmatpush1.bf16.msra.mxu0 %v11079
    %11397 = vmatprep.subr.bf16.mxu0 %v11084
    %11398 = vmatpush1.bf16.msra.mxu0 %v11083
    %11399 = vmatprep.subr.bf16.mxu0 %v11088
    %11400 = vmatpush1.bf16.msra.mxu0 %v11087
    %11401 = vmatprep.subr.bf16.mxu0 %v11092
    %11402 = vmatpush1.bf16.msra.mxu0 %v11091
    %11403 = vmatprep.subr.bf16.mxu0 %v11096
    %11404 = vmatpush1.bf16.msra.mxu0 %v11095
    %11405 = vmatprep.subr.bf16.mxu0 %v11100
    %11406 = vmatpush1.bf16.msra.mxu0 %v11099
    %11407 = vmatprep.mubr.bf16.mxu0 %v10646
    %11408 = vmatmul.mubr.bf16.gmra.mrb[0].mxu0 %v10645
    %v11409 = vpop.f32.mrb[0].mxu0
    %v11410 = vadd.f32 %v10615, %v11409
    %v11411 = vpop.f32.mrb[0].mxu0
    %v11412 = vadd.f32 %v10619, %v11411
    %v11413 = vpop.f32.mrb[0].mxu0
    %v11414 = vpop.f32.mrb[0].mxu0
    %11415 = vdwg.mxu0
    %11416 = vmatprep.subr.bf16.mxu0 %v11104
    %11417 = vmatpush1.bf16.msra.mxu0 %v11103
    %11418 = vmatprep.subr.bf16.mxu0 %v11108
    %11419 = vmatpush1.bf16.msra.mxu0 %v11107
    %11420 = vmatprep.subr.bf16.mxu0 %v11112
    %11421 = vmatpush1.bf16.msra.mxu0 %v11111
    %11422 = vmatprep.subr.bf16.mxu0 %v11116
    %11423 = vmatpush1.bf16.msra.mxu0 %v11115
    %11424 = vmatprep.subr.bf16.mxu0 %v11120
    %11425 = vmatpush1.bf16.msra.mxu0 %v11119
    %11426 = vmatprep.subr.bf16.mxu0 %v11124
    %11427 = vmatpush1.bf16.msra.mxu0 %v11123
    %11428 = vmatprep.subr.bf16.mxu0 %v11128
    %11429 = vmatpush1.bf16.msra.mxu0 %v11127
    %11430 = vmatprep.subr.bf16.mxu0 %v11132
    %11431 = vmatpush1.bf16.msra.mxu0 %v11131
    %11432 = vmatprep.subr.bf16.mxu0 %v11136
    %11433 = vmatpush1.bf16.msra.mxu0 %v11135
    %11434 = vmatprep.subr.bf16.mxu0 %v11140
    %11435 = vmatpush1.bf16.msra.mxu0 %v11139
    %11436 = vmatprep.subr.bf16.mxu0 %v11144
    %11437 = vmatpush1.bf16.msra.mxu0 %v11143
    %11438 = vmatprep.subr.bf16.mxu0 %v11148
    %11439 = vmatpush1.bf16.msra.mxu0 %v11147
    %11440 = vmatprep.subr.bf16.mxu0 %v11152
    %11441 = vmatpush1.bf16.msra.mxu0 %v11151
    %11442 = vmatprep.subr.bf16.mxu0 %v11156
    %11443 = vmatpush1.bf16.msra.mxu0 %v11155
    %11444 = vmatprep.subr.bf16.mxu0 %v11160
    %11445 = vmatpush1.bf16.msra.mxu0 %v11159
    %11446 = vmatprep.subr.bf16.mxu0 %v11164
    %11447 = vmatpush1.bf16.msra.mxu0 %v11163
    %11448 = vmatprep.mubr.bf16.mxu0 %v10648
    %11449 = vmatmul.mubr.bf16.gmra.mrb[0].mxu0 %v10647
    %v11450 = vpop.f32.mrb[0].mxu0
    %v11451 = vadd.f32 %v11410, %v11450
    %v11452 = vpop.f32.mrb[0].mxu0
    %v11453 = vadd.f32 %v11412, %v11452
    %v11454 = vpop.f32.mrb[0].mxu0
    %v11455 = vpop.f32.mrb[0].mxu0
    %11456 = vdwg.mxu0
    %v11457 = vmax.f32 %v11369, 0.0
    %v11458 = vmax.f32 %v11371, 0.0
    %v11459 = vmax.f32 %v11451, 0.0
    %v11460 = vmax.f32 %v11453, 0.0
    %v11461 = vpack.c.bf16 %v11457, %v11457
    %v11462 = vpack.c.bf16 %v11458, %v11458
    %v11463 = vpack.c.bf16 %v11459, %v11459
    %v11464 = vpack.c.bf16 %v11460, %v11460
    %v11466 = vlaneseq
    %v11467 = vshrl.u32 %v11466, 7
    %v11468 = vsub.s32 0, %v11467
    %v11469 = vrot.slane %v10537, %v11468
    %v11470 = vlaneseq
    %v11471 = vshrl.u32 %v11470, 7
    %v11472 = vsub.s32 1, %v11471
    %v11473 = vrot.slane %v10537, %v11472
    %v11474 = vlaneseq
    %v11475 = vshrl.u32 %v11474, 7
    %v11476 = vsub.s32 2, %v11475
    %v11477 = vrot.slane %v10537, %v11476
    %v11478 = vlaneseq
    %v11479 = vshrl.u32 %v11478, 7
    %v11480 = vsub.s32 3, %v11479
    %v11481 = vrot.slane %v10537, %v11480
    %v11614 = vunpack.c.l.b16 %v10409
    %v11615 = vunpack.c.h.b16 %v10409
    %v11616 = vunpack.c.l.b16 %v10410
    %v11617 = vunpack.c.h.b16 %v10410
    %v11618 = vunpack.c.l.b16 %v10411
    %v11619 = vunpack.c.h.b16 %v10411
    %v11620 = vunpack.c.l.b16 %v10412
    %v11621 = vunpack.c.h.b16 %v10412
    %v11622 = vunpack.c.l.b16 %v10413
    %v11623 = vunpack.c.h.b16 %v10413
    %v11624 = vunpack.c.l.b16 %v10414
    %v11625 = vunpack.c.h.b16 %v10414
    %v11626 = vunpack.c.l.b16 %v10415
    %v11627 = vunpack.c.h.b16 %v10415
    %v11628 = vunpack.c.l.b16 %v10416
    %v11629 = vunpack.c.h.b16 %v10416
    %v11630 = vunpack.c.l.b16 %v10417
    %v11631 = vunpack.c.h.b16 %v10417
    %v11632 = vunpack.c.l.b16 %v10418
    %v11633 = vunpack.c.h.b16 %v10418
    %v11634 = vunpack.c.l.b16 %v10419
    %v11635 = vunpack.c.h.b16 %v10419
    %v11636 = vunpack.c.l.b16 %v10420
    %v11637 = vunpack.c.h.b16 %v10420
    %v11638 = vunpack.c.l.b16 %v10421
    %v11639 = vunpack.c.h.b16 %v10421
    %v11640 = vunpack.c.l.b16 %v10422
    %v11641 = vunpack.c.h.b16 %v10422
    %v11642 = vunpack.c.l.b16 %v10423
    %v11643 = vunpack.c.h.b16 %v10423
    %v11644 = vunpack.c.l.b16 %v10424
    %v11645 = vunpack.c.h.b16 %v10424
    %v11646 = vunpack.c.l.b16 %v10425
    %v11647 = vunpack.c.h.b16 %v10425
    %v11648 = vunpack.c.l.b16 %v10426
    %v11649 = vunpack.c.h.b16 %v10426
    %v11650 = vunpack.c.l.b16 %v10427
    %v11651 = vunpack.c.h.b16 %v10427
    %v11652 = vunpack.c.l.b16 %v10428
    %v11653 = vunpack.c.h.b16 %v10428
    %v11654 = vunpack.c.l.b16 %v10429
    %v11655 = vunpack.c.h.b16 %v10429
    %v11656 = vunpack.c.l.b16 %v10430
    %v11657 = vunpack.c.h.b16 %v10430
    %v11658 = vunpack.c.l.b16 %v10431
    %v11659 = vunpack.c.h.b16 %v10431
    %v11660 = vunpack.c.l.b16 %v10432
    %v11661 = vunpack.c.h.b16 %v10432
    %v11662 = vunpack.c.l.b16 %v10433
    %v11663 = vunpack.c.h.b16 %v10433
    %v11664 = vunpack.c.l.b16 %v10434
    %v11665 = vunpack.c.h.b16 %v10434
    %v11666 = vunpack.c.l.b16 %v10435
    %v11667 = vunpack.c.h.b16 %v10435
    %v11668 = vunpack.c.l.b16 %v10436
    %v11669 = vunpack.c.h.b16 %v10436
    %v11670 = vunpack.c.l.b16 %v10437
    %v11671 = vunpack.c.h.b16 %v10437
    %v11672 = vunpack.c.l.b16 %v10438
    %v11673 = vunpack.c.h.b16 %v10438
    %v11674 = vunpack.c.l.b16 %v10439
    %v11675 = vunpack.c.h.b16 %v10439
    %v11676 = vunpack.c.l.b16 %v10440
    %v11677 = vunpack.c.h.b16 %v10440
    %v11678 = vunpack.c.l.b16 %v10441
    %v11679 = vunpack.c.h.b16 %v10441
    %v11680 = vunpack.c.l.b16 %v10442
    %v11681 = vunpack.c.h.b16 %v10442
    %v11682 = vunpack.c.l.b16 %v10443
    %v11683 = vunpack.c.h.b16 %v10443
    %v11684 = vunpack.c.l.b16 %v10444
    %v11685 = vunpack.c.h.b16 %v10444
    %v11686 = vunpack.c.l.b16 %v10445
    %v11687 = vunpack.c.h.b16 %v10445
    %v11688 = vunpack.c.l.b16 %v10446
    %v11689 = vunpack.c.h.b16 %v10446
    %v11690 = vunpack.c.l.b16 %v10447
    %v11691 = vunpack.c.h.b16 %v10447
    %v11692 = vunpack.c.l.b16 %v10448
    %v11693 = vunpack.c.h.b16 %v10448
    %v11694 = vunpack.c.l.b16 %v10449
    %v11695 = vunpack.c.h.b16 %v10449
    %v11696 = vunpack.c.l.b16 %v10450
    %v11697 = vunpack.c.h.b16 %v10450
    %v11698 = vunpack.c.l.b16 %v10451
    %v11699 = vunpack.c.h.b16 %v10451
    %v11700 = vunpack.c.l.b16 %v10452
    %v11701 = vunpack.c.h.b16 %v10452
    %v11702 = vunpack.c.l.b16 %v10453
    %v11703 = vunpack.c.h.b16 %v10453
    %v11704 = vunpack.c.l.b16 %v10454
    %v11705 = vunpack.c.h.b16 %v10454
    %v11706 = vunpack.c.l.b16 %v10455
    %v11707 = vunpack.c.h.b16 %v10455
    %v11708 = vunpack.c.l.b16 %v10456
    %v11709 = vunpack.c.h.b16 %v10456
    %v11710 = vunpack.c.l.b16 %v10457
    %v11711 = vunpack.c.h.b16 %v10457
    %v11712 = vunpack.c.l.b16 %v10458
    %v11713 = vunpack.c.h.b16 %v10458
    %v11714 = vunpack.c.l.b16 %v10459
    %v11715 = vunpack.c.h.b16 %v10459
    %v11716 = vunpack.c.l.b16 %v10460
    %v11717 = vunpack.c.h.b16 %v10460
    %v11718 = vunpack.c.l.b16 %v10461
    %v11719 = vunpack.c.h.b16 %v10461
    %v11720 = vunpack.c.l.b16 %v10462
    %v11721 = vunpack.c.h.b16 %v10462
    %v11722 = vunpack.c.l.b16 %v10463
    %v11723 = vunpack.c.h.b16 %v10463
    %v11724 = vunpack.c.l.b16 %v10464
    %v11725 = vunpack.c.h.b16 %v10464
    %v11726 = vunpack.c.l.b16 %v10465
    %v11727 = vunpack.c.h.b16 %v10465
    %v11728 = vunpack.c.l.b16 %v10466
    %v11729 = vunpack.c.h.b16 %v10466
    %v11730 = vunpack.c.l.b16 %v10467
    %v11731 = vunpack.c.h.b16 %v10467
    %v11732 = vunpack.c.l.b16 %v10468
    %v11733 = vunpack.c.h.b16 %v10468
    %v11734 = vunpack.c.l.b16 %v10469
    %v11735 = vunpack.c.h.b16 %v10469
    %v11736 = vunpack.c.l.b16 %v10470
    %v11737 = vunpack.c.h.b16 %v10470
    %v11738 = vunpack.c.l.b16 %v10471
    %v11739 = vunpack.c.h.b16 %v10471
    %v11740 = vunpack.c.l.b16 %v10472
    %v11741 = vunpack.c.h.b16 %v10472
    %v11742 = vunpack.c.l.b16 %v10473
    %v11743 = vunpack.c.h.b16 %v10473
    %v11744 = vunpack.c.l.b16 %v10474
    %v11745 = vunpack.c.h.b16 %v10474
    %v11746 = vunpack.c.l.b16 %v10475
    %v11747 = vunpack.c.h.b16 %v10475
    %v11748 = vunpack.c.l.b16 %v10476
    %v11749 = vunpack.c.h.b16 %v10476
    %v11750 = vunpack.c.l.b16 %v10477
    %v11751 = vunpack.c.h.b16 %v10477
    %v11752 = vunpack.c.l.b16 %v10478
    %v11753 = vunpack.c.h.b16 %v10478
    %v11754 = vunpack.c.l.b16 %v10479
    %v11755 = vunpack.c.h.b16 %v10479
    %v11756 = vunpack.c.l.b16 %v10480
    %v11757 = vunpack.c.h.b16 %v10480
    %v11758 = vunpack.c.l.b16 %v10481
    %v11759 = vunpack.c.h.b16 %v10481
    %v11760 = vunpack.c.l.b16 %v10482
    %v11761 = vunpack.c.h.b16 %v10482
    %v11762 = vunpack.c.l.b16 %v10483
    %v11763 = vunpack.c.h.b16 %v10483
    %v11764 = vunpack.c.l.b16 %v10484
    %v11765 = vunpack.c.h.b16 %v10484
    %v11766 = vunpack.c.l.b16 %v10485
    %v11767 = vunpack.c.h.b16 %v10485
    %v11768 = vunpack.c.l.b16 %v10486
    %v11769 = vunpack.c.h.b16 %v10486
    %v11770 = vunpack.c.l.b16 %v10487
    %v11771 = vunpack.c.h.b16 %v10487
    %v11772 = vunpack.c.l.b16 %v10488
    %v11773 = vunpack.c.h.b16 %v10488
    %v11774 = vunpack.c.l.b16 %v10489
    %v11775 = vunpack.c.h.b16 %v10489
    %v11776 = vunpack.c.l.b16 %v10490
    %v11777 = vunpack.c.h.b16 %v10490
    %v11778 = vunpack.c.l.b16 %v10491
    %v11779 = vunpack.c.h.b16 %v10491
    %v11780 = vunpack.c.l.b16 %v10492
    %v11781 = vunpack.c.h.b16 %v10492
    %v11782 = vunpack.c.l.b16 %v10493
    %v11783 = vunpack.c.h.b16 %v10493
    %v11784 = vunpack.c.l.b16 %v10494
    %v11785 = vunpack.c.h.b16 %v10494
    %v11786 = vunpack.c.l.b16 %v10495
    %v11787 = vunpack.c.h.b16 %v10495
    %v11788 = vunpack.c.l.b16 %v10496
    %v11789 = vunpack.c.h.b16 %v10496
    %v11790 = vunpack.c.l.b16 %v10497
    %v11791 = vunpack.c.h.b16 %v10497
    %v11792 = vunpack.c.l.b16 %v10498
    %v11793 = vunpack.c.h.b16 %v10498
    %v11794 = vunpack.c.l.b16 %v10499
    %v11795 = vunpack.c.h.b16 %v10499
    %v11796 = vunpack.c.l.b16 %v10500
    %v11797 = vunpack.c.h.b16 %v10500
    %v11798 = vunpack.c.l.b16 %v10501
    %v11799 = vunpack.c.h.b16 %v10501
    %v11800 = vunpack.c.l.b16 %v10502
    %v11801 = vunpack.c.h.b16 %v10502
    %v11802 = vunpack.c.l.b16 %v10503
    %v11803 = vunpack.c.h.b16 %v10503
    %v11804 = vunpack.c.l.b16 %v10504
    %v11805 = vunpack.c.h.b16 %v10504
    %v11806 = vunpack.c.l.b16 %v10505
    %v11807 = vunpack.c.h.b16 %v10505
    %v11808 = vunpack.c.l.b16 %v10506
    %v11809 = vunpack.c.h.b16 %v10506
    %v11810 = vunpack.c.l.b16 %v10507
    %v11811 = vunpack.c.h.b16 %v10507
    %v11812 = vunpack.c.l.b16 %v10508
    %v11813 = vunpack.c.h.b16 %v10508
    %v11814 = vunpack.c.l.b16 %v10509
    %v11815 = vunpack.c.h.b16 %v10509
    %v11816 = vunpack.c.l.b16 %v10510
    %v11817 = vunpack.c.h.b16 %v10510
    %v11818 = vunpack.c.l.b16 %v10511
    %v11819 = vunpack.c.h.b16 %v10511
    %v11820 = vunpack.c.l.b16 %v10512
    %v11821 = vunpack.c.h.b16 %v10512
    %v11822 = vunpack.c.l.b16 %v10513
    %v11823 = vunpack.c.h.b16 %v10513
    %v11824 = vunpack.c.l.b16 %v10514
    %v11825 = vunpack.c.h.b16 %v10514
    %v11826 = vunpack.c.l.b16 %v10515
    %v11827 = vunpack.c.h.b16 %v10515
    %v11828 = vunpack.c.l.b16 %v10516
    %v11829 = vunpack.c.h.b16 %v10516
    %v11830 = vunpack.c.l.b16 %v10517
    %v11831 = vunpack.c.h.b16 %v10517
    %v11832 = vunpack.c.l.b16 %v10518
    %v11833 = vunpack.c.h.b16 %v10518
    %v11834 = vunpack.c.l.b16 %v10519
    %v11835 = vunpack.c.h.b16 %v10519
    %v11836 = vunpack.c.l.b16 %v10520
    %v11837 = vunpack.c.h.b16 %v10520
    %v11838 = vunpack.c.l.b16 %v10521
    %v11839 = vunpack.c.h.b16 %v10521
    %v11840 = vunpack.c.l.b16 %v10522
    %v11841 = vunpack.c.h.b16 %v10522
    %v11842 = vunpack.c.l.b16 %v10523
    %v11843 = vunpack.c.h.b16 %v10523
    %v11844 = vunpack.c.l.b16 %v10524
    %v11845 = vunpack.c.h.b16 %v10524
    %v11846 = vunpack.c.l.b16 %v10525
    %v11847 = vunpack.c.h.b16 %v10525
    %v11848 = vunpack.c.l.b16 %v10526
    %v11849 = vunpack.c.h.b16 %v10526
    %v11850 = vunpack.c.l.b16 %v10527
    %v11851 = vunpack.c.h.b16 %v10527
    %v11852 = vunpack.c.l.b16 %v10528
    %v11853 = vunpack.c.h.b16 %v10528
    %v11854 = vunpack.c.l.b16 %v10529
    %v11855 = vunpack.c.h.b16 %v10529
    %v11856 = vunpack.c.l.b16 %v10530
    %v11857 = vunpack.c.h.b16 %v10530
    %v11858 = vunpack.c.l.b16 %v10531
    %v11859 = vunpack.c.h.b16 %v10531
    %v11860 = vunpack.c.l.b16 %v10532
    %v11861 = vunpack.c.h.b16 %v10532
    %v11862 = vunpack.c.l.b16 %v10533
    %v11863 = vunpack.c.h.b16 %v10533
    %v11864 = vunpack.c.l.b16 %v10534
    %v11865 = vunpack.c.h.b16 %v10534
    %v11866 = vunpack.c.l.b16 %v10535
    %v11867 = vunpack.c.h.b16 %v10535
    %v11868 = vunpack.c.l.b16 %v10536
    %v11869 = vunpack.c.h.b16 %v10536
    %v11870 = vpack.c.b16 %v11618, %v11614
    %v11871 = vpack.c.b16 %v11619, %v11615
    %v11872 = vpack.c.b16 %v11620, %v11616
    %v11873 = vpack.c.b16 %v11621, %v11617
    %v11874 = vpack.c.b16 %v11626, %v11622
    %v11875 = vpack.c.b16 %v11627, %v11623
    %v11876 = vpack.c.b16 %v11628, %v11624
    %v11877 = vpack.c.b16 %v11629, %v11625
    %v11878 = vpack.c.b16 %v11634, %v11630
    %v11879 = vpack.c.b16 %v11635, %v11631
    %v11880 = vpack.c.b16 %v11636, %v11632
    %v11881 = vpack.c.b16 %v11637, %v11633
    %v11882 = vpack.c.b16 %v11642, %v11638
    %v11883 = vpack.c.b16 %v11643, %v11639
    %v11884 = vpack.c.b16 %v11644, %v11640
    %v11885 = vpack.c.b16 %v11645, %v11641
    %v11886 = vpack.c.b16 %v11650, %v11646
    %v11887 = vpack.c.b16 %v11651, %v11647
    %v11888 = vpack.c.b16 %v11652, %v11648
    %v11889 = vpack.c.b16 %v11653, %v11649
    %v11890 = vpack.c.b16 %v11658, %v11654
    %v11891 = vpack.c.b16 %v11659, %v11655
    %v11892 = vpack.c.b16 %v11660, %v11656
    %v11893 = vpack.c.b16 %v11661, %v11657
    %v11894 = vpack.c.b16 %v11666, %v11662
    %v11895 = vpack.c.b16 %v11667, %v11663
    %v11896 = vpack.c.b16 %v11668, %v11664
    %v11897 = vpack.c.b16 %v11669, %v11665
    %v11898 = vpack.c.b16 %v11674, %v11670
    %v11899 = vpack.c.b16 %v11675, %v11671
    %v11900 = vpack.c.b16 %v11676, %v11672
    %v11901 = vpack.c.b16 %v11677, %v11673
    %v11902 = vpack.c.b16 %v11682, %v11678
    %v11903 = vpack.c.b16 %v11683, %v11679
    %v11904 = vpack.c.b16 %v11684, %v11680
    %v11905 = vpack.c.b16 %v11685, %v11681
    %v11906 = vpack.c.b16 %v11690, %v11686
    %v11907 = vpack.c.b16 %v11691, %v11687
    %v11908 = vpack.c.b16 %v11692, %v11688
    %v11909 = vpack.c.b16 %v11693, %v11689
    %v11910 = vpack.c.b16 %v11698, %v11694
    %v11911 = vpack.c.b16 %v11699, %v11695
    %v11912 = vpack.c.b16 %v11700, %v11696
    %v11913 = vpack.c.b16 %v11701, %v11697
    %v11914 = vpack.c.b16 %v11706, %v11702
    %v11915 = vpack.c.b16 %v11707, %v11703
    %v11916 = vpack.c.b16 %v11708, %v11704
    %v11917 = vpack.c.b16 %v11709, %v11705
    %v11918 = vpack.c.b16 %v11714, %v11710
    %v11919 = vpack.c.b16 %v11715, %v11711
    %v11920 = vpack.c.b16 %v11716, %v11712
    %v11921 = vpack.c.b16 %v11717, %v11713
    %v11922 = vpack.c.b16 %v11722, %v11718
    %v11923 = vpack.c.b16 %v11723, %v11719
    %v11924 = vpack.c.b16 %v11724, %v11720
    %v11925 = vpack.c.b16 %v11725, %v11721
    %v11926 = vpack.c.b16 %v11730, %v11726
    %v11927 = vpack.c.b16 %v11731, %v11727
    %v11928 = vpack.c.b16 %v11732, %v11728
    %v11929 = vpack.c.b16 %v11733, %v11729
    %v11930 = vpack.c.b16 %v11738, %v11734
    %v11931 = vpack.c.b16 %v11739, %v11735
    %v11932 = vpack.c.b16 %v11740, %v11736
    %v11933 = vpack.c.b16 %v11741, %v11737
    %v11934 = vpack.c.b16 %v11746, %v11742
    %v11935 = vpack.c.b16 %v11747, %v11743
    %v11936 = vpack.c.b16 %v11748, %v11744
    %v11937 = vpack.c.b16 %v11749, %v11745
    %v11938 = vpack.c.b16 %v11754, %v11750
    %v11939 = vpack.c.b16 %v11755, %v11751
    %v11940 = vpack.c.b16 %v11756, %v11752
    %v11941 = vpack.c.b16 %v11757, %v11753
    %v11942 = vpack.c.b16 %v11762, %v11758
    %v11943 = vpack.c.b16 %v11763, %v11759
    %v11944 = vpack.c.b16 %v11764, %v11760
    %v11945 = vpack.c.b16 %v11765, %v11761
    %v11946 = vpack.c.b16 %v11770, %v11766
    %v11947 = vpack.c.b16 %v11771, %v11767
    %v11948 = vpack.c.b16 %v11772, %v11768
    %v11949 = vpack.c.b16 %v11773, %v11769
    %v11950 = vpack.c.b16 %v11778, %v11774
    %v11951 = vpack.c.b16 %v11779, %v11775
    %v11952 = vpack.c.b16 %v11780, %v11776
    %v11953 = vpack.c.b16 %v11781, %v11777
    %v11954 = vpack.c.b16 %v11786, %v11782
    %v11955 = vpack.c.b16 %v11787, %v11783
    %v11956 = vpack.c.b16 %v11788, %v11784
    %v11957 = vpack.c.b16 %v11789, %v11785
    %v11958 = vpack.c.b16 %v11794, %v11790
    %v11959 = vpack.c.b16 %v11795, %v11791
    %v11960 = vpack.c.b16 %v11796, %v11792
    %v11961 = vpack.c.b16 %v11797, %v11793
    %v11962 = vpack.c.b16 %v11802, %v11798
    %v11963 = vpack.c.b16 %v11803, %v11799
    %v11964 = vpack.c.b16 %v11804, %v11800
    %v11965 = vpack.c.b16 %v11805, %v11801
    %v11966 = vpack.c.b16 %v11810, %v11806
    %v11967 = vpack.c.b16 %v11811, %v11807
    %v11968 = vpack.c.b16 %v11812, %v11808
    %v11969 = vpack.c.b16 %v11813, %v11809
    %v11970 = vpack.c.b16 %v11818, %v11814
    %v11971 = vpack.c.b16 %v11819, %v11815
    %v11972 = vpack.c.b16 %v11820, %v11816
    %v11973 = vpack.c.b16 %v11821, %v11817
    %v11974 = vpack.c.b16 %v11826, %v11822
    %v11975 = vpack.c.b16 %v11827, %v11823
    %v11976 = vpack.c.b16 %v11828, %v11824
    %v11977 = vpack.c.b16 %v11829, %v11825
    %v11978 = vpack.c.b16 %v11834, %v11830
    %v11979 = vpack.c.b16 %v11835, %v11831
    %v11980 = vpack.c.b16 %v11836, %v11832
    %v11981 = vpack.c.b16 %v11837, %v11833
    %v11982 = vpack.c.b16 %v11842, %v11838
    %v11983 = vpack.c.b16 %v11843, %v11839
    %v11984 = vpack.c.b16 %v11844, %v11840
    %v11985 = vpack.c.b16 %v11845, %v11841
    %v11986 = vpack.c.b16 %v11850, %v11846
    %v11987 = vpack.c.b16 %v11851, %v11847
    %v11988 = vpack.c.b16 %v11852, %v11848
    %v11989 = vpack.c.b16 %v11853, %v11849
    %v11990 = vpack.c.b16 %v11858, %v11854
    %v11991 = vpack.c.b16 %v11859, %v11855
    %v11992 = vpack.c.b16 %v11860, %v11856
    %v11993 = vpack.c.b16 %v11861, %v11857
    %v11994 = vpack.c.b16 %v11866, %v11862
    %v11995 = vpack.c.b16 %v11867, %v11863
    %v11996 = vpack.c.b16 %v11868, %v11864
    %v11997 = vpack.c.b16 %v11869, %v11865
    %12126 = vmatprep.subr.bf16.mxu0 %v11871
    %12127 = vmatpush1.bf16.msra.mxu0 %v11870
    %12128 = vmatprep.subr.bf16.mxu0 %v11875
    %12129 = vmatpush1.bf16.msra.mxu0 %v11874
    %12130 = vmatprep.subr.bf16.mxu0 %v11879
    %12131 = vmatpush1.bf16.msra.mxu0 %v11878
    %12132 = vmatprep.subr.bf16.mxu0 %v11883
    %12133 = vmatpush1.bf16.msra.mxu0 %v11882
    %12134 = vmatprep.subr.bf16.mxu0 %v11887
    %12135 = vmatpush1.bf16.msra.mxu0 %v11886
    %12136 = vmatprep.subr.bf16.mxu0 %v11891
    %12137 = vmatpush1.bf16.msra.mxu0 %v11890
    %12138 = vmatprep.subr.bf16.mxu0 %v11895
    %12139 = vmatpush1.bf16.msra.mxu0 %v11894
    %12140 = vmatprep.subr.bf16.mxu0 %v11899
    %12141 = vmatpush1.bf16.msra.mxu0 %v11898
    %12142 = vmatprep.subr.bf16.mxu0 %v11903
    %12143 = vmatpush1.bf16.msra.mxu0 %v11902
    %12144 = vmatprep.subr.bf16.mxu0 %v11907
    %12145 = vmatpush1.bf16.msra.mxu0 %v11906
    %12146 = vmatprep.subr.bf16.mxu0 %v11911
    %12147 = vmatpush1.bf16.msra.mxu0 %v11910
    %12148 = vmatprep.subr.bf16.mxu0 %v11915
    %12149 = vmatpush1.bf16.msra.mxu0 %v11914
    %12150 = vmatprep.subr.bf16.mxu0 %v11919
    %12151 = vmatpush1.bf16.msra.mxu0 %v11918
    %12152 = vmatprep.subr.bf16.mxu0 %v11923
    %12153 = vmatpush1.bf16.msra.mxu0 %v11922
    %12154 = vmatprep.subr.bf16.mxu0 %v11927
    %12155 = vmatpush1.bf16.msra.mxu0 %v11926
    %12156 = vmatprep.subr.bf16.mxu0 %v11931
    %12157 = vmatpush1.bf16.msra.mxu0 %v11930
    %12158 = vmatprep.mubr.bf16.mxu0 %v11462
    %12159 = vmatmul.mubr.bf16.gmra.mrb[0].mxu0 %v11461
    %v12160 = vpop.f32.mrb[0].mxu0
    %v12161 = vadd.f32 %v11469, %v12160
    %v12162 = vpop.f32.mrb[0].mxu0
    %v12163 = vadd.f32 %v11473, %v12162
    %v12164 = vpop.f32.mrb[0].mxu0
    %v12165 = vpop.f32.mrb[0].mxu0
    %12166 = vdwg.mxu0
    %12167 = vmatprep.subr.bf16.mxu0 %v11935
    %12168 = vmatpush1.bf16.msra.mxu0 %v11934
    %12169 = vmatprep.subr.bf16.mxu0 %v11939
    %12170 = vmatpush1.bf16.msra.mxu0 %v11938
    %12171 = vmatprep.subr.bf16.mxu0 %v11943
    %12172 = vmatpush1.bf16.msra.mxu0 %v11942
    %12173 = vmatprep.subr.bf16.mxu0 %v11947
    %12174 = vmatpush1.bf16.msra.mxu0 %v11946
    %12175 = vmatprep.subr.bf16.mxu0 %v11951
    %12176 = vmatpush1.bf16.msra.mxu0 %v11950
    %12177 = vmatprep.subr.bf16.mxu0 %v11955
    %12178 = vmatpush1.bf16.msra.mxu0 %v11954
    %12179 = vmatprep.subr.bf16.mxu0 %v11959
    %12180 = vmatpush1.bf16.msra.mxu0 %v11958
    %12181 = vmatprep.subr.bf16.mxu0 %v11963
    %12182 = vmatpush1.bf16.msra.mxu0 %v11962
    %12183 = vmatprep.subr.bf16.mxu0 %v11967
    %12184 = vmatpush1.bf16.msra.mxu0 %v11966
    %12185 = vmatprep.subr.bf16.mxu0 %v11971
    %12186 = vmatpush1.bf16.msra.mxu0 %v11970
    %12187 = vmatprep.subr.bf16.mxu0 %v11975
    %12188 = vmatpush1.bf16.msra.mxu0 %v11974
    %12189 = vmatprep.subr.bf16.mxu0 %v11979
    %12190 = vmatpush1.bf16.msra.mxu0 %v11978
    %12191 = vmatprep.subr.bf16.mxu0 %v11983
    %12192 = vmatpush1.bf16.msra.mxu0 %v11982
    %12193 = vmatprep.subr.bf16.mxu0 %v11987
    %12194 = vmatpush1.bf16.msra.mxu0 %v11986
    %12195 = vmatprep.subr.bf16.mxu0 %v11991
    %12196 = vmatpush1.bf16.msra.mxu0 %v11990
    %12197 = vmatprep.subr.bf16.mxu0 %v11995
    %12198 = vmatpush1.bf16.msra.mxu0 %v11994
    %12199 = vmatprep.mubr.bf16.mxu0 %v11464
    %12200 = vmatmul.mubr.bf16.gmra.mrb[0].mxu0 %v11463
    %v12201 = vpop.f32.mrb[0].mxu0
    %v12202 = vadd.f32 %v12161, %v12201
    %v12203 = vpop.f32.mrb[0].mxu0
    %v12204 = vadd.f32 %v12163, %v12203
    %v12205 = vpop.f32.mrb[0].mxu0
    %v12206 = vpop.f32.mrb[0].mxu0
    %12207 = vdwg.mxu0
    %12208 = vmatprep.subr.bf16.mxu0 %v11873
    %12209 = vmatpush1.bf16.msra.mxu0 %v11872
    %12210 = vmatprep.subr.bf16.mxu0 %v11877
    %12211 = vmatpush1.bf16.msra.mxu0 %v11876
    %12212 = vmatprep.subr.bf16.mxu0 %v11881
    %12213 = vmatpush1.bf16.msra.mxu0 %v11880
    %12214 = vmatprep.subr.bf16.mxu0 %v11885
    %12215 = vmatpush1.bf16.msra.mxu0 %v11884
    %12216 = vmatprep.subr.bf16.mxu0 %v11889
    %12217 = vmatpush1.bf16.msra.mxu0 %v11888
    %12218 = vmatprep.subr.bf16.mxu0 %v11893
    %12219 = vmatpush1.bf16.msra.mxu0 %v11892
    %12220 = vmatprep.subr.bf16.mxu0 %v11897
    %12221 = vmatpush1.bf16.msra.mxu0 %v11896
    %12222 = vmatprep.subr.bf16.mxu0 %v11901
    %12223 = vmatpush1.bf16.msra.mxu0 %v11900
    %12224 = vmatprep.subr.bf16.mxu0 %v11905
    %12225 = vmatpush1.bf16.msra.mxu0 %v11904
    %12226 = vmatprep.subr.bf16.mxu0 %v11909
    %12227 = vmatpush1.bf16.msra.mxu0 %v11908
    %12228 = vmatprep.subr.bf16.mxu0 %v11913
    %12229 = vmatpush1.bf16.msra.mxu0 %v11912
    %12230 = vmatprep.subr.bf16.mxu0 %v11917
    %12231 = vmatpush1.bf16.msra.mxu0 %v11916
    %12232 = vmatprep.subr.bf16.mxu0 %v11921
    %12233 = vmatpush1.bf16.msra.mxu0 %v11920
    %12234 = vmatprep.subr.bf16.mxu0 %v11925
    %12235 = vmatpush1.bf16.msra.mxu0 %v11924
    %12236 = vmatprep.subr.bf16.mxu0 %v11929
    %12237 = vmatpush1.bf16.msra.mxu0 %v11928
    %12238 = vmatprep.subr.bf16.mxu0 %v11933
    %12239 = vmatpush1.bf16.msra.mxu0 %v11932
    %12240 = vmatprep.mubr.bf16.mxu0 %v11462
    %12241 = vmatmul.mubr.bf16.gmra.mrb[0].mxu0 %v11461
    %v12242 = vpop.f32.mrb[0].mxu0
    %v12243 = vadd.f32 %v11477, %v12242
    %v12244 = vpop.f32.mrb[0].mxu0
    %v12245 = vadd.f32 %v11481, %v12244
    %v12246 = vpop.f32.mrb[0].mxu0
    %v12247 = vpop.f32.mrb[0].mxu0
    %12248 = vdwg.mxu0
    %12249 = vmatprep.subr.bf16.mxu0 %v11937
    %12250 = vmatpush1.bf16.msra.mxu0 %v11936
    %12251 = vmatprep.subr.bf16.mxu0 %v11941
    %12252 = vmatpush1.bf16.msra.mxu0 %v11940
    %12253 = vmatprep.subr.bf16.mxu0 %v11945
    %12254 = vmatpush1.bf16.msra.mxu0 %v11944
    %12255 = vmatprep.subr.bf16.mxu0 %v11949
    %12256 = vmatpush1.bf16.msra.mxu0 %v11948
    %12257 = vmatprep.subr.bf16.mxu0 %v11953
    %12258 = vmatpush1.bf16.msra.mxu0 %v11952
    %12259 = vmatprep.subr.bf16.mxu0 %v11957
    %12260 = vmatpush1.bf16.msra.mxu0 %v11956
    %12261 = vmatprep.subr.bf16.mxu0 %v11961
    %12262 = vmatpush1.bf16.msra.mxu0 %v11960
    %12263 = vmatprep.subr.bf16.mxu0 %v11965
    %12264 = vmatpush1.bf16.msra.mxu0 %v11964
    %12265 = vmatprep.subr.bf16.mxu0 %v11969
    %12266 = vmatpush1.bf16.msra.mxu0 %v11968
    %12267 = vmatprep.subr.bf16.mxu0 %v11973
    %12268 = vmatpush1.bf16.msra.mxu0 %v11972
    %12269 = vmatprep.subr.bf16.mxu0 %v11977
    %12270 = vmatpush1.bf16.msra.mxu0 %v11976
    %12271 = vmatprep.subr.bf16.mxu0 %v11981
    %12272 = vmatpush1.bf16.msra.mxu0 %v11980
    %12273 = vmatprep.subr.bf16.mxu0 %v11985
    %12274 = vmatpush1.bf16.msra.mxu0 %v11984
    %12275 = vmatprep.subr.bf16.mxu0 %v11989
    %12276 = vmatpush1.bf16.msra.mxu0 %v11988
    %12277 = vmatprep.subr.bf16.mxu0 %v11993
    %12278 = vmatpush1.bf16.msra.mxu0 %v11992
    %12279 = vmatprep.subr.bf16.mxu0 %v11997
    %12280 = vmatpush1.bf16.msra.mxu0 %v11996
    %12281 = vmatprep.mubr.bf16.mxu0 %v11464
    %12282 = vmatmul.mubr.bf16.gmra.mrb[0].mxu0 %v11463
    %v12283 = vpop.f32.mrb[0].mxu0
    %v12284 = vadd.f32 %v12243, %v12283
    %v12285 = vpop.f32.mrb[0].mxu0
    %v12286 = vadd.f32 %v12245, %v12285
    %v12287 = vpop.f32.mrb[0].mxu0
    %v12288 = vpop.f32.mrb[0].mxu0
    %12289 = vdwg.mxu0
    %v12290 = vmax.f32 %v12202, 0.0
    %v12291 = vmax.f32 %v12204, 0.0
    %v12292 = vmax.f32 %v12284, 0.0
    %v12293 = vmax.f32 %v12286, 0.0
    %v12294 = vpack.c.bf16 %v12290, %v12290
    %v12295 = vpack.c.bf16 %v12291, %v12291
    %v12296 = vpack.c.bf16 %v12292, %v12292
    %v12297 = vpack.c.bf16 %v12293, %v12293
    %v12299 = vlaneseq
    %v12300 = vshrl.u32 %v12299, 7
    %v12301 = vsub.s32 0, %v12300
    %v12302 = vrot.slane %v10602, %v12301
    %v12368 = vunpack.c.l.b16 %v10538
    %v12369 = vunpack.c.l.b16 %v10539
    %v12370 = vunpack.c.l.b16 %v10540
    %v12371 = vunpack.c.l.b16 %v10541
    %v12372 = vunpack.c.l.b16 %v10542
    %v12373 = vunpack.c.l.b16 %v10543
    %v12374 = vunpack.c.l.b16 %v10544
    %v12375 = vunpack.c.l.b16 %v10545
    %v12376 = vunpack.c.l.b16 %v10546
    %v12377 = vunpack.c.l.b16 %v10547
    %v12378 = vunpack.c.l.b16 %v10548
    %v12379 = vunpack.c.l.b16 %v10549
    %v12380 = vunpack.c.l.b16 %v10550
    %v12381 = vunpack.c.l.b16 %v10551
    %v12382 = vunpack.c.l.b16 %v10552
    %v12383 = vunpack.c.l.b16 %v10553
    %v12384 = vunpack.c.l.b16 %v10554
    %v12385 = vunpack.c.l.b16 %v10555
    %v12386 = vunpack.c.l.b16 %v10556
    %v12387 = vunpack.c.l.b16 %v10557
    %v12388 = vunpack.c.l.b16 %v10558
    %v12389 = vunpack.c.l.b16 %v10559
    %v12390 = vunpack.c.l.b16 %v10560
    %v12391 = vunpack.c.l.b16 %v10561
    %v12392 = vunpack.c.l.b16 %v10562
    %v12393 = vunpack.c.l.b16 %v10563
    %v12394 = vunpack.c.l.b16 %v10564
    %v12395 = vunpack.c.l.b16 %v10565
    %v12396 = vunpack.c.l.b16 %v10566
    %v12397 = vunpack.c.l.b16 %v10567
    %v12398 = vunpack.c.l.b16 %v10568
    %v12399 = vunpack.c.l.b16 %v10569
    %v12400 = vunpack.c.l.b16 %v10570
    %v12401 = vunpack.c.l.b16 %v10571
    %v12402 = vunpack.c.l.b16 %v10572
    %v12403 = vunpack.c.l.b16 %v10573
    %v12404 = vunpack.c.l.b16 %v10574
    %v12405 = vunpack.c.l.b16 %v10575
    %v12406 = vunpack.c.l.b16 %v10576
    %v12407 = vunpack.c.l.b16 %v10577
    %v12408 = vunpack.c.l.b16 %v10578
    %v12409 = vunpack.c.l.b16 %v10579
    %v12410 = vunpack.c.l.b16 %v10580
    %v12411 = vunpack.c.l.b16 %v10581
    %v12412 = vunpack.c.l.b16 %v10582
    %v12413 = vunpack.c.l.b16 %v10583
    %v12414 = vunpack.c.l.b16 %v10584
    %v12415 = vunpack.c.l.b16 %v10585
    %v12416 = vunpack.c.l.b16 %v10586
    %v12417 = vunpack.c.l.b16 %v10587
    %v12418 = vunpack.c.l.b16 %v10588
    %v12419 = vunpack.c.l.b16 %v10589
    %v12420 = vunpack.c.l.b16 %v10590
    %v12421 = vunpack.c.l.b16 %v10591
    %v12422 = vunpack.c.l.b16 %v10592
    %v12423 = vunpack.c.l.b16 %v10593
    %v12424 = vunpack.c.l.b16 %v10594
    %v12425 = vunpack.c.l.b16 %v10595
    %v12426 = vunpack.c.l.b16 %v10596
    %v12427 = vunpack.c.l.b16 %v10597
    %v12428 = vunpack.c.l.b16 %v10598
    %v12429 = vunpack.c.l.b16 %v10599
    %v12430 = vunpack.c.l.b16 %v10600
    %v12431 = vunpack.c.l.b16 %v10601
    %v12432 = vpack.c.b16 %v12369, %v12368
    %v12433 = vpack.c.b16 %v12371, %v12370
    %v12434 = vpack.c.b16 %v12373, %v12372
    %v12435 = vpack.c.b16 %v12375, %v12374
    %v12436 = vpack.c.b16 %v12377, %v12376
    %v12437 = vpack.c.b16 %v12379, %v12378
    %v12438 = vpack.c.b16 %v12381, %v12380
    %v12439 = vpack.c.b16 %v12383, %v12382
    %v12440 = vpack.c.b16 %v12385, %v12384
    %v12441 = vpack.c.b16 %v12387, %v12386
    %v12442 = vpack.c.b16 %v12389, %v12388
    %v12443 = vpack.c.b16 %v12391, %v12390
    %v12444 = vpack.c.b16 %v12393, %v12392
    %v12445 = vpack.c.b16 %v12395, %v12394
    %v12446 = vpack.c.b16 %v12397, %v12396
    %v12447 = vpack.c.b16 %v12399, %v12398
    %v12448 = vpack.c.b16 %v12401, %v12400
    %v12449 = vpack.c.b16 %v12403, %v12402
    %v12450 = vpack.c.b16 %v12405, %v12404
    %v12451 = vpack.c.b16 %v12407, %v12406
    %v12452 = vpack.c.b16 %v12409, %v12408
    %v12453 = vpack.c.b16 %v12411, %v12410
    %v12454 = vpack.c.b16 %v12413, %v12412
    %v12455 = vpack.c.b16 %v12415, %v12414
    %v12456 = vpack.c.b16 %v12417, %v12416
    %v12457 = vpack.c.b16 %v12419, %v12418
    %v12458 = vpack.c.b16 %v12421, %v12420
    %v12459 = vpack.c.b16 %v12423, %v12422
    %v12460 = vpack.c.b16 %v12425, %v12424
    %v12461 = vpack.c.b16 %v12427, %v12426
    %v12462 = vpack.c.b16 %v12429, %v12428
    %v12463 = vpack.c.b16 %v12431, %v12430
    %12496 = vmatprep.subr.bf16.mxu0 0
    %12497 = vmatpush1.bf16.msra.mxu0 %v12432
    %12498 = vmatprep.subr.bf16.mxu0 0
    %12499 = vmatpush1.bf16.msra.mxu0 %v12433
    %12500 = vmatprep.subr.bf16.mxu0 0
    %12501 = vmatpush1.bf16.msra.mxu0 %v12434
    %12502 = vmatprep.subr.bf16.mxu0 0
    %12503 = vmatpush1.bf16.msra.mxu0 %v12435
    %12504 = vmatprep.subr.bf16.mxu0 0
    %12505 = vmatpush1.bf16.msra.mxu0 %v12436
    %12506 = vmatprep.subr.bf16.mxu0 0
    %12507 = vmatpush1.bf16.msra.mxu0 %v12437
    %12508 = vmatprep.subr.bf16.mxu0 0
    %12509 = vmatpush1.bf16.msra.mxu0 %v12438
    %12510 = vmatprep.subr.bf16.mxu0 0
    %12511 = vmatpush1.bf16.msra.mxu0 %v12439
    %12512 = vmatprep.subr.bf16.mxu0 0
    %12513 = vmatpush1.bf16.msra.mxu0 %v12440
    %12514 = vmatprep.subr.bf16.mxu0 0
    %12515 = vmatpush1.bf16.msra.mxu0 %v12441
    %12516 = vmatprep.subr.bf16.mxu0 0
    %12517 = vmatpush1.bf16.msra.mxu0 %v12442
    %12518 = vmatprep.subr.bf16.mxu0 0
    %12519 = vmatpush1.bf16.msra.mxu0 %v12443
    %12520 = vmatprep.subr.bf16.mxu0 0
    %12521 = vmatpush1.bf16.msra.mxu0 %v12444
    %12522 = vmatprep.subr.bf16.mxu0 0
    %12523 = vmatpush1.bf16.msra.mxu0 %v12445
    %12524 = vmatprep.subr.bf16.mxu0 0
    %12525 = vmatpush1.bf16.msra.mxu0 %v12446
    %12526 = vmatprep.subr.bf16.mxu0 0
    %12527 = vmatpush1.bf16.msra.mxu0 %v12447
    %12528 = vmatprep.mubr.bf16.mxu0 %v12295
    %12529 = vmatmul.mubr.bf16.gmra.mrb[0].mxu0 %v12294
    %v12530 = vpop.f32.mrb[0].mxu0
    %v12531 = vadd.f32 %v12302, %v12530
    %v12532 = vpop.f32.mrb[0].mxu0
    %v12533 = vpop.f32.mrb[0].mxu0
    %v12534 = vpop.f32.mrb[0].mxu0
    %12535 = vdwg.mxu0
    %12536 = vmatprep.subr.bf16.mxu0 0
    %12537 = vmatpush1.bf16.msra.mxu0 %v12448
    %12538 = vmatprep.subr.bf16.mxu0 0
    %12539 = vmatpush1.bf16.msra.mxu0 %v12449
    %12540 = vmatprep.subr.bf16.mxu0 0
    %12541 = vmatpush1.bf16.msra.mxu0 %v12450
    %12542 = vmatprep.subr.bf16.mxu0 0
    %12543 = vmatpush1.bf16.msra.mxu0 %v12451
    %12544 = vmatprep.subr.bf16.mxu0 0
    %12545 = vmatpush1.bf16.msra.mxu0 %v12452
    %12546 = vmatprep.subr.bf16.mxu0 0
    %12547 = vmatpush1.bf16.msra.mxu0 %v12453
    %12548 = vmatprep.subr.bf16.mxu0 0
    %12549 = vmatpush1.bf16.msra.mxu0 %v12454
    %12550 = vmatprep.subr.bf16.mxu0 0
    %12551 = vmatpush1.bf16.msra.mxu0 %v12455
    %12552 = vmatprep.subr.bf16.mxu0 0
    %12553 = vmatpush1.bf16.msra.mxu0 %v12456
    %12554 = vmatprep.subr.bf16.mxu0 0
    %12555 = vmatpush1.bf16.msra.mxu0 %v12457
    %12556 = vmatprep.subr.bf16.mxu0 0
    %12557 = vmatpush1.bf16.msra.mxu0 %v12458
    %12558 = vmatprep.subr.bf16.mxu0 0
    %12559 = vmatpush1.bf16.msra.mxu0 %v12459
    %12560 = vmatprep.subr.bf16.mxu0 0
    %12561 = vmatpush1.bf16.msra.mxu0 %v12460
    %12562 = vmatprep.subr.bf16.mxu0 0
    %12563 = vmatpush1.bf16.msra.mxu0 %v12461
    %12564 = vmatprep.subr.bf16.mxu0 0
    %12565 = vmatpush1.bf16.msra.mxu0 %v12462
    %12566 = vmatprep.subr.bf16.mxu0 0
    %12567 = vmatpush1.bf16.msra.mxu0 %v12463
    %12568 = vmatprep.mubr.bf16.mxu0 %v12297
    %12569 = vmatmul.mubr.bf16.gmra.mrb[0].mxu0 %v12296
    %v12570 = vpop.f32.mrb[0].mxu0
    %v12571 = vadd.f32 %v12531, %v12570
    %v12572 = vpop.f32.mrb[0].mxu0
    %v12573 = vpop.f32.mrb[0].mxu0
    %v12574 = vpop.f32.mrb[0].mxu0
    %12575 = vdwg.mxu0
    %12576 = vst [vmem:[#allocation25] sm:$0x3] %v12571
    // Predicated region
    $region102: #{vgg_server_forward.1} parent=1 // pred_check
      _
    $region103: #{vgg_server_forward.1} parent=1 // pred_check_branch
      %12578 = sbr.rel (0) target = $region105
    $region104: #{vgg_server_forward.1} parent=1 // pred_region
      %s12580 = ssub.s32 32, 32
      %12581 = vsyncadd [#allocation7], %s12580
      %s12583 = sshll.u32 [#allocation25], 4
      %s12584 = int_to_ptr.vmem [resolvable:$true] %s12583
      %12586 = dma.vmem_to_hbm [thread:$0]  %s12584, 32, %s13, [#allocation7]
    $region105: #{vgg_server_forward.1} parent=1 // pred_fallthru
      _
    // Predicated region
    $region106: #{vgg_server_forward.1} parent=1 // pred_check
      _
    $region107: #{vgg_server_forward.1} parent=1 // pred_check_branch
      %12588 = sbr.rel (0) target = $region109
    $region108: #{vgg_server_forward.1} parent=1 // pred_region
      %12589 = dma.done [#allocation7], 32
    $region109: #{vgg_server_forward.1} parent=1 // pred_fallthru
      _
    %12590 = vsyncpa [#allocation6], 1
    %12591 = vsyncpa [#allocation9], 1
    %12592 = vsyncpa [#allocation12], 1
    %12593 = vsyncpa [#allocation15], 1
    %12594 = vsyncpa [#allocation18], 1
    %12595 = vsyncpa [#allocation21], 1
    %12596 = vsyncpa [#allocation24], 1
    %12597 = vsyncpa [#allocation7], 1

</llo_original>
